<compile_context>
chip_gen: v6e
topology: v6e:2x2x1
jax: 0.10.0
libtpu: 0.0.40
codegen_flags: <defaults>
</compile_context>

<pallas_src>
import functools

import jax
import jax.numpy as jnp
import numpy as np
from jax.experimental import pallas as pl
from jax.experimental.pallas import tpu as pltpu

EPS = 1e-5


def _residual_kernel(use_1x1conv, N, H, W, Cin, Cout, mxu_dtype, *refs):
    if use_1x1conv:
        (x_ref, mtop_ref, mbot_ref,
         w1_ref, g1_ref, be1_ref,
         w2_ref, g2_ref, be2_ref,
         w3_ref, b3_ref, out_ref) = refs
    else:
        (x_ref, mtop_ref, mbot_ref,
         w1_ref, g1_ref, be1_ref,
         w2_ref, g2_ref, be2_ref, out_ref) = refs

    NH = N * H
    Lin, Lout = W * Cin, W * Cout
    sh_in = Cin.bit_length() - 1            # log2(Cin)  (power-of-two asserted on host)
    sh_out = Cout.bit_length() - 1          # log2(Cout)
    inv_cnt = 1.0 / float(N * H * W)
    f32 = jnp.float32

    # ---- in-kernel constants (iota-built; nothing W-inflated is DMA'd from HBM) ----------
    def rep_rows(L, C):
        # (L, C) 0/1 matrix, [i, c] = 1 iff i % C == c:  lane-group -> per-channel reducer.
        i = jax.lax.broadcasted_iota(jnp.int32, (L, C), 0)
        c = jax.lax.broadcasted_iota(jnp.int32, (L, C), 1)
        return jnp.where(jnp.bitwise_and(i, C - 1) == c, 1.0, 0.0).astype(f32)

    def rep_cols(C, L):
        # (C, L) 0/1 matrix, [c, j] = 1 iff j % C == c:  per-channel -> lane-group broadcaster.
        c = jax.lax.broadcasted_iota(jnp.int32, (C, L), 0)
        j = jax.lax.broadcasted_iota(jnp.int32, (C, L), 1)
        return jnp.where(jnp.bitwise_and(j, C - 1) == c, 1.0, 0.0).astype(f32)

    rep_r_in = rep_rows(Lin, Cin)           # (Lin, Cin)
    rep_r_out = rep_rows(Lout, Cout)        # (Lout, Cout)  (also the BN stats reducer)
    rep_c_out = rep_cols(Cout, Lout)        # (Cout, Lout)  (BN / bias broadcaster)

    mtop = mtop_ref[...]                    # (NH, 1) f32, 0 on rows with h == 0
    mbot = mbot_ref[...]                    # (NH, 1) f32, 0 on rows with h == H - 1

    def band_weights(w_ref, rrep, sh_i):
        """Raw (9, Ci, Cout) taps -> three per-dh banded (W*Ci, W*Cout) matmul operands.

        band_dh[w_i*Ci + ci, w_o*Cout + co] = k[dh, w_i - w_o + 1, ci, co] for
        |w_i - w_o| <= 1 (else 0): the three dw taps and the SAME zero-padding of the
        image columns live in the band structure.  Built from iota masks plus two tiny
        tiling dots per tap — only ~2.3 KiB of raw weight is DMA'd (vs ~192 KiB of
        host-prebuilt banded weight previously).
        """
        L_i = rrep.shape[0]
        ri = jax.lax.broadcasted_iota(jnp.int32, (L_i, Lout), 0)
        cj = jax.lax.broadcasted_iota(jnp.int32, (L_i, Lout), 1)
        dsel = jnp.right_shift(ri, sh_i) - jnp.right_shift(cj, sh_out) + 1   # dw tap index
        bands = []
        for dh in range(3):
            band = jnp.zeros((L_i, Lout), f32)
            for dw in range(3):
                tap = w_ref[3 * dh + dw]                                   # (Ci, Cout) raw
                tiled = jnp.dot(jnp.dot(rrep, tap, preferred_element_type=f32),
                                rep_c_out, preferred_element_type=f32)     # k[.., i%Ci, j%Co]
                band = band + jnp.where(dsel == dw, tiled, 0.0)
            bands.append(band.astype(mxu_dtype))
        return bands

    def conv3x3(a, bands):
        """3x3 SAME conv on the lane-dense (NH, L) slab: three dots, one per dh band.

        Row (dh) shifts are XLU rolls of the whole slab + a boundary mask (the roll wraps
        across image/batch boundaries exactly on the rows the mask zeroes), so there is no
        3x tap-slab materialization and no concatenate copies on the load/store slots.
        """
        a_mid = a.astype(mxu_dtype)
        a_up = (pltpu.roll(a, shift=1, axis=0) * mtop).astype(mxu_dtype)        # x[h-1]
        a_dn = (pltpu.roll(a, shift=NH - 1, axis=0) * mbot).astype(mxu_dtype)   # x[h+1]
        y = jnp.dot(a_up, bands[0], preferred_element_type=f32)
        y = y + jnp.dot(a_mid, bands[1], preferred_element_type=f32)
        y = y + jnp.dot(a_dn, bands[2], preferred_element_type=f32)
        return y

    def batchnorm(y, g_ref, be_ref):
        """Train-mode BatchNorm2d (biased batch variance), single pass, strictly f32.

        Both moments are packed into one (2, Lout) x (Lout, Cout) dot; the per-channel
        scale/shift go back to lanes with one (2, Cout) x (Cout, Lout) dot.
        """
        s1 = jnp.sum(y, axis=0, keepdims=True)                        # (1, Lout)
        s2 = jnp.sum(y * y, axis=0, keepdims=True)                    # (1, Lout)
        stats = jnp.dot(jnp.concatenate([s1, s2], axis=0), rep_r_out,
                        preferred_element_type=f32) * inv_cnt         # (2, Cout): mean, E[x^2]
        mean_c = stats[0:1, :]
        var_c = jnp.maximum(stats[1:2, :] - mean_c * mean_c, 0.0)     # clamped E[x^2]-E[x]^2
        scale_c = g_ref[...] * jax.lax.rsqrt(var_c + EPS)             # (1, Cout)
        shift_c = be_ref[...] - mean_c * scale_c
        ss = jnp.dot(jnp.concatenate([scale_c, shift_c], axis=0), rep_c_out,
                     preferred_element_type=f32)                      # (2, Lout)
        return y * ss[0:1, :] + ss[1:2, :]

    x = x_ref[...]                                                    # (NH, Lin) f32

    # Y = relu(bn1(conv1(X)))   (conv bias omitted: it cancels exactly under train-mode BN)
    y = conv3x3(x, band_weights(w1_ref, rep_r_in, sh_in))
    y = jnp.maximum(batchnorm(y, g1_ref, be1_ref), 0.0)

    # Y = bn2(conv2(Y))
    y = conv3x3(y, band_weights(w2_ref, rep_r_out, sh_out))
    y = batchnorm(y, g2_ref, be2_ref)

    # skip connection
    if use_1x1conv:
        ri = jax.lax.broadcasted_iota(jnp.int32, (Lin, Lout), 0)
        cj = jax.lax.broadcasted_iota(jnp.int32, (Lin, Lout), 1)
        on_diag = jnp.right_shift(ri, sh_in) == jnp.right_shift(cj, sh_out)
        bw3 = jnp.where(
            on_diag,
            jnp.dot(jnp.dot(rep_r_in, w3_ref[...], preferred_element_type=f32),
                    rep_c_out, preferred_element_type=f32),
            0.0).astype(mxu_dtype)                                    # block-diag 1x1 conv
        b3 = jnp.dot(b3_ref[...], rep_c_out, preferred_element_type=f32)   # (1, Lout)
        res = jnp.dot(x.astype(mxu_dtype), bw3, preferred_element_type=f32) + b3
    else:
        res = x                                                       # identity, Cin == Cout

    out_ref[...] = jnp.maximum(y + res, 0.0)                          # lane-dense unmasked store


def residual_forward(x_nhwc, params, use_1x1conv, mxu_dtype=jnp.bfloat16):
    """Residual-block forward on an NHWC activation.

    The kernel works on the lane-dense (N*H, W*C) view, a free row-major reshape of NHWC
    (no transpose, no extra HBM relayout): keep activations in this layout end-to-end.
    """
    N, H, W, Cin = x_nhwc.shape
    Cout = params["w1"].shape[-1]
    assert (Cin & (Cin - 1)) == 0 and (Cout & (Cout - 1)) == 0, "power-of-two channels"
    if not use_1x1conv:
        assert Cin == Cout, "identity skip requires Cin == Cout"
    NH = N * H
    Lin, Lout = W * Cin, W * Cout

    x2d = x_nhwc.astype(jnp.float32).reshape(NH, Lin)

    # Row-boundary masks for the in-kernel dh shifts (zero at h==0 / h==H-1), 4*NH bytes each.
    hh = np.arange(NH) % H
    mtop = jnp.asarray((hh != 0).astype(np.float32).reshape(NH, 1))
    mbot = jnp.asarray((hh != H - 1).astype(np.float32).reshape(NH, 1))

    def cvec(v):
        return v.reshape(1, Cout).astype(jnp.float32)

    # NOTE: conv biases b1/b2 are NOT shipped: a per-channel conv bias cancels exactly in
    # train-mode BatchNorm (batch-mean subtraction), so honoring them costs nothing.
    inputs = [
        x2d, mtop, mbot,
        params["w1"].astype(jnp.float32).reshape(9, Cin, Cout), cvec(params["g1"]), cvec(params["be1"]),
        params["w2"].astype(jnp.float32).reshape(9, Cout, Cout), cvec(params["g2"]), cvec(params["be2"]),
    ]
    if use_1x1conv:
        inputs += [params["w3"].astype(jnp.float32), cvec(params["b3"])]

    kernel = functools.partial(_residual_kernel, use_1x1conv, N, H, W, Cin, Cout, mxu_dtype)
    vmem = pl.BlockSpec(memory_space=pltpu.MemorySpace.VMEM)

    out2d = pl.pallas_call(
        kernel,
        out_shape=jax.ShapeDtypeStruct((NH, Lout), jnp.float32),
        in_specs=[vmem] * len(inputs),
        out_specs=vmem,
        # Usage here is < 1 MiB; re-derive with double-buffering accounting once the
        # row-band grid for real shapes exists (v7x physical VMEM is 64 MiB).
        compiler_params=pltpu.CompilerParams(vmem_limit_bytes=16 * 1024 * 1024),
    )(*inputs)
    return out2d.reshape(N, H, W, Cout)


def init_params(key, Cin, Cout, use_1x1conv):
    ks = jax.random.split(key, 10)
    p = {
        "w1": jax.random.normal(ks[0], (3, 3, Cin, Cout), jnp.float32) * 0.1,
        "b1": jax.random.normal(ks[1], (Cout,), jnp.float32) * 0.1,
        "w2": jax.random.normal(ks[2], (3, 3, Cout, Cout), jnp.float32) * 0.1,
        "b2": jax.random.normal(ks[3], (Cout,), jnp.float32) * 0.1,
        "g1": 1.0 + 0.1 * jax.random.normal(ks[4], (Cout,), jnp.float32),
        "be1": 0.1 * jax.random.normal(ks[5], (Cout,), jnp.float32),
        "g2": 1.0 + 0.1 * jax.random.normal(ks[6], (Cout,), jnp.float32),
        "be2": 0.1 * jax.random.normal(ks[7], (Cout,), jnp.float32),
    }
    if use_1x1conv:
        p["w3"] = jax.random.normal(ks[8], (Cin, Cout), jnp.float32) * 0.1
        p["b3"] = jax.random.normal(ks[9], (Cout,), jnp.float32) * 0.1
    return p


def reference_forward(x_nhwc, params, use_1x1conv):
    # pure-JAX reference (lax conv, two-pass BN, with conv biases), for verification only
    x = x_nhwc.astype(jnp.float32)

    def conv(z, w, b):
        y = jax.lax.conv_general_dilated(
            z, w, window_strides=(1, 1),
            padding="SAME" if w.shape[0] == 3 else "VALID",
            dimension_numbers=("NHWC", "HWIO", "NHWC"))
        return y + b

    def bn(y, g, be):
        mean = jnp.mean(y, axis=(0, 1, 2), keepdims=True)
        var = jnp.mean((y - mean) ** 2, axis=(0, 1, 2), keepdims=True)
        return (y - mean) * jax.lax.rsqrt(var + EPS) * g + be

    y = jax.nn.relu(bn(conv(x, params["w1"], params["b1"]), params["g1"], params["be1"]))
    y = bn(conv(y, params["w2"], params["b2"]), params["g2"], params["be2"])
    if use_1x1conv:
        w3 = params["w3"].reshape(1, 1, *params["w3"].shape)
        x = conv(x, w3, params["b3"])
    return jax.nn.relu(y + x)


if __name__ == "__main__":
    key = jax.random.PRNGKey(0)
    k_id, k_proj, kp1, kp2 = jax.random.split(key, 4)

    # Case 1: identity skip (Cin == Cout).  NHWC input, lane-dense layout end-to-end.
    N, H, W, C = 2, 16, 16, 8
    x1 = jax.random.normal(k_id, (N, H, W, C), jnp.float32)
    p1 = init_params(kp1, C, C, use_1x1conv=False)
    ref1 = jax.block_until_ready(reference_forward(x1, p1, use_1x1conv=False))

    # (a) f32 MXU operands: tight check of the in-kernel band build / roll shifts / BN.
    out1_f32 = jax.block_until_ready(residual_forward(x1, p1, False, mxu_dtype=jnp.float32))
    assert out1_f32.shape == (N, H, W, C)
    assert np.allclose(np.asarray(out1_f32), np.asarray(ref1), atol=1e-3, rtol=1e-3)

    # (b) bf16 MXU operands (full-rate MXU path on v5e/v6e/v7x), f32 accumulation / BN / ReLU.
    #     Typical |err| ~ 3e-3 vs the f32 reference; bound leaves headroom for the tail.
    out1_bf16 = jax.block_until_ready(residual_forward(x1, p1, False, mxu_dtype=jnp.bfloat16))
    assert np.allclose(np.asarray(out1_bf16), np.asarray(ref1), atol=3e-2, rtol=3e-2)

    # Case 2: 1x1-conv projection on the skip path (Cin != Cout), bf16 MXU operands.
    Cin, Cout = 4, 8
    x2 = jax.random.normal(k_proj, (N, H, W, Cin), jnp.float32)
    p2 = init_params(kp2, Cin, Cout, use_1x1conv=True)
    ref2 = jax.block_until_ready(reference_forward(x2, p2, use_1x1conv=True))
    out2 = jax.block_until_ready(residual_forward(x2, p2, True, mxu_dtype=jnp.bfloat16))
    assert out2.shape == (N, H, W, Cout)
    assert np.allclose(np.asarray(out2), np.asarray(ref2), atol=3e-2, rtol=3e-2)

    print("KERNEL_OK")
</pallas_src>

<mosaic_0001>
module attributes {stable_mosaic.version = 11 : i64} {
  func.func @_residual_kernel(%arg0: memref<32x128xf32, #tpu.memory_space<vmem>>, %arg1: memref<32x1xf32, #tpu.memory_space<vmem>>, %arg2: memref<32x1xf32, #tpu.memory_space<vmem>>, %arg3: memref<9x8x8xf32, #tpu.memory_space<vmem>>, %arg4: memref<1x8xf32, #tpu.memory_space<vmem>>, %arg5: memref<1x8xf32, #tpu.memory_space<vmem>>, %arg6: memref<9x8x8xf32, #tpu.memory_space<vmem>>, %arg7: memref<1x8xf32, #tpu.memory_space<vmem>>, %arg8: memref<1x8xf32, #tpu.memory_space<vmem>>, %arg9: memref<32x128xf32, #tpu.memory_space<vmem>>) attributes {dimension_semantics = [], scalar_prefetch = 0 : i64, scratch_operands = 0 : i64, tpu.core_type = #tpu.core_type<tc>} {
    %0 = tpu.iota {dimensions = array<i32: 0>} : vector<128x8xi32>
    %1 = tpu.iota {dimensions = array<i32: 1>} : vector<128x8xi32>
    %c7_i32 = arith.constant 7 : i32
    %2 = vector.broadcast %c7_i32 : i32 to vector<128x8xi32>
    %3 = arith.andi %0, %2 : vector<128x8xi32>
    %4 = arith.cmpi eq, %3, %1 : vector<128x8xi32>
    %cst = arith.constant 1.000000e+00 : f32
    %cst_0 = arith.constant 0.000000e+00 : f32
    %5 = vector.broadcast %cst : f32 to vector<128x8xf32>
    %6 = vector.broadcast %cst_0 : f32 to vector<128x8xf32>
    %7 = arith.select %4, %5, %6 : vector<128x8xi1>, vector<128x8xf32>
    %8 = tpu.iota {dimensions = array<i32: 0>} : vector<128x8xi32>
    %9 = tpu.iota {dimensions = array<i32: 1>} : vector<128x8xi32>
    %c7_i32_1 = arith.constant 7 : i32
    %10 = vector.broadcast %c7_i32_1 : i32 to vector<128x8xi32>
    %11 = arith.andi %8, %10 : vector<128x8xi32>
    %12 = arith.cmpi eq, %11, %9 : vector<128x8xi32>
    %cst_2 = arith.constant 1.000000e+00 : f32
    %cst_3 = arith.constant 0.000000e+00 : f32
    %13 = vector.broadcast %cst_2 : f32 to vector<128x8xf32>
    %14 = vector.broadcast %cst_3 : f32 to vector<128x8xf32>
    %15 = arith.select %12, %13, %14 : vector<128x8xi1>, vector<128x8xf32>
    %16 = tpu.iota {dimensions = array<i32: 0>} : vector<8x128xi32>
    %17 = tpu.iota {dimensions = array<i32: 1>} : vector<8x128xi32>
    %c7_i32_4 = arith.constant 7 : i32
    %18 = vector.broadcast %c7_i32_4 : i32 to vector<8x128xi32>
    %19 = arith.andi %17, %18 : vector<8x128xi32>
    %20 = arith.cmpi eq, %19, %16 : vector<8x128xi32>
    %cst_5 = arith.constant 1.000000e+00 : f32
    %cst_6 = arith.constant 0.000000e+00 : f32
    %21 = vector.broadcast %cst_5 : f32 to vector<8x128xf32>
    %22 = vector.broadcast %cst_6 : f32 to vector<8x128xf32>
    %23 = arith.select %20, %21, %22 : vector<8x128xi1>, vector<8x128xf32>
    %c0 = arith.constant 0 : index
    %c0_7 = arith.constant 0 : index
    %24 = vector.load %arg1[%c0, %c0_7] : memref<32x1xf32, #tpu.memory_space<vmem>>, vector<32x1xf32>
    %c0_8 = arith.constant 0 : index
    %c0_9 = arith.constant 0 : index
    %25 = vector.load %arg2[%c0_8, %c0_9] : memref<32x1xf32, #tpu.memory_space<vmem>>, vector<32x1xf32>
    %c0_10 = arith.constant 0 : index
    %c0_11 = arith.constant 0 : index
    %26 = vector.load %arg0[%c0_10, %c0_11] : memref<32x128xf32, #tpu.memory_space<vmem>>, vector<32x128xf32>
    %27 = tpu.iota {dimensions = array<i32: 0>} : vector<128x128xi32>
    %28 = tpu.iota {dimensions = array<i32: 1>} : vector<128x128xi32>
    %c3_i32 = arith.constant 3 : i32
    %29 = vector.broadcast %c3_i32 : i32 to vector<128x128xi32>
    %30 = arith.shrsi %27, %29 : vector<128x128xi32>
    %c3_i32_12 = arith.constant 3 : i32
    %31 = vector.broadcast %c3_i32_12 : i32 to vector<128x128xi32>
    %32 = arith.shrsi %28, %31 : vector<128x128xi32>
    %33 = arith.subi %30, %32 : vector<128x128xi32>
    %c1_i32 = arith.constant 1 : i32
    %34 = vector.broadcast %c1_i32 : i32 to vector<128x128xi32>
    %35 = arith.addi %33, %34 : vector<128x128xi32>
    %cst_13 = arith.constant 0.000000e+00 : f32
    %36 = vector.broadcast %cst_13 : f32 to vector<128x128xf32>
    %c0_14 = arith.constant 0 : index
    %c0_15 = arith.constant 0 : index
    %c0_16 = arith.constant 0 : index
    %37 = vector.load %arg3[%c0_14, %c0_15, %c0_16] : memref<9x8x8xf32, #tpu.memory_space<vmem>>, vector<1x8x8xf32>
    %38 = vector.shape_cast %37 : vector<1x8x8xf32> to vector<8x8xf32>
    %cst_17 = arith.constant dense<0.000000e+00> : vector<128x8xf32>
    %39 = tpu.matmul %7, %38, %cst_17 {dimension_numbers = #tpu.dot_dimension_numbers<[1], [0], [0], [1], [0, 0, 1, 1], [], []>} : vector<128x8xf32>, vector<8x8xf32>, vector<128x8xf32> -> vector<128x8xf32>
    %cst_18 = arith.constant dense<0.000000e+00> : vector<128x128xf32>
    %40 = tpu.matmul %39, %23, %cst_18 {dimension_numbers = #tpu.dot_dimension_numbers<[1], [0], [0], [1], [0, 0, 1, 1], [], []>} : vector<128x8xf32>, vector<8x128xf32>, vector<128x128xf32> -> vector<128x128xf32>
    %c0_i32 = arith.constant 0 : i32
    %41 = vector.broadcast %c0_i32 : i32 to vector<128x128xi32>
    %42 = arith.cmpi eq, %35, %41 : vector<128x128xi32>
    %cst_19 = arith.constant 0.000000e+00 : f32
    %43 = vector.broadcast %cst_19 : f32 to vector<128x128xf32>
    %44 = arith.select %42, %40, %43 : vector<128x128xi1>, vector<128x128xf32>
    %45 = arith.addf %36, %44 : vector<128x128xf32>
    %c1 = arith.constant 1 : index
    %c0_20 = arith.constant 0 : index
    %c0_21 = arith.constant 0 : index
    %46 = vector.load %arg3[%c1, %c0_20, %c0_21] : memref<9x8x8xf32, #tpu.memory_space<vmem>>, vector<1x8x8xf32>
    %47 = vector.shape_cast %46 : vector<1x8x8xf32> to vector<8x8xf32>
    %cst_22 = arith.constant dense<0.000000e+00> : vector<128x8xf32>
    %48 = tpu.matmul %7, %47, %cst_22 {dimension_numbers = #tpu.dot_dimension_numbers<[1], [0], [0], [1], [0, 0, 1, 1], [], []>} : vector<128x8xf32>, vector<8x8xf32>, vector<128x8xf32> -> vector<128x8xf32>
    %cst_23 = arith.constant dense<0.000000e+00> : vector<128x128xf32>
    %49 = tpu.matmul %48, %23, %cst_23 {dimension_numbers = #tpu.dot_dimension_numbers<[1], [0], [0], [1], [0, 0, 1, 1], [], []>} : vector<128x8xf32>, vector<8x128xf32>, vector<128x128xf32> -> vector<128x128xf32>
    %c1_i32_24 = arith.constant 1 : i32
    %50 = vector.broadcast %c1_i32_24 : i32 to vector<128x128xi32>
    %51 = arith.cmpi eq, %35, %50 : vector<128x128xi32>
    %cst_25 = arith.constant 0.000000e+00 : f32
    %52 = vector.broadcast %cst_25 : f32 to vector<128x128xf32>
    %53 = arith.select %51, %49, %52 : vector<128x128xi1>, vector<128x128xf32>
    %54 = arith.addf %45, %53 : vector<128x128xf32>
    %c2 = arith.constant 2 : index
    %c0_26 = arith.constant 0 : index
    %c0_27 = arith.constant 0 : index
    %55 = vector.load %arg3[%c2, %c0_26, %c0_27] : memref<9x8x8xf32, #tpu.memory_space<vmem>>, vector<1x8x8xf32>
    %56 = vector.shape_cast %55 : vector<1x8x8xf32> to vector<8x8xf32>
    %cst_28 = arith.constant dense<0.000000e+00> : vector<128x8xf32>
    %57 = tpu.matmul %7, %56, %cst_28 {dimension_numbers = #tpu.dot_dimension_numbers<[1], [0], [0], [1], [0, 0, 1, 1], [], []>} : vector<128x8xf32>, vector<8x8xf32>, vector<128x8xf32> -> vector<128x8xf32>
    %cst_29 = arith.constant dense<0.000000e+00> : vector<128x128xf32>
    %58 = tpu.matmul %57, %23, %cst_29 {dimension_numbers = #tpu.dot_dimension_numbers<[1], [0], [0], [1], [0, 0, 1, 1], [], []>} : vector<128x8xf32>, vector<8x128xf32>, vector<128x128xf32> -> vector<128x128xf32>
    %c2_i32 = arith.constant 2 : i32
    %59 = vector.broadcast %c2_i32 : i32 to vector<128x128xi32>
    %60 = arith.cmpi eq, %35, %59 : vector<128x128xi32>
    %cst_30 = arith.constant 0.000000e+00 : f32
    %61 = vector.broadcast %cst_30 : f32 to vector<128x128xf32>
    %62 = arith.select %60, %58, %61 : vector<128x128xi1>, vector<128x128xf32>
    %63 = arith.addf %54, %62 : vector<128x128xf32>
    %cst_31 = arith.constant 0.000000e+00 : f32
    %64 = vector.broadcast %cst_31 : f32 to vector<128x128xf32>
    %c3 = arith.constant 3 : index
    %c0_32 = arith.constant 0 : index
    %c0_33 = arith.constant 0 : index
    %65 = vector.load %arg3[%c3, %c0_32, %c0_33] : memref<9x8x8xf32, #tpu.memory_space<vmem>>, vector<1x8x8xf32>
    %66 = vector.shape_cast %65 : vector<1x8x8xf32> to vector<8x8xf32>
    %cst_34 = arith.constant dense<0.000000e+00> : vector<128x8xf32>
    %67 = tpu.matmul %7, %66, %cst_34 {dimension_numbers = #tpu.dot_dimension_numbers<[1], [0], [0], [1], [0, 0, 1, 1], [], []>} : vector<128x8xf32>, vector<8x8xf32>, vector<128x8xf32> -> vector<128x8xf32>
    %cst_35 = arith.constant dense<0.000000e+00> : vector<128x128xf32>
    %68 = tpu.matmul %67, %23, %cst_35 {dimension_numbers = #tpu.dot_dimension_numbers<[1], [0], [0], [1], [0, 0, 1, 1], [], []>} : vector<128x8xf32>, vector<8x128xf32>, vector<128x128xf32> -> vector<128x128xf32>
    %c0_i32_36 = arith.constant 0 : i32
    %69 = vector.broadcast %c0_i32_36 : i32 to vector<128x128xi32>
    %70 = arith.cmpi eq, %35, %69 : vector<128x128xi32>
    %cst_37 = arith.constant 0.000000e+00 : f32
    %71 = vector.broadcast %cst_37 : f32 to vector<128x128xf32>
    %72 = arith.select %70, %68, %71 : vector<128x128xi1>, vector<128x128xf32>
    %73 = arith.addf %64, %72 : vector<128x128xf32>
    %c4 = arith.constant 4 : index
    %c0_38 = arith.constant 0 : index
    %c0_39 = arith.constant 0 : index
    %74 = vector.load %arg3[%c4, %c0_38, %c0_39] : memref<9x8x8xf32, #tpu.memory_space<vmem>>, vector<1x8x8xf32>
    %75 = vector.shape_cast %74 : vector<1x8x8xf32> to vector<8x8xf32>
    %cst_40 = arith.constant dense<0.000000e+00> : vector<128x8xf32>
    %76 = tpu.matmul %7, %75, %cst_40 {dimension_numbers = #tpu.dot_dimension_numbers<[1], [0], [0], [1], [0, 0, 1, 1], [], []>} : vector<128x8xf32>, vector<8x8xf32>, vector<128x8xf32> -> vector<128x8xf32>
    %cst_41 = arith.constant dense<0.000000e+00> : vector<128x128xf32>
    %77 = tpu.matmul %76, %23, %cst_41 {dimension_numbers = #tpu.dot_dimension_numbers<[1], [0], [0], [1], [0, 0, 1, 1], [], []>} : vector<128x8xf32>, vector<8x128xf32>, vector<128x128xf32> -> vector<128x128xf32>
    %c1_i32_42 = arith.constant 1 : i32
    %78 = vector.broadcast %c1_i32_42 : i32 to vector<128x128xi32>
    %79 = arith.cmpi eq, %35, %78 : vector<128x128xi32>
    %cst_43 = arith.constant 0.000000e+00 : f32
    %80 = vector.broadcast %cst_43 : f32 to vector<128x128xf32>
    %81 = arith.select %79, %77, %80 : vector<128x128xi1>, vector<128x128xf32>
    %82 = arith.addf %73, %81 : vector<128x128xf32>
    %c5 = arith.constant 5 : index
    %c0_44 = arith.constant 0 : index
    %c0_45 = arith.constant 0 : index
    %83 = vector.load %arg3[%c5, %c0_44, %c0_45] : memref<9x8x8xf32, #tpu.memory_space<vmem>>, vector<1x8x8xf32>
    %84 = vector.shape_cast %83 : vector<1x8x8xf32> to vector<8x8xf32>
    %cst_46 = arith.constant dense<0.000000e+00> : vector<128x8xf32>
    %85 = tpu.matmul %7, %84, %cst_46 {dimension_numbers = #tpu.dot_dimension_numbers<[1], [0], [0], [1], [0, 0, 1, 1], [], []>} : vector<128x8xf32>, vector<8x8xf32>, vector<128x8xf32> -> vector<128x8xf32>
    %cst_47 = arith.constant dense<0.000000e+00> : vector<128x128xf32>
    %86 = tpu.matmul %85, %23, %cst_47 {dimension_numbers = #tpu.dot_dimension_numbers<[1], [0], [0], [1], [0, 0, 1, 1], [], []>} : vector<128x8xf32>, vector<8x128xf32>, vector<128x128xf32> -> vector<128x128xf32>
    %c2_i32_48 = arith.constant 2 : i32
    %87 = vector.broadcast %c2_i32_48 : i32 to vector<128x128xi32>
    %88 = arith.cmpi eq, %35, %87 : vector<128x128xi32>
    %cst_49 = arith.constant 0.000000e+00 : f32
    %89 = vector.broadcast %cst_49 : f32 to vector<128x128xf32>
    %90 = arith.select %88, %86, %89 : vector<128x128xi1>, vector<128x128xf32>
    %91 = arith.addf %82, %90 : vector<128x128xf32>
    %cst_50 = arith.constant 0.000000e+00 : f32
    %92 = vector.broadcast %cst_50 : f32 to vector<128x128xf32>
    %c6 = arith.constant 6 : index
    %c0_51 = arith.constant 0 : index
    %c0_52 = arith.constant 0 : index
    %93 = vector.load %arg3[%c6, %c0_51, %c0_52] : memref<9x8x8xf32, #tpu.memory_space<vmem>>, vector<1x8x8xf32>
    %94 = vector.shape_cast %93 : vector<1x8x8xf32> to vector<8x8xf32>
    %cst_53 = arith.constant dense<0.000000e+00> : vector<128x8xf32>
    %95 = tpu.matmul %7, %94, %cst_53 {dimension_numbers = #tpu.dot_dimension_numbers<[1], [0], [0], [1], [0, 0, 1, 1], [], []>} : vector<128x8xf32>, vector<8x8xf32>, vector<128x8xf32> -> vector<128x8xf32>
    %cst_54 = arith.constant dense<0.000000e+00> : vector<128x128xf32>
    %96 = tpu.matmul %95, %23, %cst_54 {dimension_numbers = #tpu.dot_dimension_numbers<[1], [0], [0], [1], [0, 0, 1, 1], [], []>} : vector<128x8xf32>, vector<8x128xf32>, vector<128x128xf32> -> vector<128x128xf32>
    %c0_i32_55 = arith.constant 0 : i32
    %97 = vector.broadcast %c0_i32_55 : i32 to vector<128x128xi32>
    %98 = arith.cmpi eq, %35, %97 : vector<128x128xi32>
    %cst_56 = arith.constant 0.000000e+00 : f32
    %99 = vector.broadcast %cst_56 : f32 to vector<128x128xf32>
    %100 = arith.select %98, %96, %99 : vector<128x128xi1>, vector<128x128xf32>
    %101 = arith.addf %92, %100 : vector<128x128xf32>
    %c7 = arith.constant 7 : index
    %c0_57 = arith.constant 0 : index
    %c0_58 = arith.constant 0 : index
    %102 = vector.load %arg3[%c7, %c0_57, %c0_58] : memref<9x8x8xf32, #tpu.memory_space<vmem>>, vector<1x8x8xf32>
    %103 = vector.shape_cast %102 : vector<1x8x8xf32> to vector<8x8xf32>
    %cst_59 = arith.constant dense<0.000000e+00> : vector<128x8xf32>
    %104 = tpu.matmul %7, %103, %cst_59 {dimension_numbers = #tpu.dot_dimension_numbers<[1], [0], [0], [1], [0, 0, 1, 1], [], []>} : vector<128x8xf32>, vector<8x8xf32>, vector<128x8xf32> -> vector<128x8xf32>
    %cst_60 = arith.constant dense<0.000000e+00> : vector<128x128xf32>
    %105 = tpu.matmul %104, %23, %cst_60 {dimension_numbers = #tpu.dot_dimension_numbers<[1], [0], [0], [1], [0, 0, 1, 1], [], []>} : vector<128x8xf32>, vector<8x128xf32>, vector<128x128xf32> -> vector<128x128xf32>
    %c1_i32_61 = arith.constant 1 : i32
    %106 = vector.broadcast %c1_i32_61 : i32 to vector<128x128xi32>
    %107 = arith.cmpi eq, %35, %106 : vector<128x128xi32>
    %cst_62 = arith.constant 0.000000e+00 : f32
    %108 = vector.broadcast %cst_62 : f32 to vector<128x128xf32>
    %109 = arith.select %107, %105, %108 : vector<128x128xi1>, vector<128x128xf32>
    %110 = arith.addf %101, %109 : vector<128x128xf32>
    %c8 = arith.constant 8 : index
    %c0_63 = arith.constant 0 : index
    %c0_64 = arith.constant 0 : index
    %111 = vector.load %arg3[%c8, %c0_63, %c0_64] : memref<9x8x8xf32, #tpu.memory_space<vmem>>, vector<1x8x8xf32>
    %112 = vector.shape_cast %111 : vector<1x8x8xf32> to vector<8x8xf32>
    %cst_65 = arith.constant dense<0.000000e+00> : vector<128x8xf32>
    %113 = tpu.matmul %7, %112, %cst_65 {dimension_numbers = #tpu.dot_dimension_numbers<[1], [0], [0], [1], [0, 0, 1, 1], [], []>} : vector<128x8xf32>, vector<8x8xf32>, vector<128x8xf32> -> vector<128x8xf32>
    %cst_66 = arith.constant dense<0.000000e+00> : vector<128x128xf32>
    %114 = tpu.matmul %113, %23, %cst_66 {dimension_numbers = #tpu.dot_dimension_numbers<[1], [0], [0], [1], [0, 0, 1, 1], [], []>} : vector<128x8xf32>, vector<8x128xf32>, vector<128x128xf32> -> vector<128x128xf32>
    %c2_i32_67 = arith.constant 2 : i32
    %115 = vector.broadcast %c2_i32_67 : i32 to vector<128x128xi32>
    %116 = arith.cmpi eq, %35, %115 : vector<128x128xi32>
    %cst_68 = arith.constant 0.000000e+00 : f32
    %117 = vector.broadcast %cst_68 : f32 to vector<128x128xf32>
    %118 = arith.select %116, %114, %117 : vector<128x128xi1>, vector<128x128xf32>
    %119 = arith.addf %110, %118 : vector<128x128xf32>
    %c1_i32_69 = arith.constant 1 : i32
    %120 = tpu.dynamic_rotate %26 by %c1_i32_69 dim 0 : vector<32x128xf32>, i32 -> vector<32x128xf32>
    %121 = vector.broadcast %24 : vector<32x1xf32> to vector<32x128xf32>
    %122 = arith.mulf %120, %121 : vector<32x128xf32>
    %c31_i32 = arith.constant 31 : i32
    %123 = tpu.dynamic_rotate %26 by %c31_i32 dim 0 : vector<32x128xf32>, i32 -> vector<32x128xf32>
    %124 = vector.broadcast %25 : vector<32x1xf32> to vector<32x128xf32>
    %125 = arith.mulf %123, %124 : vector<32x128xf32>
    %cst_70 = arith.constant dense<0.000000e+00> : vector<32x128xf32>
    %126 = tpu.matmul %122, %63, %cst_70 {dimension_numbers = #tpu.dot_dimension_numbers<[1], [0], [0], [1], [0, 0, 1, 1], [], []>} : vector<32x128xf32>, vector<128x128xf32>, vector<32x128xf32> -> vector<32x128xf32>
    %cst_71 = arith.constant dense<0.000000e+00> : vector<32x128xf32>
    %127 = tpu.matmul %26, %91, %cst_71 {dimension_numbers = #tpu.dot_dimension_numbers<[1], [0], [0], [1], [0, 0, 1, 1], [], []>} : vector<32x128xf32>, vector<128x128xf32>, vector<32x128xf32> -> vector<32x128xf32>
    %128 = arith.addf %126, %127 : vector<32x128xf32>
    %cst_72 = arith.constant dense<0.000000e+00> : vector<32x128xf32>
    %129 = tpu.matmul %125, %119, %cst_72 {dimension_numbers = #tpu.dot_dimension_numbers<[1], [0], [0], [1], [0, 0, 1, 1], [], []>} : vector<32x128xf32>, vector<128x128xf32>, vector<32x128xf32> -> vector<32x128xf32>
    %130 = arith.addf %128, %129 : vector<32x128xf32>
    %cst_73 = arith.constant dense<0.000000e+00> : vector<128xf32>
    %131 = vector.multi_reduction <add>, %130, %cst_73 [0] : vector<32x128xf32> to vector<128xf32>
    %132 = vector.shape_cast %131 : vector<128xf32> to vector<1x128xf32>
    %133 = arith.mulf %130, %130 : vector<32x128xf32>
    %cst_74 = arith.constant dense<0.000000e+00> : vector<128xf32>
    %134 = vector.multi_reduction <add>, %133, %cst_74 [0] : vector<32x128xf32> to vector<128xf32>
    %135 = vector.shape_cast %134 : vector<128xf32> to vector<1x128xf32>
    %136 = tpu.concatenate %132, %135 in 0 : vector<1x128xf32>, vector<1x128xf32> -> vector<2x128xf32>
    %cst_75 = arith.constant dense<0.000000e+00> : vector<2x8xf32>
    %137 = tpu.matmul %136, %15, %cst_75 {dimension_numbers = #tpu.dot_dimension_numbers<[1], [0], [0], [1], [0, 0, 1, 1], [], []>} : vector<2x128xf32>, vector<128x8xf32>, vector<2x8xf32> -> vector<2x8xf32>
    %cst_76 = arith.constant 0.001953125 : f32
    %138 = vector.broadcast %cst_76 : f32 to vector<2x8xf32>
    %139 = arith.mulf %137, %138 : vector<2x8xf32>
    %140 = vector.extract_strided_slice %139 {offsets = [0, 0], sizes = [1, 8], strides = [1, 1]} : vector<2x8xf32> to vector<1x8xf32>
    %141 = vector.extract_strided_slice %139 {offsets = [1, 0], sizes = [1, 8], strides = [1, 1]} : vector<2x8xf32> to vector<1x8xf32>
    %142 = arith.mulf %140, %140 : vector<1x8xf32>
    %143 = arith.subf %141, %142 : vector<1x8xf32>
    %cst_77 = arith.constant 0.000000e+00 : f32
    %144 = vector.broadcast %cst_77 : f32 to vector<1x8xf32>
    %145 = arith.maximumf %143, %144 : vector<1x8xf32>
    %c0_78 = arith.constant 0 : index
    %c0_79 = arith.constant 0 : index
    %146 = vector.load %arg4[%c0_78, %c0_79] : memref<1x8xf32, #tpu.memory_space<vmem>>, vector<1x8xf32>
    %cst_80 = arith.constant 9.99999974E-6 : f32
    %147 = vector.broadcast %cst_80 : f32 to vector<1x8xf32>
    %148 = arith.addf %145, %147 : vector<1x8xf32>
    %149 = math.rsqrt %148 : vector<1x8xf32>
    %150 = arith.mulf %146, %149 : vector<1x8xf32>
    %c0_81 = arith.constant 0 : index
    %c0_82 = arith.constant 0 : index
    %151 = vector.load %arg5[%c0_81, %c0_82] : memref<1x8xf32, #tpu.memory_space<vmem>>, vector<1x8xf32>
    %152 = arith.mulf %140, %150 : vector<1x8xf32>
    %153 = arith.subf %151, %152 : vector<1x8xf32>
    %154 = tpu.concatenate %150, %153 in 0 : vector<1x8xf32>, vector<1x8xf32> -> vector<2x8xf32>
    %cst_83 = arith.constant dense<0.000000e+00> : vector<2x128xf32>
    %155 = tpu.matmul %154, %23, %cst_83 {dimension_numbers = #tpu.dot_dimension_numbers<[1], [0], [0], [1], [0, 0, 1, 1], [], []>} : vector<2x8xf32>, vector<8x128xf32>, vector<2x128xf32> -> vector<2x128xf32>
    %156 = vector.extract_strided_slice %155 {offsets = [0, 0], sizes = [1, 128], strides = [1, 1]} : vector<2x128xf32> to vector<1x128xf32>
    %157 = vector.broadcast %156 : vector<1x128xf32> to vector<32x128xf32>
    %158 = arith.mulf %130, %157 : vector<32x128xf32>
    %159 = vector.extract_strided_slice %155 {offsets = [1, 0], sizes = [1, 128], strides = [1, 1]} : vector<2x128xf32> to vector<1x128xf32>
    %160 = vector.broadcast %159 : vector<1x128xf32> to vector<32x128xf32>
    %161 = arith.addf %158, %160 : vector<32x128xf32>
    %cst_84 = arith.constant 0.000000e+00 : f32
    %162 = vector.broadcast %cst_84 : f32 to vector<32x128xf32>
    %163 = arith.maximumf %161, %162 : vector<32x128xf32>
    %164 = tpu.iota {dimensions = array<i32: 0>} : vector<128x128xi32>
    %165 = tpu.iota {dimensions = array<i32: 1>} : vector<128x128xi32>
    %c3_i32_85 = arith.constant 3 : i32
    %166 = vector.broadcast %c3_i32_85 : i32 to vector<128x128xi32>
    %167 = arith.shrsi %164, %166 : vector<128x128xi32>
    %c3_i32_86 = arith.constant 3 : i32
    %168 = vector.broadcast %c3_i32_86 : i32 to vector<128x128xi32>
    %169 = arith.shrsi %165, %168 : vector<128x128xi32>
    %170 = arith.subi %167, %169 : vector<128x128xi32>
    %c1_i32_87 = arith.constant 1 : i32
    %171 = vector.broadcast %c1_i32_87 : i32 to vector<128x128xi32>
    %172 = arith.addi %170, %171 : vector<128x128xi32>
    %cst_88 = arith.constant 0.000000e+00 : f32
    %173 = vector.broadcast %cst_88 : f32 to vector<128x128xf32>
    %c0_89 = arith.constant 0 : index
    %c0_90 = arith.constant 0 : index
    %c0_91 = arith.constant 0 : index
    %174 = vector.load %arg6[%c0_89, %c0_90, %c0_91] : memref<9x8x8xf32, #tpu.memory_space<vmem>>, vector<1x8x8xf32>
    %175 = vector.shape_cast %174 : vector<1x8x8xf32> to vector<8x8xf32>
    %cst_92 = arith.constant dense<0.000000e+00> : vector<128x8xf32>
    %176 = tpu.matmul %15, %175, %cst_92 {dimension_numbers = #tpu.dot_dimension_numbers<[1], [0], [0], [1], [0, 0, 1, 1], [], []>} : vector<128x8xf32>, vector<8x8xf32>, vector<128x8xf32> -> vector<128x8xf32>
    %cst_93 = arith.constant dense<0.000000e+00> : vector<128x128xf32>
    %177 = tpu.matmul %176, %23, %cst_93 {dimension_numbers = #tpu.dot_dimension_numbers<[1], [0], [0], [1], [0, 0, 1, 1], [], []>} : vector<128x8xf32>, vector<8x128xf32>, vector<128x128xf32> -> vector<128x128xf32>
    %c0_i32_94 = arith.constant 0 : i32
    %178 = vector.broadcast %c0_i32_94 : i32 to vector<128x128xi32>
    %179 = arith.cmpi eq, %172, %178 : vector<128x128xi32>
    %cst_95 = arith.constant 0.000000e+00 : f32
    %180 = vector.broadcast %cst_95 : f32 to vector<128x128xf32>
    %181 = arith.select %179, %177, %180 : vector<128x128xi1>, vector<128x128xf32>
    %182 = arith.addf %173, %181 : vector<128x128xf32>
    %c1_96 = arith.constant 1 : index
    %c0_97 = arith.constant 0 : index
    %c0_98 = arith.constant 0 : index
    %183 = vector.load %arg6[%c1_96, %c0_97, %c0_98] : memref<9x8x8xf32, #tpu.memory_space<vmem>>, vector<1x8x8xf32>
    %184 = vector.shape_cast %183 : vector<1x8x8xf32> to vector<8x8xf32>
    %cst_99 = arith.constant dense<0.000000e+00> : vector<128x8xf32>
    %185 = tpu.matmul %15, %184, %cst_99 {dimension_numbers = #tpu.dot_dimension_numbers<[1], [0], [0], [1], [0, 0, 1, 1], [], []>} : vector<128x8xf32>, vector<8x8xf32>, vector<128x8xf32> -> vector<128x8xf32>
    %cst_100 = arith.constant dense<0.000000e+00> : vector<128x128xf32>
    %186 = tpu.matmul %185, %23, %cst_100 {dimension_numbers = #tpu.dot_dimension_numbers<[1], [0], [0], [1], [0, 0, 1, 1], [], []>} : vector<128x8xf32>, vector<8x128xf32>, vector<128x128xf32> -> vector<128x128xf32>
    %c1_i32_101 = arith.constant 1 : i32
    %187 = vector.broadcast %c1_i32_101 : i32 to vector<128x128xi32>
    %188 = arith.cmpi eq, %172, %187 : vector<128x128xi32>
    %cst_102 = arith.constant 0.000000e+00 : f32
    %189 = vector.broadcast %cst_102 : f32 to vector<128x128xf32>
    %190 = arith.select %188, %186, %189 : vector<128x128xi1>, vector<128x128xf32>
    %191 = arith.addf %182, %190 : vector<128x128xf32>
    %c2_103 = arith.constant 2 : index
    %c0_104 = arith.constant 0 : index
    %c0_105 = arith.constant 0 : index
    %192 = vector.load %arg6[%c2_103, %c0_104, %c0_105] : memref<9x8x8xf32, #tpu.memory_space<vmem>>, vector<1x8x8xf32>
    %193 = vector.shape_cast %192 : vector<1x8x8xf32> to vector<8x8xf32>
    %cst_106 = arith.constant dense<0.000000e+00> : vector<128x8xf32>
    %194 = tpu.matmul %15, %193, %cst_106 {dimension_numbers = #tpu.dot_dimension_numbers<[1], [0], [0], [1], [0, 0, 1, 1], [], []>} : vector<128x8xf32>, vector<8x8xf32>, vector<128x8xf32> -> vector<128x8xf32>
    %cst_107 = arith.constant dense<0.000000e+00> : vector<128x128xf32>
    %195 = tpu.matmul %194, %23, %cst_107 {dimension_numbers = #tpu.dot_dimension_numbers<[1], [0], [0], [1], [0, 0, 1, 1], [], []>} : vector<128x8xf32>, vector<8x128xf32>, vector<128x128xf32> -> vector<128x128xf32>
    %c2_i32_108 = arith.constant 2 : i32
    %196 = vector.broadcast %c2_i32_108 : i32 to vector<128x128xi32>
    %197 = arith.cmpi eq, %172, %196 : vector<128x128xi32>
    %cst_109 = arith.constant 0.000000e+00 : f32
    %198 = vector.broadcast %cst_109 : f32 to vector<128x128xf32>
    %199 = arith.select %197, %195, %198 : vector<128x128xi1>, vector<128x128xf32>
    %200 = arith.addf %191, %199 : vector<128x128xf32>
    %cst_110 = arith.constant 0.000000e+00 : f32
    %201 = vector.broadcast %cst_110 : f32 to vector<128x128xf32>
    %c3_111 = arith.constant 3 : index
    %c0_112 = arith.constant 0 : index
    %c0_113 = arith.constant 0 : index
    %202 = vector.load %arg6[%c3_111, %c0_112, %c0_113] : memref<9x8x8xf32, #tpu.memory_space<vmem>>, vector<1x8x8xf32>
    %203 = vector.shape_cast %202 : vector<1x8x8xf32> to vector<8x8xf32>
    %cst_114 = arith.constant dense<0.000000e+00> : vector<128x8xf32>
    %204 = tpu.matmul %15, %203, %cst_114 {dimension_numbers = #tpu.dot_dimension_numbers<[1], [0], [0], [1], [0, 0, 1, 1], [], []>} : vector<128x8xf32>, vector<8x8xf32>, vector<128x8xf32> -> vector<128x8xf32>
    %cst_115 = arith.constant dense<0.000000e+00> : vector<128x128xf32>
    %205 = tpu.matmul %204, %23, %cst_115 {dimension_numbers = #tpu.dot_dimension_numbers<[1], [0], [0], [1], [0, 0, 1, 1], [], []>} : vector<128x8xf32>, vector<8x128xf32>, vector<128x128xf32> -> vector<128x128xf32>
    %c0_i32_116 = arith.constant 0 : i32
    %206 = vector.broadcast %c0_i32_116 : i32 to vector<128x128xi32>
    %207 = arith.cmpi eq, %172, %206 : vector<128x128xi32>
    %cst_117 = arith.constant 0.000000e+00 : f32
    %208 = vector.broadcast %cst_117 : f32 to vector<128x128xf32>
    %209 = arith.select %207, %205, %208 : vector<128x128xi1>, vector<128x128xf32>
    %210 = arith.addf %201, %209 : vector<128x128xf32>
    %c4_118 = arith.constant 4 : index
    %c0_119 = arith.constant 0 : index
    %c0_120 = arith.constant 0 : index
    %211 = vector.load %arg6[%c4_118, %c0_119, %c0_120] : memref<9x8x8xf32, #tpu.memory_space<vmem>>, vector<1x8x8xf32>
    %212 = vector.shape_cast %211 : vector<1x8x8xf32> to vector<8x8xf32>
    %cst_121 = arith.constant dense<0.000000e+00> : vector<128x8xf32>
    %213 = tpu.matmul %15, %212, %cst_121 {dimension_numbers = #tpu.dot_dimension_numbers<[1], [0], [0], [1], [0, 0, 1, 1], [], []>} : vector<128x8xf32>, vector<8x8xf32>, vector<128x8xf32> -> vector<128x8xf32>
    %cst_122 = arith.constant dense<0.000000e+00> : vector<128x128xf32>
    %214 = tpu.matmul %213, %23, %cst_122 {dimension_numbers = #tpu.dot_dimension_numbers<[1], [0], [0], [1], [0, 0, 1, 1], [], []>} : vector<128x8xf32>, vector<8x128xf32>, vector<128x128xf32> -> vector<128x128xf32>
    %c1_i32_123 = arith.constant 1 : i32
    %215 = vector.broadcast %c1_i32_123 : i32 to vector<128x128xi32>
    %216 = arith.cmpi eq, %172, %215 : vector<128x128xi32>
    %cst_124 = arith.constant 0.000000e+00 : f32
    %217 = vector.broadcast %cst_124 : f32 to vector<128x128xf32>
    %218 = arith.select %216, %214, %217 : vector<128x128xi1>, vector<128x128xf32>
    %219 = arith.addf %210, %218 : vector<128x128xf32>
    %c5_125 = arith.constant 5 : index
    %c0_126 = arith.constant 0 : index
    %c0_127 = arith.constant 0 : index
    %220 = vector.load %arg6[%c5_125, %c0_126, %c0_127] : memref<9x8x8xf32, #tpu.memory_space<vmem>>, vector<1x8x8xf32>
    %221 = vector.shape_cast %220 : vector<1x8x8xf32> to vector<8x8xf32>
    %cst_128 = arith.constant dense<0.000000e+00> : vector<128x8xf32>
    %222 = tpu.matmul %15, %221, %cst_128 {dimension_numbers = #tpu.dot_dimension_numbers<[1], [0], [0], [1], [0, 0, 1, 1], [], []>} : vector<128x8xf32>, vector<8x8xf32>, vector<128x8xf32> -> vector<128x8xf32>
    %cst_129 = arith.constant dense<0.000000e+00> : vector<128x128xf32>
    %223 = tpu.matmul %222, %23, %cst_129 {dimension_numbers = #tpu.dot_dimension_numbers<[1], [0], [0], [1], [0, 0, 1, 1], [], []>} : vector<128x8xf32>, vector<8x128xf32>, vector<128x128xf32> -> vector<128x128xf32>
    %c2_i32_130 = arith.constant 2 : i32
    %224 = vector.broadcast %c2_i32_130 : i32 to vector<128x128xi32>
    %225 = arith.cmpi eq, %172, %224 : vector<128x128xi32>
    %cst_131 = arith.constant 0.000000e+00 : f32
    %226 = vector.broadcast %cst_131 : f32 to vector<128x128xf32>
    %227 = arith.select %225, %223, %226 : vector<128x128xi1>, vector<128x128xf32>
    %228 = arith.addf %219, %227 : vector<128x128xf32>
    %cst_132 = arith.constant 0.000000e+00 : f32
    %229 = vector.broadcast %cst_132 : f32 to vector<128x128xf32>
    %c6_133 = arith.constant 6 : index
    %c0_134 = arith.constant 0 : index
    %c0_135 = arith.constant 0 : index
    %230 = vector.load %arg6[%c6_133, %c0_134, %c0_135] : memref<9x8x8xf32, #tpu.memory_space<vmem>>, vector<1x8x8xf32>
    %231 = vector.shape_cast %230 : vector<1x8x8xf32> to vector<8x8xf32>
    %cst_136 = arith.constant dense<0.000000e+00> : vector<128x8xf32>
    %232 = tpu.matmul %15, %231, %cst_136 {dimension_numbers = #tpu.dot_dimension_numbers<[1], [0], [0], [1], [0, 0, 1, 1], [], []>} : vector<128x8xf32>, vector<8x8xf32>, vector<128x8xf32> -> vector<128x8xf32>
    %cst_137 = arith.constant dense<0.000000e+00> : vector<128x128xf32>
    %233 = tpu.matmul %232, %23, %cst_137 {dimension_numbers = #tpu.dot_dimension_numbers<[1], [0], [0], [1], [0, 0, 1, 1], [], []>} : vector<128x8xf32>, vector<8x128xf32>, vector<128x128xf32> -> vector<128x128xf32>
    %c0_i32_138 = arith.constant 0 : i32
    %234 = vector.broadcast %c0_i32_138 : i32 to vector<128x128xi32>
    %235 = arith.cmpi eq, %172, %234 : vector<128x128xi32>
    %cst_139 = arith.constant 0.000000e+00 : f32
    %236 = vector.broadcast %cst_139 : f32 to vector<128x128xf32>
    %237 = arith.select %235, %233, %236 : vector<128x128xi1>, vector<128x128xf32>
    %238 = arith.addf %229, %237 : vector<128x128xf32>
    %c7_140 = arith.constant 7 : index
    %c0_141 = arith.constant 0 : index
    %c0_142 = arith.constant 0 : index
    %239 = vector.load %arg6[%c7_140, %c0_141, %c0_142] : memref<9x8x8xf32, #tpu.memory_space<vmem>>, vector<1x8x8xf32>
    %240 = vector.shape_cast %239 : vector<1x8x8xf32> to vector<8x8xf32>
    %cst_143 = arith.constant dense<0.000000e+00> : vector<128x8xf32>
    %241 = tpu.matmul %15, %240, %cst_143 {dimension_numbers = #tpu.dot_dimension_numbers<[1], [0], [0], [1], [0, 0, 1, 1], [], []>} : vector<128x8xf32>, vector<8x8xf32>, vector<128x8xf32> -> vector<128x8xf32>
    %cst_144 = arith.constant dense<0.000000e+00> : vector<128x128xf32>
    %242 = tpu.matmul %241, %23, %cst_144 {dimension_numbers = #tpu.dot_dimension_numbers<[1], [0], [0], [1], [0, 0, 1, 1], [], []>} : vector<128x8xf32>, vector<8x128xf32>, vector<128x128xf32> -> vector<128x128xf32>
    %c1_i32_145 = arith.constant 1 : i32
    %243 = vector.broadcast %c1_i32_145 : i32 to vector<128x128xi32>
    %244 = arith.cmpi eq, %172, %243 : vector<128x128xi32>
    %cst_146 = arith.constant 0.000000e+00 : f32
    %245 = vector.broadcast %cst_146 : f32 to vector<128x128xf32>
    %246 = arith.select %244, %242, %245 : vector<128x128xi1>, vector<128x128xf32>
    %247 = arith.addf %238, %246 : vector<128x128xf32>
    %c8_147 = arith.constant 8 : index
    %c0_148 = arith.constant 0 : index
    %c0_149 = arith.constant 0 : index
    %248 = vector.load %arg6[%c8_147, %c0_148, %c0_149] : memref<9x8x8xf32, #tpu.memory_space<vmem>>, vector<1x8x8xf32>
    %249 = vector.shape_cast %248 : vector<1x8x8xf32> to vector<8x8xf32>
    %cst_150 = arith.constant dense<0.000000e+00> : vector<128x8xf32>
    %250 = tpu.matmul %15, %249, %cst_150 {dimension_numbers = #tpu.dot_dimension_numbers<[1], [0], [0], [1], [0, 0, 1, 1], [], []>} : vector<128x8xf32>, vector<8x8xf32>, vector<128x8xf32> -> vector<128x8xf32>
    %cst_151 = arith.constant dense<0.000000e+00> : vector<128x128xf32>
    %251 = tpu.matmul %250, %23, %cst_151 {dimension_numbers = #tpu.dot_dimension_numbers<[1], [0], [0], [1], [0, 0, 1, 1], [], []>} : vector<128x8xf32>, vector<8x128xf32>, vector<128x128xf32> -> vector<128x128xf32>
    %c2_i32_152 = arith.constant 2 : i32
    %252 = vector.broadcast %c2_i32_152 : i32 to vector<128x128xi32>
    %253 = arith.cmpi eq, %172, %252 : vector<128x128xi32>
    %cst_153 = arith.constant 0.000000e+00 : f32
    %254 = vector.broadcast %cst_153 : f32 to vector<128x128xf32>
    %255 = arith.select %253, %251, %254 : vector<128x128xi1>, vector<128x128xf32>
    %256 = arith.addf %247, %255 : vector<128x128xf32>
    %c1_i32_154 = arith.constant 1 : i32
    %257 = tpu.dynamic_rotate %163 by %c1_i32_154 dim 0 : vector<32x128xf32>, i32 -> vector<32x128xf32>
    %258 = vector.broadcast %24 : vector<32x1xf32> to vector<32x128xf32>
    %259 = arith.mulf %257, %258 : vector<32x128xf32>
    %c31_i32_155 = arith.constant 31 : i32
    %260 = tpu.dynamic_rotate %163 by %c31_i32_155 dim 0 : vector<32x128xf32>, i32 -> vector<32x128xf32>
    %261 = vector.broadcast %25 : vector<32x1xf32> to vector<32x128xf32>
    %262 = arith.mulf %260, %261 : vector<32x128xf32>
    %cst_156 = arith.constant dense<0.000000e+00> : vector<32x128xf32>
    %263 = tpu.matmul %259, %200, %cst_156 {dimension_numbers = #tpu.dot_dimension_numbers<[1], [0], [0], [1], [0, 0, 1, 1], [], []>} : vector<32x128xf32>, vector<128x128xf32>, vector<32x128xf32> -> vector<32x128xf32>
    %cst_157 = arith.constant dense<0.000000e+00> : vector<32x128xf32>
    %264 = tpu.matmul %163, %228, %cst_157 {dimension_numbers = #tpu.dot_dimension_numbers<[1], [0], [0], [1], [0, 0, 1, 1], [], []>} : vector<32x128xf32>, vector<128x128xf32>, vector<32x128xf32> -> vector<32x128xf32>
    %265 = arith.addf %263, %264 : vector<32x128xf32>
    %cst_158 = arith.constant dense<0.000000e+00> : vector<32x128xf32>
    %266 = tpu.matmul %262, %256, %cst_158 {dimension_numbers = #tpu.dot_dimension_numbers<[1], [0], [0], [1], [0, 0, 1, 1], [], []>} : vector<32x128xf32>, vector<128x128xf32>, vector<32x128xf32> -> vector<32x128xf32>
    %267 = arith.addf %265, %266 : vector<32x128xf32>
    %cst_159 = arith.constant dense<0.000000e+00> : vector<128xf32>
    %268 = vector.multi_reduction <add>, %267, %cst_159 [0] : vector<32x128xf32> to vector<128xf32>
    %269 = vector.shape_cast %268 : vector<128xf32> to vector<1x128xf32>
    %270 = arith.mulf %267, %267 : vector<32x128xf32>
    %cst_160 = arith.constant dense<0.000000e+00> : vector<128xf32>
    %271 = vector.multi_reduction <add>, %270, %cst_160 [0] : vector<32x128xf32> to vector<128xf32>
    %272 = vector.shape_cast %271 : vector<128xf32> to vector<1x128xf32>
    %273 = tpu.concatenate %269, %272 in 0 : vector<1x128xf32>, vector<1x128xf32> -> vector<2x128xf32>
    %cst_161 = arith.constant dense<0.000000e+00> : vector<2x8xf32>
    %274 = tpu.matmul %273, %15, %cst_161 {dimension_numbers = #tpu.dot_dimension_numbers<[1], [0], [0], [1], [0, 0, 1, 1], [], []>} : vector<2x128xf32>, vector<128x8xf32>, vector<2x8xf32> -> vector<2x8xf32>
    %cst_162 = arith.constant 0.001953125 : f32
    %275 = vector.broadcast %cst_162 : f32 to vector<2x8xf32>
    %276 = arith.mulf %274, %275 : vector<2x8xf32>
    %277 = vector.extract_strided_slice %276 {offsets = [0, 0], sizes = [1, 8], strides = [1, 1]} : vector<2x8xf32> to vector<1x8xf32>
    %278 = vector.extract_strided_slice %276 {offsets = [1, 0], sizes = [1, 8], strides = [1, 1]} : vector<2x8xf32> to vector<1x8xf32>
    %279 = arith.mulf %277, %277 : vector<1x8xf32>
    %280 = arith.subf %278, %279 : vector<1x8xf32>
    %cst_163 = arith.constant 0.000000e+00 : f32
    %281 = vector.broadcast %cst_163 : f32 to vector<1x8xf32>
    %282 = arith.maximumf %280, %281 : vector<1x8xf32>
    %c0_164 = arith.constant 0 : index
    %c0_165 = arith.constant 0 : index
    %283 = vector.load %arg7[%c0_164, %c0_165] : memref<1x8xf32, #tpu.memory_space<vmem>>, vector<1x8xf32>
    %cst_166 = arith.constant 9.99999974E-6 : f32
    %284 = vector.broadcast %cst_166 : f32 to vector<1x8xf32>
    %285 = arith.addf %282, %284 : vector<1x8xf32>
    %286 = math.rsqrt %285 : vector<1x8xf32>
    %287 = arith.mulf %283, %286 : vector<1x8xf32>
    %c0_167 = arith.constant 0 : index
    %c0_168 = arith.constant 0 : index
    %288 = vector.load %arg8[%c0_167, %c0_168] : memref<1x8xf32, #tpu.memory_space<vmem>>, vector<1x8xf32>
    %289 = arith.mulf %277, %287 : vector<1x8xf32>
    %290 = arith.subf %288, %289 : vector<1x8xf32>
    %291 = tpu.concatenate %287, %290 in 0 : vector<1x8xf32>, vector<1x8xf32> -> vector<2x8xf32>
    %cst_169 = arith.constant dense<0.000000e+00> : vector<2x128xf32>
    %292 = tpu.matmul %291, %23, %cst_169 {dimension_numbers = #tpu.dot_dimension_numbers<[1], [0], [0], [1], [0, 0, 1, 1], [], []>} : vector<2x8xf32>, vector<8x128xf32>, vector<2x128xf32> -> vector<2x128xf32>
    %293 = vector.extract_strided_slice %292 {offsets = [0, 0], sizes = [1, 128], strides = [1, 1]} : vector<2x128xf32> to vector<1x128xf32>
    %294 = vector.broadcast %293 : vector<1x128xf32> to vector<32x128xf32>
    %295 = arith.mulf %267, %294 : vector<32x128xf32>
    %296 = vector.extract_strided_slice %292 {offsets = [1, 0], sizes = [1, 128], strides = [1, 1]} : vector<2x128xf32> to vector<1x128xf32>
    %297 = vector.broadcast %296 : vector<1x128xf32> to vector<32x128xf32>
    %298 = arith.addf %295, %297 : vector<32x128xf32>
    %299 = arith.addf %298, %26 : vector<32x128xf32>
    %cst_170 = arith.constant 0.000000e+00 : f32
    %300 = vector.broadcast %cst_170 : f32 to vector<32x128xf32>
    %301 = arith.maximumf %299, %300 : vector<32x128xf32>
    %c0_171 = arith.constant 0 : index
    %c0_172 = arith.constant 0 : index
    %302 = vector.load %arg9[%c0_171, %c0_172] : memref<32x128xf32, #tpu.memory_space<vmem>>, vector<32x128xf32>
    tpu.vector_store %arg9[%c0_171, %c0_172], %301 {strides = array<i32>} : memref<32x128xf32, #tpu.memory_space<vmem>>, vector<32x128xf32>,
    return
  }
}

</mosaic_0001>

<llo_original>
// kernel: tpu_custom_call.1
$region0: #{tpu_custom_call.1}
  #allocation0 [shape = 'u32[]', space=smem, size = 0x4, offset = 0x4, fixed_abs, tag = 'smem constant byte address 0x4 - core index']
  #allocation1 [shape = 'u32[144,128]{1,0:T(1,128)}', space=vmem, size = 0x12000, scoped, tag = 'internal scratch']
  %s0 = inlined_call_operand.vmem [shape: f32[32,128], index: 0, kind: input, shape index: {}]
  %s1 = inlined_call_operand.vmem [shape: f32[32,1], index: 1, kind: input, shape index: {}]
  %s2 = inlined_call_operand.vmem [shape: f32[32,1], index: 2, kind: input, shape index: {}]
  %s3 = inlined_call_operand.vmem [shape: f32[9,8,8], index: 3, kind: input, shape index: {}]
  %s4 = inlined_call_operand.vmem [shape: f32[1,8], index: 4, kind: input, shape index: {}]
  %s5 = inlined_call_operand.vmem [shape: f32[1,8], index: 5, kind: input, shape index: {}]
  %s6 = inlined_call_operand.vmem [shape: f32[9,8,8], index: 6, kind: input, shape index: {}]
  %s7 = inlined_call_operand.vmem [shape: f32[1,8], index: 7, kind: input, shape index: {}]
  %s8 = inlined_call_operand.vmem [shape: f32[1,8], index: 8, kind: input, shape index: {}]
  %s9 = inlined_call_operand.hbm [shape: f32[32,128], index: 9, kind: output, shape index: {}]
  %s10 = sld [smem:[#allocation0]]
  $region46: #{tpu_custom_call.1} parent=0
    _
  %s12 = ssub.s32 1, %s10
  %s13 = scalar_select 0, %s12, %s10
  $region1: #{tpu_custom_call.1} parent=0
    #allocation2 [shape = 'u8[16384]{0}', space=vmem, size = 0x4000, scoped, tag = 'output window, operand 0, single buffered']
    #allocation3 [shape = 's32[1]{0}', space=sflag, size = 0x4, scoped, tag = 'scoped memory for tpu_custom_call.1']
    %14 = vsyncpa [#allocation3], 0
    // Predicated region
    $region2: #{tpu_custom_call.1} parent=1 // pred_check
      _
    $region3: #{tpu_custom_call.1} parent=1 // pred_check_branch
      %16 = sbr.rel (0) target = $region5
    $region4: #{tpu_custom_call.1} parent=1 // pred_region
      _
    $region5: #{tpu_custom_call.1} parent=1 // pred_fallthru
      _
    // Predicated region
    $region6: #{tpu_custom_call.1} parent=1 // pred_check
      _
    $region7: #{tpu_custom_call.1} parent=1 // pred_check_branch
      %18 = sbr.rel (0) target = $region9
    $region8: #{tpu_custom_call.1} parent=1 // pred_region
      _
    $region9: #{tpu_custom_call.1} parent=1 // pred_fallthru
      _
    // Predicated region
    $region10: #{tpu_custom_call.1} parent=1 // pred_check
      _
    $region11: #{tpu_custom_call.1} parent=1 // pred_check_branch
      %20 = sbr.rel (0) target = $region13
    $region12: #{tpu_custom_call.1} parent=1 // pred_region
      _
    $region13: #{tpu_custom_call.1} parent=1 // pred_fallthru
      _
    // Predicated region
    $region14: #{tpu_custom_call.1} parent=1 // pred_check
      _
    $region15: #{tpu_custom_call.1} parent=1 // pred_check_branch
      %22 = sbr.rel (0) target = $region17
    $region16: #{tpu_custom_call.1} parent=1 // pred_region
      _
    $region17: #{tpu_custom_call.1} parent=1 // pred_fallthru
      _
    // Predicated region
    $region18: #{tpu_custom_call.1} parent=1 // pred_check
      _
    $region19: #{tpu_custom_call.1} parent=1 // pred_check_branch
      %24 = sbr.rel (0) target = $region21
    $region20: #{tpu_custom_call.1} parent=1 // pred_region
      _
    $region21: #{tpu_custom_call.1} parent=1 // pred_fallthru
      _
    // Predicated region
    $region22: #{tpu_custom_call.1} parent=1 // pred_check
      _
    $region23: #{tpu_custom_call.1} parent=1 // pred_check_branch
      %26 = sbr.rel (0) target = $region25
    $region24: #{tpu_custom_call.1} parent=1 // pred_region
      _
    $region25: #{tpu_custom_call.1} parent=1 // pred_fallthru
      _
    // Predicated region
    $region26: #{tpu_custom_call.1} parent=1 // pred_check
      _
    $region27: #{tpu_custom_call.1} parent=1 // pred_check_branch
      %28 = sbr.rel (0) target = $region29
    $region28: #{tpu_custom_call.1} parent=1 // pred_region
      _
    $region29: #{tpu_custom_call.1} parent=1 // pred_fallthru
      _
    // Predicated region
    $region30: #{tpu_custom_call.1} parent=1 // pred_check
      _
    $region31: #{tpu_custom_call.1} parent=1 // pred_check_branch
      %30 = sbr.rel (0) target = $region33
    $region32: #{tpu_custom_call.1} parent=1 // pred_region
      _
    $region33: #{tpu_custom_call.1} parent=1 // pred_fallthru
      _
    // Predicated region
    $region34: #{tpu_custom_call.1} parent=1 // pred_check
      _
    $region35: #{tpu_custom_call.1} parent=1 // pred_check_branch
      %32 = sbr.rel (0) target = $region37
    $region36: #{tpu_custom_call.1} parent=1 // pred_region
      _
    $region37: #{tpu_custom_call.1} parent=1 // pred_fallthru
      _
    %v33 = vlaneseq
    %v34 = vshrl.u32 %v33, 7
    %v35 = vadd.s32 %v34, 8
    %v36 = vadd.s32 %v34, 16
    %v37 = vadd.s32 %v34, 24
    %v38 = vadd.s32 %v34, 32
    %v39 = vadd.s32 %v34, 40
    %v40 = vadd.s32 %v34, 48
    %v41 = vadd.s32 %v34, 56
    %v42 = vadd.s32 %v34, 64
    %v43 = vadd.s32 %v34, 72
    %v44 = vadd.s32 %v34, 80
    %v45 = vadd.s32 %v34, 88
    %v46 = vadd.s32 %v34, 96
    %v47 = vadd.s32 %v34, 104
    %v48 = vadd.s32 %v34, 112
    %v49 = vadd.s32 %v34, 120
    %v50 = vlaneseq
    %v51 = vand.u32 %v50, 127
    %v52 = vand.u32 %v34, 7
    %v53 = vand.u32 %v35, 7
    %v54 = vand.u32 %v36, 7
    %v55 = vand.u32 %v37, 7
    %v56 = vand.u32 %v38, 7
    %v57 = vand.u32 %v39, 7
    %v58 = vand.u32 %v40, 7
    %v59 = vand.u32 %v41, 7
    %v60 = vand.u32 %v42, 7
    %v61 = vand.u32 %v43, 7
    %v62 = vand.u32 %v44, 7
    %v63 = vand.u32 %v45, 7
    %v64 = vand.u32 %v46, 7
    %v65 = vand.u32 %v47, 7
    %v66 = vand.u32 %v48, 7
    %v67 = vand.u32 %v49, 7
    %vm68 = vcmp.eq.s32.totalorder %v52, %v51
    %vm69 = vcmp.eq.s32.totalorder %v53, %v51
    %vm70 = vcmp.eq.s32.totalorder %v54, %v51
    %vm71 = vcmp.eq.s32.totalorder %v55, %v51
    %vm72 = vcmp.eq.s32.totalorder %v56, %v51
    %vm73 = vcmp.eq.s32.totalorder %v57, %v51
    %vm74 = vcmp.eq.s32.totalorder %v58, %v51
    %vm75 = vcmp.eq.s32.totalorder %v59, %v51
    %vm76 = vcmp.eq.s32.totalorder %v60, %v51
    %vm77 = vcmp.eq.s32.totalorder %v61, %v51
    %vm78 = vcmp.eq.s32.totalorder %v62, %v51
    %vm79 = vcmp.eq.s32.totalorder %v63, %v51
    %vm80 = vcmp.eq.s32.totalorder %v64, %v51
    %vm81 = vcmp.eq.s32.totalorder %v65, %v51
    %vm82 = vcmp.eq.s32.totalorder %v66, %v51
    %vm83 = vcmp.eq.s32.totalorder %v67, %v51
    %v84 = vsel %vm68, 1.0, 0.0
    %v85 = vsel %vm69, 1.0, 0.0
    %v86 = vsel %vm70, 1.0, 0.0
    %v87 = vsel %vm71, 1.0, 0.0
    %v88 = vsel %vm72, 1.0, 0.0
    %v89 = vsel %vm73, 1.0, 0.0
    %v90 = vsel %vm74, 1.0, 0.0
    %v91 = vsel %vm75, 1.0, 0.0
    %v92 = vsel %vm76, 1.0, 0.0
    %v93 = vsel %vm77, 1.0, 0.0
    %v94 = vsel %vm78, 1.0, 0.0
    %v95 = vsel %vm79, 1.0, 0.0
    %v96 = vsel %vm80, 1.0, 0.0
    %v97 = vsel %vm81, 1.0, 0.0
    %v98 = vsel %vm82, 1.0, 0.0
    %v99 = vsel %vm83, 1.0, 0.0
    %v100 = vand.u32 %v51, 7
    %vm101 = vcmp.eq.s32.totalorder %v100, %v34
    %v102 = vsel %vm101, 1.0, 0.0
    %v103 = vld [vmem:[%s1] sm:$0xff]
    %v104 = vld [vmem:[%s1 + $0x8] sm:$0xff]
    %v105 = vld [vmem:[%s1 + $0x10] sm:$0xff]
    %v106 = vld [vmem:[%s1 + $0x18] sm:$0xff]
    %v107 = vld [vmem:[%s2] sm:$0xff]
    %v108 = vld [vmem:[%s2 + $0x8] sm:$0xff]
    %v109 = vld [vmem:[%s2 + $0x10] sm:$0xff]
    %v110 = vld [vmem:[%s2 + $0x18] sm:$0xff]
    %v111 = vld [vmem:[%s0] sm:$0xff]
    %v112 = vld [vmem:[%s0 + $0x8] sm:$0xff]
    %v113 = vld [vmem:[%s0 + $0x10] sm:$0xff]
    %v114 = vld [vmem:[%s0 + $0x18] sm:$0xff]
    %v115 = vshra.s32 %v34, 3
    %v116 = vshra.s32 %v35, 3
    %v117 = vshra.s32 %v36, 3
    %v118 = vshra.s32 %v37, 3
    %v119 = vshra.s32 %v38, 3
    %v120 = vshra.s32 %v39, 3
    %v121 = vshra.s32 %v40, 3
    %v122 = vshra.s32 %v41, 3
    %v123 = vshra.s32 %v42, 3
    %v124 = vshra.s32 %v43, 3
    %v125 = vshra.s32 %v44, 3
    %v126 = vshra.s32 %v45, 3
    %v127 = vshra.s32 %v46, 3
    %v128 = vshra.s32 %v47, 3
    %v129 = vshra.s32 %v48, 3
    %v130 = vshra.s32 %v49, 3
    %v131 = vshra.s32 %v51, 3
    %v132 = vsub.s32 %v115, %v131
    %v133 = vsub.s32 %v116, %v131
    %v134 = vsub.s32 %v117, %v131
    %v135 = vsub.s32 %v118, %v131
    %v136 = vsub.s32 %v119, %v131
    %v137 = vsub.s32 %v120, %v131
    %v138 = vsub.s32 %v121, %v131
    %v139 = vsub.s32 %v122, %v131
    %v140 = vsub.s32 %v123, %v131
    %v141 = vsub.s32 %v124, %v131
    %v142 = vsub.s32 %v125, %v131
    %v143 = vsub.s32 %v126, %v131
    %v144 = vsub.s32 %v127, %v131
    %v145 = vsub.s32 %v128, %v131
    %v146 = vsub.s32 %v129, %v131
    %v147 = vsub.s32 %v130, %v131
    %v148 = vadd.s32 %v132, 1
    %v149 = vadd.s32 %v133, 1
    %v150 = vadd.s32 %v134, 1
    %v151 = vadd.s32 %v135, 1
    %v152 = vadd.s32 %v136, 1
    %v153 = vadd.s32 %v137, 1
    %v154 = vadd.s32 %v138, 1
    %v155 = vadd.s32 %v139, 1
    %v156 = vadd.s32 %v140, 1
    %v157 = vadd.s32 %v141, 1
    %v158 = vadd.s32 %v142, 1
    %v159 = vadd.s32 %v143, 1
    %v160 = vadd.s32 %v144, 1
    %v161 = vadd.s32 %v145, 1
    %v162 = vadd.s32 %v146, 1
    %v163 = vadd.s32 %v147, 1
    %v164 = vld [vmem:[%s3] sm:$0xff]
    %vm165 = vcmask 64512
    %v167 = vsel %vm165, %v84, 0
    %v170 = vsel %vm165, %v85, 0
    %v173 = vsel %vm165, %v86, 0
    %v176 = vsel %vm165, %v87, 0
    %v179 = vsel %vm165, %v88, 0
    %v182 = vsel %vm165, %v89, 0
    %v185 = vsel %vm165, %v90, 0
    %v188 = vsel %vm165, %v91, 0
    %v191 = vsel %vm165, %v92, 0
    %v194 = vsel %vm165, %v93, 0
    %v197 = vsel %vm165, %v94, 0
    %v200 = vsel %vm165, %v95, 0
    %v203 = vsel %vm165, %v96, 0
    %v206 = vsel %vm165, %v97, 0
    %v209 = vsel %vm165, %v98, 0
    %v212 = vsel %vm165, %v99, 0
    %214 = vmatprep.subr.mxu0 0.0
    %215 = vmatpush1.msra.mxu0 0.0
    %216 = vmatprep.subr.mxu0 0.0
    %217 = vmatpush1.msra.mxu0 0.0
    %218 = vmatprep.subr.mxu0 0.0
    %219 = vmatpush1.msra.mxu0 0.0
    %220 = vmatprep.subr.mxu0 0.0
    %221 = vmatpush1.msra.mxu0 0.0
    %222 = vmatprep.subr.mxu0 0.0
    %223 = vmatpush1.msra.mxu0 0.0
    %224 = vmatprep.subr.mxu0 0.0
    %225 = vmatpush1.msra.mxu0 0.0
    %226 = vmatprep.subr.mxu0 0.0
    %227 = vmatpush1.msra.mxu0 0.0
    %228 = vmatprep.subr.mxu0 0.0
    %229 = vmatpush1.msra.mxu0 0.0
    %230 = vmatprep.subr.mxu0 0.0
    %231 = vmatpush1.msra.mxu0 0.0
    %232 = vmatprep.subr.mxu0 0.0
    %233 = vmatpush1.msra.mxu0 0.0
    %234 = vmatprep.subr.mxu0 0.0
    %235 = vmatpush1.msra.mxu0 0.0
    %236 = vmatprep.subr.mxu0 0.0
    %237 = vmatpush1.msra.mxu0 0.0
    %238 = vmatprep.subr.mxu0 0.0
    %239 = vmatpush1.msra.mxu0 0.0
    %240 = vmatprep.subr.mxu0 0.0
    %241 = vmatpush1.msra.mxu0 0.0
    %242 = vmatprep.subr.mxu0 0.0
    %243 = vmatpush1.msra.mxu0 0.0
    %244 = vmatprep.subr.mxu0 0.0
    %245 = vmatpush1.msra.mxu0 %v164
    %246 = vmatprep.subr.mxu0 0.0
    %247 = vmatpush2.msra.mxu0 0.0
    %248 = vmatprep.subr.mxu0 0.0
    %249 = vmatpush2.msra.mxu0 0.0
    %250 = vmatprep.subr.mxu0 0.0
    %251 = vmatpush2.msra.mxu0 0.0
    %252 = vmatprep.subr.mxu0 0.0
    %253 = vmatpush2.msra.mxu0 0.0
    %254 = vmatprep.subr.mxu0 0.0
    %255 = vmatpush2.msra.mxu0 0.0
    %256 = vmatprep.subr.mxu0 0.0
    %257 = vmatpush2.msra.mxu0 0.0
    %258 = vmatprep.subr.mxu0 0.0
    %259 = vmatpush2.msra.mxu0 0.0
    %260 = vmatprep.subr.mxu0 0.0
    %261 = vmatpush2.msra.mxu0 0.0
    %262 = vmatprep.subr.mxu0 0.0
    %263 = vmatpush2.msra.mxu0 0.0
    %264 = vmatprep.subr.mxu0 0.0
    %265 = vmatpush2.msra.mxu0 0.0
    %266 = vmatprep.subr.mxu0 0.0
    %267 = vmatpush2.msra.mxu0 0.0
    %268 = vmatprep.subr.mxu0 0.0
    %269 = vmatpush2.msra.mxu0 0.0
    %270 = vmatprep.subr.mxu0 0.0
    %271 = vmatpush2.msra.mxu0 0.0
    %272 = vmatprep.subr.mxu0 0.0
    %273 = vmatpush2.msra.mxu0 0.0
    %274 = vmatprep.subr.mxu0 0.0
    %275 = vmatpush2.msra.mxu0 0.0
    %276 = vmatprep.subr.mxu0 0.0
    %277 = vmatpush2.msra.mxu0 0.0
    %278 = vmatprep.mubr.f32.mxu0 0.0
    %279 = vmatmul.mubr.f32.gmra.mxu0 %v167
    %v280 = vpop.f32.mrf.mxu0
    %v281 = vadd.f32 0.0, %v280
    %v282 = vpop.f32.mrf.mxu0
    %283 = vmatprep.mubr.f32.mxu0 0.0
    %284 = vmatmul.mubr.f32.gmra.mxu0 %v170
    %v285 = vpop.f32.mrf.mxu0
    %v286 = vadd.f32 0.0, %v285
    %v287 = vpop.f32.mrf.mxu0
    %288 = vmatprep.mubr.f32.mxu0 0.0
    %289 = vmatmul.mubr.f32.gmra.mxu0 %v173
    %v290 = vpop.f32.mrf.mxu0
    %v291 = vadd.f32 0.0, %v290
    %v292 = vpop.f32.mrf.mxu0
    %293 = vmatprep.mubr.f32.mxu0 0.0
    %294 = vmatmul.mubr.f32.gmra.mxu0 %v176
    %v295 = vpop.f32.mrf.mxu0
    %v296 = vadd.f32 0.0, %v295
    %v297 = vpop.f32.mrf.mxu0
    %298 = vmatprep.mubr.f32.mxu0 0.0
    %299 = vmatmul.mubr.f32.gmra.mxu0 %v179
    %v300 = vpop.f32.mrf.mxu0
    %v301 = vadd.f32 0.0, %v300
    %v302 = vpop.f32.mrf.mxu0
    %303 = vmatprep.mubr.f32.mxu0 0.0
    %304 = vmatmul.mubr.f32.gmra.mxu0 %v182
    %v305 = vpop.f32.mrf.mxu0
    %v306 = vadd.f32 0.0, %v305
    %v307 = vpop.f32.mrf.mxu0
    %308 = vmatprep.mubr.f32.mxu0 0.0
    %309 = vmatmul.mubr.f32.gmra.mxu0 %v185
    %v310 = vpop.f32.mrf.mxu0
    %v311 = vadd.f32 0.0, %v310
    %v312 = vpop.f32.mrf.mxu0
    %313 = vmatprep.mubr.f32.mxu0 0.0
    %314 = vmatmul.mubr.f32.gmra.mxu0 %v188
    %v315 = vpop.f32.mrf.mxu0
    %v316 = vadd.f32 0.0, %v315
    %v317 = vpop.f32.mrf.mxu0
    %318 = vmatprep.mubr.f32.mxu0 0.0
    %319 = vmatmul.mubr.f32.gmra.mxu0 %v191
    %v320 = vpop.f32.mrf.mxu0
    %v321 = vadd.f32 0.0, %v320
    %v322 = vpop.f32.mrf.mxu0
    %323 = vmatprep.mubr.f32.mxu0 0.0
    %324 = vmatmul.mubr.f32.gmra.mxu0 %v194
    %v325 = vpop.f32.mrf.mxu0
    %v326 = vadd.f32 0.0, %v325
    %v327 = vpop.f32.mrf.mxu0
    %328 = vmatprep.mubr.f32.mxu0 0.0
    %329 = vmatmul.mubr.f32.gmra.mxu0 %v197
    %v330 = vpop.f32.mrf.mxu0
    %v331 = vadd.f32 0.0, %v330
    %v332 = vpop.f32.mrf.mxu0
    %333 = vmatprep.mubr.f32.mxu0 0.0
    %334 = vmatmul.mubr.f32.gmra.mxu0 %v200
    %v335 = vpop.f32.mrf.mxu0
    %v336 = vadd.f32 0.0, %v335
    %v337 = vpop.f32.mrf.mxu0
    %338 = vmatprep.mubr.f32.mxu0 0.0
    %339 = vmatmul.mubr.f32.gmra.mxu0 %v203
    %v340 = vpop.f32.mrf.mxu0
    %v341 = vadd.f32 0.0, %v340
    %v342 = vpop.f32.mrf.mxu0
    %343 = vmatprep.mubr.f32.mxu0 0.0
    %344 = vmatmul.mubr.f32.gmra.mxu0 %v206
    %v345 = vpop.f32.mrf.mxu0
    %v346 = vadd.f32 0.0, %v345
    %v347 = vpop.f32.mrf.mxu0
    %348 = vmatprep.mubr.f32.mxu0 0.0
    %349 = vmatmul.mubr.f32.gmra.mxu0 %v209
    %v350 = vpop.f32.mrf.mxu0
    %v351 = vadd.f32 0.0, %v350
    %v352 = vpop.f32.mrf.mxu0
    %353 = vmatprep.mubr.f32.mxu0 0.0
    %354 = vmatmul.mubr.f32.gmra.mxu0 %v212
    %v355 = vpop.f32.mrf.mxu0
    %v356 = vadd.f32 0.0, %v355
    %v357 = vpop.f32.mrf.mxu0
    %358 = vdwg.mxu0
    %v360 = vsel %vm165, %v281, 0
    %v363 = vsel %vm165, %v286, 0
    %v366 = vsel %vm165, %v291, 0
    %v369 = vsel %vm165, %v296, 0
    %v372 = vsel %vm165, %v301, 0
    %v375 = vsel %vm165, %v306, 0
    %v378 = vsel %vm165, %v311, 0
    %v381 = vsel %vm165, %v316, 0
    %v384 = vsel %vm165, %v321, 0
    %v387 = vsel %vm165, %v326, 0
    %v390 = vsel %vm165, %v331, 0
    %v393 = vsel %vm165, %v336, 0
    %v396 = vsel %vm165, %v341, 0
    %v399 = vsel %vm165, %v346, 0
    %v402 = vsel %vm165, %v351, 0
    %v405 = vsel %vm165, %v356, 0
    %407 = vmatprep.subr.mxu0 0.0
    %408 = vmatpush1.msra.mxu0 0.0
    %409 = vmatprep.subr.mxu0 0.0
    %410 = vmatpush1.msra.mxu0 0.0
    %411 = vmatprep.subr.mxu0 0.0
    %412 = vmatpush1.msra.mxu0 0.0
    %413 = vmatprep.subr.mxu0 0.0
    %414 = vmatpush1.msra.mxu0 0.0
    %415 = vmatprep.subr.mxu0 0.0
    %416 = vmatpush1.msra.mxu0 0.0
    %417 = vmatprep.subr.mxu0 0.0
    %418 = vmatpush1.msra.mxu0 0.0
    %419 = vmatprep.subr.mxu0 0.0
    %420 = vmatpush1.msra.mxu0 0.0
    %421 = vmatprep.subr.mxu0 0.0
    %422 = vmatpush1.msra.mxu0 0.0
    %423 = vmatprep.subr.mxu0 0.0
    %424 = vmatpush1.msra.mxu0 0.0
    %425 = vmatprep.subr.mxu0 0.0
    %426 = vmatpush1.msra.mxu0 0.0
    %427 = vmatprep.subr.mxu0 0.0
    %428 = vmatpush1.msra.mxu0 0.0
    %429 = vmatprep.subr.mxu0 0.0
    %430 = vmatpush1.msra.mxu0 0.0
    %431 = vmatprep.subr.mxu0 0.0
    %432 = vmatpush1.msra.mxu0 0.0
    %433 = vmatprep.subr.mxu0 0.0
    %434 = vmatpush1.msra.mxu0 0.0
    %435 = vmatprep.subr.mxu0 0.0
    %436 = vmatpush1.msra.mxu0 0.0
    %437 = vmatprep.subr.mxu0 0.0
    %438 = vmatpush1.msra.mxu0 %v102
    %439 = vmatprep.subr.mxu0 0.0
    %440 = vmatpush2.msra.mxu0 0.0
    %441 = vmatprep.subr.mxu0 0.0
    %442 = vmatpush2.msra.mxu0 0.0
    %443 = vmatprep.subr.mxu0 0.0
    %444 = vmatpush2.msra.mxu0 0.0
    %445 = vmatprep.subr.mxu0 0.0
    %446 = vmatpush2.msra.mxu0 0.0
    %447 = vmatprep.subr.mxu0 0.0
    %448 = vmatpush2.msra.mxu0 0.0
    %449 = vmatprep.subr.mxu0 0.0
    %450 = vmatpush2.msra.mxu0 0.0
    %451 = vmatprep.subr.mxu0 0.0
    %452 = vmatpush2.msra.mxu0 0.0
    %453 = vmatprep.subr.mxu0 0.0
    %454 = vmatpush2.msra.mxu0 0.0
    %455 = vmatprep.subr.mxu0 0.0
    %456 = vmatpush2.msra.mxu0 0.0
    %457 = vmatprep.subr.mxu0 0.0
    %458 = vmatpush2.msra.mxu0 0.0
    %459 = vmatprep.subr.mxu0 0.0
    %460 = vmatpush2.msra.mxu0 0.0
    %461 = vmatprep.subr.mxu0 0.0
    %462 = vmatpush2.msra.mxu0 0.0
    %463 = vmatprep.subr.mxu0 0.0
    %464 = vmatpush2.msra.mxu0 0.0
    %465 = vmatprep.subr.mxu0 0.0
    %466 = vmatpush2.msra.mxu0 0.0
    %467 = vmatprep.subr.mxu0 0.0
    %468 = vmatpush2.msra.mxu0 0.0
    %469 = vmatprep.subr.mxu0 0.0
    %470 = vmatpush2.msra.mxu0 0.0
    %471 = vmatprep.mubr.f32.mxu0 0.0
    %472 = vmatmul.mubr.f32.gmra.mxu0 %v360
    %v473 = vpop.f32.mrf.mxu0
    %v474 = vadd.f32 0.0, %v473
    %v475 = vpop.f32.mrf.mxu0
    %476 = vmatprep.mubr.f32.mxu0 0.0
    %477 = vmatmul.mubr.f32.gmra.mxu0 %v363
    %v478 = vpop.f32.mrf.mxu0
    %v479 = vadd.f32 0.0, %v478
    %v480 = vpop.f32.mrf.mxu0
    %481 = vmatprep.mubr.f32.mxu0 0.0
    %482 = vmatmul.mubr.f32.gmra.mxu0 %v366
    %v483 = vpop.f32.mrf.mxu0
    %v484 = vadd.f32 0.0, %v483
    %v485 = vpop.f32.mrf.mxu0
    %486 = vmatprep.mubr.f32.mxu0 0.0
    %487 = vmatmul.mubr.f32.gmra.mxu0 %v369
    %v488 = vpop.f32.mrf.mxu0
    %v489 = vadd.f32 0.0, %v488
    %v490 = vpop.f32.mrf.mxu0
    %491 = vmatprep.mubr.f32.mxu0 0.0
    %492 = vmatmul.mubr.f32.gmra.mxu0 %v372
    %v493 = vpop.f32.mrf.mxu0
    %v494 = vadd.f32 0.0, %v493
    %v495 = vpop.f32.mrf.mxu0
    %496 = vmatprep.mubr.f32.mxu0 0.0
    %497 = vmatmul.mubr.f32.gmra.mxu0 %v375
    %v498 = vpop.f32.mrf.mxu0
    %v499 = vadd.f32 0.0, %v498
    %v500 = vpop.f32.mrf.mxu0
    %501 = vmatprep.mubr.f32.mxu0 0.0
    %502 = vmatmul.mubr.f32.gmra.mxu0 %v378
    %v503 = vpop.f32.mrf.mxu0
    %v504 = vadd.f32 0.0, %v503
    %v505 = vpop.f32.mrf.mxu0
    %506 = vmatprep.mubr.f32.mxu0 0.0
    %507 = vmatmul.mubr.f32.gmra.mxu0 %v381
    %v508 = vpop.f32.mrf.mxu0
    %v509 = vadd.f32 0.0, %v508
    %v510 = vpop.f32.mrf.mxu0
    %511 = vmatprep.mubr.f32.mxu0 0.0
    %512 = vmatmul.mubr.f32.gmra.mxu0 %v384
    %v513 = vpop.f32.mrf.mxu0
    %v514 = vadd.f32 0.0, %v513
    %v515 = vpop.f32.mrf.mxu0
    %516 = vmatprep.mubr.f32.mxu0 0.0
    %517 = vmatmul.mubr.f32.gmra.mxu0 %v387
    %v518 = vpop.f32.mrf.mxu0
    %v519 = vadd.f32 0.0, %v518
    %v520 = vpop.f32.mrf.mxu0
    %521 = vmatprep.mubr.f32.mxu0 0.0
    %522 = vmatmul.mubr.f32.gmra.mxu0 %v390
    %v523 = vpop.f32.mrf.mxu0
    %v524 = vadd.f32 0.0, %v523
    %v525 = vpop.f32.mrf.mxu0
    %526 = vmatprep.mubr.f32.mxu0 0.0
    %527 = vmatmul.mubr.f32.gmra.mxu0 %v393
    %v528 = vpop.f32.mrf.mxu0
    %v529 = vadd.f32 0.0, %v528
    %v530 = vpop.f32.mrf.mxu0
    %531 = vmatprep.mubr.f32.mxu0 0.0
    %532 = vmatmul.mubr.f32.gmra.mxu0 %v396
    %v533 = vpop.f32.mrf.mxu0
    %v534 = vadd.f32 0.0, %v533
    %v535 = vpop.f32.mrf.mxu0
    %536 = vmatprep.mubr.f32.mxu0 0.0
    %537 = vmatmul.mubr.f32.gmra.mxu0 %v399
    %v538 = vpop.f32.mrf.mxu0
    %v539 = vadd.f32 0.0, %v538
    %v540 = vpop.f32.mrf.mxu0
    %541 = vmatprep.mubr.f32.mxu0 0.0
    %542 = vmatmul.mubr.f32.gmra.mxu0 %v402
    %v543 = vpop.f32.mrf.mxu0
    %v544 = vadd.f32 0.0, %v543
    %v545 = vpop.f32.mrf.mxu0
    %546 = vmatprep.mubr.f32.mxu0 0.0
    %547 = vmatmul.mubr.f32.gmra.mxu0 %v405
    %v548 = vpop.f32.mrf.mxu0
    %v549 = vadd.f32 0.0, %v548
    %v550 = vpop.f32.mrf.mxu0
    %551 = vdwg.mxu0
    %vm552 = vcmp.eq.s32.totalorder %v148, 0
    %vm553 = vcmp.eq.s32.totalorder %v149, 0
    %vm554 = vcmp.eq.s32.totalorder %v150, 0
    %vm555 = vcmp.eq.s32.totalorder %v151, 0
    %vm556 = vcmp.eq.s32.totalorder %v152, 0
    %vm557 = vcmp.eq.s32.totalorder %v153, 0
    %vm558 = vcmp.eq.s32.totalorder %v154, 0
    %vm559 = vcmp.eq.s32.totalorder %v155, 0
    %vm560 = vcmp.eq.s32.totalorder %v156, 0
    %vm561 = vcmp.eq.s32.totalorder %v157, 0
    %vm562 = vcmp.eq.s32.totalorder %v158, 0
    %vm563 = vcmp.eq.s32.totalorder %v159, 0
    %vm564 = vcmp.eq.s32.totalorder %v160, 0
    %vm565 = vcmp.eq.s32.totalorder %v161, 0
    %vm566 = vcmp.eq.s32.totalorder %v162, 0
    %vm567 = vcmp.eq.s32.totalorder %v163, 0
    %v568 = vsel %vm552, %v474, 0.0
    %v569 = vsel %vm553, %v479, 0.0
    %v570 = vsel %vm554, %v484, 0.0
    %v571 = vsel %vm555, %v489, 0.0
    %v572 = vsel %vm556, %v494, 0.0
    %v573 = vsel %vm557, %v499, 0.0
    %v574 = vsel %vm558, %v504, 0.0
    %v575 = vsel %vm559, %v509, 0.0
    %v576 = vsel %vm560, %v514, 0.0
    %v577 = vsel %vm561, %v519, 0.0
    %v578 = vsel %vm562, %v524, 0.0
    %v579 = vsel %vm563, %v529, 0.0
    %v580 = vsel %vm564, %v534, 0.0
    %v581 = vsel %vm565, %v539, 0.0
    %v582 = vsel %vm566, %v544, 0.0
    %v583 = vsel %vm567, %v549, 0.0
    %v584 = vadd.f32 %v568, 0.0
    %v585 = vadd.f32 %v569, 0.0
    %v586 = vadd.f32 %v570, 0.0
    %v587 = vadd.f32 %v571, 0.0
    %v588 = vadd.f32 %v572, 0.0
    %v589 = vadd.f32 %v573, 0.0
    %v590 = vadd.f32 %v574, 0.0
    %v591 = vadd.f32 %v575, 0.0
    %v592 = vadd.f32 %v576, 0.0
    %v593 = vadd.f32 %v577, 0.0
    %v594 = vadd.f32 %v578, 0.0
    %v595 = vadd.f32 %v579, 0.0
    %v596 = vadd.f32 %v580, 0.0
    %v597 = vadd.f32 %v581, 0.0
    %v598 = vadd.f32 %v582, 0.0
    %v599 = vadd.f32 %v583, 0.0
    %s600 = scalar_lea.vmem %s3, 8
    %v601 = vld [vmem:[%s600] sm:$0xff]
    %602 = vmatprep.subr.mxu0 0.0
    %603 = vmatpush1.msra.mxu0 0.0
    %604 = vmatprep.subr.mxu0 0.0
    %605 = vmatpush1.msra.mxu0 0.0
    %606 = vmatprep.subr.mxu0 0.0
    %607 = vmatpush1.msra.mxu0 0.0
    %608 = vmatprep.subr.mxu0 0.0
    %609 = vmatpush1.msra.mxu0 0.0
    %610 = vmatprep.subr.mxu0 0.0
    %611 = vmatpush1.msra.mxu0 0.0
    %612 = vmatprep.subr.mxu0 0.0
    %613 = vmatpush1.msra.mxu0 0.0
    %614 = vmatprep.subr.mxu0 0.0
    %615 = vmatpush1.msra.mxu0 0.0
    %616 = vmatprep.subr.mxu0 0.0
    %617 = vmatpush1.msra.mxu0 0.0
    %618 = vmatprep.subr.mxu0 0.0
    %619 = vmatpush1.msra.mxu0 0.0
    %620 = vmatprep.subr.mxu0 0.0
    %621 = vmatpush1.msra.mxu0 0.0
    %622 = vmatprep.subr.mxu0 0.0
    %623 = vmatpush1.msra.mxu0 0.0
    %624 = vmatprep.subr.mxu0 0.0
    %625 = vmatpush1.msra.mxu0 0.0
    %626 = vmatprep.subr.mxu0 0.0
    %627 = vmatpush1.msra.mxu0 0.0
    %628 = vmatprep.subr.mxu0 0.0
    %629 = vmatpush1.msra.mxu0 0.0
    %630 = vmatprep.subr.mxu0 0.0
    %631 = vmatpush1.msra.mxu0 0.0
    %632 = vmatprep.subr.mxu0 0.0
    %633 = vmatpush1.msra.mxu0 %v601
    %634 = vmatprep.subr.mxu0 0.0
    %635 = vmatpush2.msra.mxu0 0.0
    %636 = vmatprep.subr.mxu0 0.0
    %637 = vmatpush2.msra.mxu0 0.0
    %638 = vmatprep.subr.mxu0 0.0
    %639 = vmatpush2.msra.mxu0 0.0
    %640 = vmatprep.subr.mxu0 0.0
    %641 = vmatpush2.msra.mxu0 0.0
    %642 = vmatprep.subr.mxu0 0.0
    %643 = vmatpush2.msra.mxu0 0.0
    %644 = vmatprep.subr.mxu0 0.0
    %645 = vmatpush2.msra.mxu0 0.0
    %646 = vmatprep.subr.mxu0 0.0
    %647 = vmatpush2.msra.mxu0 0.0
    %648 = vmatprep.subr.mxu0 0.0
    %649 = vmatpush2.msra.mxu0 0.0
    %650 = vmatprep.subr.mxu0 0.0
    %651 = vmatpush2.msra.mxu0 0.0
    %652 = vmatprep.subr.mxu0 0.0
    %653 = vmatpush2.msra.mxu0 0.0
    %654 = vmatprep.subr.mxu0 0.0
    %655 = vmatpush2.msra.mxu0 0.0
    %656 = vmatprep.subr.mxu0 0.0
    %657 = vmatpush2.msra.mxu0 0.0
    %658 = vmatprep.subr.mxu0 0.0
    %659 = vmatpush2.msra.mxu0 0.0
    %660 = vmatprep.subr.mxu0 0.0
    %661 = vmatpush2.msra.mxu0 0.0
    %662 = vmatprep.subr.mxu0 0.0
    %663 = vmatpush2.msra.mxu0 0.0
    %664 = vmatprep.subr.mxu0 0.0
    %665 = vmatpush2.msra.mxu0 0.0
    %666 = vmatprep.mubr.f32.mxu0 0.0
    %667 = vmatmul.mubr.f32.gmra.mxu0 %v167
    %v668 = vpop.f32.mrf.mxu0
    %v669 = vadd.f32 0.0, %v668
    %v670 = vpop.f32.mrf.mxu0
    %671 = vmatprep.mubr.f32.mxu0 0.0
    %672 = vmatmul.mubr.f32.gmra.mxu0 %v170
    %v673 = vpop.f32.mrf.mxu0
    %v674 = vadd.f32 0.0, %v673
    %v675 = vpop.f32.mrf.mxu0
    %676 = vmatprep.mubr.f32.mxu0 0.0
    %677 = vmatmul.mubr.f32.gmra.mxu0 %v173
    %v678 = vpop.f32.mrf.mxu0
    %v679 = vadd.f32 0.0, %v678
    %v680 = vpop.f32.mrf.mxu0
    %681 = vmatprep.mubr.f32.mxu0 0.0
    %682 = vmatmul.mubr.f32.gmra.mxu0 %v176
    %v683 = vpop.f32.mrf.mxu0
    %v684 = vadd.f32 0.0, %v683
    %v685 = vpop.f32.mrf.mxu0
    %686 = vmatprep.mubr.f32.mxu0 0.0
    %687 = vmatmul.mubr.f32.gmra.mxu0 %v179
    %v688 = vpop.f32.mrf.mxu0
    %v689 = vadd.f32 0.0, %v688
    %v690 = vpop.f32.mrf.mxu0
    %691 = vmatprep.mubr.f32.mxu0 0.0
    %692 = vmatmul.mubr.f32.gmra.mxu0 %v182
    %v693 = vpop.f32.mrf.mxu0
    %v694 = vadd.f32 0.0, %v693
    %v695 = vpop.f32.mrf.mxu0
    %696 = vmatprep.mubr.f32.mxu0 0.0
    %697 = vmatmul.mubr.f32.gmra.mxu0 %v185
    %v698 = vpop.f32.mrf.mxu0
    %v699 = vadd.f32 0.0, %v698
    %v700 = vpop.f32.mrf.mxu0
    %701 = vmatprep.mubr.f32.mxu0 0.0
    %702 = vmatmul.mubr.f32.gmra.mxu0 %v188
    %v703 = vpop.f32.mrf.mxu0
    %v704 = vadd.f32 0.0, %v703
    %v705 = vpop.f32.mrf.mxu0
    %706 = vmatprep.mubr.f32.mxu0 0.0
    %707 = vmatmul.mubr.f32.gmra.mxu0 %v191
    %v708 = vpop.f32.mrf.mxu0
    %v709 = vadd.f32 0.0, %v708
    %v710 = vpop.f32.mrf.mxu0
    %711 = vmatprep.mubr.f32.mxu0 0.0
    %712 = vmatmul.mubr.f32.gmra.mxu0 %v194
    %v713 = vpop.f32.mrf.mxu0
    %v714 = vadd.f32 0.0, %v713
    %v715 = vpop.f32.mrf.mxu0
    %716 = vmatprep.mubr.f32.mxu0 0.0
    %717 = vmatmul.mubr.f32.gmra.mxu0 %v197
    %v718 = vpop.f32.mrf.mxu0
    %v719 = vadd.f32 0.0, %v718
    %v720 = vpop.f32.mrf.mxu0
    %721 = vmatprep.mubr.f32.mxu0 0.0
    %722 = vmatmul.mubr.f32.gmra.mxu0 %v200
    %v723 = vpop.f32.mrf.mxu0
    %v724 = vadd.f32 0.0, %v723
    %v725 = vpop.f32.mrf.mxu0
    %726 = vmatprep.mubr.f32.mxu0 0.0
    %727 = vmatmul.mubr.f32.gmra.mxu0 %v203
    %v728 = vpop.f32.mrf.mxu0
    %v729 = vadd.f32 0.0, %v728
    %v730 = vpop.f32.mrf.mxu0
    %731 = vmatprep.mubr.f32.mxu0 0.0
    %732 = vmatmul.mubr.f32.gmra.mxu0 %v206
    %v733 = vpop.f32.mrf.mxu0
    %v734 = vadd.f32 0.0, %v733
    %v735 = vpop.f32.mrf.mxu0
    %736 = vmatprep.mubr.f32.mxu0 0.0
    %737 = vmatmul.mubr.f32.gmra.mxu0 %v209
    %v738 = vpop.f32.mrf.mxu0
    %v739 = vadd.f32 0.0, %v738
    %v740 = vpop.f32.mrf.mxu0
    %741 = vmatprep.mubr.f32.mxu0 0.0
    %742 = vmatmul.mubr.f32.gmra.mxu0 %v212
    %v743 = vpop.f32.mrf.mxu0
    %v744 = vadd.f32 0.0, %v743
    %v745 = vpop.f32.mrf.mxu0
    %746 = vdwg.mxu0
    %v748 = vsel %vm165, %v669, 0
    %v751 = vsel %vm165, %v674, 0
    %v754 = vsel %vm165, %v679, 0
    %v757 = vsel %vm165, %v684, 0
    %v760 = vsel %vm165, %v689, 0
    %v763 = vsel %vm165, %v694, 0
    %v766 = vsel %vm165, %v699, 0
    %v769 = vsel %vm165, %v704, 0
    %v772 = vsel %vm165, %v709, 0
    %v775 = vsel %vm165, %v714, 0
    %v778 = vsel %vm165, %v719, 0
    %v781 = vsel %vm165, %v724, 0
    %v784 = vsel %vm165, %v729, 0
    %v787 = vsel %vm165, %v734, 0
    %v790 = vsel %vm165, %v739, 0
    %v793 = vsel %vm165, %v744, 0
    %795 = vmatprep.subr.mxu0 0.0
    %796 = vmatpush1.msra.mxu0 0.0
    %797 = vmatprep.subr.mxu0 0.0
    %798 = vmatpush1.msra.mxu0 0.0
    %799 = vmatprep.subr.mxu0 0.0
    %800 = vmatpush1.msra.mxu0 0.0
    %801 = vmatprep.subr.mxu0 0.0
    %802 = vmatpush1.msra.mxu0 0.0
    %803 = vmatprep.subr.mxu0 0.0
    %804 = vmatpush1.msra.mxu0 0.0
    %805 = vmatprep.subr.mxu0 0.0
    %806 = vmatpush1.msra.mxu0 0.0
    %807 = vmatprep.subr.mxu0 0.0
    %808 = vmatpush1.msra.mxu0 0.0
    %809 = vmatprep.subr.mxu0 0.0
    %810 = vmatpush1.msra.mxu0 0.0
    %811 = vmatprep.subr.mxu0 0.0
    %812 = vmatpush1.msra.mxu0 0.0
    %813 = vmatprep.subr.mxu0 0.0
    %814 = vmatpush1.msra.mxu0 0.0
    %815 = vmatprep.subr.mxu0 0.0
    %816 = vmatpush1.msra.mxu0 0.0
    %817 = vmatprep.subr.mxu0 0.0
    %818 = vmatpush1.msra.mxu0 0.0
    %819 = vmatprep.subr.mxu0 0.0
    %820 = vmatpush1.msra.mxu0 0.0
    %821 = vmatprep.subr.mxu0 0.0
    %822 = vmatpush1.msra.mxu0 0.0
    %823 = vmatprep.subr.mxu0 0.0
    %824 = vmatpush1.msra.mxu0 0.0
    %825 = vmatprep.subr.mxu0 0.0
    %826 = vmatpush1.msra.mxu0 %v102
    %827 = vmatprep.subr.mxu0 0.0
    %828 = vmatpush2.msra.mxu0 0.0
    %829 = vmatprep.subr.mxu0 0.0
    %830 = vmatpush2.msra.mxu0 0.0
    %831 = vmatprep.subr.mxu0 0.0
    %832 = vmatpush2.msra.mxu0 0.0
    %833 = vmatprep.subr.mxu0 0.0
    %834 = vmatpush2.msra.mxu0 0.0
    %835 = vmatprep.subr.mxu0 0.0
    %836 = vmatpush2.msra.mxu0 0.0
    %837 = vmatprep.subr.mxu0 0.0
    %838 = vmatpush2.msra.mxu0 0.0
    %839 = vmatprep.subr.mxu0 0.0
    %840 = vmatpush2.msra.mxu0 0.0
    %841 = vmatprep.subr.mxu0 0.0
    %842 = vmatpush2.msra.mxu0 0.0
    %843 = vmatprep.subr.mxu0 0.0
    %844 = vmatpush2.msra.mxu0 0.0
    %845 = vmatprep.subr.mxu0 0.0
    %846 = vmatpush2.msra.mxu0 0.0
    %847 = vmatprep.subr.mxu0 0.0
    %848 = vmatpush2.msra.mxu0 0.0
    %849 = vmatprep.subr.mxu0 0.0
    %850 = vmatpush2.msra.mxu0 0.0
    %851 = vmatprep.subr.mxu0 0.0
    %852 = vmatpush2.msra.mxu0 0.0
    %853 = vmatprep.subr.mxu0 0.0
    %854 = vmatpush2.msra.mxu0 0.0
    %855 = vmatprep.subr.mxu0 0.0
    %856 = vmatpush2.msra.mxu0 0.0
    %857 = vmatprep.subr.mxu0 0.0
    %858 = vmatpush2.msra.mxu0 0.0
    %859 = vmatprep.mubr.f32.mxu0 0.0
    %860 = vmatmul.mubr.f32.gmra.mxu0 %v748
    %v861 = vpop.f32.mrf.mxu0
    %v862 = vadd.f32 0.0, %v861
    %v863 = vpop.f32.mrf.mxu0
    %864 = vmatprep.mubr.f32.mxu0 0.0
    %865 = vmatmul.mubr.f32.gmra.mxu0 %v751
    %v866 = vpop.f32.mrf.mxu0
    %v867 = vadd.f32 0.0, %v866
    %v868 = vpop.f32.mrf.mxu0
    %869 = vmatprep.mubr.f32.mxu0 0.0
    %870 = vmatmul.mubr.f32.gmra.mxu0 %v754
    %v871 = vpop.f32.mrf.mxu0
    %v872 = vadd.f32 0.0, %v871
    %v873 = vpop.f32.mrf.mxu0
    %874 = vmatprep.mubr.f32.mxu0 0.0
    %875 = vmatmul.mubr.f32.gmra.mxu0 %v757
    %v876 = vpop.f32.mrf.mxu0
    %v877 = vadd.f32 0.0, %v876
    %v878 = vpop.f32.mrf.mxu0
    %879 = vmatprep.mubr.f32.mxu0 0.0
    %880 = vmatmul.mubr.f32.gmra.mxu0 %v760
    %v881 = vpop.f32.mrf.mxu0
    %v882 = vadd.f32 0.0, %v881
    %v883 = vpop.f32.mrf.mxu0
    %884 = vmatprep.mubr.f32.mxu0 0.0
    %885 = vmatmul.mubr.f32.gmra.mxu0 %v763
    %v886 = vpop.f32.mrf.mxu0
    %v887 = vadd.f32 0.0, %v886
    %v888 = vpop.f32.mrf.mxu0
    %889 = vmatprep.mubr.f32.mxu0 0.0
    %890 = vmatmul.mubr.f32.gmra.mxu0 %v766
    %v891 = vpop.f32.mrf.mxu0
    %v892 = vadd.f32 0.0, %v891
    %v893 = vpop.f32.mrf.mxu0
    %894 = vmatprep.mubr.f32.mxu0 0.0
    %895 = vmatmul.mubr.f32.gmra.mxu0 %v769
    %v896 = vpop.f32.mrf.mxu0
    %v897 = vadd.f32 0.0, %v896
    %v898 = vpop.f32.mrf.mxu0
    %899 = vmatprep.mubr.f32.mxu0 0.0
    %900 = vmatmul.mubr.f32.gmra.mxu0 %v772
    %v901 = vpop.f32.mrf.mxu0
    %v902 = vadd.f32 0.0, %v901
    %v903 = vpop.f32.mrf.mxu0
    %904 = vmatprep.mubr.f32.mxu0 0.0
    %905 = vmatmul.mubr.f32.gmra.mxu0 %v775
    %v906 = vpop.f32.mrf.mxu0
    %v907 = vadd.f32 0.0, %v906
    %v908 = vpop.f32.mrf.mxu0
    %909 = vmatprep.mubr.f32.mxu0 0.0
    %910 = vmatmul.mubr.f32.gmra.mxu0 %v778
    %v911 = vpop.f32.mrf.mxu0
    %v912 = vadd.f32 0.0, %v911
    %v913 = vpop.f32.mrf.mxu0
    %914 = vmatprep.mubr.f32.mxu0 0.0
    %915 = vmatmul.mubr.f32.gmra.mxu0 %v781
    %v916 = vpop.f32.mrf.mxu0
    %v917 = vadd.f32 0.0, %v916
    %v918 = vpop.f32.mrf.mxu0
    %919 = vmatprep.mubr.f32.mxu0 0.0
    %920 = vmatmul.mubr.f32.gmra.mxu0 %v784
    %v921 = vpop.f32.mrf.mxu0
    %v922 = vadd.f32 0.0, %v921
    %v923 = vpop.f32.mrf.mxu0
    %924 = vmatprep.mubr.f32.mxu0 0.0
    %925 = vmatmul.mubr.f32.gmra.mxu0 %v787
    %v926 = vpop.f32.mrf.mxu0
    %v927 = vadd.f32 0.0, %v926
    %v928 = vpop.f32.mrf.mxu0
    %929 = vmatprep.mubr.f32.mxu0 0.0
    %930 = vmatmul.mubr.f32.gmra.mxu0 %v790
    %v931 = vpop.f32.mrf.mxu0
    %v932 = vadd.f32 0.0, %v931
    %v933 = vpop.f32.mrf.mxu0
    %934 = vmatprep.mubr.f32.mxu0 0.0
    %935 = vmatmul.mubr.f32.gmra.mxu0 %v793
    %v936 = vpop.f32.mrf.mxu0
    %v937 = vadd.f32 0.0, %v936
    %v938 = vpop.f32.mrf.mxu0
    %939 = vdwg.mxu0
    %vm940 = vcmp.eq.s32.totalorder %v148, 1
    %vm941 = vcmp.eq.s32.totalorder %v149, 1
    %vm942 = vcmp.eq.s32.totalorder %v150, 1
    %vm943 = vcmp.eq.s32.totalorder %v151, 1
    %vm944 = vcmp.eq.s32.totalorder %v152, 1
    %vm945 = vcmp.eq.s32.totalorder %v153, 1
    %vm946 = vcmp.eq.s32.totalorder %v154, 1
    %vm947 = vcmp.eq.s32.totalorder %v155, 1
    %vm948 = vcmp.eq.s32.totalorder %v156, 1
    %vm949 = vcmp.eq.s32.totalorder %v157, 1
    %vm950 = vcmp.eq.s32.totalorder %v158, 1
    %vm951 = vcmp.eq.s32.totalorder %v159, 1
    %vm952 = vcmp.eq.s32.totalorder %v160, 1
    %vm953 = vcmp.eq.s32.totalorder %v161, 1
    %vm954 = vcmp.eq.s32.totalorder %v162, 1
    %vm955 = vcmp.eq.s32.totalorder %v163, 1
    %v956 = vsel %vm940, %v862, 0.0
    %v957 = vsel %vm941, %v867, 0.0
    %v958 = vsel %vm942, %v872, 0.0
    %v959 = vsel %vm943, %v877, 0.0
    %v960 = vsel %vm944, %v882, 0.0
    %v961 = vsel %vm945, %v887, 0.0
    %v962 = vsel %vm946, %v892, 0.0
    %v963 = vsel %vm947, %v897, 0.0
    %v964 = vsel %vm948, %v902, 0.0
    %v965 = vsel %vm949, %v907, 0.0
    %v966 = vsel %vm950, %v912, 0.0
    %v967 = vsel %vm951, %v917, 0.0
    %v968 = vsel %vm952, %v922, 0.0
    %v969 = vsel %vm953, %v927, 0.0
    %v970 = vsel %vm954, %v932, 0.0
    %v971 = vsel %vm955, %v937, 0.0
    %v972 = vadd.f32 %v584, %v956
    %v973 = vadd.f32 %v585, %v957
    %v974 = vadd.f32 %v586, %v958
    %v975 = vadd.f32 %v587, %v959
    %v976 = vadd.f32 %v588, %v960
    %v977 = vadd.f32 %v589, %v961
    %v978 = vadd.f32 %v590, %v962
    %v979 = vadd.f32 %v591, %v963
    %v980 = vadd.f32 %v592, %v964
    %v981 = vadd.f32 %v593, %v965
    %v982 = vadd.f32 %v594, %v966
    %v983 = vadd.f32 %v595, %v967
    %v984 = vadd.f32 %v596, %v968
    %v985 = vadd.f32 %v597, %v969
    %v986 = vadd.f32 %v598, %v970
    %v987 = vadd.f32 %v599, %v971
    %s988 = scalar_lea.vmem %s3, 16
    %v989 = vld [vmem:[%s988] sm:$0xff]
    %990 = vmatprep.subr.mxu0 0.0
    %991 = vmatpush1.msra.mxu0 0.0
    %992 = vmatprep.subr.mxu0 0.0
    %993 = vmatpush1.msra.mxu0 0.0
    %994 = vmatprep.subr.mxu0 0.0
    %995 = vmatpush1.msra.mxu0 0.0
    %996 = vmatprep.subr.mxu0 0.0
    %997 = vmatpush1.msra.mxu0 0.0
    %998 = vmatprep.subr.mxu0 0.0
    %999 = vmatpush1.msra.mxu0 0.0
    %1000 = vmatprep.subr.mxu0 0.0
    %1001 = vmatpush1.msra.mxu0 0.0
    %1002 = vmatprep.subr.mxu0 0.0
    %1003 = vmatpush1.msra.mxu0 0.0
    %1004 = vmatprep.subr.mxu0 0.0
    %1005 = vmatpush1.msra.mxu0 0.0
    %1006 = vmatprep.subr.mxu0 0.0
    %1007 = vmatpush1.msra.mxu0 0.0
    %1008 = vmatprep.subr.mxu0 0.0
    %1009 = vmatpush1.msra.mxu0 0.0
    %1010 = vmatprep.subr.mxu0 0.0
    %1011 = vmatpush1.msra.mxu0 0.0
    %1012 = vmatprep.subr.mxu0 0.0
    %1013 = vmatpush1.msra.mxu0 0.0
    %1014 = vmatprep.subr.mxu0 0.0
    %1015 = vmatpush1.msra.mxu0 0.0
    %1016 = vmatprep.subr.mxu0 0.0
    %1017 = vmatpush1.msra.mxu0 0.0
    %1018 = vmatprep.subr.mxu0 0.0
    %1019 = vmatpush1.msra.mxu0 0.0
    %1020 = vmatprep.subr.mxu0 0.0
    %1021 = vmatpush1.msra.mxu0 %v989
    %1022 = vmatprep.subr.mxu0 0.0
    %1023 = vmatpush2.msra.mxu0 0.0
    %1024 = vmatprep.subr.mxu0 0.0
    %1025 = vmatpush2.msra.mxu0 0.0
    %1026 = vmatprep.subr.mxu0 0.0
    %1027 = vmatpush2.msra.mxu0 0.0
    %1028 = vmatprep.subr.mxu0 0.0
    %1029 = vmatpush2.msra.mxu0 0.0
    %1030 = vmatprep.subr.mxu0 0.0
    %1031 = vmatpush2.msra.mxu0 0.0
    %1032 = vmatprep.subr.mxu0 0.0
    %1033 = vmatpush2.msra.mxu0 0.0
    %1034 = vmatprep.subr.mxu0 0.0
    %1035 = vmatpush2.msra.mxu0 0.0
    %1036 = vmatprep.subr.mxu0 0.0
    %1037 = vmatpush2.msra.mxu0 0.0
    %1038 = vmatprep.subr.mxu0 0.0
    %1039 = vmatpush2.msra.mxu0 0.0
    %1040 = vmatprep.subr.mxu0 0.0
    %1041 = vmatpush2.msra.mxu0 0.0
    %1042 = vmatprep.subr.mxu0 0.0
    %1043 = vmatpush2.msra.mxu0 0.0
    %1044 = vmatprep.subr.mxu0 0.0
    %1045 = vmatpush2.msra.mxu0 0.0
    %1046 = vmatprep.subr.mxu0 0.0
    %1047 = vmatpush2.msra.mxu0 0.0
    %1048 = vmatprep.subr.mxu0 0.0
    %1049 = vmatpush2.msra.mxu0 0.0
    %1050 = vmatprep.subr.mxu0 0.0
    %1051 = vmatpush2.msra.mxu0 0.0
    %1052 = vmatprep.subr.mxu0 0.0
    %1053 = vmatpush2.msra.mxu0 0.0
    %1054 = vmatprep.mubr.f32.mxu0 0.0
    %1055 = vmatmul.mubr.f32.gmra.mxu0 %v167
    %v1056 = vpop.f32.mrf.mxu0
    %v1057 = vadd.f32 0.0, %v1056
    %v1058 = vpop.f32.mrf.mxu0
    %1059 = vmatprep.mubr.f32.mxu0 0.0
    %1060 = vmatmul.mubr.f32.gmra.mxu0 %v170
    %v1061 = vpop.f32.mrf.mxu0
    %v1062 = vadd.f32 0.0, %v1061
    %v1063 = vpop.f32.mrf.mxu0
    %1064 = vmatprep.mubr.f32.mxu0 0.0
    %1065 = vmatmul.mubr.f32.gmra.mxu0 %v173
    %v1066 = vpop.f32.mrf.mxu0
    %v1067 = vadd.f32 0.0, %v1066
    %v1068 = vpop.f32.mrf.mxu0
    %1069 = vmatprep.mubr.f32.mxu0 0.0
    %1070 = vmatmul.mubr.f32.gmra.mxu0 %v176
    %v1071 = vpop.f32.mrf.mxu0
    %v1072 = vadd.f32 0.0, %v1071
    %v1073 = vpop.f32.mrf.mxu0
    %1074 = vmatprep.mubr.f32.mxu0 0.0
    %1075 = vmatmul.mubr.f32.gmra.mxu0 %v179
    %v1076 = vpop.f32.mrf.mxu0
    %v1077 = vadd.f32 0.0, %v1076
    %v1078 = vpop.f32.mrf.mxu0
    %1079 = vmatprep.mubr.f32.mxu0 0.0
    %1080 = vmatmul.mubr.f32.gmra.mxu0 %v182
    %v1081 = vpop.f32.mrf.mxu0
    %v1082 = vadd.f32 0.0, %v1081
    %v1083 = vpop.f32.mrf.mxu0
    %1084 = vmatprep.mubr.f32.mxu0 0.0
    %1085 = vmatmul.mubr.f32.gmra.mxu0 %v185
    %v1086 = vpop.f32.mrf.mxu0
    %v1087 = vadd.f32 0.0, %v1086
    %v1088 = vpop.f32.mrf.mxu0
    %1089 = vmatprep.mubr.f32.mxu0 0.0
    %1090 = vmatmul.mubr.f32.gmra.mxu0 %v188
    %v1091 = vpop.f32.mrf.mxu0
    %v1092 = vadd.f32 0.0, %v1091
    %v1093 = vpop.f32.mrf.mxu0
    %1094 = vmatprep.mubr.f32.mxu0 0.0
    %1095 = vmatmul.mubr.f32.gmra.mxu0 %v191
    %v1096 = vpop.f32.mrf.mxu0
    %v1097 = vadd.f32 0.0, %v1096
    %v1098 = vpop.f32.mrf.mxu0
    %1099 = vmatprep.mubr.f32.mxu0 0.0
    %1100 = vmatmul.mubr.f32.gmra.mxu0 %v194
    %v1101 = vpop.f32.mrf.mxu0
    %v1102 = vadd.f32 0.0, %v1101
    %v1103 = vpop.f32.mrf.mxu0
    %1104 = vmatprep.mubr.f32.mxu0 0.0
    %1105 = vmatmul.mubr.f32.gmra.mxu0 %v197
    %v1106 = vpop.f32.mrf.mxu0
    %v1107 = vadd.f32 0.0, %v1106
    %v1108 = vpop.f32.mrf.mxu0
    %1109 = vmatprep.mubr.f32.mxu0 0.0
    %1110 = vmatmul.mubr.f32.gmra.mxu0 %v200
    %v1111 = vpop.f32.mrf.mxu0
    %v1112 = vadd.f32 0.0, %v1111
    %v1113 = vpop.f32.mrf.mxu0
    %1114 = vmatprep.mubr.f32.mxu0 0.0
    %1115 = vmatmul.mubr.f32.gmra.mxu0 %v203
    %v1116 = vpop.f32.mrf.mxu0
    %v1117 = vadd.f32 0.0, %v1116
    %v1118 = vpop.f32.mrf.mxu0
    %1119 = vmatprep.mubr.f32.mxu0 0.0
    %1120 = vmatmul.mubr.f32.gmra.mxu0 %v206
    %v1121 = vpop.f32.mrf.mxu0
    %v1122 = vadd.f32 0.0, %v1121
    %v1123 = vpop.f32.mrf.mxu0
    %1124 = vmatprep.mubr.f32.mxu0 0.0
    %1125 = vmatmul.mubr.f32.gmra.mxu0 %v209
    %v1126 = vpop.f32.mrf.mxu0
    %v1127 = vadd.f32 0.0, %v1126
    %v1128 = vpop.f32.mrf.mxu0
    %1129 = vmatprep.mubr.f32.mxu0 0.0
    %1130 = vmatmul.mubr.f32.gmra.mxu0 %v212
    %v1131 = vpop.f32.mrf.mxu0
    %v1132 = vadd.f32 0.0, %v1131
    %v1133 = vpop.f32.mrf.mxu0
    %1134 = vdwg.mxu0
    %v1136 = vsel %vm165, %v1057, 0
    %v1139 = vsel %vm165, %v1062, 0
    %v1142 = vsel %vm165, %v1067, 0
    %v1145 = vsel %vm165, %v1072, 0
    %v1148 = vsel %vm165, %v1077, 0
    %v1151 = vsel %vm165, %v1082, 0
    %v1154 = vsel %vm165, %v1087, 0
    %v1157 = vsel %vm165, %v1092, 0
    %v1160 = vsel %vm165, %v1097, 0
    %v1163 = vsel %vm165, %v1102, 0
    %v1166 = vsel %vm165, %v1107, 0
    %v1169 = vsel %vm165, %v1112, 0
    %v1172 = vsel %vm165, %v1117, 0
    %v1175 = vsel %vm165, %v1122, 0
    %v1178 = vsel %vm165, %v1127, 0
    %v1181 = vsel %vm165, %v1132, 0
    %1183 = vmatprep.subr.mxu0 0.0
    %1184 = vmatpush1.msra.mxu0 0.0
    %1185 = vmatprep.subr.mxu0 0.0
    %1186 = vmatpush1.msra.mxu0 0.0
    %1187 = vmatprep.subr.mxu0 0.0
    %1188 = vmatpush1.msra.mxu0 0.0
    %1189 = vmatprep.subr.mxu0 0.0
    %1190 = vmatpush1.msra.mxu0 0.0
    %1191 = vmatprep.subr.mxu0 0.0
    %1192 = vmatpush1.msra.mxu0 0.0
    %1193 = vmatprep.subr.mxu0 0.0
    %1194 = vmatpush1.msra.mxu0 0.0
    %1195 = vmatprep.subr.mxu0 0.0
    %1196 = vmatpush1.msra.mxu0 0.0
    %1197 = vmatprep.subr.mxu0 0.0
    %1198 = vmatpush1.msra.mxu0 0.0
    %1199 = vmatprep.subr.mxu0 0.0
    %1200 = vmatpush1.msra.mxu0 0.0
    %1201 = vmatprep.subr.mxu0 0.0
    %1202 = vmatpush1.msra.mxu0 0.0
    %1203 = vmatprep.subr.mxu0 0.0
    %1204 = vmatpush1.msra.mxu0 0.0
    %1205 = vmatprep.subr.mxu0 0.0
    %1206 = vmatpush1.msra.mxu0 0.0
    %1207 = vmatprep.subr.mxu0 0.0
    %1208 = vmatpush1.msra.mxu0 0.0
    %1209 = vmatprep.subr.mxu0 0.0
    %1210 = vmatpush1.msra.mxu0 0.0
    %1211 = vmatprep.subr.mxu0 0.0
    %1212 = vmatpush1.msra.mxu0 0.0
    %1213 = vmatprep.subr.mxu0 0.0
    %1214 = vmatpush1.msra.mxu0 %v102
    %1215 = vmatprep.subr.mxu0 0.0
    %1216 = vmatpush2.msra.mxu0 0.0
    %1217 = vmatprep.subr.mxu0 0.0
    %1218 = vmatpush2.msra.mxu0 0.0
    %1219 = vmatprep.subr.mxu0 0.0
    %1220 = vmatpush2.msra.mxu0 0.0
    %1221 = vmatprep.subr.mxu0 0.0
    %1222 = vmatpush2.msra.mxu0 0.0
    %1223 = vmatprep.subr.mxu0 0.0
    %1224 = vmatpush2.msra.mxu0 0.0
    %1225 = vmatprep.subr.mxu0 0.0
    %1226 = vmatpush2.msra.mxu0 0.0
    %1227 = vmatprep.subr.mxu0 0.0
    %1228 = vmatpush2.msra.mxu0 0.0
    %1229 = vmatprep.subr.mxu0 0.0
    %1230 = vmatpush2.msra.mxu0 0.0
    %1231 = vmatprep.subr.mxu0 0.0
    %1232 = vmatpush2.msra.mxu0 0.0
    %1233 = vmatprep.subr.mxu0 0.0
    %1234 = vmatpush2.msra.mxu0 0.0
    %1235 = vmatprep.subr.mxu0 0.0
    %1236 = vmatpush2.msra.mxu0 0.0
    %1237 = vmatprep.subr.mxu0 0.0
    %1238 = vmatpush2.msra.mxu0 0.0
    %1239 = vmatprep.subr.mxu0 0.0
    %1240 = vmatpush2.msra.mxu0 0.0
    %1241 = vmatprep.subr.mxu0 0.0
    %1242 = vmatpush2.msra.mxu0 0.0
    %1243 = vmatprep.subr.mxu0 0.0
    %1244 = vmatpush2.msra.mxu0 0.0
    %1245 = vmatprep.subr.mxu0 0.0
    %1246 = vmatpush2.msra.mxu0 0.0
    %1247 = vmatprep.mubr.f32.mxu0 0.0
    %1248 = vmatmul.mubr.f32.gmra.mxu0 %v1136
    %v1249 = vpop.f32.mrf.mxu0
    %v1250 = vadd.f32 0.0, %v1249
    %v1251 = vpop.f32.mrf.mxu0
    %1252 = vmatprep.mubr.f32.mxu0 0.0
    %1253 = vmatmul.mubr.f32.gmra.mxu0 %v1139
    %v1254 = vpop.f32.mrf.mxu0
    %v1255 = vadd.f32 0.0, %v1254
    %v1256 = vpop.f32.mrf.mxu0
    %1257 = vmatprep.mubr.f32.mxu0 0.0
    %1258 = vmatmul.mubr.f32.gmra.mxu0 %v1142
    %v1259 = vpop.f32.mrf.mxu0
    %v1260 = vadd.f32 0.0, %v1259
    %v1261 = vpop.f32.mrf.mxu0
    %1262 = vmatprep.mubr.f32.mxu0 0.0
    %1263 = vmatmul.mubr.f32.gmra.mxu0 %v1145
    %v1264 = vpop.f32.mrf.mxu0
    %v1265 = vadd.f32 0.0, %v1264
    %v1266 = vpop.f32.mrf.mxu0
    %1267 = vmatprep.mubr.f32.mxu0 0.0
    %1268 = vmatmul.mubr.f32.gmra.mxu0 %v1148
    %v1269 = vpop.f32.mrf.mxu0
    %v1270 = vadd.f32 0.0, %v1269
    %v1271 = vpop.f32.mrf.mxu0
    %1272 = vmatprep.mubr.f32.mxu0 0.0
    %1273 = vmatmul.mubr.f32.gmra.mxu0 %v1151
    %v1274 = vpop.f32.mrf.mxu0
    %v1275 = vadd.f32 0.0, %v1274
    %v1276 = vpop.f32.mrf.mxu0
    %1277 = vmatprep.mubr.f32.mxu0 0.0
    %1278 = vmatmul.mubr.f32.gmra.mxu0 %v1154
    %v1279 = vpop.f32.mrf.mxu0
    %v1280 = vadd.f32 0.0, %v1279
    %v1281 = vpop.f32.mrf.mxu0
    %1282 = vmatprep.mubr.f32.mxu0 0.0
    %1283 = vmatmul.mubr.f32.gmra.mxu0 %v1157
    %v1284 = vpop.f32.mrf.mxu0
    %v1285 = vadd.f32 0.0, %v1284
    %v1286 = vpop.f32.mrf.mxu0
    %1287 = vmatprep.mubr.f32.mxu0 0.0
    %1288 = vmatmul.mubr.f32.gmra.mxu0 %v1160
    %v1289 = vpop.f32.mrf.mxu0
    %v1290 = vadd.f32 0.0, %v1289
    %v1291 = vpop.f32.mrf.mxu0
    %1292 = vmatprep.mubr.f32.mxu0 0.0
    %1293 = vmatmul.mubr.f32.gmra.mxu0 %v1163
    %v1294 = vpop.f32.mrf.mxu0
    %v1295 = vadd.f32 0.0, %v1294
    %v1296 = vpop.f32.mrf.mxu0
    %1297 = vmatprep.mubr.f32.mxu0 0.0
    %1298 = vmatmul.mubr.f32.gmra.mxu0 %v1166
    %v1299 = vpop.f32.mrf.mxu0
    %v1300 = vadd.f32 0.0, %v1299
    %v1301 = vpop.f32.mrf.mxu0
    %1302 = vmatprep.mubr.f32.mxu0 0.0
    %1303 = vmatmul.mubr.f32.gmra.mxu0 %v1169
    %v1304 = vpop.f32.mrf.mxu0
    %v1305 = vadd.f32 0.0, %v1304
    %v1306 = vpop.f32.mrf.mxu0
    %1307 = vmatprep.mubr.f32.mxu0 0.0
    %1308 = vmatmul.mubr.f32.gmra.mxu0 %v1172
    %v1309 = vpop.f32.mrf.mxu0
    %v1310 = vadd.f32 0.0, %v1309
    %v1311 = vpop.f32.mrf.mxu0
    %1312 = vmatprep.mubr.f32.mxu0 0.0
    %1313 = vmatmul.mubr.f32.gmra.mxu0 %v1175
    %v1314 = vpop.f32.mrf.mxu0
    %v1315 = vadd.f32 0.0, %v1314
    %v1316 = vpop.f32.mrf.mxu0
    %1317 = vmatprep.mubr.f32.mxu0 0.0
    %1318 = vmatmul.mubr.f32.gmra.mxu0 %v1178
    %v1319 = vpop.f32.mrf.mxu0
    %v1320 = vadd.f32 0.0, %v1319
    %v1321 = vpop.f32.mrf.mxu0
    %1322 = vmatprep.mubr.f32.mxu0 0.0
    %1323 = vmatmul.mubr.f32.gmra.mxu0 %v1181
    %v1324 = vpop.f32.mrf.mxu0
    %v1325 = vadd.f32 0.0, %v1324
    %v1326 = vpop.f32.mrf.mxu0
    %1327 = vdwg.mxu0
    %vm1328 = vcmp.eq.s32.totalorder %v148, 2
    %vm1329 = vcmp.eq.s32.totalorder %v149, 2
    %vm1330 = vcmp.eq.s32.totalorder %v150, 2
    %vm1331 = vcmp.eq.s32.totalorder %v151, 2
    %vm1332 = vcmp.eq.s32.totalorder %v152, 2
    %vm1333 = vcmp.eq.s32.totalorder %v153, 2
    %vm1334 = vcmp.eq.s32.totalorder %v154, 2
    %vm1335 = vcmp.eq.s32.totalorder %v155, 2
    %vm1336 = vcmp.eq.s32.totalorder %v156, 2
    %vm1337 = vcmp.eq.s32.totalorder %v157, 2
    %vm1338 = vcmp.eq.s32.totalorder %v158, 2
    %vm1339 = vcmp.eq.s32.totalorder %v159, 2
    %vm1340 = vcmp.eq.s32.totalorder %v160, 2
    %vm1341 = vcmp.eq.s32.totalorder %v161, 2
    %vm1342 = vcmp.eq.s32.totalorder %v162, 2
    %vm1343 = vcmp.eq.s32.totalorder %v163, 2
    %v1344 = vsel %vm1328, %v1250, 0.0
    %v1345 = vsel %vm1329, %v1255, 0.0
    %v1346 = vsel %vm1330, %v1260, 0.0
    %v1347 = vsel %vm1331, %v1265, 0.0
    %v1348 = vsel %vm1332, %v1270, 0.0
    %v1349 = vsel %vm1333, %v1275, 0.0
    %v1350 = vsel %vm1334, %v1280, 0.0
    %v1351 = vsel %vm1335, %v1285, 0.0
    %v1352 = vsel %vm1336, %v1290, 0.0
    %v1353 = vsel %vm1337, %v1295, 0.0
    %v1354 = vsel %vm1338, %v1300, 0.0
    %v1355 = vsel %vm1339, %v1305, 0.0
    %v1356 = vsel %vm1340, %v1310, 0.0
    %v1357 = vsel %vm1341, %v1315, 0.0
    %v1358 = vsel %vm1342, %v1320, 0.0
    %v1359 = vsel %vm1343, %v1325, 0.0
    %v1360 = vadd.f32 %v972, %v1344
    %v1361 = vadd.f32 %v973, %v1345
    %v1362 = vadd.f32 %v974, %v1346
    %v1363 = vadd.f32 %v975, %v1347
    %v1364 = vadd.f32 %v976, %v1348
    %v1365 = vadd.f32 %v977, %v1349
    %v1366 = vadd.f32 %v978, %v1350
    %v1367 = vadd.f32 %v979, %v1351
    %v1368 = vadd.f32 %v980, %v1352
    %v1369 = vadd.f32 %v981, %v1353
    %v1370 = vadd.f32 %v982, %v1354
    %v1371 = vadd.f32 %v983, %v1355
    %v1372 = vadd.f32 %v984, %v1356
    %v1373 = vadd.f32 %v985, %v1357
    %v1374 = vadd.f32 %v986, %v1358
    %v1375 = vadd.f32 %v987, %v1359
    %s1376 = scalar_lea.vmem %s3, 24
    %v1377 = vld [vmem:[%s1376] sm:$0xff]
    %1378 = vmatprep.subr.mxu0 0.0
    %1379 = vmatpush1.msra.mxu0 0.0
    %1380 = vmatprep.subr.mxu0 0.0
    %1381 = vmatpush1.msra.mxu0 0.0
    %1382 = vmatprep.subr.mxu0 0.0
    %1383 = vmatpush1.msra.mxu0 0.0
    %1384 = vmatprep.subr.mxu0 0.0
    %1385 = vmatpush1.msra.mxu0 0.0
    %1386 = vmatprep.subr.mxu0 0.0
    %1387 = vmatpush1.msra.mxu0 0.0
    %1388 = vmatprep.subr.mxu0 0.0
    %1389 = vmatpush1.msra.mxu0 0.0
    %1390 = vmatprep.subr.mxu0 0.0
    %1391 = vmatpush1.msra.mxu0 0.0
    %1392 = vmatprep.subr.mxu0 0.0
    %1393 = vmatpush1.msra.mxu0 0.0
    %1394 = vmatprep.subr.mxu0 0.0
    %1395 = vmatpush1.msra.mxu0 0.0
    %1396 = vmatprep.subr.mxu0 0.0
    %1397 = vmatpush1.msra.mxu0 0.0
    %1398 = vmatprep.subr.mxu0 0.0
    %1399 = vmatpush1.msra.mxu0 0.0
    %1400 = vmatprep.subr.mxu0 0.0
    %1401 = vmatpush1.msra.mxu0 0.0
    %1402 = vmatprep.subr.mxu0 0.0
    %1403 = vmatpush1.msra.mxu0 0.0
    %1404 = vmatprep.subr.mxu0 0.0
    %1405 = vmatpush1.msra.mxu0 0.0
    %1406 = vmatprep.subr.mxu0 0.0
    %1407 = vmatpush1.msra.mxu0 0.0
    %1408 = vmatprep.subr.mxu0 0.0
    %1409 = vmatpush1.msra.mxu0 %v1377
    %1410 = vmatprep.subr.mxu0 0.0
    %1411 = vmatpush2.msra.mxu0 0.0
    %1412 = vmatprep.subr.mxu0 0.0
    %1413 = vmatpush2.msra.mxu0 0.0
    %1414 = vmatprep.subr.mxu0 0.0
    %1415 = vmatpush2.msra.mxu0 0.0
    %1416 = vmatprep.subr.mxu0 0.0
    %1417 = vmatpush2.msra.mxu0 0.0
    %1418 = vmatprep.subr.mxu0 0.0
    %1419 = vmatpush2.msra.mxu0 0.0
    %1420 = vmatprep.subr.mxu0 0.0
    %1421 = vmatpush2.msra.mxu0 0.0
    %1422 = vmatprep.subr.mxu0 0.0
    %1423 = vmatpush2.msra.mxu0 0.0
    %1424 = vmatprep.subr.mxu0 0.0
    %1425 = vmatpush2.msra.mxu0 0.0
    %1426 = vmatprep.subr.mxu0 0.0
    %1427 = vmatpush2.msra.mxu0 0.0
    %1428 = vmatprep.subr.mxu0 0.0
    %1429 = vmatpush2.msra.mxu0 0.0
    %1430 = vmatprep.subr.mxu0 0.0
    %1431 = vmatpush2.msra.mxu0 0.0
    %1432 = vmatprep.subr.mxu0 0.0
    %1433 = vmatpush2.msra.mxu0 0.0
    %1434 = vmatprep.subr.mxu0 0.0
    %1435 = vmatpush2.msra.mxu0 0.0
    %1436 = vmatprep.subr.mxu0 0.0
    %1437 = vmatpush2.msra.mxu0 0.0
    %1438 = vmatprep.subr.mxu0 0.0
    %1439 = vmatpush2.msra.mxu0 0.0
    %1440 = vmatprep.subr.mxu0 0.0
    %1441 = vmatpush2.msra.mxu0 0.0
    %1442 = vmatprep.mubr.f32.mxu0 0.0
    %1443 = vmatmul.mubr.f32.gmra.mxu0 %v167
    %v1444 = vpop.f32.mrf.mxu0
    %v1445 = vadd.f32 0.0, %v1444
    %v1446 = vpop.f32.mrf.mxu0
    %1447 = vmatprep.mubr.f32.mxu0 0.0
    %1448 = vmatmul.mubr.f32.gmra.mxu0 %v170
    %v1449 = vpop.f32.mrf.mxu0
    %v1450 = vadd.f32 0.0, %v1449
    %v1451 = vpop.f32.mrf.mxu0
    %1452 = vmatprep.mubr.f32.mxu0 0.0
    %1453 = vmatmul.mubr.f32.gmra.mxu0 %v173
    %v1454 = vpop.f32.mrf.mxu0
    %v1455 = vadd.f32 0.0, %v1454
    %v1456 = vpop.f32.mrf.mxu0
    %1457 = vmatprep.mubr.f32.mxu0 0.0
    %1458 = vmatmul.mubr.f32.gmra.mxu0 %v176
    %v1459 = vpop.f32.mrf.mxu0
    %v1460 = vadd.f32 0.0, %v1459
    %v1461 = vpop.f32.mrf.mxu0
    %1462 = vmatprep.mubr.f32.mxu0 0.0
    %1463 = vmatmul.mubr.f32.gmra.mxu0 %v179
    %v1464 = vpop.f32.mrf.mxu0
    %v1465 = vadd.f32 0.0, %v1464
    %v1466 = vpop.f32.mrf.mxu0
    %1467 = vmatprep.mubr.f32.mxu0 0.0
    %1468 = vmatmul.mubr.f32.gmra.mxu0 %v182
    %v1469 = vpop.f32.mrf.mxu0
    %v1470 = vadd.f32 0.0, %v1469
    %v1471 = vpop.f32.mrf.mxu0
    %1472 = vmatprep.mubr.f32.mxu0 0.0
    %1473 = vmatmul.mubr.f32.gmra.mxu0 %v185
    %v1474 = vpop.f32.mrf.mxu0
    %v1475 = vadd.f32 0.0, %v1474
    %v1476 = vpop.f32.mrf.mxu0
    %1477 = vmatprep.mubr.f32.mxu0 0.0
    %1478 = vmatmul.mubr.f32.gmra.mxu0 %v188
    %v1479 = vpop.f32.mrf.mxu0
    %v1480 = vadd.f32 0.0, %v1479
    %v1481 = vpop.f32.mrf.mxu0
    %1482 = vmatprep.mubr.f32.mxu0 0.0
    %1483 = vmatmul.mubr.f32.gmra.mxu0 %v191
    %v1484 = vpop.f32.mrf.mxu0
    %v1485 = vadd.f32 0.0, %v1484
    %v1486 = vpop.f32.mrf.mxu0
    %1487 = vmatprep.mubr.f32.mxu0 0.0
    %1488 = vmatmul.mubr.f32.gmra.mxu0 %v194
    %v1489 = vpop.f32.mrf.mxu0
    %v1490 = vadd.f32 0.0, %v1489
    %v1491 = vpop.f32.mrf.mxu0
    %1492 = vmatprep.mubr.f32.mxu0 0.0
    %1493 = vmatmul.mubr.f32.gmra.mxu0 %v197
    %v1494 = vpop.f32.mrf.mxu0
    %v1495 = vadd.f32 0.0, %v1494
    %v1496 = vpop.f32.mrf.mxu0
    %1497 = vmatprep.mubr.f32.mxu0 0.0
    %1498 = vmatmul.mubr.f32.gmra.mxu0 %v200
    %v1499 = vpop.f32.mrf.mxu0
    %v1500 = vadd.f32 0.0, %v1499
    %v1501 = vpop.f32.mrf.mxu0
    %1502 = vmatprep.mubr.f32.mxu0 0.0
    %1503 = vmatmul.mubr.f32.gmra.mxu0 %v203
    %v1504 = vpop.f32.mrf.mxu0
    %v1505 = vadd.f32 0.0, %v1504
    %v1506 = vpop.f32.mrf.mxu0
    %1507 = vmatprep.mubr.f32.mxu0 0.0
    %1508 = vmatmul.mubr.f32.gmra.mxu0 %v206
    %v1509 = vpop.f32.mrf.mxu0
    %v1510 = vadd.f32 0.0, %v1509
    %v1511 = vpop.f32.mrf.mxu0
    %1512 = vmatprep.mubr.f32.mxu0 0.0
    %1513 = vmatmul.mubr.f32.gmra.mxu0 %v209
    %v1514 = vpop.f32.mrf.mxu0
    %v1515 = vadd.f32 0.0, %v1514
    %v1516 = vpop.f32.mrf.mxu0
    %1517 = vmatprep.mubr.f32.mxu0 0.0
    %1518 = vmatmul.mubr.f32.gmra.mxu0 %v212
    %v1519 = vpop.f32.mrf.mxu0
    %v1520 = vadd.f32 0.0, %v1519
    %v1521 = vpop.f32.mrf.mxu0
    %1522 = vdwg.mxu0
    %v1524 = vsel %vm165, %v1445, 0
    %v1527 = vsel %vm165, %v1450, 0
    %v1530 = vsel %vm165, %v1455, 0
    %v1533 = vsel %vm165, %v1460, 0
    %v1536 = vsel %vm165, %v1465, 0
    %v1539 = vsel %vm165, %v1470, 0
    %v1542 = vsel %vm165, %v1475, 0
    %v1545 = vsel %vm165, %v1480, 0
    %v1548 = vsel %vm165, %v1485, 0
    %v1551 = vsel %vm165, %v1490, 0
    %v1554 = vsel %vm165, %v1495, 0
    %v1557 = vsel %vm165, %v1500, 0
    %v1560 = vsel %vm165, %v1505, 0
    %v1563 = vsel %vm165, %v1510, 0
    %v1566 = vsel %vm165, %v1515, 0
    %v1569 = vsel %vm165, %v1520, 0
    %1571 = vmatprep.subr.mxu0 0.0
    %1572 = vmatpush1.msra.mxu0 0.0
    %1573 = vmatprep.subr.mxu0 0.0
    %1574 = vmatpush1.msra.mxu0 0.0
    %1575 = vmatprep.subr.mxu0 0.0
    %1576 = vmatpush1.msra.mxu0 0.0
    %1577 = vmatprep.subr.mxu0 0.0
    %1578 = vmatpush1.msra.mxu0 0.0
    %1579 = vmatprep.subr.mxu0 0.0
    %1580 = vmatpush1.msra.mxu0 0.0
    %1581 = vmatprep.subr.mxu0 0.0
    %1582 = vmatpush1.msra.mxu0 0.0
    %1583 = vmatprep.subr.mxu0 0.0
    %1584 = vmatpush1.msra.mxu0 0.0
    %1585 = vmatprep.subr.mxu0 0.0
    %1586 = vmatpush1.msra.mxu0 0.0
    %1587 = vmatprep.subr.mxu0 0.0
    %1588 = vmatpush1.msra.mxu0 0.0
    %1589 = vmatprep.subr.mxu0 0.0
    %1590 = vmatpush1.msra.mxu0 0.0
    %1591 = vmatprep.subr.mxu0 0.0
    %1592 = vmatpush1.msra.mxu0 0.0
    %1593 = vmatprep.subr.mxu0 0.0
    %1594 = vmatpush1.msra.mxu0 0.0
    %1595 = vmatprep.subr.mxu0 0.0
    %1596 = vmatpush1.msra.mxu0 0.0
    %1597 = vmatprep.subr.mxu0 0.0
    %1598 = vmatpush1.msra.mxu0 0.0
    %1599 = vmatprep.subr.mxu0 0.0
    %1600 = vmatpush1.msra.mxu0 0.0
    %1601 = vmatprep.subr.mxu0 0.0
    %1602 = vmatpush1.msra.mxu0 %v102
    %1603 = vmatprep.subr.mxu0 0.0
    %1604 = vmatpush2.msra.mxu0 0.0
    %1605 = vmatprep.subr.mxu0 0.0
    %1606 = vmatpush2.msra.mxu0 0.0
    %1607 = vmatprep.subr.mxu0 0.0
    %1608 = vmatpush2.msra.mxu0 0.0
    %1609 = vmatprep.subr.mxu0 0.0
    %1610 = vmatpush2.msra.mxu0 0.0
    %1611 = vmatprep.subr.mxu0 0.0
    %1612 = vmatpush2.msra.mxu0 0.0
    %1613 = vmatprep.subr.mxu0 0.0
    %1614 = vmatpush2.msra.mxu0 0.0
    %1615 = vmatprep.subr.mxu0 0.0
    %1616 = vmatpush2.msra.mxu0 0.0
    %1617 = vmatprep.subr.mxu0 0.0
    %1618 = vmatpush2.msra.mxu0 0.0
    %1619 = vmatprep.subr.mxu0 0.0
    %1620 = vmatpush2.msra.mxu0 0.0
    %1621 = vmatprep.subr.mxu0 0.0
    %1622 = vmatpush2.msra.mxu0 0.0
    %1623 = vmatprep.subr.mxu0 0.0
    %1624 = vmatpush2.msra.mxu0 0.0
    %1625 = vmatprep.subr.mxu0 0.0
    %1626 = vmatpush2.msra.mxu0 0.0
    %1627 = vmatprep.subr.mxu0 0.0
    %1628 = vmatpush2.msra.mxu0 0.0
    %1629 = vmatprep.subr.mxu0 0.0
    %1630 = vmatpush2.msra.mxu0 0.0
    %1631 = vmatprep.subr.mxu0 0.0
    %1632 = vmatpush2.msra.mxu0 0.0
    %1633 = vmatprep.subr.mxu0 0.0
    %1634 = vmatpush2.msra.mxu0 0.0
    %1635 = vmatprep.mubr.f32.mxu0 0.0
    %1636 = vmatmul.mubr.f32.gmra.mxu0 %v1524
    %v1637 = vpop.f32.mrf.mxu0
    %v1638 = vadd.f32 0.0, %v1637
    %v1639 = vpop.f32.mrf.mxu0
    %1640 = vmatprep.mubr.f32.mxu0 0.0
    %1641 = vmatmul.mubr.f32.gmra.mxu0 %v1527
    %v1642 = vpop.f32.mrf.mxu0
    %v1643 = vadd.f32 0.0, %v1642
    %v1644 = vpop.f32.mrf.mxu0
    %1645 = vmatprep.mubr.f32.mxu0 0.0
    %1646 = vmatmul.mubr.f32.gmra.mxu0 %v1530
    %v1647 = vpop.f32.mrf.mxu0
    %v1648 = vadd.f32 0.0, %v1647
    %v1649 = vpop.f32.mrf.mxu0
    %1650 = vmatprep.mubr.f32.mxu0 0.0
    %1651 = vmatmul.mubr.f32.gmra.mxu0 %v1533
    %v1652 = vpop.f32.mrf.mxu0
    %v1653 = vadd.f32 0.0, %v1652
    %v1654 = vpop.f32.mrf.mxu0
    %1655 = vmatprep.mubr.f32.mxu0 0.0
    %1656 = vmatmul.mubr.f32.gmra.mxu0 %v1536
    %v1657 = vpop.f32.mrf.mxu0
    %v1658 = vadd.f32 0.0, %v1657
    %v1659 = vpop.f32.mrf.mxu0
    %1660 = vmatprep.mubr.f32.mxu0 0.0
    %1661 = vmatmul.mubr.f32.gmra.mxu0 %v1539
    %v1662 = vpop.f32.mrf.mxu0
    %v1663 = vadd.f32 0.0, %v1662
    %v1664 = vpop.f32.mrf.mxu0
    %1665 = vmatprep.mubr.f32.mxu0 0.0
    %1666 = vmatmul.mubr.f32.gmra.mxu0 %v1542
    %v1667 = vpop.f32.mrf.mxu0
    %v1668 = vadd.f32 0.0, %v1667
    %v1669 = vpop.f32.mrf.mxu0
    %1670 = vmatprep.mubr.f32.mxu0 0.0
    %1671 = vmatmul.mubr.f32.gmra.mxu0 %v1545
    %v1672 = vpop.f32.mrf.mxu0
    %v1673 = vadd.f32 0.0, %v1672
    %v1674 = vpop.f32.mrf.mxu0
    %1675 = vmatprep.mubr.f32.mxu0 0.0
    %1676 = vmatmul.mubr.f32.gmra.mxu0 %v1548
    %v1677 = vpop.f32.mrf.mxu0
    %v1678 = vadd.f32 0.0, %v1677
    %v1679 = vpop.f32.mrf.mxu0
    %1680 = vmatprep.mubr.f32.mxu0 0.0
    %1681 = vmatmul.mubr.f32.gmra.mxu0 %v1551
    %v1682 = vpop.f32.mrf.mxu0
    %v1683 = vadd.f32 0.0, %v1682
    %v1684 = vpop.f32.mrf.mxu0
    %1685 = vmatprep.mubr.f32.mxu0 0.0
    %1686 = vmatmul.mubr.f32.gmra.mxu0 %v1554
    %v1687 = vpop.f32.mrf.mxu0
    %v1688 = vadd.f32 0.0, %v1687
    %v1689 = vpop.f32.mrf.mxu0
    %1690 = vmatprep.mubr.f32.mxu0 0.0
    %1691 = vmatmul.mubr.f32.gmra.mxu0 %v1557
    %v1692 = vpop.f32.mrf.mxu0
    %v1693 = vadd.f32 0.0, %v1692
    %v1694 = vpop.f32.mrf.mxu0
    %1695 = vmatprep.mubr.f32.mxu0 0.0
    %1696 = vmatmul.mubr.f32.gmra.mxu0 %v1560
    %v1697 = vpop.f32.mrf.mxu0
    %v1698 = vadd.f32 0.0, %v1697
    %v1699 = vpop.f32.mrf.mxu0
    %1700 = vmatprep.mubr.f32.mxu0 0.0
    %1701 = vmatmul.mubr.f32.gmra.mxu0 %v1563
    %v1702 = vpop.f32.mrf.mxu0
    %v1703 = vadd.f32 0.0, %v1702
    %v1704 = vpop.f32.mrf.mxu0
    %1705 = vmatprep.mubr.f32.mxu0 0.0
    %1706 = vmatmul.mubr.f32.gmra.mxu0 %v1566
    %v1707 = vpop.f32.mrf.mxu0
    %v1708 = vadd.f32 0.0, %v1707
    %v1709 = vpop.f32.mrf.mxu0
    %1710 = vmatprep.mubr.f32.mxu0 0.0
    %1711 = vmatmul.mubr.f32.gmra.mxu0 %v1569
    %v1712 = vpop.f32.mrf.mxu0
    %v1713 = vadd.f32 0.0, %v1712
    %v1714 = vpop.f32.mrf.mxu0
    %1715 = vdwg.mxu0
    %v1716 = vsel %vm552, %v1638, 0.0
    %v1717 = vsel %vm553, %v1643, 0.0
    %v1718 = vsel %vm554, %v1648, 0.0
    %v1719 = vsel %vm555, %v1653, 0.0
    %v1720 = vsel %vm556, %v1658, 0.0
    %v1721 = vsel %vm557, %v1663, 0.0
    %v1722 = vsel %vm558, %v1668, 0.0
    %v1723 = vsel %vm559, %v1673, 0.0
    %v1724 = vsel %vm560, %v1678, 0.0
    %v1725 = vsel %vm561, %v1683, 0.0
    %v1726 = vsel %vm562, %v1688, 0.0
    %v1727 = vsel %vm563, %v1693, 0.0
    %v1728 = vsel %vm564, %v1698, 0.0
    %v1729 = vsel %vm565, %v1703, 0.0
    %v1730 = vsel %vm566, %v1708, 0.0
    %v1731 = vsel %vm567, %v1713, 0.0
    %v1732 = vadd.f32 %v1716, 0.0
    %v1733 = vadd.f32 %v1717, 0.0
    %v1734 = vadd.f32 %v1718, 0.0
    %v1735 = vadd.f32 %v1719, 0.0
    %v1736 = vadd.f32 %v1720, 0.0
    %v1737 = vadd.f32 %v1721, 0.0
    %v1738 = vadd.f32 %v1722, 0.0
    %v1739 = vadd.f32 %v1723, 0.0
    %v1740 = vadd.f32 %v1724, 0.0
    %v1741 = vadd.f32 %v1725, 0.0
    %v1742 = vadd.f32 %v1726, 0.0
    %v1743 = vadd.f32 %v1727, 0.0
    %v1744 = vadd.f32 %v1728, 0.0
    %v1745 = vadd.f32 %v1729, 0.0
    %v1746 = vadd.f32 %v1730, 0.0
    %v1747 = vadd.f32 %v1731, 0.0
    %s1748 = scalar_lea.vmem %s3, 32
    %v1749 = vld [vmem:[%s1748] sm:$0xff]
    %1750 = vmatprep.subr.mxu0 0.0
    %1751 = vmatpush1.msra.mxu0 0.0
    %1752 = vmatprep.subr.mxu0 0.0
    %1753 = vmatpush1.msra.mxu0 0.0
    %1754 = vmatprep.subr.mxu0 0.0
    %1755 = vmatpush1.msra.mxu0 0.0
    %1756 = vmatprep.subr.mxu0 0.0
    %1757 = vmatpush1.msra.mxu0 0.0
    %1758 = vmatprep.subr.mxu0 0.0
    %1759 = vmatpush1.msra.mxu0 0.0
    %1760 = vmatprep.subr.mxu0 0.0
    %1761 = vmatpush1.msra.mxu0 0.0
    %1762 = vmatprep.subr.mxu0 0.0
    %1763 = vmatpush1.msra.mxu0 0.0
    %1764 = vmatprep.subr.mxu0 0.0
    %1765 = vmatpush1.msra.mxu0 0.0
    %1766 = vmatprep.subr.mxu0 0.0
    %1767 = vmatpush1.msra.mxu0 0.0
    %1768 = vmatprep.subr.mxu0 0.0
    %1769 = vmatpush1.msra.mxu0 0.0
    %1770 = vmatprep.subr.mxu0 0.0
    %1771 = vmatpush1.msra.mxu0 0.0
    %1772 = vmatprep.subr.mxu0 0.0
    %1773 = vmatpush1.msra.mxu0 0.0
    %1774 = vmatprep.subr.mxu0 0.0
    %1775 = vmatpush1.msra.mxu0 0.0
    %1776 = vmatprep.subr.mxu0 0.0
    %1777 = vmatpush1.msra.mxu0 0.0
    %1778 = vmatprep.subr.mxu0 0.0
    %1779 = vmatpush1.msra.mxu0 0.0
    %1780 = vmatprep.subr.mxu0 0.0
    %1781 = vmatpush1.msra.mxu0 %v1749
    %1782 = vmatprep.subr.mxu0 0.0
    %1783 = vmatpush2.msra.mxu0 0.0
    %1784 = vmatprep.subr.mxu0 0.0
    %1785 = vmatpush2.msra.mxu0 0.0
    %1786 = vmatprep.subr.mxu0 0.0
    %1787 = vmatpush2.msra.mxu0 0.0
    %1788 = vmatprep.subr.mxu0 0.0
    %1789 = vmatpush2.msra.mxu0 0.0
    %1790 = vmatprep.subr.mxu0 0.0
    %1791 = vmatpush2.msra.mxu0 0.0
    %1792 = vmatprep.subr.mxu0 0.0
    %1793 = vmatpush2.msra.mxu0 0.0
    %1794 = vmatprep.subr.mxu0 0.0
    %1795 = vmatpush2.msra.mxu0 0.0
    %1796 = vmatprep.subr.mxu0 0.0
    %1797 = vmatpush2.msra.mxu0 0.0
    %1798 = vmatprep.subr.mxu0 0.0
    %1799 = vmatpush2.msra.mxu0 0.0
    %1800 = vmatprep.subr.mxu0 0.0
    %1801 = vmatpush2.msra.mxu0 0.0
    %1802 = vmatprep.subr.mxu0 0.0
    %1803 = vmatpush2.msra.mxu0 0.0
    %1804 = vmatprep.subr.mxu0 0.0
    %1805 = vmatpush2.msra.mxu0 0.0
    %1806 = vmatprep.subr.mxu0 0.0
    %1807 = vmatpush2.msra.mxu0 0.0
    %1808 = vmatprep.subr.mxu0 0.0
    %1809 = vmatpush2.msra.mxu0 0.0
    %1810 = vmatprep.subr.mxu0 0.0
    %1811 = vmatpush2.msra.mxu0 0.0
    %1812 = vmatprep.subr.mxu0 0.0
    %1813 = vmatpush2.msra.mxu0 0.0
    %1814 = vmatprep.mubr.f32.mxu0 0.0
    %1815 = vmatmul.mubr.f32.gmra.mxu0 %v167
    %v1816 = vpop.f32.mrf.mxu0
    %v1817 = vadd.f32 0.0, %v1816
    %v1818 = vpop.f32.mrf.mxu0
    %1819 = vmatprep.mubr.f32.mxu0 0.0
    %1820 = vmatmul.mubr.f32.gmra.mxu0 %v170
    %v1821 = vpop.f32.mrf.mxu0
    %v1822 = vadd.f32 0.0, %v1821
    %v1823 = vpop.f32.mrf.mxu0
    %1824 = vmatprep.mubr.f32.mxu0 0.0
    %1825 = vmatmul.mubr.f32.gmra.mxu0 %v173
    %v1826 = vpop.f32.mrf.mxu0
    %v1827 = vadd.f32 0.0, %v1826
    %v1828 = vpop.f32.mrf.mxu0
    %1829 = vmatprep.mubr.f32.mxu0 0.0
    %1830 = vmatmul.mubr.f32.gmra.mxu0 %v176
    %v1831 = vpop.f32.mrf.mxu0
    %v1832 = vadd.f32 0.0, %v1831
    %v1833 = vpop.f32.mrf.mxu0
    %1834 = vmatprep.mubr.f32.mxu0 0.0
    %1835 = vmatmul.mubr.f32.gmra.mxu0 %v179
    %v1836 = vpop.f32.mrf.mxu0
    %v1837 = vadd.f32 0.0, %v1836
    %v1838 = vpop.f32.mrf.mxu0
    %1839 = vmatprep.mubr.f32.mxu0 0.0
    %1840 = vmatmul.mubr.f32.gmra.mxu0 %v182
    %v1841 = vpop.f32.mrf.mxu0
    %v1842 = vadd.f32 0.0, %v1841
    %v1843 = vpop.f32.mrf.mxu0
    %1844 = vmatprep.mubr.f32.mxu0 0.0
    %1845 = vmatmul.mubr.f32.gmra.mxu0 %v185
    %v1846 = vpop.f32.mrf.mxu0
    %v1847 = vadd.f32 0.0, %v1846
    %v1848 = vpop.f32.mrf.mxu0
    %1849 = vmatprep.mubr.f32.mxu0 0.0
    %1850 = vmatmul.mubr.f32.gmra.mxu0 %v188
    %v1851 = vpop.f32.mrf.mxu0
    %v1852 = vadd.f32 0.0, %v1851
    %v1853 = vpop.f32.mrf.mxu0
    %1854 = vmatprep.mubr.f32.mxu0 0.0
    %1855 = vmatmul.mubr.f32.gmra.mxu0 %v191
    %v1856 = vpop.f32.mrf.mxu0
    %v1857 = vadd.f32 0.0, %v1856
    %v1858 = vpop.f32.mrf.mxu0
    %1859 = vmatprep.mubr.f32.mxu0 0.0
    %1860 = vmatmul.mubr.f32.gmra.mxu0 %v194
    %v1861 = vpop.f32.mrf.mxu0
    %v1862 = vadd.f32 0.0, %v1861
    %v1863 = vpop.f32.mrf.mxu0
    %1864 = vmatprep.mubr.f32.mxu0 0.0
    %1865 = vmatmul.mubr.f32.gmra.mxu0 %v197
    %v1866 = vpop.f32.mrf.mxu0
    %v1867 = vadd.f32 0.0, %v1866
    %v1868 = vpop.f32.mrf.mxu0
    %1869 = vmatprep.mubr.f32.mxu0 0.0
    %1870 = vmatmul.mubr.f32.gmra.mxu0 %v200
    %v1871 = vpop.f32.mrf.mxu0
    %v1872 = vadd.f32 0.0, %v1871
    %v1873 = vpop.f32.mrf.mxu0
    %1874 = vmatprep.mubr.f32.mxu0 0.0
    %1875 = vmatmul.mubr.f32.gmra.mxu0 %v203
    %v1876 = vpop.f32.mrf.mxu0
    %v1877 = vadd.f32 0.0, %v1876
    %v1878 = vpop.f32.mrf.mxu0
    %1879 = vmatprep.mubr.f32.mxu0 0.0
    %1880 = vmatmul.mubr.f32.gmra.mxu0 %v206
    %v1881 = vpop.f32.mrf.mxu0
    %v1882 = vadd.f32 0.0, %v1881
    %v1883 = vpop.f32.mrf.mxu0
    %1884 = vmatprep.mubr.f32.mxu0 0.0
    %1885 = vmatmul.mubr.f32.gmra.mxu0 %v209
    %v1886 = vpop.f32.mrf.mxu0
    %v1887 = vadd.f32 0.0, %v1886
    %v1888 = vpop.f32.mrf.mxu0
    %1889 = vmatprep.mubr.f32.mxu0 0.0
    %1890 = vmatmul.mubr.f32.gmra.mxu0 %v212
    %v1891 = vpop.f32.mrf.mxu0
    %v1892 = vadd.f32 0.0, %v1891
    %v1893 = vpop.f32.mrf.mxu0
    %1894 = vdwg.mxu0
    %v1896 = vsel %vm165, %v1817, 0
    %v1899 = vsel %vm165, %v1822, 0
    %v1902 = vsel %vm165, %v1827, 0
    %v1905 = vsel %vm165, %v1832, 0
    %v1908 = vsel %vm165, %v1837, 0
    %v1911 = vsel %vm165, %v1842, 0
    %v1914 = vsel %vm165, %v1847, 0
    %v1917 = vsel %vm165, %v1852, 0
    %v1920 = vsel %vm165, %v1857, 0
    %v1923 = vsel %vm165, %v1862, 0
    %v1926 = vsel %vm165, %v1867, 0
    %v1929 = vsel %vm165, %v1872, 0
    %v1932 = vsel %vm165, %v1877, 0
    %v1935 = vsel %vm165, %v1882, 0
    %v1938 = vsel %vm165, %v1887, 0
    %v1941 = vsel %vm165, %v1892, 0
    %1943 = vmatprep.subr.mxu0 0.0
    %1944 = vmatpush1.msra.mxu0 0.0
    %1945 = vmatprep.subr.mxu0 0.0
    %1946 = vmatpush1.msra.mxu0 0.0
    %1947 = vmatprep.subr.mxu0 0.0
    %1948 = vmatpush1.msra.mxu0 0.0
    %1949 = vmatprep.subr.mxu0 0.0
    %1950 = vmatpush1.msra.mxu0 0.0
    %1951 = vmatprep.subr.mxu0 0.0
    %1952 = vmatpush1.msra.mxu0 0.0
    %1953 = vmatprep.subr.mxu0 0.0
    %1954 = vmatpush1.msra.mxu0 0.0
    %1955 = vmatprep.subr.mxu0 0.0
    %1956 = vmatpush1.msra.mxu0 0.0
    %1957 = vmatprep.subr.mxu0 0.0
    %1958 = vmatpush1.msra.mxu0 0.0
    %1959 = vmatprep.subr.mxu0 0.0
    %1960 = vmatpush1.msra.mxu0 0.0
    %1961 = vmatprep.subr.mxu0 0.0
    %1962 = vmatpush1.msra.mxu0 0.0
    %1963 = vmatprep.subr.mxu0 0.0
    %1964 = vmatpush1.msra.mxu0 0.0
    %1965 = vmatprep.subr.mxu0 0.0
    %1966 = vmatpush1.msra.mxu0 0.0
    %1967 = vmatprep.subr.mxu0 0.0
    %1968 = vmatpush1.msra.mxu0 0.0
    %1969 = vmatprep.subr.mxu0 0.0
    %1970 = vmatpush1.msra.mxu0 0.0
    %1971 = vmatprep.subr.mxu0 0.0
    %1972 = vmatpush1.msra.mxu0 0.0
    %1973 = vmatprep.subr.mxu0 0.0
    %1974 = vmatpush1.msra.mxu0 %v102
    %1975 = vmatprep.subr.mxu0 0.0
    %1976 = vmatpush2.msra.mxu0 0.0
    %1977 = vmatprep.subr.mxu0 0.0
    %1978 = vmatpush2.msra.mxu0 0.0
    %1979 = vmatprep.subr.mxu0 0.0
    %1980 = vmatpush2.msra.mxu0 0.0
    %1981 = vmatprep.subr.mxu0 0.0
    %1982 = vmatpush2.msra.mxu0 0.0
    %1983 = vmatprep.subr.mxu0 0.0
    %1984 = vmatpush2.msra.mxu0 0.0
    %1985 = vmatprep.subr.mxu0 0.0
    %1986 = vmatpush2.msra.mxu0 0.0
    %1987 = vmatprep.subr.mxu0 0.0
    %1988 = vmatpush2.msra.mxu0 0.0
    %1989 = vmatprep.subr.mxu0 0.0
    %1990 = vmatpush2.msra.mxu0 0.0
    %1991 = vmatprep.subr.mxu0 0.0
    %1992 = vmatpush2.msra.mxu0 0.0
    %1993 = vmatprep.subr.mxu0 0.0
    %1994 = vmatpush2.msra.mxu0 0.0
    %1995 = vmatprep.subr.mxu0 0.0
    %1996 = vmatpush2.msra.mxu0 0.0
    %1997 = vmatprep.subr.mxu0 0.0
    %1998 = vmatpush2.msra.mxu0 0.0
    %1999 = vmatprep.subr.mxu0 0.0
    %2000 = vmatpush2.msra.mxu0 0.0
    %2001 = vmatprep.subr.mxu0 0.0
    %2002 = vmatpush2.msra.mxu0 0.0
    %2003 = vmatprep.subr.mxu0 0.0
    %2004 = vmatpush2.msra.mxu0 0.0
    %2005 = vmatprep.subr.mxu0 0.0
    %2006 = vmatpush2.msra.mxu0 0.0
    %2007 = vmatprep.mubr.f32.mxu0 0.0
    %2008 = vmatmul.mubr.f32.gmra.mxu0 %v1896
    %v2009 = vpop.f32.mrf.mxu0
    %v2010 = vadd.f32 0.0, %v2009
    %v2011 = vpop.f32.mrf.mxu0
    %2012 = vmatprep.mubr.f32.mxu0 0.0
    %2013 = vmatmul.mubr.f32.gmra.mxu0 %v1899
    %v2014 = vpop.f32.mrf.mxu0
    %v2015 = vadd.f32 0.0, %v2014
    %v2016 = vpop.f32.mrf.mxu0
    %2017 = vmatprep.mubr.f32.mxu0 0.0
    %2018 = vmatmul.mubr.f32.gmra.mxu0 %v1902
    %v2019 = vpop.f32.mrf.mxu0
    %v2020 = vadd.f32 0.0, %v2019
    %v2021 = vpop.f32.mrf.mxu0
    %2022 = vmatprep.mubr.f32.mxu0 0.0
    %2023 = vmatmul.mubr.f32.gmra.mxu0 %v1905
    %v2024 = vpop.f32.mrf.mxu0
    %v2025 = vadd.f32 0.0, %v2024
    %v2026 = vpop.f32.mrf.mxu0
    %2027 = vmatprep.mubr.f32.mxu0 0.0
    %2028 = vmatmul.mubr.f32.gmra.mxu0 %v1908
    %v2029 = vpop.f32.mrf.mxu0
    %v2030 = vadd.f32 0.0, %v2029
    %v2031 = vpop.f32.mrf.mxu0
    %2032 = vmatprep.mubr.f32.mxu0 0.0
    %2033 = vmatmul.mubr.f32.gmra.mxu0 %v1911
    %v2034 = vpop.f32.mrf.mxu0
    %v2035 = vadd.f32 0.0, %v2034
    %v2036 = vpop.f32.mrf.mxu0
    %2037 = vmatprep.mubr.f32.mxu0 0.0
    %2038 = vmatmul.mubr.f32.gmra.mxu0 %v1914
    %v2039 = vpop.f32.mrf.mxu0
    %v2040 = vadd.f32 0.0, %v2039
    %v2041 = vpop.f32.mrf.mxu0
    %2042 = vmatprep.mubr.f32.mxu0 0.0
    %2043 = vmatmul.mubr.f32.gmra.mxu0 %v1917
    %v2044 = vpop.f32.mrf.mxu0
    %v2045 = vadd.f32 0.0, %v2044
    %v2046 = vpop.f32.mrf.mxu0
    %2047 = vmatprep.mubr.f32.mxu0 0.0
    %2048 = vmatmul.mubr.f32.gmra.mxu0 %v1920
    %v2049 = vpop.f32.mrf.mxu0
    %v2050 = vadd.f32 0.0, %v2049
    %v2051 = vpop.f32.mrf.mxu0
    %2052 = vmatprep.mubr.f32.mxu0 0.0
    %2053 = vmatmul.mubr.f32.gmra.mxu0 %v1923
    %v2054 = vpop.f32.mrf.mxu0
    %v2055 = vadd.f32 0.0, %v2054
    %v2056 = vpop.f32.mrf.mxu0
    %2057 = vmatprep.mubr.f32.mxu0 0.0
    %2058 = vmatmul.mubr.f32.gmra.mxu0 %v1926
    %v2059 = vpop.f32.mrf.mxu0
    %v2060 = vadd.f32 0.0, %v2059
    %v2061 = vpop.f32.mrf.mxu0
    %2062 = vmatprep.mubr.f32.mxu0 0.0
    %2063 = vmatmul.mubr.f32.gmra.mxu0 %v1929
    %v2064 = vpop.f32.mrf.mxu0
    %v2065 = vadd.f32 0.0, %v2064
    %v2066 = vpop.f32.mrf.mxu0
    %2067 = vmatprep.mubr.f32.mxu0 0.0
    %2068 = vmatmul.mubr.f32.gmra.mxu0 %v1932
    %v2069 = vpop.f32.mrf.mxu0
    %v2070 = vadd.f32 0.0, %v2069
    %v2071 = vpop.f32.mrf.mxu0
    %2072 = vmatprep.mubr.f32.mxu0 0.0
    %2073 = vmatmul.mubr.f32.gmra.mxu0 %v1935
    %v2074 = vpop.f32.mrf.mxu0
    %v2075 = vadd.f32 0.0, %v2074
    %v2076 = vpop.f32.mrf.mxu0
    %2077 = vmatprep.mubr.f32.mxu0 0.0
    %2078 = vmatmul.mubr.f32.gmra.mxu0 %v1938
    %v2079 = vpop.f32.mrf.mxu0
    %v2080 = vadd.f32 0.0, %v2079
    %v2081 = vpop.f32.mrf.mxu0
    %2082 = vmatprep.mubr.f32.mxu0 0.0
    %2083 = vmatmul.mubr.f32.gmra.mxu0 %v1941
    %v2084 = vpop.f32.mrf.mxu0
    %v2085 = vadd.f32 0.0, %v2084
    %v2086 = vpop.f32.mrf.mxu0
    %2087 = vdwg.mxu0
    %v2088 = vsel %vm940, %v2010, 0.0
    %v2089 = vsel %vm941, %v2015, 0.0
    %v2090 = vsel %vm942, %v2020, 0.0
    %v2091 = vsel %vm943, %v2025, 0.0
    %v2092 = vsel %vm944, %v2030, 0.0
    %v2093 = vsel %vm945, %v2035, 0.0
    %v2094 = vsel %vm946, %v2040, 0.0
    %v2095 = vsel %vm947, %v2045, 0.0
    %v2096 = vsel %vm948, %v2050, 0.0
    %v2097 = vsel %vm949, %v2055, 0.0
    %v2098 = vsel %vm950, %v2060, 0.0
    %v2099 = vsel %vm951, %v2065, 0.0
    %v2100 = vsel %vm952, %v2070, 0.0
    %v2101 = vsel %vm953, %v2075, 0.0
    %v2102 = vsel %vm954, %v2080, 0.0
    %v2103 = vsel %vm955, %v2085, 0.0
    %v2104 = vadd.f32 %v1732, %v2088
    %v2105 = vadd.f32 %v1733, %v2089
    %v2106 = vadd.f32 %v1734, %v2090
    %v2107 = vadd.f32 %v1735, %v2091
    %v2108 = vadd.f32 %v1736, %v2092
    %v2109 = vadd.f32 %v1737, %v2093
    %v2110 = vadd.f32 %v1738, %v2094
    %v2111 = vadd.f32 %v1739, %v2095
    %v2112 = vadd.f32 %v1740, %v2096
    %v2113 = vadd.f32 %v1741, %v2097
    %v2114 = vadd.f32 %v1742, %v2098
    %v2115 = vadd.f32 %v1743, %v2099
    %v2116 = vadd.f32 %v1744, %v2100
    %v2117 = vadd.f32 %v1745, %v2101
    %v2118 = vadd.f32 %v1746, %v2102
    %v2119 = vadd.f32 %v1747, %v2103
    %s2120 = scalar_lea.vmem %s3, 40
    %v2121 = vld [vmem:[%s2120] sm:$0xff]
    %2122 = vmatprep.subr.mxu0 0.0
    %2123 = vmatpush1.msra.mxu0 0.0
    %2124 = vmatprep.subr.mxu0 0.0
    %2125 = vmatpush1.msra.mxu0 0.0
    %2126 = vmatprep.subr.mxu0 0.0
    %2127 = vmatpush1.msra.mxu0 0.0
    %2128 = vmatprep.subr.mxu0 0.0
    %2129 = vmatpush1.msra.mxu0 0.0
    %2130 = vmatprep.subr.mxu0 0.0
    %2131 = vmatpush1.msra.mxu0 0.0
    %2132 = vmatprep.subr.mxu0 0.0
    %2133 = vmatpush1.msra.mxu0 0.0
    %2134 = vmatprep.subr.mxu0 0.0
    %2135 = vmatpush1.msra.mxu0 0.0
    %2136 = vmatprep.subr.mxu0 0.0
    %2137 = vmatpush1.msra.mxu0 0.0
    %2138 = vmatprep.subr.mxu0 0.0
    %2139 = vmatpush1.msra.mxu0 0.0
    %2140 = vmatprep.subr.mxu0 0.0
    %2141 = vmatpush1.msra.mxu0 0.0
    %2142 = vmatprep.subr.mxu0 0.0
    %2143 = vmatpush1.msra.mxu0 0.0
    %2144 = vmatprep.subr.mxu0 0.0
    %2145 = vmatpush1.msra.mxu0 0.0
    %2146 = vmatprep.subr.mxu0 0.0
    %2147 = vmatpush1.msra.mxu0 0.0
    %2148 = vmatprep.subr.mxu0 0.0
    %2149 = vmatpush1.msra.mxu0 0.0
    %2150 = vmatprep.subr.mxu0 0.0
    %2151 = vmatpush1.msra.mxu0 0.0
    %2152 = vmatprep.subr.mxu0 0.0
    %2153 = vmatpush1.msra.mxu0 %v2121
    %2154 = vmatprep.subr.mxu0 0.0
    %2155 = vmatpush2.msra.mxu0 0.0
    %2156 = vmatprep.subr.mxu0 0.0
    %2157 = vmatpush2.msra.mxu0 0.0
    %2158 = vmatprep.subr.mxu0 0.0
    %2159 = vmatpush2.msra.mxu0 0.0
    %2160 = vmatprep.subr.mxu0 0.0
    %2161 = vmatpush2.msra.mxu0 0.0
    %2162 = vmatprep.subr.mxu0 0.0
    %2163 = vmatpush2.msra.mxu0 0.0
    %2164 = vmatprep.subr.mxu0 0.0
    %2165 = vmatpush2.msra.mxu0 0.0
    %2166 = vmatprep.subr.mxu0 0.0
    %2167 = vmatpush2.msra.mxu0 0.0
    %2168 = vmatprep.subr.mxu0 0.0
    %2169 = vmatpush2.msra.mxu0 0.0
    %2170 = vmatprep.subr.mxu0 0.0
    %2171 = vmatpush2.msra.mxu0 0.0
    %2172 = vmatprep.subr.mxu0 0.0
    %2173 = vmatpush2.msra.mxu0 0.0
    %2174 = vmatprep.subr.mxu0 0.0
    %2175 = vmatpush2.msra.mxu0 0.0
    %2176 = vmatprep.subr.mxu0 0.0
    %2177 = vmatpush2.msra.mxu0 0.0
    %2178 = vmatprep.subr.mxu0 0.0
    %2179 = vmatpush2.msra.mxu0 0.0
    %2180 = vmatprep.subr.mxu0 0.0
    %2181 = vmatpush2.msra.mxu0 0.0
    %2182 = vmatprep.subr.mxu0 0.0
    %2183 = vmatpush2.msra.mxu0 0.0
    %2184 = vmatprep.subr.mxu0 0.0
    %2185 = vmatpush2.msra.mxu0 0.0
    %2186 = vmatprep.mubr.f32.mxu0 0.0
    %2187 = vmatmul.mubr.f32.gmra.mxu0 %v167
    %v2188 = vpop.f32.mrf.mxu0
    %v2189 = vadd.f32 0.0, %v2188
    %v2190 = vpop.f32.mrf.mxu0
    %2191 = vmatprep.mubr.f32.mxu0 0.0
    %2192 = vmatmul.mubr.f32.gmra.mxu0 %v170
    %v2193 = vpop.f32.mrf.mxu0
    %v2194 = vadd.f32 0.0, %v2193
    %v2195 = vpop.f32.mrf.mxu0
    %2196 = vmatprep.mubr.f32.mxu0 0.0
    %2197 = vmatmul.mubr.f32.gmra.mxu0 %v173
    %v2198 = vpop.f32.mrf.mxu0
    %v2199 = vadd.f32 0.0, %v2198
    %v2200 = vpop.f32.mrf.mxu0
    %2201 = vmatprep.mubr.f32.mxu0 0.0
    %2202 = vmatmul.mubr.f32.gmra.mxu0 %v176
    %v2203 = vpop.f32.mrf.mxu0
    %v2204 = vadd.f32 0.0, %v2203
    %v2205 = vpop.f32.mrf.mxu0
    %2206 = vmatprep.mubr.f32.mxu0 0.0
    %2207 = vmatmul.mubr.f32.gmra.mxu0 %v179
    %v2208 = vpop.f32.mrf.mxu0
    %v2209 = vadd.f32 0.0, %v2208
    %v2210 = vpop.f32.mrf.mxu0
    %2211 = vmatprep.mubr.f32.mxu0 0.0
    %2212 = vmatmul.mubr.f32.gmra.mxu0 %v182
    %v2213 = vpop.f32.mrf.mxu0
    %v2214 = vadd.f32 0.0, %v2213
    %v2215 = vpop.f32.mrf.mxu0
    %2216 = vmatprep.mubr.f32.mxu0 0.0
    %2217 = vmatmul.mubr.f32.gmra.mxu0 %v185
    %v2218 = vpop.f32.mrf.mxu0
    %v2219 = vadd.f32 0.0, %v2218
    %v2220 = vpop.f32.mrf.mxu0
    %2221 = vmatprep.mubr.f32.mxu0 0.0
    %2222 = vmatmul.mubr.f32.gmra.mxu0 %v188
    %v2223 = vpop.f32.mrf.mxu0
    %v2224 = vadd.f32 0.0, %v2223
    %v2225 = vpop.f32.mrf.mxu0
    %2226 = vmatprep.mubr.f32.mxu0 0.0
    %2227 = vmatmul.mubr.f32.gmra.mxu0 %v191
    %v2228 = vpop.f32.mrf.mxu0
    %v2229 = vadd.f32 0.0, %v2228
    %v2230 = vpop.f32.mrf.mxu0
    %2231 = vmatprep.mubr.f32.mxu0 0.0
    %2232 = vmatmul.mubr.f32.gmra.mxu0 %v194
    %v2233 = vpop.f32.mrf.mxu0
    %v2234 = vadd.f32 0.0, %v2233
    %v2235 = vpop.f32.mrf.mxu0
    %2236 = vmatprep.mubr.f32.mxu0 0.0
    %2237 = vmatmul.mubr.f32.gmra.mxu0 %v197
    %v2238 = vpop.f32.mrf.mxu0
    %v2239 = vadd.f32 0.0, %v2238
    %v2240 = vpop.f32.mrf.mxu0
    %2241 = vmatprep.mubr.f32.mxu0 0.0
    %2242 = vmatmul.mubr.f32.gmra.mxu0 %v200
    %v2243 = vpop.f32.mrf.mxu0
    %v2244 = vadd.f32 0.0, %v2243
    %v2245 = vpop.f32.mrf.mxu0
    %2246 = vmatprep.mubr.f32.mxu0 0.0
    %2247 = vmatmul.mubr.f32.gmra.mxu0 %v203
    %v2248 = vpop.f32.mrf.mxu0
    %v2249 = vadd.f32 0.0, %v2248
    %v2250 = vpop.f32.mrf.mxu0
    %2251 = vmatprep.mubr.f32.mxu0 0.0
    %2252 = vmatmul.mubr.f32.gmra.mxu0 %v206
    %v2253 = vpop.f32.mrf.mxu0
    %v2254 = vadd.f32 0.0, %v2253
    %v2255 = vpop.f32.mrf.mxu0
    %2256 = vmatprep.mubr.f32.mxu0 0.0
    %2257 = vmatmul.mubr.f32.gmra.mxu0 %v209
    %v2258 = vpop.f32.mrf.mxu0
    %v2259 = vadd.f32 0.0, %v2258
    %v2260 = vpop.f32.mrf.mxu0
    %2261 = vmatprep.mubr.f32.mxu0 0.0
    %2262 = vmatmul.mubr.f32.gmra.mxu0 %v212
    %v2263 = vpop.f32.mrf.mxu0
    %v2264 = vadd.f32 0.0, %v2263
    %v2265 = vpop.f32.mrf.mxu0
    %2266 = vdwg.mxu0
    %v2268 = vsel %vm165, %v2189, 0
    %v2271 = vsel %vm165, %v2194, 0
    %v2274 = vsel %vm165, %v2199, 0
    %v2277 = vsel %vm165, %v2204, 0
    %v2280 = vsel %vm165, %v2209, 0
    %v2283 = vsel %vm165, %v2214, 0
    %v2286 = vsel %vm165, %v2219, 0
    %v2289 = vsel %vm165, %v2224, 0
    %v2292 = vsel %vm165, %v2229, 0
    %v2295 = vsel %vm165, %v2234, 0
    %v2298 = vsel %vm165, %v2239, 0
    %v2301 = vsel %vm165, %v2244, 0
    %v2304 = vsel %vm165, %v2249, 0
    %v2307 = vsel %vm165, %v2254, 0
    %v2310 = vsel %vm165, %v2259, 0
    %v2313 = vsel %vm165, %v2264, 0
    %2315 = vmatprep.subr.mxu0 0.0
    %2316 = vmatpush1.msra.mxu0 0.0
    %2317 = vmatprep.subr.mxu0 0.0
    %2318 = vmatpush1.msra.mxu0 0.0
    %2319 = vmatprep.subr.mxu0 0.0
    %2320 = vmatpush1.msra.mxu0 0.0
    %2321 = vmatprep.subr.mxu0 0.0
    %2322 = vmatpush1.msra.mxu0 0.0
    %2323 = vmatprep.subr.mxu0 0.0
    %2324 = vmatpush1.msra.mxu0 0.0
    %2325 = vmatprep.subr.mxu0 0.0
    %2326 = vmatpush1.msra.mxu0 0.0
    %2327 = vmatprep.subr.mxu0 0.0
    %2328 = vmatpush1.msra.mxu0 0.0
    %2329 = vmatprep.subr.mxu0 0.0
    %2330 = vmatpush1.msra.mxu0 0.0
    %2331 = vmatprep.subr.mxu0 0.0
    %2332 = vmatpush1.msra.mxu0 0.0
    %2333 = vmatprep.subr.mxu0 0.0
    %2334 = vmatpush1.msra.mxu0 0.0
    %2335 = vmatprep.subr.mxu0 0.0
    %2336 = vmatpush1.msra.mxu0 0.0
    %2337 = vmatprep.subr.mxu0 0.0
    %2338 = vmatpush1.msra.mxu0 0.0
    %2339 = vmatprep.subr.mxu0 0.0
    %2340 = vmatpush1.msra.mxu0 0.0
    %2341 = vmatprep.subr.mxu0 0.0
    %2342 = vmatpush1.msra.mxu0 0.0
    %2343 = vmatprep.subr.mxu0 0.0
    %2344 = vmatpush1.msra.mxu0 0.0
    %2345 = vmatprep.subr.mxu0 0.0
    %2346 = vmatpush1.msra.mxu0 %v102
    %2347 = vmatprep.subr.mxu0 0.0
    %2348 = vmatpush2.msra.mxu0 0.0
    %2349 = vmatprep.subr.mxu0 0.0
    %2350 = vmatpush2.msra.mxu0 0.0
    %2351 = vmatprep.subr.mxu0 0.0
    %2352 = vmatpush2.msra.mxu0 0.0
    %2353 = vmatprep.subr.mxu0 0.0
    %2354 = vmatpush2.msra.mxu0 0.0
    %2355 = vmatprep.subr.mxu0 0.0
    %2356 = vmatpush2.msra.mxu0 0.0
    %2357 = vmatprep.subr.mxu0 0.0
    %2358 = vmatpush2.msra.mxu0 0.0
    %2359 = vmatprep.subr.mxu0 0.0
    %2360 = vmatpush2.msra.mxu0 0.0
    %2361 = vmatprep.subr.mxu0 0.0
    %2362 = vmatpush2.msra.mxu0 0.0
    %2363 = vmatprep.subr.mxu0 0.0
    %2364 = vmatpush2.msra.mxu0 0.0
    %2365 = vmatprep.subr.mxu0 0.0
    %2366 = vmatpush2.msra.mxu0 0.0
    %2367 = vmatprep.subr.mxu0 0.0
    %2368 = vmatpush2.msra.mxu0 0.0
    %2369 = vmatprep.subr.mxu0 0.0
    %2370 = vmatpush2.msra.mxu0 0.0
    %2371 = vmatprep.subr.mxu0 0.0
    %2372 = vmatpush2.msra.mxu0 0.0
    %2373 = vmatprep.subr.mxu0 0.0
    %2374 = vmatpush2.msra.mxu0 0.0
    %2375 = vmatprep.subr.mxu0 0.0
    %2376 = vmatpush2.msra.mxu0 0.0
    %2377 = vmatprep.subr.mxu0 0.0
    %2378 = vmatpush2.msra.mxu0 0.0
    %2379 = vmatprep.mubr.f32.mxu0 0.0
    %2380 = vmatmul.mubr.f32.gmra.mxu0 %v2268
    %v2381 = vpop.f32.mrf.mxu0
    %v2382 = vadd.f32 0.0, %v2381
    %v2383 = vpop.f32.mrf.mxu0
    %2384 = vmatprep.mubr.f32.mxu0 0.0
    %2385 = vmatmul.mubr.f32.gmra.mxu0 %v2271
    %v2386 = vpop.f32.mrf.mxu0
    %v2387 = vadd.f32 0.0, %v2386
    %v2388 = vpop.f32.mrf.mxu0
    %2389 = vmatprep.mubr.f32.mxu0 0.0
    %2390 = vmatmul.mubr.f32.gmra.mxu0 %v2274
    %v2391 = vpop.f32.mrf.mxu0
    %v2392 = vadd.f32 0.0, %v2391
    %v2393 = vpop.f32.mrf.mxu0
    %2394 = vmatprep.mubr.f32.mxu0 0.0
    %2395 = vmatmul.mubr.f32.gmra.mxu0 %v2277
    %v2396 = vpop.f32.mrf.mxu0
    %v2397 = vadd.f32 0.0, %v2396
    %v2398 = vpop.f32.mrf.mxu0
    %2399 = vmatprep.mubr.f32.mxu0 0.0
    %2400 = vmatmul.mubr.f32.gmra.mxu0 %v2280
    %v2401 = vpop.f32.mrf.mxu0
    %v2402 = vadd.f32 0.0, %v2401
    %v2403 = vpop.f32.mrf.mxu0
    %2404 = vmatprep.mubr.f32.mxu0 0.0
    %2405 = vmatmul.mubr.f32.gmra.mxu0 %v2283
    %v2406 = vpop.f32.mrf.mxu0
    %v2407 = vadd.f32 0.0, %v2406
    %v2408 = vpop.f32.mrf.mxu0
    %2409 = vmatprep.mubr.f32.mxu0 0.0
    %2410 = vmatmul.mubr.f32.gmra.mxu0 %v2286
    %v2411 = vpop.f32.mrf.mxu0
    %v2412 = vadd.f32 0.0, %v2411
    %v2413 = vpop.f32.mrf.mxu0
    %2414 = vmatprep.mubr.f32.mxu0 0.0
    %2415 = vmatmul.mubr.f32.gmra.mxu0 %v2289
    %v2416 = vpop.f32.mrf.mxu0
    %v2417 = vadd.f32 0.0, %v2416
    %v2418 = vpop.f32.mrf.mxu0
    %2419 = vmatprep.mubr.f32.mxu0 0.0
    %2420 = vmatmul.mubr.f32.gmra.mxu0 %v2292
    %v2421 = vpop.f32.mrf.mxu0
    %v2422 = vadd.f32 0.0, %v2421
    %v2423 = vpop.f32.mrf.mxu0
    %2424 = vmatprep.mubr.f32.mxu0 0.0
    %2425 = vmatmul.mubr.f32.gmra.mxu0 %v2295
    %v2426 = vpop.f32.mrf.mxu0
    %v2427 = vadd.f32 0.0, %v2426
    %v2428 = vpop.f32.mrf.mxu0
    %2429 = vmatprep.mubr.f32.mxu0 0.0
    %2430 = vmatmul.mubr.f32.gmra.mxu0 %v2298
    %v2431 = vpop.f32.mrf.mxu0
    %v2432 = vadd.f32 0.0, %v2431
    %v2433 = vpop.f32.mrf.mxu0
    %2434 = vmatprep.mubr.f32.mxu0 0.0
    %2435 = vmatmul.mubr.f32.gmra.mxu0 %v2301
    %v2436 = vpop.f32.mrf.mxu0
    %v2437 = vadd.f32 0.0, %v2436
    %v2438 = vpop.f32.mrf.mxu0
    %2439 = vmatprep.mubr.f32.mxu0 0.0
    %2440 = vmatmul.mubr.f32.gmra.mxu0 %v2304
    %v2441 = vpop.f32.mrf.mxu0
    %v2442 = vadd.f32 0.0, %v2441
    %v2443 = vpop.f32.mrf.mxu0
    %2444 = vmatprep.mubr.f32.mxu0 0.0
    %2445 = vmatmul.mubr.f32.gmra.mxu0 %v2307
    %v2446 = vpop.f32.mrf.mxu0
    %v2447 = vadd.f32 0.0, %v2446
    %v2448 = vpop.f32.mrf.mxu0
    %2449 = vmatprep.mubr.f32.mxu0 0.0
    %2450 = vmatmul.mubr.f32.gmra.mxu0 %v2310
    %v2451 = vpop.f32.mrf.mxu0
    %v2452 = vadd.f32 0.0, %v2451
    %v2453 = vpop.f32.mrf.mxu0
    %2454 = vmatprep.mubr.f32.mxu0 0.0
    %2455 = vmatmul.mubr.f32.gmra.mxu0 %v2313
    %v2456 = vpop.f32.mrf.mxu0
    %v2457 = vadd.f32 0.0, %v2456
    %v2458 = vpop.f32.mrf.mxu0
    %2459 = vdwg.mxu0
    %v2460 = vsel %vm1328, %v2382, 0.0
    %v2461 = vsel %vm1329, %v2387, 0.0
    %v2462 = vsel %vm1330, %v2392, 0.0
    %v2463 = vsel %vm1331, %v2397, 0.0
    %v2464 = vsel %vm1332, %v2402, 0.0
    %v2465 = vsel %vm1333, %v2407, 0.0
    %v2466 = vsel %vm1334, %v2412, 0.0
    %v2467 = vsel %vm1335, %v2417, 0.0
    %v2468 = vsel %vm1336, %v2422, 0.0
    %v2469 = vsel %vm1337, %v2427, 0.0
    %v2470 = vsel %vm1338, %v2432, 0.0
    %v2471 = vsel %vm1339, %v2437, 0.0
    %v2472 = vsel %vm1340, %v2442, 0.0
    %v2473 = vsel %vm1341, %v2447, 0.0
    %v2474 = vsel %vm1342, %v2452, 0.0
    %v2475 = vsel %vm1343, %v2457, 0.0
    %v2476 = vadd.f32 %v2104, %v2460
    %v2477 = vadd.f32 %v2105, %v2461
    %v2478 = vadd.f32 %v2106, %v2462
    %v2479 = vadd.f32 %v2107, %v2463
    %v2480 = vadd.f32 %v2108, %v2464
    %v2481 = vadd.f32 %v2109, %v2465
    %v2482 = vadd.f32 %v2110, %v2466
    %v2483 = vadd.f32 %v2111, %v2467
    %v2484 = vadd.f32 %v2112, %v2468
    %v2485 = vadd.f32 %v2113, %v2469
    %v2486 = vadd.f32 %v2114, %v2470
    %v2487 = vadd.f32 %v2115, %v2471
    %v2488 = vadd.f32 %v2116, %v2472
    %v2489 = vadd.f32 %v2117, %v2473
    %v2490 = vadd.f32 %v2118, %v2474
    %v2491 = vadd.f32 %v2119, %v2475
    %s2492 = scalar_lea.vmem %s3, 48
    %v2493 = vld [vmem:[%s2492] sm:$0xff]
    %2494 = vmatprep.subr.mxu0 0.0
    %2495 = vmatpush1.msra.mxu0 0.0
    %2496 = vmatprep.subr.mxu0 0.0
    %2497 = vmatpush1.msra.mxu0 0.0
    %2498 = vmatprep.subr.mxu0 0.0
    %2499 = vmatpush1.msra.mxu0 0.0
    %2500 = vmatprep.subr.mxu0 0.0
    %2501 = vmatpush1.msra.mxu0 0.0
    %2502 = vmatprep.subr.mxu0 0.0
    %2503 = vmatpush1.msra.mxu0 0.0
    %2504 = vmatprep.subr.mxu0 0.0
    %2505 = vmatpush1.msra.mxu0 0.0
    %2506 = vmatprep.subr.mxu0 0.0
    %2507 = vmatpush1.msra.mxu0 0.0
    %2508 = vmatprep.subr.mxu0 0.0
    %2509 = vmatpush1.msra.mxu0 0.0
    %2510 = vmatprep.subr.mxu0 0.0
    %2511 = vmatpush1.msra.mxu0 0.0
    %2512 = vmatprep.subr.mxu0 0.0
    %2513 = vmatpush1.msra.mxu0 0.0
    %2514 = vmatprep.subr.mxu0 0.0
    %2515 = vmatpush1.msra.mxu0 0.0
    %2516 = vmatprep.subr.mxu0 0.0
    %2517 = vmatpush1.msra.mxu0 0.0
    %2518 = vmatprep.subr.mxu0 0.0
    %2519 = vmatpush1.msra.mxu0 0.0
    %2520 = vmatprep.subr.mxu0 0.0
    %2521 = vmatpush1.msra.mxu0 0.0
    %2522 = vmatprep.subr.mxu0 0.0
    %2523 = vmatpush1.msra.mxu0 0.0
    %2524 = vmatprep.subr.mxu0 0.0
    %2525 = vmatpush1.msra.mxu0 %v2493
    %2526 = vmatprep.subr.mxu0 0.0
    %2527 = vmatpush2.msra.mxu0 0.0
    %2528 = vmatprep.subr.mxu0 0.0
    %2529 = vmatpush2.msra.mxu0 0.0
    %2530 = vmatprep.subr.mxu0 0.0
    %2531 = vmatpush2.msra.mxu0 0.0
    %2532 = vmatprep.subr.mxu0 0.0
    %2533 = vmatpush2.msra.mxu0 0.0
    %2534 = vmatprep.subr.mxu0 0.0
    %2535 = vmatpush2.msra.mxu0 0.0
    %2536 = vmatprep.subr.mxu0 0.0
    %2537 = vmatpush2.msra.mxu0 0.0
    %2538 = vmatprep.subr.mxu0 0.0
    %2539 = vmatpush2.msra.mxu0 0.0
    %2540 = vmatprep.subr.mxu0 0.0
    %2541 = vmatpush2.msra.mxu0 0.0
    %2542 = vmatprep.subr.mxu0 0.0
    %2543 = vmatpush2.msra.mxu0 0.0
    %2544 = vmatprep.subr.mxu0 0.0
    %2545 = vmatpush2.msra.mxu0 0.0
    %2546 = vmatprep.subr.mxu0 0.0
    %2547 = vmatpush2.msra.mxu0 0.0
    %2548 = vmatprep.subr.mxu0 0.0
    %2549 = vmatpush2.msra.mxu0 0.0
    %2550 = vmatprep.subr.mxu0 0.0
    %2551 = vmatpush2.msra.mxu0 0.0
    %2552 = vmatprep.subr.mxu0 0.0
    %2553 = vmatpush2.msra.mxu0 0.0
    %2554 = vmatprep.subr.mxu0 0.0
    %2555 = vmatpush2.msra.mxu0 0.0
    %2556 = vmatprep.subr.mxu0 0.0
    %2557 = vmatpush2.msra.mxu0 0.0
    %2558 = vmatprep.mubr.f32.mxu0 0.0
    %2559 = vmatmul.mubr.f32.gmra.mxu0 %v167
    %v2560 = vpop.f32.mrf.mxu0
    %v2561 = vadd.f32 0.0, %v2560
    %v2562 = vpop.f32.mrf.mxu0
    %2563 = vmatprep.mubr.f32.mxu0 0.0
    %2564 = vmatmul.mubr.f32.gmra.mxu0 %v170
    %v2565 = vpop.f32.mrf.mxu0
    %v2566 = vadd.f32 0.0, %v2565
    %v2567 = vpop.f32.mrf.mxu0
    %2568 = vmatprep.mubr.f32.mxu0 0.0
    %2569 = vmatmul.mubr.f32.gmra.mxu0 %v173
    %v2570 = vpop.f32.mrf.mxu0
    %v2571 = vadd.f32 0.0, %v2570
    %v2572 = vpop.f32.mrf.mxu0
    %2573 = vmatprep.mubr.f32.mxu0 0.0
    %2574 = vmatmul.mubr.f32.gmra.mxu0 %v176
    %v2575 = vpop.f32.mrf.mxu0
    %v2576 = vadd.f32 0.0, %v2575
    %v2577 = vpop.f32.mrf.mxu0
    %2578 = vmatprep.mubr.f32.mxu0 0.0
    %2579 = vmatmul.mubr.f32.gmra.mxu0 %v179
    %v2580 = vpop.f32.mrf.mxu0
    %v2581 = vadd.f32 0.0, %v2580
    %v2582 = vpop.f32.mrf.mxu0
    %2583 = vmatprep.mubr.f32.mxu0 0.0
    %2584 = vmatmul.mubr.f32.gmra.mxu0 %v182
    %v2585 = vpop.f32.mrf.mxu0
    %v2586 = vadd.f32 0.0, %v2585
    %v2587 = vpop.f32.mrf.mxu0
    %2588 = vmatprep.mubr.f32.mxu0 0.0
    %2589 = vmatmul.mubr.f32.gmra.mxu0 %v185
    %v2590 = vpop.f32.mrf.mxu0
    %v2591 = vadd.f32 0.0, %v2590
    %v2592 = vpop.f32.mrf.mxu0
    %2593 = vmatprep.mubr.f32.mxu0 0.0
    %2594 = vmatmul.mubr.f32.gmra.mxu0 %v188
    %v2595 = vpop.f32.mrf.mxu0
    %v2596 = vadd.f32 0.0, %v2595
    %v2597 = vpop.f32.mrf.mxu0
    %2598 = vmatprep.mubr.f32.mxu0 0.0
    %2599 = vmatmul.mubr.f32.gmra.mxu0 %v191
    %v2600 = vpop.f32.mrf.mxu0
    %v2601 = vadd.f32 0.0, %v2600
    %v2602 = vpop.f32.mrf.mxu0
    %2603 = vmatprep.mubr.f32.mxu0 0.0
    %2604 = vmatmul.mubr.f32.gmra.mxu0 %v194
    %v2605 = vpop.f32.mrf.mxu0
    %v2606 = vadd.f32 0.0, %v2605
    %v2607 = vpop.f32.mrf.mxu0
    %2608 = vmatprep.mubr.f32.mxu0 0.0
    %2609 = vmatmul.mubr.f32.gmra.mxu0 %v197
    %v2610 = vpop.f32.mrf.mxu0
    %v2611 = vadd.f32 0.0, %v2610
    %v2612 = vpop.f32.mrf.mxu0
    %2613 = vmatprep.mubr.f32.mxu0 0.0
    %2614 = vmatmul.mubr.f32.gmra.mxu0 %v200
    %v2615 = vpop.f32.mrf.mxu0
    %v2616 = vadd.f32 0.0, %v2615
    %v2617 = vpop.f32.mrf.mxu0
    %2618 = vmatprep.mubr.f32.mxu0 0.0
    %2619 = vmatmul.mubr.f32.gmra.mxu0 %v203
    %v2620 = vpop.f32.mrf.mxu0
    %v2621 = vadd.f32 0.0, %v2620
    %v2622 = vpop.f32.mrf.mxu0
    %2623 = vmatprep.mubr.f32.mxu0 0.0
    %2624 = vmatmul.mubr.f32.gmra.mxu0 %v206
    %v2625 = vpop.f32.mrf.mxu0
    %v2626 = vadd.f32 0.0, %v2625
    %v2627 = vpop.f32.mrf.mxu0
    %2628 = vmatprep.mubr.f32.mxu0 0.0
    %2629 = vmatmul.mubr.f32.gmra.mxu0 %v209
    %v2630 = vpop.f32.mrf.mxu0
    %v2631 = vadd.f32 0.0, %v2630
    %v2632 = vpop.f32.mrf.mxu0
    %2633 = vmatprep.mubr.f32.mxu0 0.0
    %2634 = vmatmul.mubr.f32.gmra.mxu0 %v212
    %v2635 = vpop.f32.mrf.mxu0
    %v2636 = vadd.f32 0.0, %v2635
    %v2637 = vpop.f32.mrf.mxu0
    %2638 = vdwg.mxu0
    %v2640 = vsel %vm165, %v2561, 0
    %v2643 = vsel %vm165, %v2566, 0
    %v2646 = vsel %vm165, %v2571, 0
    %v2649 = vsel %vm165, %v2576, 0
    %v2652 = vsel %vm165, %v2581, 0
    %v2655 = vsel %vm165, %v2586, 0
    %v2658 = vsel %vm165, %v2591, 0
    %v2661 = vsel %vm165, %v2596, 0
    %v2664 = vsel %vm165, %v2601, 0
    %v2667 = vsel %vm165, %v2606, 0
    %v2670 = vsel %vm165, %v2611, 0
    %v2673 = vsel %vm165, %v2616, 0
    %v2676 = vsel %vm165, %v2621, 0
    %v2679 = vsel %vm165, %v2626, 0
    %v2682 = vsel %vm165, %v2631, 0
    %v2685 = vsel %vm165, %v2636, 0
    %2687 = vmatprep.subr.mxu0 0.0
    %2688 = vmatpush1.msra.mxu0 0.0
    %2689 = vmatprep.subr.mxu0 0.0
    %2690 = vmatpush1.msra.mxu0 0.0
    %2691 = vmatprep.subr.mxu0 0.0
    %2692 = vmatpush1.msra.mxu0 0.0
    %2693 = vmatprep.subr.mxu0 0.0
    %2694 = vmatpush1.msra.mxu0 0.0
    %2695 = vmatprep.subr.mxu0 0.0
    %2696 = vmatpush1.msra.mxu0 0.0
    %2697 = vmatprep.subr.mxu0 0.0
    %2698 = vmatpush1.msra.mxu0 0.0
    %2699 = vmatprep.subr.mxu0 0.0
    %2700 = vmatpush1.msra.mxu0 0.0
    %2701 = vmatprep.subr.mxu0 0.0
    %2702 = vmatpush1.msra.mxu0 0.0
    %2703 = vmatprep.subr.mxu0 0.0
    %2704 = vmatpush1.msra.mxu0 0.0
    %2705 = vmatprep.subr.mxu0 0.0
    %2706 = vmatpush1.msra.mxu0 0.0
    %2707 = vmatprep.subr.mxu0 0.0
    %2708 = vmatpush1.msra.mxu0 0.0
    %2709 = vmatprep.subr.mxu0 0.0
    %2710 = vmatpush1.msra.mxu0 0.0
    %2711 = vmatprep.subr.mxu0 0.0
    %2712 = vmatpush1.msra.mxu0 0.0
    %2713 = vmatprep.subr.mxu0 0.0
    %2714 = vmatpush1.msra.mxu0 0.0
    %2715 = vmatprep.subr.mxu0 0.0
    %2716 = vmatpush1.msra.mxu0 0.0
    %2717 = vmatprep.subr.mxu0 0.0
    %2718 = vmatpush1.msra.mxu0 %v102
    %2719 = vmatprep.subr.mxu0 0.0
    %2720 = vmatpush2.msra.mxu0 0.0
    %2721 = vmatprep.subr.mxu0 0.0
    %2722 = vmatpush2.msra.mxu0 0.0
    %2723 = vmatprep.subr.mxu0 0.0
    %2724 = vmatpush2.msra.mxu0 0.0
    %2725 = vmatprep.subr.mxu0 0.0
    %2726 = vmatpush2.msra.mxu0 0.0
    %2727 = vmatprep.subr.mxu0 0.0
    %2728 = vmatpush2.msra.mxu0 0.0
    %2729 = vmatprep.subr.mxu0 0.0
    %2730 = vmatpush2.msra.mxu0 0.0
    %2731 = vmatprep.subr.mxu0 0.0
    %2732 = vmatpush2.msra.mxu0 0.0
    %2733 = vmatprep.subr.mxu0 0.0
    %2734 = vmatpush2.msra.mxu0 0.0
    %2735 = vmatprep.subr.mxu0 0.0
    %2736 = vmatpush2.msra.mxu0 0.0
    %2737 = vmatprep.subr.mxu0 0.0
    %2738 = vmatpush2.msra.mxu0 0.0
    %2739 = vmatprep.subr.mxu0 0.0
    %2740 = vmatpush2.msra.mxu0 0.0
    %2741 = vmatprep.subr.mxu0 0.0
    %2742 = vmatpush2.msra.mxu0 0.0
    %2743 = vmatprep.subr.mxu0 0.0
    %2744 = vmatpush2.msra.mxu0 0.0
    %2745 = vmatprep.subr.mxu0 0.0
    %2746 = vmatpush2.msra.mxu0 0.0
    %2747 = vmatprep.subr.mxu0 0.0
    %2748 = vmatpush2.msra.mxu0 0.0
    %2749 = vmatprep.subr.mxu0 0.0
    %2750 = vmatpush2.msra.mxu0 0.0
    %2751 = vmatprep.mubr.f32.mxu0 0.0
    %2752 = vmatmul.mubr.f32.gmra.mxu0 %v2640
    %v2753 = vpop.f32.mrf.mxu0
    %v2754 = vadd.f32 0.0, %v2753
    %v2755 = vpop.f32.mrf.mxu0
    %2756 = vmatprep.mubr.f32.mxu0 0.0
    %2757 = vmatmul.mubr.f32.gmra.mxu0 %v2643
    %v2758 = vpop.f32.mrf.mxu0
    %v2759 = vadd.f32 0.0, %v2758
    %v2760 = vpop.f32.mrf.mxu0
    %2761 = vmatprep.mubr.f32.mxu0 0.0
    %2762 = vmatmul.mubr.f32.gmra.mxu0 %v2646
    %v2763 = vpop.f32.mrf.mxu0
    %v2764 = vadd.f32 0.0, %v2763
    %v2765 = vpop.f32.mrf.mxu0
    %2766 = vmatprep.mubr.f32.mxu0 0.0
    %2767 = vmatmul.mubr.f32.gmra.mxu0 %v2649
    %v2768 = vpop.f32.mrf.mxu0
    %v2769 = vadd.f32 0.0, %v2768
    %v2770 = vpop.f32.mrf.mxu0
    %2771 = vmatprep.mubr.f32.mxu0 0.0
    %2772 = vmatmul.mubr.f32.gmra.mxu0 %v2652
    %v2773 = vpop.f32.mrf.mxu0
    %v2774 = vadd.f32 0.0, %v2773
    %v2775 = vpop.f32.mrf.mxu0
    %2776 = vmatprep.mubr.f32.mxu0 0.0
    %2777 = vmatmul.mubr.f32.gmra.mxu0 %v2655
    %v2778 = vpop.f32.mrf.mxu0
    %v2779 = vadd.f32 0.0, %v2778
    %v2780 = vpop.f32.mrf.mxu0
    %2781 = vmatprep.mubr.f32.mxu0 0.0
    %2782 = vmatmul.mubr.f32.gmra.mxu0 %v2658
    %v2783 = vpop.f32.mrf.mxu0
    %v2784 = vadd.f32 0.0, %v2783
    %v2785 = vpop.f32.mrf.mxu0
    %2786 = vmatprep.mubr.f32.mxu0 0.0
    %2787 = vmatmul.mubr.f32.gmra.mxu0 %v2661
    %v2788 = vpop.f32.mrf.mxu0
    %v2789 = vadd.f32 0.0, %v2788
    %v2790 = vpop.f32.mrf.mxu0
    %2791 = vmatprep.mubr.f32.mxu0 0.0
    %2792 = vmatmul.mubr.f32.gmra.mxu0 %v2664
    %v2793 = vpop.f32.mrf.mxu0
    %v2794 = vadd.f32 0.0, %v2793
    %v2795 = vpop.f32.mrf.mxu0
    %2796 = vmatprep.mubr.f32.mxu0 0.0
    %2797 = vmatmul.mubr.f32.gmra.mxu0 %v2667
    %v2798 = vpop.f32.mrf.mxu0
    %v2799 = vadd.f32 0.0, %v2798
    %v2800 = vpop.f32.mrf.mxu0
    %2801 = vmatprep.mubr.f32.mxu0 0.0
    %2802 = vmatmul.mubr.f32.gmra.mxu0 %v2670
    %v2803 = vpop.f32.mrf.mxu0
    %v2804 = vadd.f32 0.0, %v2803
    %v2805 = vpop.f32.mrf.mxu0
    %2806 = vmatprep.mubr.f32.mxu0 0.0
    %2807 = vmatmul.mubr.f32.gmra.mxu0 %v2673
    %v2808 = vpop.f32.mrf.mxu0
    %v2809 = vadd.f32 0.0, %v2808
    %v2810 = vpop.f32.mrf.mxu0
    %2811 = vmatprep.mubr.f32.mxu0 0.0
    %2812 = vmatmul.mubr.f32.gmra.mxu0 %v2676
    %v2813 = vpop.f32.mrf.mxu0
    %v2814 = vadd.f32 0.0, %v2813
    %v2815 = vpop.f32.mrf.mxu0
    %2816 = vmatprep.mubr.f32.mxu0 0.0
    %2817 = vmatmul.mubr.f32.gmra.mxu0 %v2679
    %v2818 = vpop.f32.mrf.mxu0
    %v2819 = vadd.f32 0.0, %v2818
    %v2820 = vpop.f32.mrf.mxu0
    %2821 = vmatprep.mubr.f32.mxu0 0.0
    %2822 = vmatmul.mubr.f32.gmra.mxu0 %v2682
    %v2823 = vpop.f32.mrf.mxu0
    %v2824 = vadd.f32 0.0, %v2823
    %v2825 = vpop.f32.mrf.mxu0
    %2826 = vmatprep.mubr.f32.mxu0 0.0
    %2827 = vmatmul.mubr.f32.gmra.mxu0 %v2685
    %v2828 = vpop.f32.mrf.mxu0
    %v2829 = vadd.f32 0.0, %v2828
    %v2830 = vpop.f32.mrf.mxu0
    %2831 = vdwg.mxu0
    %v2832 = vsel %vm552, %v2754, 0.0
    %v2833 = vsel %vm553, %v2759, 0.0
    %v2834 = vsel %vm554, %v2764, 0.0
    %v2835 = vsel %vm555, %v2769, 0.0
    %v2836 = vsel %vm556, %v2774, 0.0
    %v2837 = vsel %vm557, %v2779, 0.0
    %v2838 = vsel %vm558, %v2784, 0.0
    %v2839 = vsel %vm559, %v2789, 0.0
    %v2840 = vsel %vm560, %v2794, 0.0
    %v2841 = vsel %vm561, %v2799, 0.0
    %v2842 = vsel %vm562, %v2804, 0.0
    %v2843 = vsel %vm563, %v2809, 0.0
    %v2844 = vsel %vm564, %v2814, 0.0
    %v2845 = vsel %vm565, %v2819, 0.0
    %v2846 = vsel %vm566, %v2824, 0.0
    %v2847 = vsel %vm567, %v2829, 0.0
    %v2848 = vadd.f32 %v2832, 0.0
    %v2849 = vadd.f32 %v2833, 0.0
    %v2850 = vadd.f32 %v2834, 0.0
    %v2851 = vadd.f32 %v2835, 0.0
    %v2852 = vadd.f32 %v2836, 0.0
    %v2853 = vadd.f32 %v2837, 0.0
    %v2854 = vadd.f32 %v2838, 0.0
    %v2855 = vadd.f32 %v2839, 0.0
    %v2856 = vadd.f32 %v2840, 0.0
    %v2857 = vadd.f32 %v2841, 0.0
    %v2858 = vadd.f32 %v2842, 0.0
    %v2859 = vadd.f32 %v2843, 0.0
    %v2860 = vadd.f32 %v2844, 0.0
    %v2861 = vadd.f32 %v2845, 0.0
    %v2862 = vadd.f32 %v2846, 0.0
    %v2863 = vadd.f32 %v2847, 0.0
    %s2864 = scalar_lea.vmem %s3, 56
    %v2865 = vld [vmem:[%s2864] sm:$0xff]
    %2866 = vmatprep.subr.mxu0 0.0
    %2867 = vmatpush1.msra.mxu0 0.0
    %2868 = vmatprep.subr.mxu0 0.0
    %2869 = vmatpush1.msra.mxu0 0.0
    %2870 = vmatprep.subr.mxu0 0.0
    %2871 = vmatpush1.msra.mxu0 0.0
    %2872 = vmatprep.subr.mxu0 0.0
    %2873 = vmatpush1.msra.mxu0 0.0
    %2874 = vmatprep.subr.mxu0 0.0
    %2875 = vmatpush1.msra.mxu0 0.0
    %2876 = vmatprep.subr.mxu0 0.0
    %2877 = vmatpush1.msra.mxu0 0.0
    %2878 = vmatprep.subr.mxu0 0.0
    %2879 = vmatpush1.msra.mxu0 0.0
    %2880 = vmatprep.subr.mxu0 0.0
    %2881 = vmatpush1.msra.mxu0 0.0
    %2882 = vmatprep.subr.mxu0 0.0
    %2883 = vmatpush1.msra.mxu0 0.0
    %2884 = vmatprep.subr.mxu0 0.0
    %2885 = vmatpush1.msra.mxu0 0.0
    %2886 = vmatprep.subr.mxu0 0.0
    %2887 = vmatpush1.msra.mxu0 0.0
    %2888 = vmatprep.subr.mxu0 0.0
    %2889 = vmatpush1.msra.mxu0 0.0
    %2890 = vmatprep.subr.mxu0 0.0
    %2891 = vmatpush1.msra.mxu0 0.0
    %2892 = vmatprep.subr.mxu0 0.0
    %2893 = vmatpush1.msra.mxu0 0.0
    %2894 = vmatprep.subr.mxu0 0.0
    %2895 = vmatpush1.msra.mxu0 0.0
    %2896 = vmatprep.subr.mxu0 0.0
    %2897 = vmatpush1.msra.mxu0 %v2865
    %2898 = vmatprep.subr.mxu0 0.0
    %2899 = vmatpush2.msra.mxu0 0.0
    %2900 = vmatprep.subr.mxu0 0.0
    %2901 = vmatpush2.msra.mxu0 0.0
    %2902 = vmatprep.subr.mxu0 0.0
    %2903 = vmatpush2.msra.mxu0 0.0
    %2904 = vmatprep.subr.mxu0 0.0
    %2905 = vmatpush2.msra.mxu0 0.0
    %2906 = vmatprep.subr.mxu0 0.0
    %2907 = vmatpush2.msra.mxu0 0.0
    %2908 = vmatprep.subr.mxu0 0.0
    %2909 = vmatpush2.msra.mxu0 0.0
    %2910 = vmatprep.subr.mxu0 0.0
    %2911 = vmatpush2.msra.mxu0 0.0
    %2912 = vmatprep.subr.mxu0 0.0
    %2913 = vmatpush2.msra.mxu0 0.0
    %2914 = vmatprep.subr.mxu0 0.0
    %2915 = vmatpush2.msra.mxu0 0.0
    %2916 = vmatprep.subr.mxu0 0.0
    %2917 = vmatpush2.msra.mxu0 0.0
    %2918 = vmatprep.subr.mxu0 0.0
    %2919 = vmatpush2.msra.mxu0 0.0
    %2920 = vmatprep.subr.mxu0 0.0
    %2921 = vmatpush2.msra.mxu0 0.0
    %2922 = vmatprep.subr.mxu0 0.0
    %2923 = vmatpush2.msra.mxu0 0.0
    %2924 = vmatprep.subr.mxu0 0.0
    %2925 = vmatpush2.msra.mxu0 0.0
    %2926 = vmatprep.subr.mxu0 0.0
    %2927 = vmatpush2.msra.mxu0 0.0
    %2928 = vmatprep.subr.mxu0 0.0
    %2929 = vmatpush2.msra.mxu0 0.0
    %2930 = vmatprep.mubr.f32.mxu0 0.0
    %2931 = vmatmul.mubr.f32.gmra.mxu0 %v167
    %v2932 = vpop.f32.mrf.mxu0
    %v2933 = vadd.f32 0.0, %v2932
    %v2934 = vpop.f32.mrf.mxu0
    %2935 = vmatprep.mubr.f32.mxu0 0.0
    %2936 = vmatmul.mubr.f32.gmra.mxu0 %v170
    %v2937 = vpop.f32.mrf.mxu0
    %v2938 = vadd.f32 0.0, %v2937
    %v2939 = vpop.f32.mrf.mxu0
    %2940 = vmatprep.mubr.f32.mxu0 0.0
    %2941 = vmatmul.mubr.f32.gmra.mxu0 %v173
    %v2942 = vpop.f32.mrf.mxu0
    %v2943 = vadd.f32 0.0, %v2942
    %v2944 = vpop.f32.mrf.mxu0
    %2945 = vmatprep.mubr.f32.mxu0 0.0
    %2946 = vmatmul.mubr.f32.gmra.mxu0 %v176
    %v2947 = vpop.f32.mrf.mxu0
    %v2948 = vadd.f32 0.0, %v2947
    %v2949 = vpop.f32.mrf.mxu0
    %2950 = vmatprep.mubr.f32.mxu0 0.0
    %2951 = vmatmul.mubr.f32.gmra.mxu0 %v179
    %v2952 = vpop.f32.mrf.mxu0
    %v2953 = vadd.f32 0.0, %v2952
    %v2954 = vpop.f32.mrf.mxu0
    %2955 = vmatprep.mubr.f32.mxu0 0.0
    %2956 = vmatmul.mubr.f32.gmra.mxu0 %v182
    %v2957 = vpop.f32.mrf.mxu0
    %v2958 = vadd.f32 0.0, %v2957
    %v2959 = vpop.f32.mrf.mxu0
    %2960 = vmatprep.mubr.f32.mxu0 0.0
    %2961 = vmatmul.mubr.f32.gmra.mxu0 %v185
    %v2962 = vpop.f32.mrf.mxu0
    %v2963 = vadd.f32 0.0, %v2962
    %v2964 = vpop.f32.mrf.mxu0
    %2965 = vmatprep.mubr.f32.mxu0 0.0
    %2966 = vmatmul.mubr.f32.gmra.mxu0 %v188
    %v2967 = vpop.f32.mrf.mxu0
    %v2968 = vadd.f32 0.0, %v2967
    %v2969 = vpop.f32.mrf.mxu0
    %2970 = vmatprep.mubr.f32.mxu0 0.0
    %2971 = vmatmul.mubr.f32.gmra.mxu0 %v191
    %v2972 = vpop.f32.mrf.mxu0
    %v2973 = vadd.f32 0.0, %v2972
    %v2974 = vpop.f32.mrf.mxu0
    %2975 = vmatprep.mubr.f32.mxu0 0.0
    %2976 = vmatmul.mubr.f32.gmra.mxu0 %v194
    %v2977 = vpop.f32.mrf.mxu0
    %v2978 = vadd.f32 0.0, %v2977
    %v2979 = vpop.f32.mrf.mxu0
    %2980 = vmatprep.mubr.f32.mxu0 0.0
    %2981 = vmatmul.mubr.f32.gmra.mxu0 %v197
    %v2982 = vpop.f32.mrf.mxu0
    %v2983 = vadd.f32 0.0, %v2982
    %v2984 = vpop.f32.mrf.mxu0
    %2985 = vmatprep.mubr.f32.mxu0 0.0
    %2986 = vmatmul.mubr.f32.gmra.mxu0 %v200
    %v2987 = vpop.f32.mrf.mxu0
    %v2988 = vadd.f32 0.0, %v2987
    %v2989 = vpop.f32.mrf.mxu0
    %2990 = vmatprep.mubr.f32.mxu0 0.0
    %2991 = vmatmul.mubr.f32.gmra.mxu0 %v203
    %v2992 = vpop.f32.mrf.mxu0
    %v2993 = vadd.f32 0.0, %v2992
    %v2994 = vpop.f32.mrf.mxu0
    %2995 = vmatprep.mubr.f32.mxu0 0.0
    %2996 = vmatmul.mubr.f32.gmra.mxu0 %v206
    %v2997 = vpop.f32.mrf.mxu0
    %v2998 = vadd.f32 0.0, %v2997
    %v2999 = vpop.f32.mrf.mxu0
    %3000 = vmatprep.mubr.f32.mxu0 0.0
    %3001 = vmatmul.mubr.f32.gmra.mxu0 %v209
    %v3002 = vpop.f32.mrf.mxu0
    %v3003 = vadd.f32 0.0, %v3002
    %v3004 = vpop.f32.mrf.mxu0
    %3005 = vmatprep.mubr.f32.mxu0 0.0
    %3006 = vmatmul.mubr.f32.gmra.mxu0 %v212
    %v3007 = vpop.f32.mrf.mxu0
    %v3008 = vadd.f32 0.0, %v3007
    %v3009 = vpop.f32.mrf.mxu0
    %3010 = vdwg.mxu0
    %v3012 = vsel %vm165, %v2933, 0
    %v3015 = vsel %vm165, %v2938, 0
    %v3018 = vsel %vm165, %v2943, 0
    %v3021 = vsel %vm165, %v2948, 0
    %v3024 = vsel %vm165, %v2953, 0
    %v3027 = vsel %vm165, %v2958, 0
    %v3030 = vsel %vm165, %v2963, 0
    %v3033 = vsel %vm165, %v2968, 0
    %v3036 = vsel %vm165, %v2973, 0
    %v3039 = vsel %vm165, %v2978, 0
    %v3042 = vsel %vm165, %v2983, 0
    %v3045 = vsel %vm165, %v2988, 0
    %v3048 = vsel %vm165, %v2993, 0
    %v3051 = vsel %vm165, %v2998, 0
    %v3054 = vsel %vm165, %v3003, 0
    %v3057 = vsel %vm165, %v3008, 0
    %3059 = vmatprep.subr.mxu0 0.0
    %3060 = vmatpush1.msra.mxu0 0.0
    %3061 = vmatprep.subr.mxu0 0.0
    %3062 = vmatpush1.msra.mxu0 0.0
    %3063 = vmatprep.subr.mxu0 0.0
    %3064 = vmatpush1.msra.mxu0 0.0
    %3065 = vmatprep.subr.mxu0 0.0
    %3066 = vmatpush1.msra.mxu0 0.0
    %3067 = vmatprep.subr.mxu0 0.0
    %3068 = vmatpush1.msra.mxu0 0.0
    %3069 = vmatprep.subr.mxu0 0.0
    %3070 = vmatpush1.msra.mxu0 0.0
    %3071 = vmatprep.subr.mxu0 0.0
    %3072 = vmatpush1.msra.mxu0 0.0
    %3073 = vmatprep.subr.mxu0 0.0
    %3074 = vmatpush1.msra.mxu0 0.0
    %3075 = vmatprep.subr.mxu0 0.0
    %3076 = vmatpush1.msra.mxu0 0.0
    %3077 = vmatprep.subr.mxu0 0.0
    %3078 = vmatpush1.msra.mxu0 0.0
    %3079 = vmatprep.subr.mxu0 0.0
    %3080 = vmatpush1.msra.mxu0 0.0
    %3081 = vmatprep.subr.mxu0 0.0
    %3082 = vmatpush1.msra.mxu0 0.0
    %3083 = vmatprep.subr.mxu0 0.0
    %3084 = vmatpush1.msra.mxu0 0.0
    %3085 = vmatprep.subr.mxu0 0.0
    %3086 = vmatpush1.msra.mxu0 0.0
    %3087 = vmatprep.subr.mxu0 0.0
    %3088 = vmatpush1.msra.mxu0 0.0
    %3089 = vmatprep.subr.mxu0 0.0
    %3090 = vmatpush1.msra.mxu0 %v102
    %3091 = vmatprep.subr.mxu0 0.0
    %3092 = vmatpush2.msra.mxu0 0.0
    %3093 = vmatprep.subr.mxu0 0.0
    %3094 = vmatpush2.msra.mxu0 0.0
    %3095 = vmatprep.subr.mxu0 0.0
    %3096 = vmatpush2.msra.mxu0 0.0
    %3097 = vmatprep.subr.mxu0 0.0
    %3098 = vmatpush2.msra.mxu0 0.0
    %3099 = vmatprep.subr.mxu0 0.0
    %3100 = vmatpush2.msra.mxu0 0.0
    %3101 = vmatprep.subr.mxu0 0.0
    %3102 = vmatpush2.msra.mxu0 0.0
    %3103 = vmatprep.subr.mxu0 0.0
    %3104 = vmatpush2.msra.mxu0 0.0
    %3105 = vmatprep.subr.mxu0 0.0
    %3106 = vmatpush2.msra.mxu0 0.0
    %3107 = vmatprep.subr.mxu0 0.0
    %3108 = vmatpush2.msra.mxu0 0.0
    %3109 = vmatprep.subr.mxu0 0.0
    %3110 = vmatpush2.msra.mxu0 0.0
    %3111 = vmatprep.subr.mxu0 0.0
    %3112 = vmatpush2.msra.mxu0 0.0
    %3113 = vmatprep.subr.mxu0 0.0
    %3114 = vmatpush2.msra.mxu0 0.0
    %3115 = vmatprep.subr.mxu0 0.0
    %3116 = vmatpush2.msra.mxu0 0.0
    %3117 = vmatprep.subr.mxu0 0.0
    %3118 = vmatpush2.msra.mxu0 0.0
    %3119 = vmatprep.subr.mxu0 0.0
    %3120 = vmatpush2.msra.mxu0 0.0
    %3121 = vmatprep.subr.mxu0 0.0
    %3122 = vmatpush2.msra.mxu0 0.0
    %3123 = vmatprep.mubr.f32.mxu0 0.0
    %3124 = vmatmul.mubr.f32.gmra.mxu0 %v3012
    %v3125 = vpop.f32.mrf.mxu0
    %v3126 = vadd.f32 0.0, %v3125
    %v3127 = vpop.f32.mrf.mxu0
    %3128 = vmatprep.mubr.f32.mxu0 0.0
    %3129 = vmatmul.mubr.f32.gmra.mxu0 %v3015
    %v3130 = vpop.f32.mrf.mxu0
    %v3131 = vadd.f32 0.0, %v3130
    %v3132 = vpop.f32.mrf.mxu0
    %3133 = vmatprep.mubr.f32.mxu0 0.0
    %3134 = vmatmul.mubr.f32.gmra.mxu0 %v3018
    %v3135 = vpop.f32.mrf.mxu0
    %v3136 = vadd.f32 0.0, %v3135
    %v3137 = vpop.f32.mrf.mxu0
    %3138 = vmatprep.mubr.f32.mxu0 0.0
    %3139 = vmatmul.mubr.f32.gmra.mxu0 %v3021
    %v3140 = vpop.f32.mrf.mxu0
    %v3141 = vadd.f32 0.0, %v3140
    %v3142 = vpop.f32.mrf.mxu0
    %3143 = vmatprep.mubr.f32.mxu0 0.0
    %3144 = vmatmul.mubr.f32.gmra.mxu0 %v3024
    %v3145 = vpop.f32.mrf.mxu0
    %v3146 = vadd.f32 0.0, %v3145
    %v3147 = vpop.f32.mrf.mxu0
    %3148 = vmatprep.mubr.f32.mxu0 0.0
    %3149 = vmatmul.mubr.f32.gmra.mxu0 %v3027
    %v3150 = vpop.f32.mrf.mxu0
    %v3151 = vadd.f32 0.0, %v3150
    %v3152 = vpop.f32.mrf.mxu0
    %3153 = vmatprep.mubr.f32.mxu0 0.0
    %3154 = vmatmul.mubr.f32.gmra.mxu0 %v3030
    %v3155 = vpop.f32.mrf.mxu0
    %v3156 = vadd.f32 0.0, %v3155
    %v3157 = vpop.f32.mrf.mxu0
    %3158 = vmatprep.mubr.f32.mxu0 0.0
    %3159 = vmatmul.mubr.f32.gmra.mxu0 %v3033
    %v3160 = vpop.f32.mrf.mxu0
    %v3161 = vadd.f32 0.0, %v3160
    %v3162 = vpop.f32.mrf.mxu0
    %3163 = vmatprep.mubr.f32.mxu0 0.0
    %3164 = vmatmul.mubr.f32.gmra.mxu0 %v3036
    %v3165 = vpop.f32.mrf.mxu0
    %v3166 = vadd.f32 0.0, %v3165
    %v3167 = vpop.f32.mrf.mxu0
    %3168 = vmatprep.mubr.f32.mxu0 0.0
    %3169 = vmatmul.mubr.f32.gmra.mxu0 %v3039
    %v3170 = vpop.f32.mrf.mxu0
    %v3171 = vadd.f32 0.0, %v3170
    %v3172 = vpop.f32.mrf.mxu0
    %3173 = vmatprep.mubr.f32.mxu0 0.0
    %3174 = vmatmul.mubr.f32.gmra.mxu0 %v3042
    %v3175 = vpop.f32.mrf.mxu0
    %v3176 = vadd.f32 0.0, %v3175
    %v3177 = vpop.f32.mrf.mxu0
    %3178 = vmatprep.mubr.f32.mxu0 0.0
    %3179 = vmatmul.mubr.f32.gmra.mxu0 %v3045
    %v3180 = vpop.f32.mrf.mxu0
    %v3181 = vadd.f32 0.0, %v3180
    %v3182 = vpop.f32.mrf.mxu0
    %3183 = vmatprep.mubr.f32.mxu0 0.0
    %3184 = vmatmul.mubr.f32.gmra.mxu0 %v3048
    %v3185 = vpop.f32.mrf.mxu0
    %v3186 = vadd.f32 0.0, %v3185
    %v3187 = vpop.f32.mrf.mxu0
    %3188 = vmatprep.mubr.f32.mxu0 0.0
    %3189 = vmatmul.mubr.f32.gmra.mxu0 %v3051
    %v3190 = vpop.f32.mrf.mxu0
    %v3191 = vadd.f32 0.0, %v3190
    %v3192 = vpop.f32.mrf.mxu0
    %3193 = vmatprep.mubr.f32.mxu0 0.0
    %3194 = vmatmul.mubr.f32.gmra.mxu0 %v3054
    %v3195 = vpop.f32.mrf.mxu0
    %v3196 = vadd.f32 0.0, %v3195
    %v3197 = vpop.f32.mrf.mxu0
    %3198 = vmatprep.mubr.f32.mxu0 0.0
    %3199 = vmatmul.mubr.f32.gmra.mxu0 %v3057
    %v3200 = vpop.f32.mrf.mxu0
    %v3201 = vadd.f32 0.0, %v3200
    %v3202 = vpop.f32.mrf.mxu0
    %3203 = vdwg.mxu0
    %v3204 = vsel %vm940, %v3126, 0.0
    %v3205 = vsel %vm941, %v3131, 0.0
    %v3206 = vsel %vm942, %v3136, 0.0
    %v3207 = vsel %vm943, %v3141, 0.0
    %v3208 = vsel %vm944, %v3146, 0.0
    %v3209 = vsel %vm945, %v3151, 0.0
    %v3210 = vsel %vm946, %v3156, 0.0
    %v3211 = vsel %vm947, %v3161, 0.0
    %v3212 = vsel %vm948, %v3166, 0.0
    %v3213 = vsel %vm949, %v3171, 0.0
    %v3214 = vsel %vm950, %v3176, 0.0
    %v3215 = vsel %vm951, %v3181, 0.0
    %v3216 = vsel %vm952, %v3186, 0.0
    %v3217 = vsel %vm953, %v3191, 0.0
    %v3218 = vsel %vm954, %v3196, 0.0
    %v3219 = vsel %vm955, %v3201, 0.0
    %v3220 = vadd.f32 %v2848, %v3204
    %v3221 = vadd.f32 %v2849, %v3205
    %v3222 = vadd.f32 %v2850, %v3206
    %v3223 = vadd.f32 %v2851, %v3207
    %v3224 = vadd.f32 %v2852, %v3208
    %v3225 = vadd.f32 %v2853, %v3209
    %v3226 = vadd.f32 %v2854, %v3210
    %v3227 = vadd.f32 %v2855, %v3211
    %v3228 = vadd.f32 %v2856, %v3212
    %v3229 = vadd.f32 %v2857, %v3213
    %v3230 = vadd.f32 %v2858, %v3214
    %v3231 = vadd.f32 %v2859, %v3215
    %v3232 = vadd.f32 %v2860, %v3216
    %v3233 = vadd.f32 %v2861, %v3217
    %v3234 = vadd.f32 %v2862, %v3218
    %v3235 = vadd.f32 %v2863, %v3219
    %s3236 = scalar_lea.vmem %s3, 64
    %v3237 = vld [vmem:[%s3236] sm:$0xff]
    %3238 = vmatprep.subr.mxu0 0.0
    %3239 = vmatpush1.msra.mxu0 0.0
    %3240 = vmatprep.subr.mxu0 0.0
    %3241 = vmatpush1.msra.mxu0 0.0
    %3242 = vmatprep.subr.mxu0 0.0
    %3243 = vmatpush1.msra.mxu0 0.0
    %3244 = vmatprep.subr.mxu0 0.0
    %3245 = vmatpush1.msra.mxu0 0.0
    %3246 = vmatprep.subr.mxu0 0.0
    %3247 = vmatpush1.msra.mxu0 0.0
    %3248 = vmatprep.subr.mxu0 0.0
    %3249 = vmatpush1.msra.mxu0 0.0
    %3250 = vmatprep.subr.mxu0 0.0
    %3251 = vmatpush1.msra.mxu0 0.0
    %3252 = vmatprep.subr.mxu0 0.0
    %3253 = vmatpush1.msra.mxu0 0.0
    %3254 = vmatprep.subr.mxu0 0.0
    %3255 = vmatpush1.msra.mxu0 0.0
    %3256 = vmatprep.subr.mxu0 0.0
    %3257 = vmatpush1.msra.mxu0 0.0
    %3258 = vmatprep.subr.mxu0 0.0
    %3259 = vmatpush1.msra.mxu0 0.0
    %3260 = vmatprep.subr.mxu0 0.0
    %3261 = vmatpush1.msra.mxu0 0.0
    %3262 = vmatprep.subr.mxu0 0.0
    %3263 = vmatpush1.msra.mxu0 0.0
    %3264 = vmatprep.subr.mxu0 0.0
    %3265 = vmatpush1.msra.mxu0 0.0
    %3266 = vmatprep.subr.mxu0 0.0
    %3267 = vmatpush1.msra.mxu0 0.0
    %3268 = vmatprep.subr.mxu0 0.0
    %3269 = vmatpush1.msra.mxu0 %v3237
    %3270 = vmatprep.subr.mxu0 0.0
    %3271 = vmatpush2.msra.mxu0 0.0
    %3272 = vmatprep.subr.mxu0 0.0
    %3273 = vmatpush2.msra.mxu0 0.0
    %3274 = vmatprep.subr.mxu0 0.0
    %3275 = vmatpush2.msra.mxu0 0.0
    %3276 = vmatprep.subr.mxu0 0.0
    %3277 = vmatpush2.msra.mxu0 0.0
    %3278 = vmatprep.subr.mxu0 0.0
    %3279 = vmatpush2.msra.mxu0 0.0
    %3280 = vmatprep.subr.mxu0 0.0
    %3281 = vmatpush2.msra.mxu0 0.0
    %3282 = vmatprep.subr.mxu0 0.0
    %3283 = vmatpush2.msra.mxu0 0.0
    %3284 = vmatprep.subr.mxu0 0.0
    %3285 = vmatpush2.msra.mxu0 0.0
    %3286 = vmatprep.subr.mxu0 0.0
    %3287 = vmatpush2.msra.mxu0 0.0
    %3288 = vmatprep.subr.mxu0 0.0
    %3289 = vmatpush2.msra.mxu0 0.0
    %3290 = vmatprep.subr.mxu0 0.0
    %3291 = vmatpush2.msra.mxu0 0.0
    %3292 = vmatprep.subr.mxu0 0.0
    %3293 = vmatpush2.msra.mxu0 0.0
    %3294 = vmatprep.subr.mxu0 0.0
    %3295 = vmatpush2.msra.mxu0 0.0
    %3296 = vmatprep.subr.mxu0 0.0
    %3297 = vmatpush2.msra.mxu0 0.0
    %3298 = vmatprep.subr.mxu0 0.0
    %3299 = vmatpush2.msra.mxu0 0.0
    %3300 = vmatprep.subr.mxu0 0.0
    %3301 = vmatpush2.msra.mxu0 0.0
    %3302 = vmatprep.mubr.f32.mxu0 0.0
    %3303 = vmatmul.mubr.f32.gmra.mxu0 %v167
    %v3304 = vpop.f32.mrf.mxu0
    %v3305 = vadd.f32 0.0, %v3304
    %v3306 = vpop.f32.mrf.mxu0
    %3307 = vmatprep.mubr.f32.mxu0 0.0
    %3308 = vmatmul.mubr.f32.gmra.mxu0 %v170
    %v3309 = vpop.f32.mrf.mxu0
    %v3310 = vadd.f32 0.0, %v3309
    %v3311 = vpop.f32.mrf.mxu0
    %3312 = vmatprep.mubr.f32.mxu0 0.0
    %3313 = vmatmul.mubr.f32.gmra.mxu0 %v173
    %v3314 = vpop.f32.mrf.mxu0
    %v3315 = vadd.f32 0.0, %v3314
    %v3316 = vpop.f32.mrf.mxu0
    %3317 = vmatprep.mubr.f32.mxu0 0.0
    %3318 = vmatmul.mubr.f32.gmra.mxu0 %v176
    %v3319 = vpop.f32.mrf.mxu0
    %v3320 = vadd.f32 0.0, %v3319
    %v3321 = vpop.f32.mrf.mxu0
    %3322 = vmatprep.mubr.f32.mxu0 0.0
    %3323 = vmatmul.mubr.f32.gmra.mxu0 %v179
    %v3324 = vpop.f32.mrf.mxu0
    %v3325 = vadd.f32 0.0, %v3324
    %v3326 = vpop.f32.mrf.mxu0
    %3327 = vmatprep.mubr.f32.mxu0 0.0
    %3328 = vmatmul.mubr.f32.gmra.mxu0 %v182
    %v3329 = vpop.f32.mrf.mxu0
    %v3330 = vadd.f32 0.0, %v3329
    %v3331 = vpop.f32.mrf.mxu0
    %3332 = vmatprep.mubr.f32.mxu0 0.0
    %3333 = vmatmul.mubr.f32.gmra.mxu0 %v185
    %v3334 = vpop.f32.mrf.mxu0
    %v3335 = vadd.f32 0.0, %v3334
    %v3336 = vpop.f32.mrf.mxu0
    %3337 = vmatprep.mubr.f32.mxu0 0.0
    %3338 = vmatmul.mubr.f32.gmra.mxu0 %v188
    %v3339 = vpop.f32.mrf.mxu0
    %v3340 = vadd.f32 0.0, %v3339
    %v3341 = vpop.f32.mrf.mxu0
    %3342 = vmatprep.mubr.f32.mxu0 0.0
    %3343 = vmatmul.mubr.f32.gmra.mxu0 %v191
    %v3344 = vpop.f32.mrf.mxu0
    %v3345 = vadd.f32 0.0, %v3344
    %v3346 = vpop.f32.mrf.mxu0
    %3347 = vmatprep.mubr.f32.mxu0 0.0
    %3348 = vmatmul.mubr.f32.gmra.mxu0 %v194
    %v3349 = vpop.f32.mrf.mxu0
    %v3350 = vadd.f32 0.0, %v3349
    %v3351 = vpop.f32.mrf.mxu0
    %3352 = vmatprep.mubr.f32.mxu0 0.0
    %3353 = vmatmul.mubr.f32.gmra.mxu0 %v197
    %v3354 = vpop.f32.mrf.mxu0
    %v3355 = vadd.f32 0.0, %v3354
    %v3356 = vpop.f32.mrf.mxu0
    %3357 = vmatprep.mubr.f32.mxu0 0.0
    %3358 = vmatmul.mubr.f32.gmra.mxu0 %v200
    %v3359 = vpop.f32.mrf.mxu0
    %v3360 = vadd.f32 0.0, %v3359
    %v3361 = vpop.f32.mrf.mxu0
    %3362 = vmatprep.mubr.f32.mxu0 0.0
    %3363 = vmatmul.mubr.f32.gmra.mxu0 %v203
    %v3364 = vpop.f32.mrf.mxu0
    %v3365 = vadd.f32 0.0, %v3364
    %v3366 = vpop.f32.mrf.mxu0
    %3367 = vmatprep.mubr.f32.mxu0 0.0
    %3368 = vmatmul.mubr.f32.gmra.mxu0 %v206
    %v3369 = vpop.f32.mrf.mxu0
    %v3370 = vadd.f32 0.0, %v3369
    %v3371 = vpop.f32.mrf.mxu0
    %3372 = vmatprep.mubr.f32.mxu0 0.0
    %3373 = vmatmul.mubr.f32.gmra.mxu0 %v209
    %v3374 = vpop.f32.mrf.mxu0
    %v3375 = vadd.f32 0.0, %v3374
    %v3376 = vpop.f32.mrf.mxu0
    %3377 = vmatprep.mubr.f32.mxu0 0.0
    %3378 = vmatmul.mubr.f32.gmra.mxu0 %v212
    %v3379 = vpop.f32.mrf.mxu0
    %v3380 = vadd.f32 0.0, %v3379
    %v3381 = vpop.f32.mrf.mxu0
    %3382 = vdwg.mxu0
    %v3384 = vsel %vm165, %v3305, 0
    %v3387 = vsel %vm165, %v3310, 0
    %v3390 = vsel %vm165, %v3315, 0
    %v3393 = vsel %vm165, %v3320, 0
    %v3396 = vsel %vm165, %v3325, 0
    %v3399 = vsel %vm165, %v3330, 0
    %v3402 = vsel %vm165, %v3335, 0
    %v3405 = vsel %vm165, %v3340, 0
    %v3408 = vsel %vm165, %v3345, 0
    %v3411 = vsel %vm165, %v3350, 0
    %v3414 = vsel %vm165, %v3355, 0
    %v3417 = vsel %vm165, %v3360, 0
    %v3420 = vsel %vm165, %v3365, 0
    %v3423 = vsel %vm165, %v3370, 0
    %v3426 = vsel %vm165, %v3375, 0
    %v3429 = vsel %vm165, %v3380, 0
    %3431 = vmatprep.subr.mxu0 0.0
    %3432 = vmatpush1.msra.mxu0 0.0
    %3433 = vmatprep.subr.mxu0 0.0
    %3434 = vmatpush1.msra.mxu0 0.0
    %3435 = vmatprep.subr.mxu0 0.0
    %3436 = vmatpush1.msra.mxu0 0.0
    %3437 = vmatprep.subr.mxu0 0.0
    %3438 = vmatpush1.msra.mxu0 0.0
    %3439 = vmatprep.subr.mxu0 0.0
    %3440 = vmatpush1.msra.mxu0 0.0
    %3441 = vmatprep.subr.mxu0 0.0
    %3442 = vmatpush1.msra.mxu0 0.0
    %3443 = vmatprep.subr.mxu0 0.0
    %3444 = vmatpush1.msra.mxu0 0.0
    %3445 = vmatprep.subr.mxu0 0.0
    %3446 = vmatpush1.msra.mxu0 0.0
    %3447 = vmatprep.subr.mxu0 0.0
    %3448 = vmatpush1.msra.mxu0 0.0
    %3449 = vmatprep.subr.mxu0 0.0
    %3450 = vmatpush1.msra.mxu0 0.0
    %3451 = vmatprep.subr.mxu0 0.0
    %3452 = vmatpush1.msra.mxu0 0.0
    %3453 = vmatprep.subr.mxu0 0.0
    %3454 = vmatpush1.msra.mxu0 0.0
    %3455 = vmatprep.subr.mxu0 0.0
    %3456 = vmatpush1.msra.mxu0 0.0
    %3457 = vmatprep.subr.mxu0 0.0
    %3458 = vmatpush1.msra.mxu0 0.0
    %3459 = vmatprep.subr.mxu0 0.0
    %3460 = vmatpush1.msra.mxu0 0.0
    %3461 = vmatprep.subr.mxu0 0.0
    %3462 = vmatpush1.msra.mxu0 %v102
    %3463 = vmatprep.subr.mxu0 0.0
    %3464 = vmatpush2.msra.mxu0 0.0
    %3465 = vmatprep.subr.mxu0 0.0
    %3466 = vmatpush2.msra.mxu0 0.0
    %3467 = vmatprep.subr.mxu0 0.0
    %3468 = vmatpush2.msra.mxu0 0.0
    %3469 = vmatprep.subr.mxu0 0.0
    %3470 = vmatpush2.msra.mxu0 0.0
    %3471 = vmatprep.subr.mxu0 0.0
    %3472 = vmatpush2.msra.mxu0 0.0
    %3473 = vmatprep.subr.mxu0 0.0
    %3474 = vmatpush2.msra.mxu0 0.0
    %3475 = vmatprep.subr.mxu0 0.0
    %3476 = vmatpush2.msra.mxu0 0.0
    %3477 = vmatprep.subr.mxu0 0.0
    %3478 = vmatpush2.msra.mxu0 0.0
    %3479 = vmatprep.subr.mxu0 0.0
    %3480 = vmatpush2.msra.mxu0 0.0
    %3481 = vmatprep.subr.mxu0 0.0
    %3482 = vmatpush2.msra.mxu0 0.0
    %3483 = vmatprep.subr.mxu0 0.0
    %3484 = vmatpush2.msra.mxu0 0.0
    %3485 = vmatprep.subr.mxu0 0.0
    %3486 = vmatpush2.msra.mxu0 0.0
    %3487 = vmatprep.subr.mxu0 0.0
    %3488 = vmatpush2.msra.mxu0 0.0
    %3489 = vmatprep.subr.mxu0 0.0
    %3490 = vmatpush2.msra.mxu0 0.0
    %3491 = vmatprep.subr.mxu0 0.0
    %3492 = vmatpush2.msra.mxu0 0.0
    %3493 = vmatprep.subr.mxu0 0.0
    %3494 = vmatpush2.msra.mxu0 0.0
    %3495 = vmatprep.mubr.f32.mxu0 0.0
    %3496 = vmatmul.mubr.f32.gmra.mxu0 %v3384
    %v3497 = vpop.f32.mrf.mxu0
    %v3498 = vadd.f32 0.0, %v3497
    %v3499 = vpop.f32.mrf.mxu0
    %3500 = vmatprep.mubr.f32.mxu0 0.0
    %3501 = vmatmul.mubr.f32.gmra.mxu0 %v3387
    %v3502 = vpop.f32.mrf.mxu0
    %v3503 = vadd.f32 0.0, %v3502
    %v3504 = vpop.f32.mrf.mxu0
    %3505 = vmatprep.mubr.f32.mxu0 0.0
    %3506 = vmatmul.mubr.f32.gmra.mxu0 %v3390
    %v3507 = vpop.f32.mrf.mxu0
    %v3508 = vadd.f32 0.0, %v3507
    %v3509 = vpop.f32.mrf.mxu0
    %3510 = vmatprep.mubr.f32.mxu0 0.0
    %3511 = vmatmul.mubr.f32.gmra.mxu0 %v3393
    %v3512 = vpop.f32.mrf.mxu0
    %v3513 = vadd.f32 0.0, %v3512
    %v3514 = vpop.f32.mrf.mxu0
    %3515 = vmatprep.mubr.f32.mxu0 0.0
    %3516 = vmatmul.mubr.f32.gmra.mxu0 %v3396
    %v3517 = vpop.f32.mrf.mxu0
    %v3518 = vadd.f32 0.0, %v3517
    %v3519 = vpop.f32.mrf.mxu0
    %3520 = vmatprep.mubr.f32.mxu0 0.0
    %3521 = vmatmul.mubr.f32.gmra.mxu0 %v3399
    %v3522 = vpop.f32.mrf.mxu0
    %v3523 = vadd.f32 0.0, %v3522
    %v3524 = vpop.f32.mrf.mxu0
    %3525 = vmatprep.mubr.f32.mxu0 0.0
    %3526 = vmatmul.mubr.f32.gmra.mxu0 %v3402
    %v3527 = vpop.f32.mrf.mxu0
    %v3528 = vadd.f32 0.0, %v3527
    %v3529 = vpop.f32.mrf.mxu0
    %3530 = vmatprep.mubr.f32.mxu0 0.0
    %3531 = vmatmul.mubr.f32.gmra.mxu0 %v3405
    %v3532 = vpop.f32.mrf.mxu0
    %v3533 = vadd.f32 0.0, %v3532
    %v3534 = vpop.f32.mrf.mxu0
    %3535 = vmatprep.mubr.f32.mxu0 0.0
    %3536 = vmatmul.mubr.f32.gmra.mxu0 %v3408
    %v3537 = vpop.f32.mrf.mxu0
    %v3538 = vadd.f32 0.0, %v3537
    %v3539 = vpop.f32.mrf.mxu0
    %3540 = vmatprep.mubr.f32.mxu0 0.0
    %3541 = vmatmul.mubr.f32.gmra.mxu0 %v3411
    %v3542 = vpop.f32.mrf.mxu0
    %v3543 = vadd.f32 0.0, %v3542
    %v3544 = vpop.f32.mrf.mxu0
    %3545 = vmatprep.mubr.f32.mxu0 0.0
    %3546 = vmatmul.mubr.f32.gmra.mxu0 %v3414
    %v3547 = vpop.f32.mrf.mxu0
    %v3548 = vadd.f32 0.0, %v3547
    %v3549 = vpop.f32.mrf.mxu0
    %3550 = vmatprep.mubr.f32.mxu0 0.0
    %3551 = vmatmul.mubr.f32.gmra.mxu0 %v3417
    %v3552 = vpop.f32.mrf.mxu0
    %v3553 = vadd.f32 0.0, %v3552
    %v3554 = vpop.f32.mrf.mxu0
    %3555 = vmatprep.mubr.f32.mxu0 0.0
    %3556 = vmatmul.mubr.f32.gmra.mxu0 %v3420
    %v3557 = vpop.f32.mrf.mxu0
    %v3558 = vadd.f32 0.0, %v3557
    %v3559 = vpop.f32.mrf.mxu0
    %3560 = vmatprep.mubr.f32.mxu0 0.0
    %3561 = vmatmul.mubr.f32.gmra.mxu0 %v3423
    %v3562 = vpop.f32.mrf.mxu0
    %v3563 = vadd.f32 0.0, %v3562
    %v3564 = vpop.f32.mrf.mxu0
    %3565 = vmatprep.mubr.f32.mxu0 0.0
    %3566 = vmatmul.mubr.f32.gmra.mxu0 %v3426
    %v3567 = vpop.f32.mrf.mxu0
    %v3568 = vadd.f32 0.0, %v3567
    %v3569 = vpop.f32.mrf.mxu0
    %3570 = vmatprep.mubr.f32.mxu0 0.0
    %3571 = vmatmul.mubr.f32.gmra.mxu0 %v3429
    %v3572 = vpop.f32.mrf.mxu0
    %v3573 = vadd.f32 0.0, %v3572
    %v3574 = vpop.f32.mrf.mxu0
    %3575 = vdwg.mxu0
    %v3576 = vsel %vm1328, %v3498, 0.0
    %v3577 = vsel %vm1329, %v3503, 0.0
    %v3578 = vsel %vm1330, %v3508, 0.0
    %v3579 = vsel %vm1331, %v3513, 0.0
    %v3580 = vsel %vm1332, %v3518, 0.0
    %v3581 = vsel %vm1333, %v3523, 0.0
    %v3582 = vsel %vm1334, %v3528, 0.0
    %v3583 = vsel %vm1335, %v3533, 0.0
    %v3584 = vsel %vm1336, %v3538, 0.0
    %v3585 = vsel %vm1337, %v3543, 0.0
    %v3586 = vsel %vm1338, %v3548, 0.0
    %v3587 = vsel %vm1339, %v3553, 0.0
    %v3588 = vsel %vm1340, %v3558, 0.0
    %v3589 = vsel %vm1341, %v3563, 0.0
    %v3590 = vsel %vm1342, %v3568, 0.0
    %v3591 = vsel %vm1343, %v3573, 0.0
    %v3592 = vadd.f32 %v3220, %v3576
    %v3593 = vadd.f32 %v3221, %v3577
    %v3594 = vadd.f32 %v3222, %v3578
    %v3595 = vadd.f32 %v3223, %v3579
    %v3596 = vadd.f32 %v3224, %v3580
    %v3597 = vadd.f32 %v3225, %v3581
    %v3598 = vadd.f32 %v3226, %v3582
    %v3599 = vadd.f32 %v3227, %v3583
    %v3600 = vadd.f32 %v3228, %v3584
    %v3601 = vadd.f32 %v3229, %v3585
    %v3602 = vadd.f32 %v3230, %v3586
    %v3603 = vadd.f32 %v3231, %v3587
    %v3604 = vadd.f32 %v3232, %v3588
    %v3605 = vadd.f32 %v3233, %v3589
    %v3606 = vadd.f32 %v3234, %v3590
    %v3607 = vadd.f32 %v3235, %v3591
    %v3608 = vrot.slane %v111, 7
    %v3609 = vrot.slane %v112, 7
    %v3610 = vrot.slane %v113, 7
    %v3611 = vrot.slane %v114, 7
    %vm3612 = vcmp.lt.s32.totalorder %v34, 1
    %v3613 = vsel %vm3612, %v3610, %v3611
    %v3614 = vsel %vm3612, %v3609, %v3610
    %v3615 = vsel %vm3612, %v3608, %v3609
    %v3616 = vsel %vm3612, %v3611, %v3608
    %3618 = vset.pattern.permute.xlu0 0
    %3619 = vperm.xlu0 %3618, %v103
    %v3620 = vpop.permute.xlu0 %3619
    %3623 = vset.pattern.permute.xlu0 0
    %3624 = vperm.xlu0 %3623, %v104
    %v3625 = vpop.permute.xlu0 %3624
    %3628 = vset.pattern.permute.xlu0 0
    %3629 = vperm.xlu0 %3628, %v105
    %v3630 = vpop.permute.xlu0 %3629
    %3633 = vset.pattern.permute.xlu0 0
    %3634 = vperm.xlu0 %3633, %v106
    %v3635 = vpop.permute.xlu0 %3634
    %v3637 = vmul.f32 %v3616, %v3620
    %v3638 = vmul.f32 %v3615, %v3625
    %v3639 = vmul.f32 %v3614, %v3630
    %v3640 = vmul.f32 %v3613, %v3635
    %v3641 = vrot.slane %v111, 1
    %v3642 = vrot.slane %v112, 1
    %v3643 = vrot.slane %v113, 1
    %v3644 = vrot.slane %v114, 1
    %vm3645 = vcmp.lt.s32.totalorder %v34, 7
    %v3646 = vsel %vm3645, %v3643, %v3644
    %v3647 = vsel %vm3645, %v3642, %v3643
    %v3648 = vsel %vm3645, %v3641, %v3642
    %v3649 = vsel %vm3645, %v3644, %v3641
    %3651 = vset.pattern.permute.xlu0 0
    %3652 = vperm.xlu0 %3651, %v107
    %v3653 = vpop.permute.xlu0 %3652
    %3656 = vset.pattern.permute.xlu0 0
    %3657 = vperm.xlu0 %3656, %v108
    %v3658 = vpop.permute.xlu0 %3657
    %3661 = vset.pattern.permute.xlu0 0
    %3662 = vperm.xlu0 %3661, %v109
    %v3663 = vpop.permute.xlu0 %3662
    %3666 = vset.pattern.permute.xlu0 0
    %3667 = vperm.xlu0 %3666, %v110
    %v3668 = vpop.permute.xlu0 %3667
    %v3670 = vmul.f32 %v3648, %v3653
    %v3671 = vmul.f32 %v3647, %v3658
    %v3672 = vmul.f32 %v3646, %v3663
    %v3673 = vmul.f32 %v3649, %v3668
    %3674 = vmatprep.subr.mxu0 0.0
    %3675 = vmatpush1.msra.mxu0 %v2491
    %3676 = vmatprep.subr.mxu0 0.0
    %3677 = vmatpush1.msra.mxu0 %v2490
    %3678 = vmatprep.subr.mxu0 0.0
    %3679 = vmatpush1.msra.mxu0 %v2489
    %3680 = vmatprep.subr.mxu0 0.0
    %3681 = vmatpush1.msra.mxu0 %v2488
    %3682 = vmatprep.subr.mxu0 0.0
    %3683 = vmatpush1.msra.mxu0 %v2487
    %3684 = vmatprep.subr.mxu0 0.0
    %3685 = vmatpush1.msra.mxu0 %v2486
    %3686 = vmatprep.subr.mxu0 0.0
    %3687 = vmatpush1.msra.mxu0 %v2485
    %3688 = vmatprep.subr.mxu0 0.0
    %3689 = vmatpush1.msra.mxu0 %v2484
    %3690 = vmatprep.subr.mxu0 0.0
    %3691 = vmatpush1.msra.mxu0 %v2483
    %3692 = vmatprep.subr.mxu0 0.0
    %3693 = vmatpush1.msra.mxu0 %v2482
    %3694 = vmatprep.subr.mxu0 0.0
    %3695 = vmatpush1.msra.mxu0 %v2481
    %3696 = vmatprep.subr.mxu0 0.0
    %3697 = vmatpush1.msra.mxu0 %v2480
    %3698 = vmatprep.subr.mxu0 0.0
    %3699 = vmatpush1.msra.mxu0 %v2479
    %3700 = vmatprep.subr.mxu0 0.0
    %3701 = vmatpush1.msra.mxu0 %v2478
    %3702 = vmatprep.subr.mxu0 0.0
    %3703 = vmatpush1.msra.mxu0 %v2477
    %3704 = vmatprep.subr.mxu0 0.0
    %3705 = vmatpush1.msra.mxu0 %v2476
    %3706 = vmatprep.subr.mxu0 0.0
    %3707 = vmatpush2.msra.mxu0 0.0
    %3708 = vmatprep.subr.mxu0 0.0
    %3709 = vmatpush2.msra.mxu0 0.0
    %3710 = vmatprep.subr.mxu0 0.0
    %3711 = vmatpush2.msra.mxu0 0.0
    %3712 = vmatprep.subr.mxu0 0.0
    %3713 = vmatpush2.msra.mxu0 0.0
    %3714 = vmatprep.subr.mxu0 0.0
    %3715 = vmatpush2.msra.mxu0 0.0
    %3716 = vmatprep.subr.mxu0 0.0
    %3717 = vmatpush2.msra.mxu0 0.0
    %3718 = vmatprep.subr.mxu0 0.0
    %3719 = vmatpush2.msra.mxu0 0.0
    %3720 = vmatprep.subr.mxu0 0.0
    %3721 = vmatpush2.msra.mxu0 0.0
    %3722 = vmatprep.subr.mxu0 0.0
    %3723 = vmatpush2.msra.mxu0 0.0
    %3724 = vmatprep.subr.mxu0 0.0
    %3725 = vmatpush2.msra.mxu0 0.0
    %3726 = vmatprep.subr.mxu0 0.0
    %3727 = vmatpush2.msra.mxu0 0.0
    %3728 = vmatprep.subr.mxu0 0.0
    %3729 = vmatpush2.msra.mxu0 0.0
    %3730 = vmatprep.subr.mxu0 0.0
    %3731 = vmatpush2.msra.mxu0 0.0
    %3732 = vmatprep.subr.mxu0 0.0
    %3733 = vmatpush2.msra.mxu0 0.0
    %3734 = vmatprep.subr.mxu0 0.0
    %3735 = vmatpush2.msra.mxu0 0.0
    %3736 = vmatprep.subr.mxu0 0.0
    %3737 = vmatpush2.msra.mxu0 0.0
    %3738 = vmatprep.mubr.f32.mxu0 0.0
    %3739 = vmatmul.mubr.f32.gmra.mxu0 %v111
    %v3740 = vpop.f32.mrf.mxu0
    %v3741 = vadd.f32 0.0, %v3740
    %v3742 = vpop.f32.mrf.mxu0
    %3743 = vmatprep.mubr.f32.mxu0 0.0
    %3744 = vmatmul.mubr.f32.gmra.mxu0 %v112
    %v3745 = vpop.f32.mrf.mxu0
    %v3746 = vadd.f32 0.0, %v3745
    %v3747 = vpop.f32.mrf.mxu0
    %3748 = vmatprep.mubr.f32.mxu0 0.0
    %3749 = vmatmul.mubr.f32.gmra.mxu0 %v113
    %v3750 = vpop.f32.mrf.mxu0
    %v3751 = vadd.f32 0.0, %v3750
    %v3752 = vpop.f32.mrf.mxu0
    %3753 = vmatprep.mubr.f32.mxu0 0.0
    %3754 = vmatmul.mubr.f32.gmra.mxu0 %v114
    %v3755 = vpop.f32.mrf.mxu0
    %v3756 = vadd.f32 0.0, %v3755
    %v3757 = vpop.f32.mrf.mxu0
    %3758 = vdwg.mxu0
    %3759 = vmatprep.subr.mxu0 0.0
    %3760 = vmatpush1.msra.mxu0 %v1375
    %3761 = vmatprep.subr.mxu0 0.0
    %3762 = vmatpush1.msra.mxu0 %v1374
    %3763 = vmatprep.subr.mxu0 0.0
    %3764 = vmatpush1.msra.mxu0 %v1373
    %3765 = vmatprep.subr.mxu0 0.0
    %3766 = vmatpush1.msra.mxu0 %v1372
    %3767 = vmatprep.subr.mxu0 0.0
    %3768 = vmatpush1.msra.mxu0 %v1371
    %3769 = vmatprep.subr.mxu0 0.0
    %3770 = vmatpush1.msra.mxu0 %v1370
    %3771 = vmatprep.subr.mxu0 0.0
    %3772 = vmatpush1.msra.mxu0 %v1369
    %3773 = vmatprep.subr.mxu0 0.0
    %3774 = vmatpush1.msra.mxu0 %v1368
    %3775 = vmatprep.subr.mxu0 0.0
    %3776 = vmatpush1.msra.mxu0 %v1367
    %3777 = vmatprep.subr.mxu0 0.0
    %3778 = vmatpush1.msra.mxu0 %v1366
    %3779 = vmatprep.subr.mxu0 0.0
    %3780 = vmatpush1.msra.mxu0 %v1365
    %3781 = vmatprep.subr.mxu0 0.0
    %3782 = vmatpush1.msra.mxu0 %v1364
    %3783 = vmatprep.subr.mxu0 0.0
    %3784 = vmatpush1.msra.mxu0 %v1363
    %3785 = vmatprep.subr.mxu0 0.0
    %3786 = vmatpush1.msra.mxu0 %v1362
    %3787 = vmatprep.subr.mxu0 0.0
    %3788 = vmatpush1.msra.mxu0 %v1361
    %3789 = vmatprep.subr.mxu0 0.0
    %3790 = vmatpush1.msra.mxu0 %v1360
    %3791 = vmatprep.subr.mxu0 0.0
    %3792 = vmatpush2.msra.mxu0 0.0
    %3793 = vmatprep.subr.mxu0 0.0
    %3794 = vmatpush2.msra.mxu0 0.0
    %3795 = vmatprep.subr.mxu0 0.0
    %3796 = vmatpush2.msra.mxu0 0.0
    %3797 = vmatprep.subr.mxu0 0.0
    %3798 = vmatpush2.msra.mxu0 0.0
    %3799 = vmatprep.subr.mxu0 0.0
    %3800 = vmatpush2.msra.mxu0 0.0
    %3801 = vmatprep.subr.mxu0 0.0
    %3802 = vmatpush2.msra.mxu0 0.0
    %3803 = vmatprep.subr.mxu0 0.0
    %3804 = vmatpush2.msra.mxu0 0.0
    %3805 = vmatprep.subr.mxu0 0.0
    %3806 = vmatpush2.msra.mxu0 0.0
    %3807 = vmatprep.subr.mxu0 0.0
    %3808 = vmatpush2.msra.mxu0 0.0
    %3809 = vmatprep.subr.mxu0 0.0
    %3810 = vmatpush2.msra.mxu0 0.0
    %3811 = vmatprep.subr.mxu0 0.0
    %3812 = vmatpush2.msra.mxu0 0.0
    %3813 = vmatprep.subr.mxu0 0.0
    %3814 = vmatpush2.msra.mxu0 0.0
    %3815 = vmatprep.subr.mxu0 0.0
    %3816 = vmatpush2.msra.mxu0 0.0
    %3817 = vmatprep.subr.mxu0 0.0
    %3818 = vmatpush2.msra.mxu0 0.0
    %3819 = vmatprep.subr.mxu0 0.0
    %3820 = vmatpush2.msra.mxu0 0.0
    %3821 = vmatprep.subr.mxu0 0.0
    %3822 = vmatpush2.msra.mxu0 0.0
    %3823 = vmatprep.mubr.f32.mxu0 0.0
    %3824 = vmatmul.mubr.f32.gmra.mxu0 %v3637
    %v3825 = vpop.f32.mrf.mxu0
    %v3826 = vadd.f32 %v3741, %v3825
    %v3827 = vpop.f32.mrf.mxu0
    %3828 = vmatprep.mubr.f32.mxu0 0.0
    %3829 = vmatmul.mubr.f32.gmra.mxu0 %v3638
    %v3830 = vpop.f32.mrf.mxu0
    %v3831 = vadd.f32 %v3746, %v3830
    %v3832 = vpop.f32.mrf.mxu0
    %3833 = vmatprep.mubr.f32.mxu0 0.0
    %3834 = vmatmul.mubr.f32.gmra.mxu0 %v3639
    %v3835 = vpop.f32.mrf.mxu0
    %v3836 = vadd.f32 %v3751, %v3835
    %v3837 = vpop.f32.mrf.mxu0
    %3838 = vmatprep.mubr.f32.mxu0 0.0
    %3839 = vmatmul.mubr.f32.gmra.mxu0 %v3640
    %v3840 = vpop.f32.mrf.mxu0
    %v3841 = vadd.f32 %v3756, %v3840
    %v3842 = vpop.f32.mrf.mxu0
    %3843 = vdwg.mxu0
    %3844 = vmatprep.subr.mxu0 0.0
    %3845 = vmatpush1.msra.mxu0 %v3607
    %3846 = vmatprep.subr.mxu0 0.0
    %3847 = vmatpush1.msra.mxu0 %v3606
    %3848 = vmatprep.subr.mxu0 0.0
    %3849 = vmatpush1.msra.mxu0 %v3605
    %3850 = vmatprep.subr.mxu0 0.0
    %3851 = vmatpush1.msra.mxu0 %v3604
    %3852 = vmatprep.subr.mxu0 0.0
    %3853 = vmatpush1.msra.mxu0 %v3603
    %3854 = vmatprep.subr.mxu0 0.0
    %3855 = vmatpush1.msra.mxu0 %v3602
    %3856 = vmatprep.subr.mxu0 0.0
    %3857 = vmatpush1.msra.mxu0 %v3601
    %3858 = vmatprep.subr.mxu0 0.0
    %3859 = vmatpush1.msra.mxu0 %v3600
    %3860 = vmatprep.subr.mxu0 0.0
    %3861 = vmatpush1.msra.mxu0 %v3599
    %3862 = vmatprep.subr.mxu0 0.0
    %3863 = vmatpush1.msra.mxu0 %v3598
    %3864 = vmatprep.subr.mxu0 0.0
    %3865 = vmatpush1.msra.mxu0 %v3597
    %3866 = vmatprep.subr.mxu0 0.0
    %3867 = vmatpush1.msra.mxu0 %v3596
    %3868 = vmatprep.subr.mxu0 0.0
    %3869 = vmatpush1.msra.mxu0 %v3595
    %3870 = vmatprep.subr.mxu0 0.0
    %3871 = vmatpush1.msra.mxu0 %v3594
    %3872 = vmatprep.subr.mxu0 0.0
    %3873 = vmatpush1.msra.mxu0 %v3593
    %3874 = vmatprep.subr.mxu0 0.0
    %3875 = vmatpush1.msra.mxu0 %v3592
    %3876 = vmatprep.subr.mxu0 0.0
    %3877 = vmatpush2.msra.mxu0 0.0
    %3878 = vmatprep.subr.mxu0 0.0
    %3879 = vmatpush2.msra.mxu0 0.0
    %3880 = vmatprep.subr.mxu0 0.0
    %3881 = vmatpush2.msra.mxu0 0.0
    %3882 = vmatprep.subr.mxu0 0.0
    %3883 = vmatpush2.msra.mxu0 0.0
    %3884 = vmatprep.subr.mxu0 0.0
    %3885 = vmatpush2.msra.mxu0 0.0
    %3886 = vmatprep.subr.mxu0 0.0
    %3887 = vmatpush2.msra.mxu0 0.0
    %3888 = vmatprep.subr.mxu0 0.0
    %3889 = vmatpush2.msra.mxu0 0.0
    %3890 = vmatprep.subr.mxu0 0.0
    %3891 = vmatpush2.msra.mxu0 0.0
    %3892 = vmatprep.subr.mxu0 0.0
    %3893 = vmatpush2.msra.mxu0 0.0
    %3894 = vmatprep.subr.mxu0 0.0
    %3895 = vmatpush2.msra.mxu0 0.0
    %3896 = vmatprep.subr.mxu0 0.0
    %3897 = vmatpush2.msra.mxu0 0.0
    %3898 = vmatprep.subr.mxu0 0.0
    %3899 = vmatpush2.msra.mxu0 0.0
    %3900 = vmatprep.subr.mxu0 0.0
    %3901 = vmatpush2.msra.mxu0 0.0
    %3902 = vmatprep.subr.mxu0 0.0
    %3903 = vmatpush2.msra.mxu0 0.0
    %3904 = vmatprep.subr.mxu0 0.0
    %3905 = vmatpush2.msra.mxu0 0.0
    %3906 = vmatprep.subr.mxu0 0.0
    %3907 = vmatpush2.msra.mxu0 0.0
    %3908 = vmatprep.mubr.f32.mxu0 0.0
    %3909 = vmatmul.mubr.f32.gmra.mxu0 %v3670
    %v3910 = vpop.f32.mrf.mxu0
    %v3911 = vadd.f32 0.0, %v3910
    %v3912 = vpop.f32.mrf.mxu0
    %3913 = vmatprep.mubr.f32.mxu0 0.0
    %3914 = vmatmul.mubr.f32.gmra.mxu0 %v3671
    %v3915 = vpop.f32.mrf.mxu0
    %v3916 = vadd.f32 0.0, %v3915
    %v3917 = vpop.f32.mrf.mxu0
    %3918 = vmatprep.mubr.f32.mxu0 0.0
    %3919 = vmatmul.mubr.f32.gmra.mxu0 %v3672
    %v3920 = vpop.f32.mrf.mxu0
    %v3921 = vadd.f32 0.0, %v3920
    %v3922 = vpop.f32.mrf.mxu0
    %3923 = vmatprep.mubr.f32.mxu0 0.0
    %3924 = vmatmul.mubr.f32.gmra.mxu0 %v3673
    %v3925 = vpop.f32.mrf.mxu0
    %v3926 = vadd.f32 0.0, %v3925
    %v3927 = vpop.f32.mrf.mxu0
    %3928 = vdwg.mxu0
    %v3929 = vadd.f32 %v3826, %v3911
    %v3930 = vadd.f32 %v3831, %v3916
    %v3931 = vadd.f32 %v3836, %v3921
    %v3932 = vadd.f32 %v3841, %v3926
    %v3933 = vadd.f32 %v3929, %v3930
    %v3934 = vadd.f32 %v3933, %v3931
    %v3935 = vadd.f32 %v3934, %v3932
    %v3936 = vrot.slane %v3935, 4
    %v3937 = vadd.f32 %v3935, %v3936
    %v3938 = vrot.slane %v3937, 2
    %v3939 = vadd.f32 %v3937, %v3938
    %v3940 = vrot.slane %v3939, 1
    %v3941 = vadd.f32 %v3939, %v3940
    %v3942 = vmul.f32 %v3929, %v3929
    %v3943 = vmul.f32 %v3930, %v3930
    %v3944 = vmul.f32 %v3931, %v3931
    %v3945 = vmul.f32 %v3932, %v3932
    %v3946 = vadd.f32 %v3942, %v3943
    %v3947 = vadd.f32 %v3946, %v3944
    %v3948 = vadd.f32 %v3947, %v3945
    %v3949 = vrot.slane %v3948, 4
    %v3950 = vadd.f32 %v3948, %v3949
    %v3951 = vrot.slane %v3950, 2
    %v3952 = vadd.f32 %v3950, %v3951
    %v3953 = vrot.slane %v3952, 1
    %v3954 = vadd.f32 %v3952, %v3953
    %vm3955 = vcmask 1040384
    %v3956 = vsel %vm3955, %v3941, %v3954
    %3957 = vmatprep.subr.mxu0 0.0
    %3958 = vmatpush1.msra.mxu0 %v99
    %3959 = vmatprep.subr.mxu0 0.0
    %3960 = vmatpush1.msra.mxu0 %v98
    %3961 = vmatprep.subr.mxu0 0.0
    %3962 = vmatpush1.msra.mxu0 %v97
    %3963 = vmatprep.subr.mxu0 0.0
    %3964 = vmatpush1.msra.mxu0 %v96
    %3965 = vmatprep.subr.mxu0 0.0
    %3966 = vmatpush1.msra.mxu0 %v95
    %3967 = vmatprep.subr.mxu0 0.0
    %3968 = vmatpush1.msra.mxu0 %v94
    %3969 = vmatprep.subr.mxu0 0.0
    %3970 = vmatpush1.msra.mxu0 %v93
    %3971 = vmatprep.subr.mxu0 0.0
    %3972 = vmatpush1.msra.mxu0 %v92
    %3973 = vmatprep.subr.mxu0 0.0
    %3974 = vmatpush1.msra.mxu0 %v91
    %3975 = vmatprep.subr.mxu0 0.0
    %3976 = vmatpush1.msra.mxu0 %v90
    %3977 = vmatprep.subr.mxu0 0.0
    %3978 = vmatpush1.msra.mxu0 %v89
    %3979 = vmatprep.subr.mxu0 0.0
    %3980 = vmatpush1.msra.mxu0 %v88
    %3981 = vmatprep.subr.mxu0 0.0
    %3982 = vmatpush1.msra.mxu0 %v87
    %3983 = vmatprep.subr.mxu0 0.0
    %3984 = vmatpush1.msra.mxu0 %v86
    %3985 = vmatprep.subr.mxu0 0.0
    %3986 = vmatpush1.msra.mxu0 %v85
    %3987 = vmatprep.subr.mxu0 0.0
    %3988 = vmatpush1.msra.mxu0 %v84
    %3989 = vmatprep.subr.mxu0 0.0
    %3990 = vmatpush2.msra.mxu0 0.0
    %3991 = vmatprep.subr.mxu0 0.0
    %3992 = vmatpush2.msra.mxu0 0.0
    %3993 = vmatprep.subr.mxu0 0.0
    %3994 = vmatpush2.msra.mxu0 0.0
    %3995 = vmatprep.subr.mxu0 0.0
    %3996 = vmatpush2.msra.mxu0 0.0
    %3997 = vmatprep.subr.mxu0 0.0
    %3998 = vmatpush2.msra.mxu0 0.0
    %3999 = vmatprep.subr.mxu0 0.0
    %4000 = vmatpush2.msra.mxu0 0.0
    %4001 = vmatprep.subr.mxu0 0.0
    %4002 = vmatpush2.msra.mxu0 0.0
    %4003 = vmatprep.subr.mxu0 0.0
    %4004 = vmatpush2.msra.mxu0 0.0
    %4005 = vmatprep.subr.mxu0 0.0
    %4006 = vmatpush2.msra.mxu0 0.0
    %4007 = vmatprep.subr.mxu0 0.0
    %4008 = vmatpush2.msra.mxu0 0.0
    %4009 = vmatprep.subr.mxu0 0.0
    %4010 = vmatpush2.msra.mxu0 0.0
    %4011 = vmatprep.subr.mxu0 0.0
    %4012 = vmatpush2.msra.mxu0 0.0
    %4013 = vmatprep.subr.mxu0 0.0
    %4014 = vmatpush2.msra.mxu0 0.0
    %4015 = vmatprep.subr.mxu0 0.0
    %4016 = vmatpush2.msra.mxu0 0.0
    %4017 = vmatprep.subr.mxu0 0.0
    %4018 = vmatpush2.msra.mxu0 0.0
    %4019 = vmatprep.subr.mxu0 0.0
    %4020 = vmatpush2.msra.mxu0 0.0
    %4021 = vmatprep.mubr.f32.mxu0 0.0
    %4022 = vmatmul.mubr.f32.gmra.mxu0 %v3956
    %v4023 = vpop.f32.mrf.mxu0
    %v4024 = vadd.f32 0.0, %v4023
    %v4025 = vpop.f32.mrf.mxu0
    %4026 = vdwg.mxu0
    %v4027 = vmul.f32 %v4024, 0.001953125
    %v4028 = vmul.f32 %v4027, %v4027
    %v4030 = vrot.slane %v4028, 7
    %v4032 = vsub.f32 %v4027, %v4030
    %v4033 = vmax.f32 %v4032, 0.0
    %v4034 = vld [vmem:[%s4] sm:$0x1]
    %v4035 = vadd.f32 %v4033, 1e-05
    %v4036 = vrsqrt.pop %v4035
    %v4039 = vunpack.c.l.s4 1966171168
    %v4040 = vunpack.c.0.s8 %v4039
    %v4041 = vlaneseq
    %v4042 = vshrl.u32 %v4041, 7
    %v4043 = vsub.s32 %v4040, %v4042
    %v4044 = vrot.slane %v4036, %v4043
    %v4045 = vcombine.high %v4044, %v4044
    %v4047 = vunpack.c.l.s4 1966171168
    %v4048 = vunpack.c.0.s8 %v4047
    %v4049 = vlaneseq
    %v4050 = vshrl.u32 %v4049, 7
    %v4051 = vsub.s32 %v4048, %v4050
    %v4052 = vrot.slane %v4045, %v4051
    %v4054 = vmul.f32 %v4034, %v4052
    %v4055 = vld [vmem:[%s5] sm:$0x1]
    %v4056 = vmul.f32 %v4027, %v4054
    %v4057 = vsub.f32 %v4055, %v4056
    %v4059 = vlaneseq
    %v4060 = vshrl.u32 %v4059, 7
    %v4061 = vsub.s32 0, %v4060
    %v4062 = vrot.slane %v4057, %v4061
    %v4064 = vsel %vm3955, %v4054, %v4062
    %v4066 = vsel %vm165, %v4064, 0
    %4068 = vmatprep.subr.mxu0 0.0
    %4069 = vmatpush1.msra.mxu0 0.0
    %4070 = vmatprep.subr.mxu0 0.0
    %4071 = vmatpush1.msra.mxu0 0.0
    %4072 = vmatprep.subr.mxu0 0.0
    %4073 = vmatpush1.msra.mxu0 0.0
    %4074 = vmatprep.subr.mxu0 0.0
    %4075 = vmatpush1.msra.mxu0 0.0
    %4076 = vmatprep.subr.mxu0 0.0
    %4077 = vmatpush1.msra.mxu0 0.0
    %4078 = vmatprep.subr.mxu0 0.0
    %4079 = vmatpush1.msra.mxu0 0.0
    %4080 = vmatprep.subr.mxu0 0.0
    %4081 = vmatpush1.msra.mxu0 0.0
    %4082 = vmatprep.subr.mxu0 0.0
    %4083 = vmatpush1.msra.mxu0 0.0
    %4084 = vmatprep.subr.mxu0 0.0
    %4085 = vmatpush1.msra.mxu0 0.0
    %4086 = vmatprep.subr.mxu0 0.0
    %4087 = vmatpush1.msra.mxu0 0.0
    %4088 = vmatprep.subr.mxu0 0.0
    %4089 = vmatpush1.msra.mxu0 0.0
    %4090 = vmatprep.subr.mxu0 0.0
    %4091 = vmatpush1.msra.mxu0 0.0
    %4092 = vmatprep.subr.mxu0 0.0
    %4093 = vmatpush1.msra.mxu0 0.0
    %4094 = vmatprep.subr.mxu0 0.0
    %4095 = vmatpush1.msra.mxu0 0.0
    %4096 = vmatprep.subr.mxu0 0.0
    %4097 = vmatpush1.msra.mxu0 0.0
    %4098 = vmatprep.subr.mxu0 0.0
    %4099 = vmatpush1.msra.mxu0 %v102
    %4100 = vmatprep.subr.mxu0 0.0
    %4101 = vmatpush2.msra.mxu0 0.0
    %4102 = vmatprep.subr.mxu0 0.0
    %4103 = vmatpush2.msra.mxu0 0.0
    %4104 = vmatprep.subr.mxu0 0.0
    %4105 = vmatpush2.msra.mxu0 0.0
    %4106 = vmatprep.subr.mxu0 0.0
    %4107 = vmatpush2.msra.mxu0 0.0
    %4108 = vmatprep.subr.mxu0 0.0
    %4109 = vmatpush2.msra.mxu0 0.0
    %4110 = vmatprep.subr.mxu0 0.0
    %4111 = vmatpush2.msra.mxu0 0.0
    %4112 = vmatprep.subr.mxu0 0.0
    %4113 = vmatpush2.msra.mxu0 0.0
    %4114 = vmatprep.subr.mxu0 0.0
    %4115 = vmatpush2.msra.mxu0 0.0
    %4116 = vmatprep.subr.mxu0 0.0
    %4117 = vmatpush2.msra.mxu0 0.0
    %4118 = vmatprep.subr.mxu0 0.0
    %4119 = vmatpush2.msra.mxu0 0.0
    %4120 = vmatprep.subr.mxu0 0.0
    %4121 = vmatpush2.msra.mxu0 0.0
    %4122 = vmatprep.subr.mxu0 0.0
    %4123 = vmatpush2.msra.mxu0 0.0
    %4124 = vmatprep.subr.mxu0 0.0
    %4125 = vmatpush2.msra.mxu0 0.0
    %4126 = vmatprep.subr.mxu0 0.0
    %4127 = vmatpush2.msra.mxu0 0.0
    %4128 = vmatprep.subr.mxu0 0.0
    %4129 = vmatpush2.msra.mxu0 0.0
    %4130 = vmatprep.subr.mxu0 0.0
    %4131 = vmatpush2.msra.mxu0 0.0
    %4132 = vmatprep.mubr.f32.mxu0 0.0
    %4133 = vmatmul.mubr.f32.gmra.mxu0 %v4066
    %v4134 = vpop.f32.mrf.mxu0
    %v4135 = vadd.f32 0.0, %v4134
    %v4136 = vpop.f32.mrf.mxu0
    %4137 = vdwg.mxu0
    %v4138 = vlaneseq
    %v4139 = vshrl.u32 %v4138, 7
    %v4140 = vsub.s32 0, %v4139
    %v4141 = vrot.slane %v4135, %v4140
    %v4142 = vmul.f32 %v3929, %v4141
    %v4143 = vmul.f32 %v3930, %v4141
    %v4144 = vmul.f32 %v3931, %v4141
    %v4145 = vmul.f32 %v3932, %v4141
    %v4146 = vlaneseq
    %v4147 = vshrl.u32 %v4146, 7
    %v4148 = vsub.s32 1, %v4147
    %v4149 = vrot.slane %v4135, %v4148
    %v4150 = vadd.f32 %v4142, %v4149
    %v4151 = vadd.f32 %v4143, %v4149
    %v4152 = vadd.f32 %v4144, %v4149
    %v4153 = vadd.f32 %v4145, %v4149
    %v4154 = vmax.f32 %v4150, 0.0
    %v4155 = vmax.f32 %v4151, 0.0
    %v4156 = vmax.f32 %v4152, 0.0
    %v4157 = vmax.f32 %v4153, 0.0
    %v4158 = vld [vmem:[%s6] sm:$0xff]
    %4159 = vmatprep.subr.mxu0 0.0
    %4160 = vmatpush1.msra.mxu0 0.0
    %4161 = vmatprep.subr.mxu0 0.0
    %4162 = vmatpush1.msra.mxu0 0.0
    %4163 = vmatprep.subr.mxu0 0.0
    %4164 = vmatpush1.msra.mxu0 0.0
    %4165 = vmatprep.subr.mxu0 0.0
    %4166 = vmatpush1.msra.mxu0 0.0
    %4167 = vmatprep.subr.mxu0 0.0
    %4168 = vmatpush1.msra.mxu0 0.0
    %4169 = vmatprep.subr.mxu0 0.0
    %4170 = vmatpush1.msra.mxu0 0.0
    %4171 = vmatprep.subr.mxu0 0.0
    %4172 = vmatpush1.msra.mxu0 0.0
    %4173 = vmatprep.subr.mxu0 0.0
    %4174 = vmatpush1.msra.mxu0 0.0
    %4175 = vmatprep.subr.mxu0 0.0
    %4176 = vmatpush1.msra.mxu0 0.0
    %4177 = vmatprep.subr.mxu0 0.0
    %4178 = vmatpush1.msra.mxu0 0.0
    %4179 = vmatprep.subr.mxu0 0.0
    %4180 = vmatpush1.msra.mxu0 0.0
    %4181 = vmatprep.subr.mxu0 0.0
    %4182 = vmatpush1.msra.mxu0 0.0
    %4183 = vmatprep.subr.mxu0 0.0
    %4184 = vmatpush1.msra.mxu0 0.0
    %4185 = vmatprep.subr.mxu0 0.0
    %4186 = vmatpush1.msra.mxu0 0.0
    %4187 = vmatprep.subr.mxu0 0.0
    %4188 = vmatpush1.msra.mxu0 0.0
    %4189 = vmatprep.subr.mxu0 0.0
    %4190 = vmatpush1.msra.mxu0 %v4158
    %4191 = vmatprep.subr.mxu0 0.0
    %4192 = vmatpush2.msra.mxu0 0.0
    %4193 = vmatprep.subr.mxu0 0.0
    %4194 = vmatpush2.msra.mxu0 0.0
    %4195 = vmatprep.subr.mxu0 0.0
    %4196 = vmatpush2.msra.mxu0 0.0
    %4197 = vmatprep.subr.mxu0 0.0
    %4198 = vmatpush2.msra.mxu0 0.0
    %4199 = vmatprep.subr.mxu0 0.0
    %4200 = vmatpush2.msra.mxu0 0.0
    %4201 = vmatprep.subr.mxu0 0.0
    %4202 = vmatpush2.msra.mxu0 0.0
    %4203 = vmatprep.subr.mxu0 0.0
    %4204 = vmatpush2.msra.mxu0 0.0
    %4205 = vmatprep.subr.mxu0 0.0
    %4206 = vmatpush2.msra.mxu0 0.0
    %4207 = vmatprep.subr.mxu0 0.0
    %4208 = vmatpush2.msra.mxu0 0.0
    %4209 = vmatprep.subr.mxu0 0.0
    %4210 = vmatpush2.msra.mxu0 0.0
    %4211 = vmatprep.subr.mxu0 0.0
    %4212 = vmatpush2.msra.mxu0 0.0
    %4213 = vmatprep.subr.mxu0 0.0
    %4214 = vmatpush2.msra.mxu0 0.0
    %4215 = vmatprep.subr.mxu0 0.0
    %4216 = vmatpush2.msra.mxu0 0.0
    %4217 = vmatprep.subr.mxu0 0.0
    %4218 = vmatpush2.msra.mxu0 0.0
    %4219 = vmatprep.subr.mxu0 0.0
    %4220 = vmatpush2.msra.mxu0 0.0
    %4221 = vmatprep.subr.mxu0 0.0
    %4222 = vmatpush2.msra.mxu0 0.0
    %4223 = vmatprep.mubr.f32.mxu0 0.0
    %4224 = vmatmul.mubr.f32.gmra.mxu0 %v167
    %v4225 = vpop.f32.mrf.mxu0
    %v4226 = vadd.f32 0.0, %v4225
    %v4227 = vpop.f32.mrf.mxu0
    %4228 = vmatprep.mubr.f32.mxu0 0.0
    %4229 = vmatmul.mubr.f32.gmra.mxu0 %v170
    %v4230 = vpop.f32.mrf.mxu0
    %v4231 = vadd.f32 0.0, %v4230
    %v4232 = vpop.f32.mrf.mxu0
    %4233 = vmatprep.mubr.f32.mxu0 0.0
    %4234 = vmatmul.mubr.f32.gmra.mxu0 %v173
    %v4235 = vpop.f32.mrf.mxu0
    %v4236 = vadd.f32 0.0, %v4235
    %v4237 = vpop.f32.mrf.mxu0
    %4238 = vmatprep.mubr.f32.mxu0 0.0
    %4239 = vmatmul.mubr.f32.gmra.mxu0 %v176
    %v4240 = vpop.f32.mrf.mxu0
    %v4241 = vadd.f32 0.0, %v4240
    %v4242 = vpop.f32.mrf.mxu0
    %4243 = vmatprep.mubr.f32.mxu0 0.0
    %4244 = vmatmul.mubr.f32.gmra.mxu0 %v179
    %v4245 = vpop.f32.mrf.mxu0
    %v4246 = vadd.f32 0.0, %v4245
    %v4247 = vpop.f32.mrf.mxu0
    %4248 = vmatprep.mubr.f32.mxu0 0.0
    %4249 = vmatmul.mubr.f32.gmra.mxu0 %v182
    %v4250 = vpop.f32.mrf.mxu0
    %v4251 = vadd.f32 0.0, %v4250
    %v4252 = vpop.f32.mrf.mxu0
    %4253 = vmatprep.mubr.f32.mxu0 0.0
    %4254 = vmatmul.mubr.f32.gmra.mxu0 %v185
    %v4255 = vpop.f32.mrf.mxu0
    %v4256 = vadd.f32 0.0, %v4255
    %v4257 = vpop.f32.mrf.mxu0
    %4258 = vmatprep.mubr.f32.mxu0 0.0
    %4259 = vmatmul.mubr.f32.gmra.mxu0 %v188
    %v4260 = vpop.f32.mrf.mxu0
    %v4261 = vadd.f32 0.0, %v4260
    %v4262 = vpop.f32.mrf.mxu0
    %4263 = vmatprep.mubr.f32.mxu0 0.0
    %4264 = vmatmul.mubr.f32.gmra.mxu0 %v191
    %v4265 = vpop.f32.mrf.mxu0
    %v4266 = vadd.f32 0.0, %v4265
    %v4267 = vpop.f32.mrf.mxu0
    %4268 = vmatprep.mubr.f32.mxu0 0.0
    %4269 = vmatmul.mubr.f32.gmra.mxu0 %v194
    %v4270 = vpop.f32.mrf.mxu0
    %v4271 = vadd.f32 0.0, %v4270
    %v4272 = vpop.f32.mrf.mxu0
    %4273 = vmatprep.mubr.f32.mxu0 0.0
    %4274 = vmatmul.mubr.f32.gmra.mxu0 %v197
    %v4275 = vpop.f32.mrf.mxu0
    %v4276 = vadd.f32 0.0, %v4275
    %v4277 = vpop.f32.mrf.mxu0
    %4278 = vmatprep.mubr.f32.mxu0 0.0
    %4279 = vmatmul.mubr.f32.gmra.mxu0 %v200
    %v4280 = vpop.f32.mrf.mxu0
    %v4281 = vadd.f32 0.0, %v4280
    %v4282 = vpop.f32.mrf.mxu0
    %4283 = vmatprep.mubr.f32.mxu0 0.0
    %4284 = vmatmul.mubr.f32.gmra.mxu0 %v203
    %v4285 = vpop.f32.mrf.mxu0
    %v4286 = vadd.f32 0.0, %v4285
    %v4287 = vpop.f32.mrf.mxu0
    %4288 = vmatprep.mubr.f32.mxu0 0.0
    %4289 = vmatmul.mubr.f32.gmra.mxu0 %v206
    %v4290 = vpop.f32.mrf.mxu0
    %v4291 = vadd.f32 0.0, %v4290
    %v4292 = vpop.f32.mrf.mxu0
    %4293 = vmatprep.mubr.f32.mxu0 0.0
    %4294 = vmatmul.mubr.f32.gmra.mxu0 %v209
    %v4295 = vpop.f32.mrf.mxu0
    %v4296 = vadd.f32 0.0, %v4295
    %v4297 = vpop.f32.mrf.mxu0
    %4298 = vmatprep.mubr.f32.mxu0 0.0
    %4299 = vmatmul.mubr.f32.gmra.mxu0 %v212
    %v4300 = vpop.f32.mrf.mxu0
    %v4301 = vadd.f32 0.0, %v4300
    %v4302 = vpop.f32.mrf.mxu0
    %4303 = vdwg.mxu0
    %v4305 = vsel %vm165, %v4226, 0
    %v4308 = vsel %vm165, %v4231, 0
    %v4311 = vsel %vm165, %v4236, 0
    %v4314 = vsel %vm165, %v4241, 0
    %v4317 = vsel %vm165, %v4246, 0
    %v4320 = vsel %vm165, %v4251, 0
    %v4323 = vsel %vm165, %v4256, 0
    %v4326 = vsel %vm165, %v4261, 0
    %v4329 = vsel %vm165, %v4266, 0
    %v4332 = vsel %vm165, %v4271, 0
    %v4335 = vsel %vm165, %v4276, 0
    %v4338 = vsel %vm165, %v4281, 0
    %v4341 = vsel %vm165, %v4286, 0
    %v4344 = vsel %vm165, %v4291, 0
    %v4347 = vsel %vm165, %v4296, 0
    %v4350 = vsel %vm165, %v4301, 0
    %4352 = vmatprep.subr.mxu0 0.0
    %4353 = vmatpush1.msra.mxu0 0.0
    %4354 = vmatprep.subr.mxu0 0.0
    %4355 = vmatpush1.msra.mxu0 0.0
    %4356 = vmatprep.subr.mxu0 0.0
    %4357 = vmatpush1.msra.mxu0 0.0
    %4358 = vmatprep.subr.mxu0 0.0
    %4359 = vmatpush1.msra.mxu0 0.0
    %4360 = vmatprep.subr.mxu0 0.0
    %4361 = vmatpush1.msra.mxu0 0.0
    %4362 = vmatprep.subr.mxu0 0.0
    %4363 = vmatpush1.msra.mxu0 0.0
    %4364 = vmatprep.subr.mxu0 0.0
    %4365 = vmatpush1.msra.mxu0 0.0
    %4366 = vmatprep.subr.mxu0 0.0
    %4367 = vmatpush1.msra.mxu0 0.0
    %4368 = vmatprep.subr.mxu0 0.0
    %4369 = vmatpush1.msra.mxu0 0.0
    %4370 = vmatprep.subr.mxu0 0.0
    %4371 = vmatpush1.msra.mxu0 0.0
    %4372 = vmatprep.subr.mxu0 0.0
    %4373 = vmatpush1.msra.mxu0 0.0
    %4374 = vmatprep.subr.mxu0 0.0
    %4375 = vmatpush1.msra.mxu0 0.0
    %4376 = vmatprep.subr.mxu0 0.0
    %4377 = vmatpush1.msra.mxu0 0.0
    %4378 = vmatprep.subr.mxu0 0.0
    %4379 = vmatpush1.msra.mxu0 0.0
    %4380 = vmatprep.subr.mxu0 0.0
    %4381 = vmatpush1.msra.mxu0 0.0
    %4382 = vmatprep.subr.mxu0 0.0
    %4383 = vmatpush1.msra.mxu0 %v102
    %4384 = vmatprep.subr.mxu0 0.0
    %4385 = vmatpush2.msra.mxu0 0.0
    %4386 = vmatprep.subr.mxu0 0.0
    %4387 = vmatpush2.msra.mxu0 0.0
    %4388 = vmatprep.subr.mxu0 0.0
    %4389 = vmatpush2.msra.mxu0 0.0
    %4390 = vmatprep.subr.mxu0 0.0
    %4391 = vmatpush2.msra.mxu0 0.0
    %4392 = vmatprep.subr.mxu0 0.0
    %4393 = vmatpush2.msra.mxu0 0.0
    %4394 = vmatprep.subr.mxu0 0.0
    %4395 = vmatpush2.msra.mxu0 0.0
    %4396 = vmatprep.subr.mxu0 0.0
    %4397 = vmatpush2.msra.mxu0 0.0
    %4398 = vmatprep.subr.mxu0 0.0
    %4399 = vmatpush2.msra.mxu0 0.0
    %4400 = vmatprep.subr.mxu0 0.0
    %4401 = vmatpush2.msra.mxu0 0.0
    %4402 = vmatprep.subr.mxu0 0.0
    %4403 = vmatpush2.msra.mxu0 0.0
    %4404 = vmatprep.subr.mxu0 0.0
    %4405 = vmatpush2.msra.mxu0 0.0
    %4406 = vmatprep.subr.mxu0 0.0
    %4407 = vmatpush2.msra.mxu0 0.0
    %4408 = vmatprep.subr.mxu0 0.0
    %4409 = vmatpush2.msra.mxu0 0.0
    %4410 = vmatprep.subr.mxu0 0.0
    %4411 = vmatpush2.msra.mxu0 0.0
    %4412 = vmatprep.subr.mxu0 0.0
    %4413 = vmatpush2.msra.mxu0 0.0
    %4414 = vmatprep.subr.mxu0 0.0
    %4415 = vmatpush2.msra.mxu0 0.0
    %4416 = vmatprep.mubr.f32.mxu0 0.0
    %4417 = vmatmul.mubr.f32.gmra.mxu0 %v4305
    %v4418 = vpop.f32.mrf.mxu0
    %v4419 = vadd.f32 0.0, %v4418
    %v4420 = vpop.f32.mrf.mxu0
    %4421 = vmatprep.mubr.f32.mxu0 0.0
    %4422 = vmatmul.mubr.f32.gmra.mxu0 %v4308
    %v4423 = vpop.f32.mrf.mxu0
    %v4424 = vadd.f32 0.0, %v4423
    %v4425 = vpop.f32.mrf.mxu0
    %4426 = vmatprep.mubr.f32.mxu0 0.0
    %4427 = vmatmul.mubr.f32.gmra.mxu0 %v4311
    %v4428 = vpop.f32.mrf.mxu0
    %v4429 = vadd.f32 0.0, %v4428
    %v4430 = vpop.f32.mrf.mxu0
    %4431 = vmatprep.mubr.f32.mxu0 0.0
    %4432 = vmatmul.mubr.f32.gmra.mxu0 %v4314
    %v4433 = vpop.f32.mrf.mxu0
    %v4434 = vadd.f32 0.0, %v4433
    %v4435 = vpop.f32.mrf.mxu0
    %4436 = vmatprep.mubr.f32.mxu0 0.0
    %4437 = vmatmul.mubr.f32.gmra.mxu0 %v4317
    %v4438 = vpop.f32.mrf.mxu0
    %v4439 = vadd.f32 0.0, %v4438
    %v4440 = vpop.f32.mrf.mxu0
    %4441 = vmatprep.mubr.f32.mxu0 0.0
    %4442 = vmatmul.mubr.f32.gmra.mxu0 %v4320
    %v4443 = vpop.f32.mrf.mxu0
    %v4444 = vadd.f32 0.0, %v4443
    %v4445 = vpop.f32.mrf.mxu0
    %4446 = vmatprep.mubr.f32.mxu0 0.0
    %4447 = vmatmul.mubr.f32.gmra.mxu0 %v4323
    %v4448 = vpop.f32.mrf.mxu0
    %v4449 = vadd.f32 0.0, %v4448
    %v4450 = vpop.f32.mrf.mxu0
    %4451 = vmatprep.mubr.f32.mxu0 0.0
    %4452 = vmatmul.mubr.f32.gmra.mxu0 %v4326
    %v4453 = vpop.f32.mrf.mxu0
    %v4454 = vadd.f32 0.0, %v4453
    %v4455 = vpop.f32.mrf.mxu0
    %4456 = vmatprep.mubr.f32.mxu0 0.0
    %4457 = vmatmul.mubr.f32.gmra.mxu0 %v4329
    %v4458 = vpop.f32.mrf.mxu0
    %v4459 = vadd.f32 0.0, %v4458
    %v4460 = vpop.f32.mrf.mxu0
    %4461 = vmatprep.mubr.f32.mxu0 0.0
    %4462 = vmatmul.mubr.f32.gmra.mxu0 %v4332
    %v4463 = vpop.f32.mrf.mxu0
    %v4464 = vadd.f32 0.0, %v4463
    %v4465 = vpop.f32.mrf.mxu0
    %4466 = vmatprep.mubr.f32.mxu0 0.0
    %4467 = vmatmul.mubr.f32.gmra.mxu0 %v4335
    %v4468 = vpop.f32.mrf.mxu0
    %v4469 = vadd.f32 0.0, %v4468
    %v4470 = vpop.f32.mrf.mxu0
    %4471 = vmatprep.mubr.f32.mxu0 0.0
    %4472 = vmatmul.mubr.f32.gmra.mxu0 %v4338
    %v4473 = vpop.f32.mrf.mxu0
    %v4474 = vadd.f32 0.0, %v4473
    %v4475 = vpop.f32.mrf.mxu0
    %4476 = vmatprep.mubr.f32.mxu0 0.0
    %4477 = vmatmul.mubr.f32.gmra.mxu0 %v4341
    %v4478 = vpop.f32.mrf.mxu0
    %v4479 = vadd.f32 0.0, %v4478
    %v4480 = vpop.f32.mrf.mxu0
    %4481 = vmatprep.mubr.f32.mxu0 0.0
    %4482 = vmatmul.mubr.f32.gmra.mxu0 %v4344
    %v4483 = vpop.f32.mrf.mxu0
    %v4484 = vadd.f32 0.0, %v4483
    %v4485 = vpop.f32.mrf.mxu0
    %4486 = vmatprep.mubr.f32.mxu0 0.0
    %4487 = vmatmul.mubr.f32.gmra.mxu0 %v4347
    %v4488 = vpop.f32.mrf.mxu0
    %v4489 = vadd.f32 0.0, %v4488
    %v4490 = vpop.f32.mrf.mxu0
    %4491 = vmatprep.mubr.f32.mxu0 0.0
    %4492 = vmatmul.mubr.f32.gmra.mxu0 %v4350
    %v4493 = vpop.f32.mrf.mxu0
    %v4494 = vadd.f32 0.0, %v4493
    %v4495 = vpop.f32.mrf.mxu0
    %4496 = vdwg.mxu0
    %v4497 = vsel %vm552, %v4419, 0.0
    %v4498 = vsel %vm553, %v4424, 0.0
    %v4499 = vsel %vm554, %v4429, 0.0
    %v4500 = vsel %vm555, %v4434, 0.0
    %v4501 = vsel %vm556, %v4439, 0.0
    %v4502 = vsel %vm557, %v4444, 0.0
    %v4503 = vsel %vm558, %v4449, 0.0
    %v4504 = vsel %vm559, %v4454, 0.0
    %v4505 = vsel %vm560, %v4459, 0.0
    %v4506 = vsel %vm561, %v4464, 0.0
    %v4507 = vsel %vm562, %v4469, 0.0
    %v4508 = vsel %vm563, %v4474, 0.0
    %v4509 = vsel %vm564, %v4479, 0.0
    %v4510 = vsel %vm565, %v4484, 0.0
    %v4511 = vsel %vm566, %v4489, 0.0
    %v4512 = vsel %vm567, %v4494, 0.0
    %v4513 = vadd.f32 %v4497, 0.0
    %v4514 = vadd.f32 %v4498, 0.0
    %v4515 = vadd.f32 %v4499, 0.0
    %v4516 = vadd.f32 %v4500, 0.0
    %v4517 = vadd.f32 %v4501, 0.0
    %v4518 = vadd.f32 %v4502, 0.0
    %v4519 = vadd.f32 %v4503, 0.0
    %v4520 = vadd.f32 %v4504, 0.0
    %v4521 = vadd.f32 %v4505, 0.0
    %v4522 = vadd.f32 %v4506, 0.0
    %v4523 = vadd.f32 %v4507, 0.0
    %v4524 = vadd.f32 %v4508, 0.0
    %v4525 = vadd.f32 %v4509, 0.0
    %v4526 = vadd.f32 %v4510, 0.0
    %v4527 = vadd.f32 %v4511, 0.0
    %v4528 = vadd.f32 %v4512, 0.0
    %s4529 = scalar_lea.vmem %s6, 8
    %v4530 = vld [vmem:[%s4529] sm:$0xff]
    %4531 = vmatprep.subr.mxu0 0.0
    %4532 = vmatpush1.msra.mxu0 0.0
    %4533 = vmatprep.subr.mxu0 0.0
    %4534 = vmatpush1.msra.mxu0 0.0
    %4535 = vmatprep.subr.mxu0 0.0
    %4536 = vmatpush1.msra.mxu0 0.0
    %4537 = vmatprep.subr.mxu0 0.0
    %4538 = vmatpush1.msra.mxu0 0.0
    %4539 = vmatprep.subr.mxu0 0.0
    %4540 = vmatpush1.msra.mxu0 0.0
    %4541 = vmatprep.subr.mxu0 0.0
    %4542 = vmatpush1.msra.mxu0 0.0
    %4543 = vmatprep.subr.mxu0 0.0
    %4544 = vmatpush1.msra.mxu0 0.0
    %4545 = vmatprep.subr.mxu0 0.0
    %4546 = vmatpush1.msra.mxu0 0.0
    %4547 = vmatprep.subr.mxu0 0.0
    %4548 = vmatpush1.msra.mxu0 0.0
    %4549 = vmatprep.subr.mxu0 0.0
    %4550 = vmatpush1.msra.mxu0 0.0
    %4551 = vmatprep.subr.mxu0 0.0
    %4552 = vmatpush1.msra.mxu0 0.0
    %4553 = vmatprep.subr.mxu0 0.0
    %4554 = vmatpush1.msra.mxu0 0.0
    %4555 = vmatprep.subr.mxu0 0.0
    %4556 = vmatpush1.msra.mxu0 0.0
    %4557 = vmatprep.subr.mxu0 0.0
    %4558 = vmatpush1.msra.mxu0 0.0
    %4559 = vmatprep.subr.mxu0 0.0
    %4560 = vmatpush1.msra.mxu0 0.0
    %4561 = vmatprep.subr.mxu0 0.0
    %4562 = vmatpush1.msra.mxu0 %v4530
    %4563 = vmatprep.subr.mxu0 0.0
    %4564 = vmatpush2.msra.mxu0 0.0
    %4565 = vmatprep.subr.mxu0 0.0
    %4566 = vmatpush2.msra.mxu0 0.0
    %4567 = vmatprep.subr.mxu0 0.0
    %4568 = vmatpush2.msra.mxu0 0.0
    %4569 = vmatprep.subr.mxu0 0.0
    %4570 = vmatpush2.msra.mxu0 0.0
    %4571 = vmatprep.subr.mxu0 0.0
    %4572 = vmatpush2.msra.mxu0 0.0
    %4573 = vmatprep.subr.mxu0 0.0
    %4574 = vmatpush2.msra.mxu0 0.0
    %4575 = vmatprep.subr.mxu0 0.0
    %4576 = vmatpush2.msra.mxu0 0.0
    %4577 = vmatprep.subr.mxu0 0.0
    %4578 = vmatpush2.msra.mxu0 0.0
    %4579 = vmatprep.subr.mxu0 0.0
    %4580 = vmatpush2.msra.mxu0 0.0
    %4581 = vmatprep.subr.mxu0 0.0
    %4582 = vmatpush2.msra.mxu0 0.0
    %4583 = vmatprep.subr.mxu0 0.0
    %4584 = vmatpush2.msra.mxu0 0.0
    %4585 = vmatprep.subr.mxu0 0.0
    %4586 = vmatpush2.msra.mxu0 0.0
    %4587 = vmatprep.subr.mxu0 0.0
    %4588 = vmatpush2.msra.mxu0 0.0
    %4589 = vmatprep.subr.mxu0 0.0
    %4590 = vmatpush2.msra.mxu0 0.0
    %4591 = vmatprep.subr.mxu0 0.0
    %4592 = vmatpush2.msra.mxu0 0.0
    %4593 = vmatprep.subr.mxu0 0.0
    %4594 = vmatpush2.msra.mxu0 0.0
    %4595 = vmatprep.mubr.f32.mxu0 0.0
    %4596 = vmatmul.mubr.f32.gmra.mxu0 %v167
    %v4597 = vpop.f32.mrf.mxu0
    %v4598 = vadd.f32 0.0, %v4597
    %v4599 = vpop.f32.mrf.mxu0
    %4600 = vmatprep.mubr.f32.mxu0 0.0
    %4601 = vmatmul.mubr.f32.gmra.mxu0 %v170
    %v4602 = vpop.f32.mrf.mxu0
    %v4603 = vadd.f32 0.0, %v4602
    %v4604 = vpop.f32.mrf.mxu0
    %4605 = vmatprep.mubr.f32.mxu0 0.0
    %4606 = vmatmul.mubr.f32.gmra.mxu0 %v173
    %v4607 = vpop.f32.mrf.mxu0
    %v4608 = vadd.f32 0.0, %v4607
    %v4609 = vpop.f32.mrf.mxu0
    %4610 = vmatprep.mubr.f32.mxu0 0.0
    %4611 = vmatmul.mubr.f32.gmra.mxu0 %v176
    %v4612 = vpop.f32.mrf.mxu0
    %v4613 = vadd.f32 0.0, %v4612
    %v4614 = vpop.f32.mrf.mxu0
    %4615 = vmatprep.mubr.f32.mxu0 0.0
    %4616 = vmatmul.mubr.f32.gmra.mxu0 %v179
    %v4617 = vpop.f32.mrf.mxu0
    %v4618 = vadd.f32 0.0, %v4617
    %v4619 = vpop.f32.mrf.mxu0
    %4620 = vmatprep.mubr.f32.mxu0 0.0
    %4621 = vmatmul.mubr.f32.gmra.mxu0 %v182
    %v4622 = vpop.f32.mrf.mxu0
    %v4623 = vadd.f32 0.0, %v4622
    %v4624 = vpop.f32.mrf.mxu0
    %4625 = vmatprep.mubr.f32.mxu0 0.0
    %4626 = vmatmul.mubr.f32.gmra.mxu0 %v185
    %v4627 = vpop.f32.mrf.mxu0
    %v4628 = vadd.f32 0.0, %v4627
    %v4629 = vpop.f32.mrf.mxu0
    %4630 = vmatprep.mubr.f32.mxu0 0.0
    %4631 = vmatmul.mubr.f32.gmra.mxu0 %v188
    %v4632 = vpop.f32.mrf.mxu0
    %v4633 = vadd.f32 0.0, %v4632
    %v4634 = vpop.f32.mrf.mxu0
    %4635 = vmatprep.mubr.f32.mxu0 0.0
    %4636 = vmatmul.mubr.f32.gmra.mxu0 %v191
    %v4637 = vpop.f32.mrf.mxu0
    %v4638 = vadd.f32 0.0, %v4637
    %v4639 = vpop.f32.mrf.mxu0
    %4640 = vmatprep.mubr.f32.mxu0 0.0
    %4641 = vmatmul.mubr.f32.gmra.mxu0 %v194
    %v4642 = vpop.f32.mrf.mxu0
    %v4643 = vadd.f32 0.0, %v4642
    %v4644 = vpop.f32.mrf.mxu0
    %4645 = vmatprep.mubr.f32.mxu0 0.0
    %4646 = vmatmul.mubr.f32.gmra.mxu0 %v197
    %v4647 = vpop.f32.mrf.mxu0
    %v4648 = vadd.f32 0.0, %v4647
    %v4649 = vpop.f32.mrf.mxu0
    %4650 = vmatprep.mubr.f32.mxu0 0.0
    %4651 = vmatmul.mubr.f32.gmra.mxu0 %v200
    %v4652 = vpop.f32.mrf.mxu0
    %v4653 = vadd.f32 0.0, %v4652
    %v4654 = vpop.f32.mrf.mxu0
    %4655 = vmatprep.mubr.f32.mxu0 0.0
    %4656 = vmatmul.mubr.f32.gmra.mxu0 %v203
    %v4657 = vpop.f32.mrf.mxu0
    %v4658 = vadd.f32 0.0, %v4657
    %v4659 = vpop.f32.mrf.mxu0
    %4660 = vmatprep.mubr.f32.mxu0 0.0
    %4661 = vmatmul.mubr.f32.gmra.mxu0 %v206
    %v4662 = vpop.f32.mrf.mxu0
    %v4663 = vadd.f32 0.0, %v4662
    %v4664 = vpop.f32.mrf.mxu0
    %4665 = vmatprep.mubr.f32.mxu0 0.0
    %4666 = vmatmul.mubr.f32.gmra.mxu0 %v209
    %v4667 = vpop.f32.mrf.mxu0
    %v4668 = vadd.f32 0.0, %v4667
    %v4669 = vpop.f32.mrf.mxu0
    %4670 = vmatprep.mubr.f32.mxu0 0.0
    %4671 = vmatmul.mubr.f32.gmra.mxu0 %v212
    %v4672 = vpop.f32.mrf.mxu0
    %v4673 = vadd.f32 0.0, %v4672
    %v4674 = vpop.f32.mrf.mxu0
    %4675 = vdwg.mxu0
    %v4677 = vsel %vm165, %v4598, 0
    %v4680 = vsel %vm165, %v4603, 0
    %v4683 = vsel %vm165, %v4608, 0
    %v4686 = vsel %vm165, %v4613, 0
    %v4689 = vsel %vm165, %v4618, 0
    %v4692 = vsel %vm165, %v4623, 0
    %v4695 = vsel %vm165, %v4628, 0
    %v4698 = vsel %vm165, %v4633, 0
    %v4701 = vsel %vm165, %v4638, 0
    %v4704 = vsel %vm165, %v4643, 0
    %v4707 = vsel %vm165, %v4648, 0
    %v4710 = vsel %vm165, %v4653, 0
    %v4713 = vsel %vm165, %v4658, 0
    %v4716 = vsel %vm165, %v4663, 0
    %v4719 = vsel %vm165, %v4668, 0
    %v4722 = vsel %vm165, %v4673, 0
    %4724 = vmatprep.subr.mxu0 0.0
    %4725 = vmatpush1.msra.mxu0 0.0
    %4726 = vmatprep.subr.mxu0 0.0
    %4727 = vmatpush1.msra.mxu0 0.0
    %4728 = vmatprep.subr.mxu0 0.0
    %4729 = vmatpush1.msra.mxu0 0.0
    %4730 = vmatprep.subr.mxu0 0.0
    %4731 = vmatpush1.msra.mxu0 0.0
    %4732 = vmatprep.subr.mxu0 0.0
    %4733 = vmatpush1.msra.mxu0 0.0
    %4734 = vmatprep.subr.mxu0 0.0
    %4735 = vmatpush1.msra.mxu0 0.0
    %4736 = vmatprep.subr.mxu0 0.0
    %4737 = vmatpush1.msra.mxu0 0.0
    %4738 = vmatprep.subr.mxu0 0.0
    %4739 = vmatpush1.msra.mxu0 0.0
    %4740 = vmatprep.subr.mxu0 0.0
    %4741 = vmatpush1.msra.mxu0 0.0
    %4742 = vmatprep.subr.mxu0 0.0
    %4743 = vmatpush1.msra.mxu0 0.0
    %4744 = vmatprep.subr.mxu0 0.0
    %4745 = vmatpush1.msra.mxu0 0.0
    %4746 = vmatprep.subr.mxu0 0.0
    %4747 = vmatpush1.msra.mxu0 0.0
    %4748 = vmatprep.subr.mxu0 0.0
    %4749 = vmatpush1.msra.mxu0 0.0
    %4750 = vmatprep.subr.mxu0 0.0
    %4751 = vmatpush1.msra.mxu0 0.0
    %4752 = vmatprep.subr.mxu0 0.0
    %4753 = vmatpush1.msra.mxu0 0.0
    %4754 = vmatprep.subr.mxu0 0.0
    %4755 = vmatpush1.msra.mxu0 %v102
    %4756 = vmatprep.subr.mxu0 0.0
    %4757 = vmatpush2.msra.mxu0 0.0
    %4758 = vmatprep.subr.mxu0 0.0
    %4759 = vmatpush2.msra.mxu0 0.0
    %4760 = vmatprep.subr.mxu0 0.0
    %4761 = vmatpush2.msra.mxu0 0.0
    %4762 = vmatprep.subr.mxu0 0.0
    %4763 = vmatpush2.msra.mxu0 0.0
    %4764 = vmatprep.subr.mxu0 0.0
    %4765 = vmatpush2.msra.mxu0 0.0
    %4766 = vmatprep.subr.mxu0 0.0
    %4767 = vmatpush2.msra.mxu0 0.0
    %4768 = vmatprep.subr.mxu0 0.0
    %4769 = vmatpush2.msra.mxu0 0.0
    %4770 = vmatprep.subr.mxu0 0.0
    %4771 = vmatpush2.msra.mxu0 0.0
    %4772 = vmatprep.subr.mxu0 0.0
    %4773 = vmatpush2.msra.mxu0 0.0
    %4774 = vmatprep.subr.mxu0 0.0
    %4775 = vmatpush2.msra.mxu0 0.0
    %4776 = vmatprep.subr.mxu0 0.0
    %4777 = vmatpush2.msra.mxu0 0.0
    %4778 = vmatprep.subr.mxu0 0.0
    %4779 = vmatpush2.msra.mxu0 0.0
    %4780 = vmatprep.subr.mxu0 0.0
    %4781 = vmatpush2.msra.mxu0 0.0
    %4782 = vmatprep.subr.mxu0 0.0
    %4783 = vmatpush2.msra.mxu0 0.0
    %4784 = vmatprep.subr.mxu0 0.0
    %4785 = vmatpush2.msra.mxu0 0.0
    %4786 = vmatprep.subr.mxu0 0.0
    %4787 = vmatpush2.msra.mxu0 0.0
    %4788 = vmatprep.mubr.f32.mxu0 0.0
    %4789 = vmatmul.mubr.f32.gmra.mxu0 %v4677
    %v4790 = vpop.f32.mrf.mxu0
    %v4791 = vadd.f32 0.0, %v4790
    %v4792 = vpop.f32.mrf.mxu0
    %4793 = vmatprep.mubr.f32.mxu0 0.0
    %4794 = vmatmul.mubr.f32.gmra.mxu0 %v4680
    %v4795 = vpop.f32.mrf.mxu0
    %v4796 = vadd.f32 0.0, %v4795
    %v4797 = vpop.f32.mrf.mxu0
    %4798 = vmatprep.mubr.f32.mxu0 0.0
    %4799 = vmatmul.mubr.f32.gmra.mxu0 %v4683
    %v4800 = vpop.f32.mrf.mxu0
    %v4801 = vadd.f32 0.0, %v4800
    %v4802 = vpop.f32.mrf.mxu0
    %4803 = vmatprep.mubr.f32.mxu0 0.0
    %4804 = vmatmul.mubr.f32.gmra.mxu0 %v4686
    %v4805 = vpop.f32.mrf.mxu0
    %v4806 = vadd.f32 0.0, %v4805
    %v4807 = vpop.f32.mrf.mxu0
    %4808 = vmatprep.mubr.f32.mxu0 0.0
    %4809 = vmatmul.mubr.f32.gmra.mxu0 %v4689
    %v4810 = vpop.f32.mrf.mxu0
    %v4811 = vadd.f32 0.0, %v4810
    %v4812 = vpop.f32.mrf.mxu0
    %4813 = vmatprep.mubr.f32.mxu0 0.0
    %4814 = vmatmul.mubr.f32.gmra.mxu0 %v4692
    %v4815 = vpop.f32.mrf.mxu0
    %v4816 = vadd.f32 0.0, %v4815
    %v4817 = vpop.f32.mrf.mxu0
    %4818 = vmatprep.mubr.f32.mxu0 0.0
    %4819 = vmatmul.mubr.f32.gmra.mxu0 %v4695
    %v4820 = vpop.f32.mrf.mxu0
    %v4821 = vadd.f32 0.0, %v4820
    %v4822 = vpop.f32.mrf.mxu0
    %4823 = vmatprep.mubr.f32.mxu0 0.0
    %4824 = vmatmul.mubr.f32.gmra.mxu0 %v4698
    %v4825 = vpop.f32.mrf.mxu0
    %v4826 = vadd.f32 0.0, %v4825
    %v4827 = vpop.f32.mrf.mxu0
    %4828 = vmatprep.mubr.f32.mxu0 0.0
    %4829 = vmatmul.mubr.f32.gmra.mxu0 %v4701
    %v4830 = vpop.f32.mrf.mxu0
    %v4831 = vadd.f32 0.0, %v4830
    %v4832 = vpop.f32.mrf.mxu0
    %4833 = vmatprep.mubr.f32.mxu0 0.0
    %4834 = vmatmul.mubr.f32.gmra.mxu0 %v4704
    %v4835 = vpop.f32.mrf.mxu0
    %v4836 = vadd.f32 0.0, %v4835
    %v4837 = vpop.f32.mrf.mxu0
    %4838 = vmatprep.mubr.f32.mxu0 0.0
    %4839 = vmatmul.mubr.f32.gmra.mxu0 %v4707
    %v4840 = vpop.f32.mrf.mxu0
    %v4841 = vadd.f32 0.0, %v4840
    %v4842 = vpop.f32.mrf.mxu0
    %4843 = vmatprep.mubr.f32.mxu0 0.0
    %4844 = vmatmul.mubr.f32.gmra.mxu0 %v4710
    %v4845 = vpop.f32.mrf.mxu0
    %v4846 = vadd.f32 0.0, %v4845
    %v4847 = vpop.f32.mrf.mxu0
    %4848 = vmatprep.mubr.f32.mxu0 0.0
    %4849 = vmatmul.mubr.f32.gmra.mxu0 %v4713
    %v4850 = vpop.f32.mrf.mxu0
    %v4851 = vadd.f32 0.0, %v4850
    %v4852 = vpop.f32.mrf.mxu0
    %4853 = vmatprep.mubr.f32.mxu0 0.0
    %4854 = vmatmul.mubr.f32.gmra.mxu0 %v4716
    %v4855 = vpop.f32.mrf.mxu0
    %v4856 = vadd.f32 0.0, %v4855
    %v4857 = vpop.f32.mrf.mxu0
    %4858 = vmatprep.mubr.f32.mxu0 0.0
    %4859 = vmatmul.mubr.f32.gmra.mxu0 %v4719
    %v4860 = vpop.f32.mrf.mxu0
    %v4861 = vadd.f32 0.0, %v4860
    %v4862 = vpop.f32.mrf.mxu0
    %4863 = vmatprep.mubr.f32.mxu0 0.0
    %4864 = vmatmul.mubr.f32.gmra.mxu0 %v4722
    %v4865 = vpop.f32.mrf.mxu0
    %v4866 = vadd.f32 0.0, %v4865
    %v4867 = vpop.f32.mrf.mxu0
    %4868 = vdwg.mxu0
    %v4869 = vsel %vm940, %v4791, 0.0
    %v4870 = vsel %vm941, %v4796, 0.0
    %v4871 = vsel %vm942, %v4801, 0.0
    %v4872 = vsel %vm943, %v4806, 0.0
    %v4873 = vsel %vm944, %v4811, 0.0
    %v4874 = vsel %vm945, %v4816, 0.0
    %v4875 = vsel %vm946, %v4821, 0.0
    %v4876 = vsel %vm947, %v4826, 0.0
    %v4877 = vsel %vm948, %v4831, 0.0
    %v4878 = vsel %vm949, %v4836, 0.0
    %v4879 = vsel %vm950, %v4841, 0.0
    %v4880 = vsel %vm951, %v4846, 0.0
    %v4881 = vsel %vm952, %v4851, 0.0
    %v4882 = vsel %vm953, %v4856, 0.0
    %v4883 = vsel %vm954, %v4861, 0.0
    %v4884 = vsel %vm955, %v4866, 0.0
    %v4885 = vadd.f32 %v4513, %v4869
    %v4886 = vadd.f32 %v4514, %v4870
    %v4887 = vadd.f32 %v4515, %v4871
    %v4888 = vadd.f32 %v4516, %v4872
    %v4889 = vadd.f32 %v4517, %v4873
    %v4890 = vadd.f32 %v4518, %v4874
    %v4891 = vadd.f32 %v4519, %v4875
    %v4892 = vadd.f32 %v4520, %v4876
    %v4893 = vadd.f32 %v4521, %v4877
    %v4894 = vadd.f32 %v4522, %v4878
    %v4895 = vadd.f32 %v4523, %v4879
    %v4896 = vadd.f32 %v4524, %v4880
    %v4897 = vadd.f32 %v4525, %v4881
    %v4898 = vadd.f32 %v4526, %v4882
    %v4899 = vadd.f32 %v4527, %v4883
    %v4900 = vadd.f32 %v4528, %v4884
    %s4901 = scalar_lea.vmem %s6, 16
    %v4902 = vld [vmem:[%s4901] sm:$0xff]
    %4903 = vmatprep.subr.mxu0 0.0
    %4904 = vmatpush1.msra.mxu0 0.0
    %4905 = vmatprep.subr.mxu0 0.0
    %4906 = vmatpush1.msra.mxu0 0.0
    %4907 = vmatprep.subr.mxu0 0.0
    %4908 = vmatpush1.msra.mxu0 0.0
    %4909 = vmatprep.subr.mxu0 0.0
    %4910 = vmatpush1.msra.mxu0 0.0
    %4911 = vmatprep.subr.mxu0 0.0
    %4912 = vmatpush1.msra.mxu0 0.0
    %4913 = vmatprep.subr.mxu0 0.0
    %4914 = vmatpush1.msra.mxu0 0.0
    %4915 = vmatprep.subr.mxu0 0.0
    %4916 = vmatpush1.msra.mxu0 0.0
    %4917 = vmatprep.subr.mxu0 0.0
    %4918 = vmatpush1.msra.mxu0 0.0
    %4919 = vmatprep.subr.mxu0 0.0
    %4920 = vmatpush1.msra.mxu0 0.0
    %4921 = vmatprep.subr.mxu0 0.0
    %4922 = vmatpush1.msra.mxu0 0.0
    %4923 = vmatprep.subr.mxu0 0.0
    %4924 = vmatpush1.msra.mxu0 0.0
    %4925 = vmatprep.subr.mxu0 0.0
    %4926 = vmatpush1.msra.mxu0 0.0
    %4927 = vmatprep.subr.mxu0 0.0
    %4928 = vmatpush1.msra.mxu0 0.0
    %4929 = vmatprep.subr.mxu0 0.0
    %4930 = vmatpush1.msra.mxu0 0.0
    %4931 = vmatprep.subr.mxu0 0.0
    %4932 = vmatpush1.msra.mxu0 0.0
    %4933 = vmatprep.subr.mxu0 0.0
    %4934 = vmatpush1.msra.mxu0 %v4902
    %4935 = vmatprep.subr.mxu0 0.0
    %4936 = vmatpush2.msra.mxu0 0.0
    %4937 = vmatprep.subr.mxu0 0.0
    %4938 = vmatpush2.msra.mxu0 0.0
    %4939 = vmatprep.subr.mxu0 0.0
    %4940 = vmatpush2.msra.mxu0 0.0
    %4941 = vmatprep.subr.mxu0 0.0
    %4942 = vmatpush2.msra.mxu0 0.0
    %4943 = vmatprep.subr.mxu0 0.0
    %4944 = vmatpush2.msra.mxu0 0.0
    %4945 = vmatprep.subr.mxu0 0.0
    %4946 = vmatpush2.msra.mxu0 0.0
    %4947 = vmatprep.subr.mxu0 0.0
    %4948 = vmatpush2.msra.mxu0 0.0
    %4949 = vmatprep.subr.mxu0 0.0
    %4950 = vmatpush2.msra.mxu0 0.0
    %4951 = vmatprep.subr.mxu0 0.0
    %4952 = vmatpush2.msra.mxu0 0.0
    %4953 = vmatprep.subr.mxu0 0.0
    %4954 = vmatpush2.msra.mxu0 0.0
    %4955 = vmatprep.subr.mxu0 0.0
    %4956 = vmatpush2.msra.mxu0 0.0
    %4957 = vmatprep.subr.mxu0 0.0
    %4958 = vmatpush2.msra.mxu0 0.0
    %4959 = vmatprep.subr.mxu0 0.0
    %4960 = vmatpush2.msra.mxu0 0.0
    %4961 = vmatprep.subr.mxu0 0.0
    %4962 = vmatpush2.msra.mxu0 0.0
    %4963 = vmatprep.subr.mxu0 0.0
    %4964 = vmatpush2.msra.mxu0 0.0
    %4965 = vmatprep.subr.mxu0 0.0
    %4966 = vmatpush2.msra.mxu0 0.0
    %4967 = vmatprep.mubr.f32.mxu0 0.0
    %4968 = vmatmul.mubr.f32.gmra.mxu0 %v167
    %v4969 = vpop.f32.mrf.mxu0
    %v4970 = vadd.f32 0.0, %v4969
    %v4971 = vpop.f32.mrf.mxu0
    %4972 = vmatprep.mubr.f32.mxu0 0.0
    %4973 = vmatmul.mubr.f32.gmra.mxu0 %v170
    %v4974 = vpop.f32.mrf.mxu0
    %v4975 = vadd.f32 0.0, %v4974
    %v4976 = vpop.f32.mrf.mxu0
    %4977 = vmatprep.mubr.f32.mxu0 0.0
    %4978 = vmatmul.mubr.f32.gmra.mxu0 %v173
    %v4979 = vpop.f32.mrf.mxu0
    %v4980 = vadd.f32 0.0, %v4979
    %v4981 = vpop.f32.mrf.mxu0
    %4982 = vmatprep.mubr.f32.mxu0 0.0
    %4983 = vmatmul.mubr.f32.gmra.mxu0 %v176
    %v4984 = vpop.f32.mrf.mxu0
    %v4985 = vadd.f32 0.0, %v4984
    %v4986 = vpop.f32.mrf.mxu0
    %4987 = vmatprep.mubr.f32.mxu0 0.0
    %4988 = vmatmul.mubr.f32.gmra.mxu0 %v179
    %v4989 = vpop.f32.mrf.mxu0
    %v4990 = vadd.f32 0.0, %v4989
    %v4991 = vpop.f32.mrf.mxu0
    %4992 = vmatprep.mubr.f32.mxu0 0.0
    %4993 = vmatmul.mubr.f32.gmra.mxu0 %v182
    %v4994 = vpop.f32.mrf.mxu0
    %v4995 = vadd.f32 0.0, %v4994
    %v4996 = vpop.f32.mrf.mxu0
    %4997 = vmatprep.mubr.f32.mxu0 0.0
    %4998 = vmatmul.mubr.f32.gmra.mxu0 %v185
    %v4999 = vpop.f32.mrf.mxu0
    %v5000 = vadd.f32 0.0, %v4999
    %v5001 = vpop.f32.mrf.mxu0
    %5002 = vmatprep.mubr.f32.mxu0 0.0
    %5003 = vmatmul.mubr.f32.gmra.mxu0 %v188
    %v5004 = vpop.f32.mrf.mxu0
    %v5005 = vadd.f32 0.0, %v5004
    %v5006 = vpop.f32.mrf.mxu0
    %5007 = vmatprep.mubr.f32.mxu0 0.0
    %5008 = vmatmul.mubr.f32.gmra.mxu0 %v191
    %v5009 = vpop.f32.mrf.mxu0
    %v5010 = vadd.f32 0.0, %v5009
    %v5011 = vpop.f32.mrf.mxu0
    %5012 = vmatprep.mubr.f32.mxu0 0.0
    %5013 = vmatmul.mubr.f32.gmra.mxu0 %v194
    %v5014 = vpop.f32.mrf.mxu0
    %v5015 = vadd.f32 0.0, %v5014
    %v5016 = vpop.f32.mrf.mxu0
    %5017 = vmatprep.mubr.f32.mxu0 0.0
    %5018 = vmatmul.mubr.f32.gmra.mxu0 %v197
    %v5019 = vpop.f32.mrf.mxu0
    %v5020 = vadd.f32 0.0, %v5019
    %v5021 = vpop.f32.mrf.mxu0
    %5022 = vmatprep.mubr.f32.mxu0 0.0
    %5023 = vmatmul.mubr.f32.gmra.mxu0 %v200
    %v5024 = vpop.f32.mrf.mxu0
    %v5025 = vadd.f32 0.0, %v5024
    %v5026 = vpop.f32.mrf.mxu0
    %5027 = vmatprep.mubr.f32.mxu0 0.0
    %5028 = vmatmul.mubr.f32.gmra.mxu0 %v203
    %v5029 = vpop.f32.mrf.mxu0
    %v5030 = vadd.f32 0.0, %v5029
    %v5031 = vpop.f32.mrf.mxu0
    %5032 = vmatprep.mubr.f32.mxu0 0.0
    %5033 = vmatmul.mubr.f32.gmra.mxu0 %v206
    %v5034 = vpop.f32.mrf.mxu0
    %v5035 = vadd.f32 0.0, %v5034
    %v5036 = vpop.f32.mrf.mxu0
    %5037 = vmatprep.mubr.f32.mxu0 0.0
    %5038 = vmatmul.mubr.f32.gmra.mxu0 %v209
    %v5039 = vpop.f32.mrf.mxu0
    %v5040 = vadd.f32 0.0, %v5039
    %v5041 = vpop.f32.mrf.mxu0
    %5042 = vmatprep.mubr.f32.mxu0 0.0
    %5043 = vmatmul.mubr.f32.gmra.mxu0 %v212
    %v5044 = vpop.f32.mrf.mxu0
    %v5045 = vadd.f32 0.0, %v5044
    %v5046 = vpop.f32.mrf.mxu0
    %5047 = vdwg.mxu0
    %v5049 = vsel %vm165, %v4970, 0
    %v5052 = vsel %vm165, %v4975, 0
    %v5055 = vsel %vm165, %v4980, 0
    %v5058 = vsel %vm165, %v4985, 0
    %v5061 = vsel %vm165, %v4990, 0
    %v5064 = vsel %vm165, %v4995, 0
    %v5067 = vsel %vm165, %v5000, 0
    %v5070 = vsel %vm165, %v5005, 0
    %v5073 = vsel %vm165, %v5010, 0
    %v5076 = vsel %vm165, %v5015, 0
    %v5079 = vsel %vm165, %v5020, 0
    %v5082 = vsel %vm165, %v5025, 0
    %v5085 = vsel %vm165, %v5030, 0
    %v5088 = vsel %vm165, %v5035, 0
    %v5091 = vsel %vm165, %v5040, 0
    %v5094 = vsel %vm165, %v5045, 0
    %5096 = vmatprep.subr.mxu0 0.0
    %5097 = vmatpush1.msra.mxu0 0.0
    %5098 = vmatprep.subr.mxu0 0.0
    %5099 = vmatpush1.msra.mxu0 0.0
    %5100 = vmatprep.subr.mxu0 0.0
    %5101 = vmatpush1.msra.mxu0 0.0
    %5102 = vmatprep.subr.mxu0 0.0
    %5103 = vmatpush1.msra.mxu0 0.0
    %5104 = vmatprep.subr.mxu0 0.0
    %5105 = vmatpush1.msra.mxu0 0.0
    %5106 = vmatprep.subr.mxu0 0.0
    %5107 = vmatpush1.msra.mxu0 0.0
    %5108 = vmatprep.subr.mxu0 0.0
    %5109 = vmatpush1.msra.mxu0 0.0
    %5110 = vmatprep.subr.mxu0 0.0
    %5111 = vmatpush1.msra.mxu0 0.0
    %5112 = vmatprep.subr.mxu0 0.0
    %5113 = vmatpush1.msra.mxu0 0.0
    %5114 = vmatprep.subr.mxu0 0.0
    %5115 = vmatpush1.msra.mxu0 0.0
    %5116 = vmatprep.subr.mxu0 0.0
    %5117 = vmatpush1.msra.mxu0 0.0
    %5118 = vmatprep.subr.mxu0 0.0
    %5119 = vmatpush1.msra.mxu0 0.0
    %5120 = vmatprep.subr.mxu0 0.0
    %5121 = vmatpush1.msra.mxu0 0.0
    %5122 = vmatprep.subr.mxu0 0.0
    %5123 = vmatpush1.msra.mxu0 0.0
    %5124 = vmatprep.subr.mxu0 0.0
    %5125 = vmatpush1.msra.mxu0 0.0
    %5126 = vmatprep.subr.mxu0 0.0
    %5127 = vmatpush1.msra.mxu0 %v102
    %5128 = vmatprep.subr.mxu0 0.0
    %5129 = vmatpush2.msra.mxu0 0.0
    %5130 = vmatprep.subr.mxu0 0.0
    %5131 = vmatpush2.msra.mxu0 0.0
    %5132 = vmatprep.subr.mxu0 0.0
    %5133 = vmatpush2.msra.mxu0 0.0
    %5134 = vmatprep.subr.mxu0 0.0
    %5135 = vmatpush2.msra.mxu0 0.0
    %5136 = vmatprep.subr.mxu0 0.0
    %5137 = vmatpush2.msra.mxu0 0.0
    %5138 = vmatprep.subr.mxu0 0.0
    %5139 = vmatpush2.msra.mxu0 0.0
    %5140 = vmatprep.subr.mxu0 0.0
    %5141 = vmatpush2.msra.mxu0 0.0
    %5142 = vmatprep.subr.mxu0 0.0
    %5143 = vmatpush2.msra.mxu0 0.0
    %5144 = vmatprep.subr.mxu0 0.0
    %5145 = vmatpush2.msra.mxu0 0.0
    %5146 = vmatprep.subr.mxu0 0.0
    %5147 = vmatpush2.msra.mxu0 0.0
    %5148 = vmatprep.subr.mxu0 0.0
    %5149 = vmatpush2.msra.mxu0 0.0
    %5150 = vmatprep.subr.mxu0 0.0
    %5151 = vmatpush2.msra.mxu0 0.0
    %5152 = vmatprep.subr.mxu0 0.0
    %5153 = vmatpush2.msra.mxu0 0.0
    %5154 = vmatprep.subr.mxu0 0.0
    %5155 = vmatpush2.msra.mxu0 0.0
    %5156 = vmatprep.subr.mxu0 0.0
    %5157 = vmatpush2.msra.mxu0 0.0
    %5158 = vmatprep.subr.mxu0 0.0
    %5159 = vmatpush2.msra.mxu0 0.0
    %5160 = vmatprep.mubr.f32.mxu0 0.0
    %5161 = vmatmul.mubr.f32.gmra.mxu0 %v5049
    %v5162 = vpop.f32.mrf.mxu0
    %v5163 = vadd.f32 0.0, %v5162
    %v5164 = vpop.f32.mrf.mxu0
    %5165 = vmatprep.mubr.f32.mxu0 0.0
    %5166 = vmatmul.mubr.f32.gmra.mxu0 %v5052
    %v5167 = vpop.f32.mrf.mxu0
    %v5168 = vadd.f32 0.0, %v5167
    %v5169 = vpop.f32.mrf.mxu0
    %5170 = vmatprep.mubr.f32.mxu0 0.0
    %5171 = vmatmul.mubr.f32.gmra.mxu0 %v5055
    %v5172 = vpop.f32.mrf.mxu0
    %v5173 = vadd.f32 0.0, %v5172
    %v5174 = vpop.f32.mrf.mxu0
    %5175 = vmatprep.mubr.f32.mxu0 0.0
    %5176 = vmatmul.mubr.f32.gmra.mxu0 %v5058
    %v5177 = vpop.f32.mrf.mxu0
    %v5178 = vadd.f32 0.0, %v5177
    %v5179 = vpop.f32.mrf.mxu0
    %5180 = vmatprep.mubr.f32.mxu0 0.0
    %5181 = vmatmul.mubr.f32.gmra.mxu0 %v5061
    %v5182 = vpop.f32.mrf.mxu0
    %v5183 = vadd.f32 0.0, %v5182
    %v5184 = vpop.f32.mrf.mxu0
    %5185 = vmatprep.mubr.f32.mxu0 0.0
    %5186 = vmatmul.mubr.f32.gmra.mxu0 %v5064
    %v5187 = vpop.f32.mrf.mxu0
    %v5188 = vadd.f32 0.0, %v5187
    %v5189 = vpop.f32.mrf.mxu0
    %5190 = vmatprep.mubr.f32.mxu0 0.0
    %5191 = vmatmul.mubr.f32.gmra.mxu0 %v5067
    %v5192 = vpop.f32.mrf.mxu0
    %v5193 = vadd.f32 0.0, %v5192
    %v5194 = vpop.f32.mrf.mxu0
    %5195 = vmatprep.mubr.f32.mxu0 0.0
    %5196 = vmatmul.mubr.f32.gmra.mxu0 %v5070
    %v5197 = vpop.f32.mrf.mxu0
    %v5198 = vadd.f32 0.0, %v5197
    %v5199 = vpop.f32.mrf.mxu0
    %5200 = vmatprep.mubr.f32.mxu0 0.0
    %5201 = vmatmul.mubr.f32.gmra.mxu0 %v5073
    %v5202 = vpop.f32.mrf.mxu0
    %v5203 = vadd.f32 0.0, %v5202
    %v5204 = vpop.f32.mrf.mxu0
    %5205 = vmatprep.mubr.f32.mxu0 0.0
    %5206 = vmatmul.mubr.f32.gmra.mxu0 %v5076
    %v5207 = vpop.f32.mrf.mxu0
    %v5208 = vadd.f32 0.0, %v5207
    %v5209 = vpop.f32.mrf.mxu0
    %5210 = vmatprep.mubr.f32.mxu0 0.0
    %5211 = vmatmul.mubr.f32.gmra.mxu0 %v5079
    %v5212 = vpop.f32.mrf.mxu0
    %v5213 = vadd.f32 0.0, %v5212
    %v5214 = vpop.f32.mrf.mxu0
    %5215 = vmatprep.mubr.f32.mxu0 0.0
    %5216 = vmatmul.mubr.f32.gmra.mxu0 %v5082
    %v5217 = vpop.f32.mrf.mxu0
    %v5218 = vadd.f32 0.0, %v5217
    %v5219 = vpop.f32.mrf.mxu0
    %5220 = vmatprep.mubr.f32.mxu0 0.0
    %5221 = vmatmul.mubr.f32.gmra.mxu0 %v5085
    %v5222 = vpop.f32.mrf.mxu0
    %v5223 = vadd.f32 0.0, %v5222
    %v5224 = vpop.f32.mrf.mxu0
    %5225 = vmatprep.mubr.f32.mxu0 0.0
    %5226 = vmatmul.mubr.f32.gmra.mxu0 %v5088
    %v5227 = vpop.f32.mrf.mxu0
    %v5228 = vadd.f32 0.0, %v5227
    %v5229 = vpop.f32.mrf.mxu0
    %5230 = vmatprep.mubr.f32.mxu0 0.0
    %5231 = vmatmul.mubr.f32.gmra.mxu0 %v5091
    %v5232 = vpop.f32.mrf.mxu0
    %v5233 = vadd.f32 0.0, %v5232
    %v5234 = vpop.f32.mrf.mxu0
    %5235 = vmatprep.mubr.f32.mxu0 0.0
    %5236 = vmatmul.mubr.f32.gmra.mxu0 %v5094
    %v5237 = vpop.f32.mrf.mxu0
    %v5238 = vadd.f32 0.0, %v5237
    %v5239 = vpop.f32.mrf.mxu0
    %5240 = vdwg.mxu0
    %v5241 = vsel %vm1328, %v5163, 0.0
    %v5242 = vsel %vm1329, %v5168, 0.0
    %v5243 = vsel %vm1330, %v5173, 0.0
    %v5244 = vsel %vm1331, %v5178, 0.0
    %v5245 = vsel %vm1332, %v5183, 0.0
    %v5246 = vsel %vm1333, %v5188, 0.0
    %v5247 = vsel %vm1334, %v5193, 0.0
    %v5248 = vsel %vm1335, %v5198, 0.0
    %v5249 = vsel %vm1336, %v5203, 0.0
    %v5250 = vsel %vm1337, %v5208, 0.0
    %v5251 = vsel %vm1338, %v5213, 0.0
    %v5252 = vsel %vm1339, %v5218, 0.0
    %v5253 = vsel %vm1340, %v5223, 0.0
    %v5254 = vsel %vm1341, %v5228, 0.0
    %v5255 = vsel %vm1342, %v5233, 0.0
    %v5256 = vsel %vm1343, %v5238, 0.0
    %v5257 = vadd.f32 %v4885, %v5241
    %v5258 = vadd.f32 %v4886, %v5242
    %v5259 = vadd.f32 %v4887, %v5243
    %v5260 = vadd.f32 %v4888, %v5244
    %v5261 = vadd.f32 %v4889, %v5245
    %v5262 = vadd.f32 %v4890, %v5246
    %v5263 = vadd.f32 %v4891, %v5247
    %v5264 = vadd.f32 %v4892, %v5248
    %v5265 = vadd.f32 %v4893, %v5249
    %v5266 = vadd.f32 %v4894, %v5250
    %v5267 = vadd.f32 %v4895, %v5251
    %v5268 = vadd.f32 %v4896, %v5252
    %v5269 = vadd.f32 %v4897, %v5253
    %v5270 = vadd.f32 %v4898, %v5254
    %v5271 = vadd.f32 %v4899, %v5255
    %v5272 = vadd.f32 %v4900, %v5256
    %s5273 = scalar_lea.vmem %s6, 24
    %v5274 = vld [vmem:[%s5273] sm:$0xff]
    %5275 = vmatprep.subr.mxu0 0.0
    %5276 = vmatpush1.msra.mxu0 0.0
    %5277 = vmatprep.subr.mxu0 0.0
    %5278 = vmatpush1.msra.mxu0 0.0
    %5279 = vmatprep.subr.mxu0 0.0
    %5280 = vmatpush1.msra.mxu0 0.0
    %5281 = vmatprep.subr.mxu0 0.0
    %5282 = vmatpush1.msra.mxu0 0.0
    %5283 = vmatprep.subr.mxu0 0.0
    %5284 = vmatpush1.msra.mxu0 0.0
    %5285 = vmatprep.subr.mxu0 0.0
    %5286 = vmatpush1.msra.mxu0 0.0
    %5287 = vmatprep.subr.mxu0 0.0
    %5288 = vmatpush1.msra.mxu0 0.0
    %5289 = vmatprep.subr.mxu0 0.0
    %5290 = vmatpush1.msra.mxu0 0.0
    %5291 = vmatprep.subr.mxu0 0.0
    %5292 = vmatpush1.msra.mxu0 0.0
    %5293 = vmatprep.subr.mxu0 0.0
    %5294 = vmatpush1.msra.mxu0 0.0
    %5295 = vmatprep.subr.mxu0 0.0
    %5296 = vmatpush1.msra.mxu0 0.0
    %5297 = vmatprep.subr.mxu0 0.0
    %5298 = vmatpush1.msra.mxu0 0.0
    %5299 = vmatprep.subr.mxu0 0.0
    %5300 = vmatpush1.msra.mxu0 0.0
    %5301 = vmatprep.subr.mxu0 0.0
    %5302 = vmatpush1.msra.mxu0 0.0
    %5303 = vmatprep.subr.mxu0 0.0
    %5304 = vmatpush1.msra.mxu0 0.0
    %5305 = vmatprep.subr.mxu0 0.0
    %5306 = vmatpush1.msra.mxu0 %v5274
    %5307 = vmatprep.subr.mxu0 0.0
    %5308 = vmatpush2.msra.mxu0 0.0
    %5309 = vmatprep.subr.mxu0 0.0
    %5310 = vmatpush2.msra.mxu0 0.0
    %5311 = vmatprep.subr.mxu0 0.0
    %5312 = vmatpush2.msra.mxu0 0.0
    %5313 = vmatprep.subr.mxu0 0.0
    %5314 = vmatpush2.msra.mxu0 0.0
    %5315 = vmatprep.subr.mxu0 0.0
    %5316 = vmatpush2.msra.mxu0 0.0
    %5317 = vmatprep.subr.mxu0 0.0
    %5318 = vmatpush2.msra.mxu0 0.0
    %5319 = vmatprep.subr.mxu0 0.0
    %5320 = vmatpush2.msra.mxu0 0.0
    %5321 = vmatprep.subr.mxu0 0.0
    %5322 = vmatpush2.msra.mxu0 0.0
    %5323 = vmatprep.subr.mxu0 0.0
    %5324 = vmatpush2.msra.mxu0 0.0
    %5325 = vmatprep.subr.mxu0 0.0
    %5326 = vmatpush2.msra.mxu0 0.0
    %5327 = vmatprep.subr.mxu0 0.0
    %5328 = vmatpush2.msra.mxu0 0.0
    %5329 = vmatprep.subr.mxu0 0.0
    %5330 = vmatpush2.msra.mxu0 0.0
    %5331 = vmatprep.subr.mxu0 0.0
    %5332 = vmatpush2.msra.mxu0 0.0
    %5333 = vmatprep.subr.mxu0 0.0
    %5334 = vmatpush2.msra.mxu0 0.0
    %5335 = vmatprep.subr.mxu0 0.0
    %5336 = vmatpush2.msra.mxu0 0.0
    %5337 = vmatprep.subr.mxu0 0.0
    %5338 = vmatpush2.msra.mxu0 0.0
    %5339 = vmatprep.mubr.f32.mxu0 0.0
    %5340 = vmatmul.mubr.f32.gmra.mxu0 %v167
    %v5341 = vpop.f32.mrf.mxu0
    %v5342 = vadd.f32 0.0, %v5341
    %v5343 = vpop.f32.mrf.mxu0
    %5344 = vmatprep.mubr.f32.mxu0 0.0
    %5345 = vmatmul.mubr.f32.gmra.mxu0 %v170
    %v5346 = vpop.f32.mrf.mxu0
    %v5347 = vadd.f32 0.0, %v5346
    %v5348 = vpop.f32.mrf.mxu0
    %5349 = vmatprep.mubr.f32.mxu0 0.0
    %5350 = vmatmul.mubr.f32.gmra.mxu0 %v173
    %v5351 = vpop.f32.mrf.mxu0
    %v5352 = vadd.f32 0.0, %v5351
    %v5353 = vpop.f32.mrf.mxu0
    %5354 = vmatprep.mubr.f32.mxu0 0.0
    %5355 = vmatmul.mubr.f32.gmra.mxu0 %v176
    %v5356 = vpop.f32.mrf.mxu0
    %v5357 = vadd.f32 0.0, %v5356
    %v5358 = vpop.f32.mrf.mxu0
    %5359 = vmatprep.mubr.f32.mxu0 0.0
    %5360 = vmatmul.mubr.f32.gmra.mxu0 %v179
    %v5361 = vpop.f32.mrf.mxu0
    %v5362 = vadd.f32 0.0, %v5361
    %v5363 = vpop.f32.mrf.mxu0
    %5364 = vmatprep.mubr.f32.mxu0 0.0
    %5365 = vmatmul.mubr.f32.gmra.mxu0 %v182
    %v5366 = vpop.f32.mrf.mxu0
    %v5367 = vadd.f32 0.0, %v5366
    %v5368 = vpop.f32.mrf.mxu0
    %5369 = vmatprep.mubr.f32.mxu0 0.0
    %5370 = vmatmul.mubr.f32.gmra.mxu0 %v185
    %v5371 = vpop.f32.mrf.mxu0
    %v5372 = vadd.f32 0.0, %v5371
    %v5373 = vpop.f32.mrf.mxu0
    %5374 = vmatprep.mubr.f32.mxu0 0.0
    %5375 = vmatmul.mubr.f32.gmra.mxu0 %v188
    %v5376 = vpop.f32.mrf.mxu0
    %v5377 = vadd.f32 0.0, %v5376
    %v5378 = vpop.f32.mrf.mxu0
    %5379 = vmatprep.mubr.f32.mxu0 0.0
    %5380 = vmatmul.mubr.f32.gmra.mxu0 %v191
    %v5381 = vpop.f32.mrf.mxu0
    %v5382 = vadd.f32 0.0, %v5381
    %v5383 = vpop.f32.mrf.mxu0
    %5384 = vmatprep.mubr.f32.mxu0 0.0
    %5385 = vmatmul.mubr.f32.gmra.mxu0 %v194
    %v5386 = vpop.f32.mrf.mxu0
    %v5387 = vadd.f32 0.0, %v5386
    %v5388 = vpop.f32.mrf.mxu0
    %5389 = vmatprep.mubr.f32.mxu0 0.0
    %5390 = vmatmul.mubr.f32.gmra.mxu0 %v197
    %v5391 = vpop.f32.mrf.mxu0
    %v5392 = vadd.f32 0.0, %v5391
    %v5393 = vpop.f32.mrf.mxu0
    %5394 = vmatprep.mubr.f32.mxu0 0.0
    %5395 = vmatmul.mubr.f32.gmra.mxu0 %v200
    %v5396 = vpop.f32.mrf.mxu0
    %v5397 = vadd.f32 0.0, %v5396
    %v5398 = vpop.f32.mrf.mxu0
    %5399 = vmatprep.mubr.f32.mxu0 0.0
    %5400 = vmatmul.mubr.f32.gmra.mxu0 %v203
    %v5401 = vpop.f32.mrf.mxu0
    %v5402 = vadd.f32 0.0, %v5401
    %v5403 = vpop.f32.mrf.mxu0
    %5404 = vmatprep.mubr.f32.mxu0 0.0
    %5405 = vmatmul.mubr.f32.gmra.mxu0 %v206
    %v5406 = vpop.f32.mrf.mxu0
    %v5407 = vadd.f32 0.0, %v5406
    %v5408 = vpop.f32.mrf.mxu0
    %5409 = vmatprep.mubr.f32.mxu0 0.0
    %5410 = vmatmul.mubr.f32.gmra.mxu0 %v209
    %v5411 = vpop.f32.mrf.mxu0
    %v5412 = vadd.f32 0.0, %v5411
    %v5413 = vpop.f32.mrf.mxu0
    %5414 = vmatprep.mubr.f32.mxu0 0.0
    %5415 = vmatmul.mubr.f32.gmra.mxu0 %v212
    %v5416 = vpop.f32.mrf.mxu0
    %v5417 = vadd.f32 0.0, %v5416
    %v5418 = vpop.f32.mrf.mxu0
    %5419 = vdwg.mxu0
    %v5421 = vsel %vm165, %v5342, 0
    %v5424 = vsel %vm165, %v5347, 0
    %v5427 = vsel %vm165, %v5352, 0
    %v5430 = vsel %vm165, %v5357, 0
    %v5433 = vsel %vm165, %v5362, 0
    %v5436 = vsel %vm165, %v5367, 0
    %v5439 = vsel %vm165, %v5372, 0
    %v5442 = vsel %vm165, %v5377, 0
    %v5445 = vsel %vm165, %v5382, 0
    %v5448 = vsel %vm165, %v5387, 0
    %v5451 = vsel %vm165, %v5392, 0
    %v5454 = vsel %vm165, %v5397, 0
    %v5457 = vsel %vm165, %v5402, 0
    %v5460 = vsel %vm165, %v5407, 0
    %v5463 = vsel %vm165, %v5412, 0
    %v5466 = vsel %vm165, %v5417, 0
    %5468 = vmatprep.subr.mxu0 0.0
    %5469 = vmatpush1.msra.mxu0 0.0
    %5470 = vmatprep.subr.mxu0 0.0
    %5471 = vmatpush1.msra.mxu0 0.0
    %5472 = vmatprep.subr.mxu0 0.0
    %5473 = vmatpush1.msra.mxu0 0.0
    %5474 = vmatprep.subr.mxu0 0.0
    %5475 = vmatpush1.msra.mxu0 0.0
    %5476 = vmatprep.subr.mxu0 0.0
    %5477 = vmatpush1.msra.mxu0 0.0
    %5478 = vmatprep.subr.mxu0 0.0
    %5479 = vmatpush1.msra.mxu0 0.0
    %5480 = vmatprep.subr.mxu0 0.0
    %5481 = vmatpush1.msra.mxu0 0.0
    %5482 = vmatprep.subr.mxu0 0.0
    %5483 = vmatpush1.msra.mxu0 0.0
    %5484 = vmatprep.subr.mxu0 0.0
    %5485 = vmatpush1.msra.mxu0 0.0
    %5486 = vmatprep.subr.mxu0 0.0
    %5487 = vmatpush1.msra.mxu0 0.0
    %5488 = vmatprep.subr.mxu0 0.0
    %5489 = vmatpush1.msra.mxu0 0.0
    %5490 = vmatprep.subr.mxu0 0.0
    %5491 = vmatpush1.msra.mxu0 0.0
    %5492 = vmatprep.subr.mxu0 0.0
    %5493 = vmatpush1.msra.mxu0 0.0
    %5494 = vmatprep.subr.mxu0 0.0
    %5495 = vmatpush1.msra.mxu0 0.0
    %5496 = vmatprep.subr.mxu0 0.0
    %5497 = vmatpush1.msra.mxu0 0.0
    %5498 = vmatprep.subr.mxu0 0.0
    %5499 = vmatpush1.msra.mxu0 %v102
    %5500 = vmatprep.subr.mxu0 0.0
    %5501 = vmatpush2.msra.mxu0 0.0
    %5502 = vmatprep.subr.mxu0 0.0
    %5503 = vmatpush2.msra.mxu0 0.0
    %5504 = vmatprep.subr.mxu0 0.0
    %5505 = vmatpush2.msra.mxu0 0.0
    %5506 = vmatprep.subr.mxu0 0.0
    %5507 = vmatpush2.msra.mxu0 0.0
    %5508 = vmatprep.subr.mxu0 0.0
    %5509 = vmatpush2.msra.mxu0 0.0
    %5510 = vmatprep.subr.mxu0 0.0
    %5511 = vmatpush2.msra.mxu0 0.0
    %5512 = vmatprep.subr.mxu0 0.0
    %5513 = vmatpush2.msra.mxu0 0.0
    %5514 = vmatprep.subr.mxu0 0.0
    %5515 = vmatpush2.msra.mxu0 0.0
    %5516 = vmatprep.subr.mxu0 0.0
    %5517 = vmatpush2.msra.mxu0 0.0
    %5518 = vmatprep.subr.mxu0 0.0
    %5519 = vmatpush2.msra.mxu0 0.0
    %5520 = vmatprep.subr.mxu0 0.0
    %5521 = vmatpush2.msra.mxu0 0.0
    %5522 = vmatprep.subr.mxu0 0.0
    %5523 = vmatpush2.msra.mxu0 0.0
    %5524 = vmatprep.subr.mxu0 0.0
    %5525 = vmatpush2.msra.mxu0 0.0
    %5526 = vmatprep.subr.mxu0 0.0
    %5527 = vmatpush2.msra.mxu0 0.0
    %5528 = vmatprep.subr.mxu0 0.0
    %5529 = vmatpush2.msra.mxu0 0.0
    %5530 = vmatprep.subr.mxu0 0.0
    %5531 = vmatpush2.msra.mxu0 0.0
    %5532 = vmatprep.mubr.f32.mxu0 0.0
    %5533 = vmatmul.mubr.f32.gmra.mxu0 %v5421
    %v5534 = vpop.f32.mrf.mxu0
    %v5535 = vadd.f32 0.0, %v5534
    %v5536 = vpop.f32.mrf.mxu0
    %5537 = vmatprep.mubr.f32.mxu0 0.0
    %5538 = vmatmul.mubr.f32.gmra.mxu0 %v5424
    %v5539 = vpop.f32.mrf.mxu0
    %v5540 = vadd.f32 0.0, %v5539
    %v5541 = vpop.f32.mrf.mxu0
    %5542 = vmatprep.mubr.f32.mxu0 0.0
    %5543 = vmatmul.mubr.f32.gmra.mxu0 %v5427
    %v5544 = vpop.f32.mrf.mxu0
    %v5545 = vadd.f32 0.0, %v5544
    %v5546 = vpop.f32.mrf.mxu0
    %5547 = vmatprep.mubr.f32.mxu0 0.0
    %5548 = vmatmul.mubr.f32.gmra.mxu0 %v5430
    %v5549 = vpop.f32.mrf.mxu0
    %v5550 = vadd.f32 0.0, %v5549
    %v5551 = vpop.f32.mrf.mxu0
    %5552 = vmatprep.mubr.f32.mxu0 0.0
    %5553 = vmatmul.mubr.f32.gmra.mxu0 %v5433
    %v5554 = vpop.f32.mrf.mxu0
    %v5555 = vadd.f32 0.0, %v5554
    %v5556 = vpop.f32.mrf.mxu0
    %5557 = vmatprep.mubr.f32.mxu0 0.0
    %5558 = vmatmul.mubr.f32.gmra.mxu0 %v5436
    %v5559 = vpop.f32.mrf.mxu0
    %v5560 = vadd.f32 0.0, %v5559
    %v5561 = vpop.f32.mrf.mxu0
    %5562 = vmatprep.mubr.f32.mxu0 0.0
    %5563 = vmatmul.mubr.f32.gmra.mxu0 %v5439
    %v5564 = vpop.f32.mrf.mxu0
    %v5565 = vadd.f32 0.0, %v5564
    %v5566 = vpop.f32.mrf.mxu0
    %5567 = vmatprep.mubr.f32.mxu0 0.0
    %5568 = vmatmul.mubr.f32.gmra.mxu0 %v5442
    %v5569 = vpop.f32.mrf.mxu0
    %v5570 = vadd.f32 0.0, %v5569
    %v5571 = vpop.f32.mrf.mxu0
    %5572 = vmatprep.mubr.f32.mxu0 0.0
    %5573 = vmatmul.mubr.f32.gmra.mxu0 %v5445
    %v5574 = vpop.f32.mrf.mxu0
    %v5575 = vadd.f32 0.0, %v5574
    %v5576 = vpop.f32.mrf.mxu0
    %5577 = vmatprep.mubr.f32.mxu0 0.0
    %5578 = vmatmul.mubr.f32.gmra.mxu0 %v5448
    %v5579 = vpop.f32.mrf.mxu0
    %v5580 = vadd.f32 0.0, %v5579
    %v5581 = vpop.f32.mrf.mxu0
    %5582 = vmatprep.mubr.f32.mxu0 0.0
    %5583 = vmatmul.mubr.f32.gmra.mxu0 %v5451
    %v5584 = vpop.f32.mrf.mxu0
    %v5585 = vadd.f32 0.0, %v5584
    %v5586 = vpop.f32.mrf.mxu0
    %5587 = vmatprep.mubr.f32.mxu0 0.0
    %5588 = vmatmul.mubr.f32.gmra.mxu0 %v5454
    %v5589 = vpop.f32.mrf.mxu0
    %v5590 = vadd.f32 0.0, %v5589
    %v5591 = vpop.f32.mrf.mxu0
    %5592 = vmatprep.mubr.f32.mxu0 0.0
    %5593 = vmatmul.mubr.f32.gmra.mxu0 %v5457
    %v5594 = vpop.f32.mrf.mxu0
    %v5595 = vadd.f32 0.0, %v5594
    %v5596 = vpop.f32.mrf.mxu0
    %5597 = vmatprep.mubr.f32.mxu0 0.0
    %5598 = vmatmul.mubr.f32.gmra.mxu0 %v5460
    %v5599 = vpop.f32.mrf.mxu0
    %v5600 = vadd.f32 0.0, %v5599
    %v5601 = vpop.f32.mrf.mxu0
    %5602 = vmatprep.mubr.f32.mxu0 0.0
    %5603 = vmatmul.mubr.f32.gmra.mxu0 %v5463
    %v5604 = vpop.f32.mrf.mxu0
    %v5605 = vadd.f32 0.0, %v5604
    %v5606 = vpop.f32.mrf.mxu0
    %5607 = vmatprep.mubr.f32.mxu0 0.0
    %5608 = vmatmul.mubr.f32.gmra.mxu0 %v5466
    %v5609 = vpop.f32.mrf.mxu0
    %v5610 = vadd.f32 0.0, %v5609
    %v5611 = vpop.f32.mrf.mxu0
    %5612 = vdwg.mxu0
    %v5613 = vsel %vm552, %v5535, 0.0
    %v5614 = vsel %vm553, %v5540, 0.0
    %v5615 = vsel %vm554, %v5545, 0.0
    %v5616 = vsel %vm555, %v5550, 0.0
    %v5617 = vsel %vm556, %v5555, 0.0
    %v5618 = vsel %vm557, %v5560, 0.0
    %v5619 = vsel %vm558, %v5565, 0.0
    %v5620 = vsel %vm559, %v5570, 0.0
    %v5621 = vsel %vm560, %v5575, 0.0
    %v5622 = vsel %vm561, %v5580, 0.0
    %v5623 = vsel %vm562, %v5585, 0.0
    %v5624 = vsel %vm563, %v5590, 0.0
    %v5625 = vsel %vm564, %v5595, 0.0
    %v5626 = vsel %vm565, %v5600, 0.0
    %v5627 = vsel %vm566, %v5605, 0.0
    %v5628 = vsel %vm567, %v5610, 0.0
    %v5629 = vadd.f32 %v5613, 0.0
    %v5630 = vadd.f32 %v5614, 0.0
    %v5631 = vadd.f32 %v5615, 0.0
    %v5632 = vadd.f32 %v5616, 0.0
    %v5633 = vadd.f32 %v5617, 0.0
    %v5634 = vadd.f32 %v5618, 0.0
    %v5635 = vadd.f32 %v5619, 0.0
    %v5636 = vadd.f32 %v5620, 0.0
    %v5637 = vadd.f32 %v5621, 0.0
    %v5638 = vadd.f32 %v5622, 0.0
    %v5639 = vadd.f32 %v5623, 0.0
    %v5640 = vadd.f32 %v5624, 0.0
    %v5641 = vadd.f32 %v5625, 0.0
    %v5642 = vadd.f32 %v5626, 0.0
    %v5643 = vadd.f32 %v5627, 0.0
    %v5644 = vadd.f32 %v5628, 0.0
    %s5645 = scalar_lea.vmem %s6, 32
    %v5646 = vld [vmem:[%s5645] sm:$0xff]
    %5647 = vmatprep.subr.mxu0 0.0
    %5648 = vmatpush1.msra.mxu0 0.0
    %5649 = vmatprep.subr.mxu0 0.0
    %5650 = vmatpush1.msra.mxu0 0.0
    %5651 = vmatprep.subr.mxu0 0.0
    %5652 = vmatpush1.msra.mxu0 0.0
    %5653 = vmatprep.subr.mxu0 0.0
    %5654 = vmatpush1.msra.mxu0 0.0
    %5655 = vmatprep.subr.mxu0 0.0
    %5656 = vmatpush1.msra.mxu0 0.0
    %5657 = vmatprep.subr.mxu0 0.0
    %5658 = vmatpush1.msra.mxu0 0.0
    %5659 = vmatprep.subr.mxu0 0.0
    %5660 = vmatpush1.msra.mxu0 0.0
    %5661 = vmatprep.subr.mxu0 0.0
    %5662 = vmatpush1.msra.mxu0 0.0
    %5663 = vmatprep.subr.mxu0 0.0
    %5664 = vmatpush1.msra.mxu0 0.0
    %5665 = vmatprep.subr.mxu0 0.0
    %5666 = vmatpush1.msra.mxu0 0.0
    %5667 = vmatprep.subr.mxu0 0.0
    %5668 = vmatpush1.msra.mxu0 0.0
    %5669 = vmatprep.subr.mxu0 0.0
    %5670 = vmatpush1.msra.mxu0 0.0
    %5671 = vmatprep.subr.mxu0 0.0
    %5672 = vmatpush1.msra.mxu0 0.0
    %5673 = vmatprep.subr.mxu0 0.0
    %5674 = vmatpush1.msra.mxu0 0.0
    %5675 = vmatprep.subr.mxu0 0.0
    %5676 = vmatpush1.msra.mxu0 0.0
    %5677 = vmatprep.subr.mxu0 0.0
    %5678 = vmatpush1.msra.mxu0 %v5646
    %5679 = vmatprep.subr.mxu0 0.0
    %5680 = vmatpush2.msra.mxu0 0.0
    %5681 = vmatprep.subr.mxu0 0.0
    %5682 = vmatpush2.msra.mxu0 0.0
    %5683 = vmatprep.subr.mxu0 0.0
    %5684 = vmatpush2.msra.mxu0 0.0
    %5685 = vmatprep.subr.mxu0 0.0
    %5686 = vmatpush2.msra.mxu0 0.0
    %5687 = vmatprep.subr.mxu0 0.0
    %5688 = vmatpush2.msra.mxu0 0.0
    %5689 = vmatprep.subr.mxu0 0.0
    %5690 = vmatpush2.msra.mxu0 0.0
    %5691 = vmatprep.subr.mxu0 0.0
    %5692 = vmatpush2.msra.mxu0 0.0
    %5693 = vmatprep.subr.mxu0 0.0
    %5694 = vmatpush2.msra.mxu0 0.0
    %5695 = vmatprep.subr.mxu0 0.0
    %5696 = vmatpush2.msra.mxu0 0.0
    %5697 = vmatprep.subr.mxu0 0.0
    %5698 = vmatpush2.msra.mxu0 0.0
    %5699 = vmatprep.subr.mxu0 0.0
    %5700 = vmatpush2.msra.mxu0 0.0
    %5701 = vmatprep.subr.mxu0 0.0
    %5702 = vmatpush2.msra.mxu0 0.0
    %5703 = vmatprep.subr.mxu0 0.0
    %5704 = vmatpush2.msra.mxu0 0.0
    %5705 = vmatprep.subr.mxu0 0.0
    %5706 = vmatpush2.msra.mxu0 0.0
    %5707 = vmatprep.subr.mxu0 0.0
    %5708 = vmatpush2.msra.mxu0 0.0
    %5709 = vmatprep.subr.mxu0 0.0
    %5710 = vmatpush2.msra.mxu0 0.0
    %5711 = vmatprep.mubr.f32.mxu0 0.0
    %5712 = vmatmul.mubr.f32.gmra.mxu0 %v167
    %v5713 = vpop.f32.mrf.mxu0
    %v5714 = vadd.f32 0.0, %v5713
    %v5715 = vpop.f32.mrf.mxu0
    %5716 = vmatprep.mubr.f32.mxu0 0.0
    %5717 = vmatmul.mubr.f32.gmra.mxu0 %v170
    %v5718 = vpop.f32.mrf.mxu0
    %v5719 = vadd.f32 0.0, %v5718
    %v5720 = vpop.f32.mrf.mxu0
    %5721 = vmatprep.mubr.f32.mxu0 0.0
    %5722 = vmatmul.mubr.f32.gmra.mxu0 %v173
    %v5723 = vpop.f32.mrf.mxu0
    %v5724 = vadd.f32 0.0, %v5723
    %v5725 = vpop.f32.mrf.mxu0
    %5726 = vmatprep.mubr.f32.mxu0 0.0
    %5727 = vmatmul.mubr.f32.gmra.mxu0 %v176
    %v5728 = vpop.f32.mrf.mxu0
    %v5729 = vadd.f32 0.0, %v5728
    %v5730 = vpop.f32.mrf.mxu0
    %5731 = vmatprep.mubr.f32.mxu0 0.0
    %5732 = vmatmul.mubr.f32.gmra.mxu0 %v179
    %v5733 = vpop.f32.mrf.mxu0
    %v5734 = vadd.f32 0.0, %v5733
    %v5735 = vpop.f32.mrf.mxu0
    %5736 = vmatprep.mubr.f32.mxu0 0.0
    %5737 = vmatmul.mubr.f32.gmra.mxu0 %v182
    %v5738 = vpop.f32.mrf.mxu0
    %v5739 = vadd.f32 0.0, %v5738
    %v5740 = vpop.f32.mrf.mxu0
    %5741 = vmatprep.mubr.f32.mxu0 0.0
    %5742 = vmatmul.mubr.f32.gmra.mxu0 %v185
    %v5743 = vpop.f32.mrf.mxu0
    %v5744 = vadd.f32 0.0, %v5743
    %v5745 = vpop.f32.mrf.mxu0
    %5746 = vmatprep.mubr.f32.mxu0 0.0
    %5747 = vmatmul.mubr.f32.gmra.mxu0 %v188
    %v5748 = vpop.f32.mrf.mxu0
    %v5749 = vadd.f32 0.0, %v5748
    %v5750 = vpop.f32.mrf.mxu0
    %5751 = vmatprep.mubr.f32.mxu0 0.0
    %5752 = vmatmul.mubr.f32.gmra.mxu0 %v191
    %v5753 = vpop.f32.mrf.mxu0
    %v5754 = vadd.f32 0.0, %v5753
    %v5755 = vpop.f32.mrf.mxu0
    %5756 = vmatprep.mubr.f32.mxu0 0.0
    %5757 = vmatmul.mubr.f32.gmra.mxu0 %v194
    %v5758 = vpop.f32.mrf.mxu0
    %v5759 = vadd.f32 0.0, %v5758
    %v5760 = vpop.f32.mrf.mxu0
    %5761 = vmatprep.mubr.f32.mxu0 0.0
    %5762 = vmatmul.mubr.f32.gmra.mxu0 %v197
    %v5763 = vpop.f32.mrf.mxu0
    %v5764 = vadd.f32 0.0, %v5763
    %v5765 = vpop.f32.mrf.mxu0
    %5766 = vmatprep.mubr.f32.mxu0 0.0
    %5767 = vmatmul.mubr.f32.gmra.mxu0 %v200
    %v5768 = vpop.f32.mrf.mxu0
    %v5769 = vadd.f32 0.0, %v5768
    %v5770 = vpop.f32.mrf.mxu0
    %5771 = vmatprep.mubr.f32.mxu0 0.0
    %5772 = vmatmul.mubr.f32.gmra.mxu0 %v203
    %v5773 = vpop.f32.mrf.mxu0
    %v5774 = vadd.f32 0.0, %v5773
    %v5775 = vpop.f32.mrf.mxu0
    %5776 = vmatprep.mubr.f32.mxu0 0.0
    %5777 = vmatmul.mubr.f32.gmra.mxu0 %v206
    %v5778 = vpop.f32.mrf.mxu0
    %v5779 = vadd.f32 0.0, %v5778
    %v5780 = vpop.f32.mrf.mxu0
    %5781 = vmatprep.mubr.f32.mxu0 0.0
    %5782 = vmatmul.mubr.f32.gmra.mxu0 %v209
    %v5783 = vpop.f32.mrf.mxu0
    %v5784 = vadd.f32 0.0, %v5783
    %v5785 = vpop.f32.mrf.mxu0
    %5786 = vmatprep.mubr.f32.mxu0 0.0
    %5787 = vmatmul.mubr.f32.gmra.mxu0 %v212
    %v5788 = vpop.f32.mrf.mxu0
    %v5789 = vadd.f32 0.0, %v5788
    %v5790 = vpop.f32.mrf.mxu0
    %5791 = vdwg.mxu0
    %v5793 = vsel %vm165, %v5714, 0
    %v5796 = vsel %vm165, %v5719, 0
    %v5799 = vsel %vm165, %v5724, 0
    %v5802 = vsel %vm165, %v5729, 0
    %v5805 = vsel %vm165, %v5734, 0
    %v5808 = vsel %vm165, %v5739, 0
    %v5811 = vsel %vm165, %v5744, 0
    %v5814 = vsel %vm165, %v5749, 0
    %v5817 = vsel %vm165, %v5754, 0
    %v5820 = vsel %vm165, %v5759, 0
    %v5823 = vsel %vm165, %v5764, 0
    %v5826 = vsel %vm165, %v5769, 0
    %v5829 = vsel %vm165, %v5774, 0
    %v5832 = vsel %vm165, %v5779, 0
    %v5835 = vsel %vm165, %v5784, 0
    %v5838 = vsel %vm165, %v5789, 0
    %5840 = vmatprep.subr.mxu0 0.0
    %5841 = vmatpush1.msra.mxu0 0.0
    %5842 = vmatprep.subr.mxu0 0.0
    %5843 = vmatpush1.msra.mxu0 0.0
    %5844 = vmatprep.subr.mxu0 0.0
    %5845 = vmatpush1.msra.mxu0 0.0
    %5846 = vmatprep.subr.mxu0 0.0
    %5847 = vmatpush1.msra.mxu0 0.0
    %5848 = vmatprep.subr.mxu0 0.0
    %5849 = vmatpush1.msra.mxu0 0.0
    %5850 = vmatprep.subr.mxu0 0.0
    %5851 = vmatpush1.msra.mxu0 0.0
    %5852 = vmatprep.subr.mxu0 0.0
    %5853 = vmatpush1.msra.mxu0 0.0
    %5854 = vmatprep.subr.mxu0 0.0
    %5855 = vmatpush1.msra.mxu0 0.0
    %5856 = vmatprep.subr.mxu0 0.0
    %5857 = vmatpush1.msra.mxu0 0.0
    %5858 = vmatprep.subr.mxu0 0.0
    %5859 = vmatpush1.msra.mxu0 0.0
    %5860 = vmatprep.subr.mxu0 0.0
    %5861 = vmatpush1.msra.mxu0 0.0
    %5862 = vmatprep.subr.mxu0 0.0
    %5863 = vmatpush1.msra.mxu0 0.0
    %5864 = vmatprep.subr.mxu0 0.0
    %5865 = vmatpush1.msra.mxu0 0.0
    %5866 = vmatprep.subr.mxu0 0.0
    %5867 = vmatpush1.msra.mxu0 0.0
    %5868 = vmatprep.subr.mxu0 0.0
    %5869 = vmatpush1.msra.mxu0 0.0
    %5870 = vmatprep.subr.mxu0 0.0
    %5871 = vmatpush1.msra.mxu0 %v102
    %5872 = vmatprep.subr.mxu0 0.0
    %5873 = vmatpush2.msra.mxu0 0.0
    %5874 = vmatprep.subr.mxu0 0.0
    %5875 = vmatpush2.msra.mxu0 0.0
    %5876 = vmatprep.subr.mxu0 0.0
    %5877 = vmatpush2.msra.mxu0 0.0
    %5878 = vmatprep.subr.mxu0 0.0
    %5879 = vmatpush2.msra.mxu0 0.0
    %5880 = vmatprep.subr.mxu0 0.0
    %5881 = vmatpush2.msra.mxu0 0.0
    %5882 = vmatprep.subr.mxu0 0.0
    %5883 = vmatpush2.msra.mxu0 0.0
    %5884 = vmatprep.subr.mxu0 0.0
    %5885 = vmatpush2.msra.mxu0 0.0
    %5886 = vmatprep.subr.mxu0 0.0
    %5887 = vmatpush2.msra.mxu0 0.0
    %5888 = vmatprep.subr.mxu0 0.0
    %5889 = vmatpush2.msra.mxu0 0.0
    %5890 = vmatprep.subr.mxu0 0.0
    %5891 = vmatpush2.msra.mxu0 0.0
    %5892 = vmatprep.subr.mxu0 0.0
    %5893 = vmatpush2.msra.mxu0 0.0
    %5894 = vmatprep.subr.mxu0 0.0
    %5895 = vmatpush2.msra.mxu0 0.0
    %5896 = vmatprep.subr.mxu0 0.0
    %5897 = vmatpush2.msra.mxu0 0.0
    %5898 = vmatprep.subr.mxu0 0.0
    %5899 = vmatpush2.msra.mxu0 0.0
    %5900 = vmatprep.subr.mxu0 0.0
    %5901 = vmatpush2.msra.mxu0 0.0
    %5902 = vmatprep.subr.mxu0 0.0
    %5903 = vmatpush2.msra.mxu0 0.0
    %5904 = vmatprep.mubr.f32.mxu0 0.0
    %5905 = vmatmul.mubr.f32.gmra.mxu0 %v5793
    %v5906 = vpop.f32.mrf.mxu0
    %v5907 = vadd.f32 0.0, %v5906
    %v5908 = vpop.f32.mrf.mxu0
    %5909 = vmatprep.mubr.f32.mxu0 0.0
    %5910 = vmatmul.mubr.f32.gmra.mxu0 %v5796
    %v5911 = vpop.f32.mrf.mxu0
    %v5912 = vadd.f32 0.0, %v5911
    %v5913 = vpop.f32.mrf.mxu0
    %5914 = vmatprep.mubr.f32.mxu0 0.0
    %5915 = vmatmul.mubr.f32.gmra.mxu0 %v5799
    %v5916 = vpop.f32.mrf.mxu0
    %v5917 = vadd.f32 0.0, %v5916
    %v5918 = vpop.f32.mrf.mxu0
    %5919 = vmatprep.mubr.f32.mxu0 0.0
    %5920 = vmatmul.mubr.f32.gmra.mxu0 %v5802
    %v5921 = vpop.f32.mrf.mxu0
    %v5922 = vadd.f32 0.0, %v5921
    %v5923 = vpop.f32.mrf.mxu0
    %5924 = vmatprep.mubr.f32.mxu0 0.0
    %5925 = vmatmul.mubr.f32.gmra.mxu0 %v5805
    %v5926 = vpop.f32.mrf.mxu0
    %v5927 = vadd.f32 0.0, %v5926
    %v5928 = vpop.f32.mrf.mxu0
    %5929 = vmatprep.mubr.f32.mxu0 0.0
    %5930 = vmatmul.mubr.f32.gmra.mxu0 %v5808
    %v5931 = vpop.f32.mrf.mxu0
    %v5932 = vadd.f32 0.0, %v5931
    %v5933 = vpop.f32.mrf.mxu0
    %5934 = vmatprep.mubr.f32.mxu0 0.0
    %5935 = vmatmul.mubr.f32.gmra.mxu0 %v5811
    %v5936 = vpop.f32.mrf.mxu0
    %v5937 = vadd.f32 0.0, %v5936
    %v5938 = vpop.f32.mrf.mxu0
    %5939 = vmatprep.mubr.f32.mxu0 0.0
    %5940 = vmatmul.mubr.f32.gmra.mxu0 %v5814
    %v5941 = vpop.f32.mrf.mxu0
    %v5942 = vadd.f32 0.0, %v5941
    %v5943 = vpop.f32.mrf.mxu0
    %5944 = vmatprep.mubr.f32.mxu0 0.0
    %5945 = vmatmul.mubr.f32.gmra.mxu0 %v5817
    %v5946 = vpop.f32.mrf.mxu0
    %v5947 = vadd.f32 0.0, %v5946
    %v5948 = vpop.f32.mrf.mxu0
    %5949 = vmatprep.mubr.f32.mxu0 0.0
    %5950 = vmatmul.mubr.f32.gmra.mxu0 %v5820
    %v5951 = vpop.f32.mrf.mxu0
    %v5952 = vadd.f32 0.0, %v5951
    %v5953 = vpop.f32.mrf.mxu0
    %5954 = vmatprep.mubr.f32.mxu0 0.0
    %5955 = vmatmul.mubr.f32.gmra.mxu0 %v5823
    %v5956 = vpop.f32.mrf.mxu0
    %v5957 = vadd.f32 0.0, %v5956
    %v5958 = vpop.f32.mrf.mxu0
    %5959 = vmatprep.mubr.f32.mxu0 0.0
    %5960 = vmatmul.mubr.f32.gmra.mxu0 %v5826
    %v5961 = vpop.f32.mrf.mxu0
    %v5962 = vadd.f32 0.0, %v5961
    %v5963 = vpop.f32.mrf.mxu0
    %5964 = vmatprep.mubr.f32.mxu0 0.0
    %5965 = vmatmul.mubr.f32.gmra.mxu0 %v5829
    %v5966 = vpop.f32.mrf.mxu0
    %v5967 = vadd.f32 0.0, %v5966
    %v5968 = vpop.f32.mrf.mxu0
    %5969 = vmatprep.mubr.f32.mxu0 0.0
    %5970 = vmatmul.mubr.f32.gmra.mxu0 %v5832
    %v5971 = vpop.f32.mrf.mxu0
    %v5972 = vadd.f32 0.0, %v5971
    %v5973 = vpop.f32.mrf.mxu0
    %5974 = vmatprep.mubr.f32.mxu0 0.0
    %5975 = vmatmul.mubr.f32.gmra.mxu0 %v5835
    %v5976 = vpop.f32.mrf.mxu0
    %v5977 = vadd.f32 0.0, %v5976
    %v5978 = vpop.f32.mrf.mxu0
    %5979 = vmatprep.mubr.f32.mxu0 0.0
    %5980 = vmatmul.mubr.f32.gmra.mxu0 %v5838
    %v5981 = vpop.f32.mrf.mxu0
    %v5982 = vadd.f32 0.0, %v5981
    %v5983 = vpop.f32.mrf.mxu0
    %5984 = vdwg.mxu0
    %v5985 = vsel %vm940, %v5907, 0.0
    %v5986 = vsel %vm941, %v5912, 0.0
    %v5987 = vsel %vm942, %v5917, 0.0
    %v5988 = vsel %vm943, %v5922, 0.0
    %v5989 = vsel %vm944, %v5927, 0.0
    %v5990 = vsel %vm945, %v5932, 0.0
    %v5991 = vsel %vm946, %v5937, 0.0
    %v5992 = vsel %vm947, %v5942, 0.0
    %v5993 = vsel %vm948, %v5947, 0.0
    %v5994 = vsel %vm949, %v5952, 0.0
    %v5995 = vsel %vm950, %v5957, 0.0
    %v5996 = vsel %vm951, %v5962, 0.0
    %v5997 = vsel %vm952, %v5967, 0.0
    %v5998 = vsel %vm953, %v5972, 0.0
    %v5999 = vsel %vm954, %v5977, 0.0
    %v6000 = vsel %vm955, %v5982, 0.0
    %v6001 = vadd.f32 %v5629, %v5985
    %v6002 = vadd.f32 %v5630, %v5986
    %v6003 = vadd.f32 %v5631, %v5987
    %v6004 = vadd.f32 %v5632, %v5988
    %v6005 = vadd.f32 %v5633, %v5989
    %v6006 = vadd.f32 %v5634, %v5990
    %v6007 = vadd.f32 %v5635, %v5991
    %v6008 = vadd.f32 %v5636, %v5992
    %v6009 = vadd.f32 %v5637, %v5993
    %v6010 = vadd.f32 %v5638, %v5994
    %v6011 = vadd.f32 %v5639, %v5995
    %v6012 = vadd.f32 %v5640, %v5996
    %v6013 = vadd.f32 %v5641, %v5997
    %v6014 = vadd.f32 %v5642, %v5998
    %v6015 = vadd.f32 %v5643, %v5999
    %v6016 = vadd.f32 %v5644, %v6000
    %s6017 = scalar_lea.vmem %s6, 40
    %v6018 = vld [vmem:[%s6017] sm:$0xff]
    %6019 = vmatprep.subr.mxu0 0.0
    %6020 = vmatpush1.msra.mxu0 0.0
    %6021 = vmatprep.subr.mxu0 0.0
    %6022 = vmatpush1.msra.mxu0 0.0
    %6023 = vmatprep.subr.mxu0 0.0
    %6024 = vmatpush1.msra.mxu0 0.0
    %6025 = vmatprep.subr.mxu0 0.0
    %6026 = vmatpush1.msra.mxu0 0.0
    %6027 = vmatprep.subr.mxu0 0.0
    %6028 = vmatpush1.msra.mxu0 0.0
    %6029 = vmatprep.subr.mxu0 0.0
    %6030 = vmatpush1.msra.mxu0 0.0
    %6031 = vmatprep.subr.mxu0 0.0
    %6032 = vmatpush1.msra.mxu0 0.0
    %6033 = vmatprep.subr.mxu0 0.0
    %6034 = vmatpush1.msra.mxu0 0.0
    %6035 = vmatprep.subr.mxu0 0.0
    %6036 = vmatpush1.msra.mxu0 0.0
    %6037 = vmatprep.subr.mxu0 0.0
    %6038 = vmatpush1.msra.mxu0 0.0
    %6039 = vmatprep.subr.mxu0 0.0
    %6040 = vmatpush1.msra.mxu0 0.0
    %6041 = vmatprep.subr.mxu0 0.0
    %6042 = vmatpush1.msra.mxu0 0.0
    %6043 = vmatprep.subr.mxu0 0.0
    %6044 = vmatpush1.msra.mxu0 0.0
    %6045 = vmatprep.subr.mxu0 0.0
    %6046 = vmatpush1.msra.mxu0 0.0
    %6047 = vmatprep.subr.mxu0 0.0
    %6048 = vmatpush1.msra.mxu0 0.0
    %6049 = vmatprep.subr.mxu0 0.0
    %6050 = vmatpush1.msra.mxu0 %v6018
    %6051 = vmatprep.subr.mxu0 0.0
    %6052 = vmatpush2.msra.mxu0 0.0
    %6053 = vmatprep.subr.mxu0 0.0
    %6054 = vmatpush2.msra.mxu0 0.0
    %6055 = vmatprep.subr.mxu0 0.0
    %6056 = vmatpush2.msra.mxu0 0.0
    %6057 = vmatprep.subr.mxu0 0.0
    %6058 = vmatpush2.msra.mxu0 0.0
    %6059 = vmatprep.subr.mxu0 0.0
    %6060 = vmatpush2.msra.mxu0 0.0
    %6061 = vmatprep.subr.mxu0 0.0
    %6062 = vmatpush2.msra.mxu0 0.0
    %6063 = vmatprep.subr.mxu0 0.0
    %6064 = vmatpush2.msra.mxu0 0.0
    %6065 = vmatprep.subr.mxu0 0.0
    %6066 = vmatpush2.msra.mxu0 0.0
    %6067 = vmatprep.subr.mxu0 0.0
    %6068 = vmatpush2.msra.mxu0 0.0
    %6069 = vmatprep.subr.mxu0 0.0
    %6070 = vmatpush2.msra.mxu0 0.0
    %6071 = vmatprep.subr.mxu0 0.0
    %6072 = vmatpush2.msra.mxu0 0.0
    %6073 = vmatprep.subr.mxu0 0.0
    %6074 = vmatpush2.msra.mxu0 0.0
    %6075 = vmatprep.subr.mxu0 0.0
    %6076 = vmatpush2.msra.mxu0 0.0
    %6077 = vmatprep.subr.mxu0 0.0
    %6078 = vmatpush2.msra.mxu0 0.0
    %6079 = vmatprep.subr.mxu0 0.0
    %6080 = vmatpush2.msra.mxu0 0.0
    %6081 = vmatprep.subr.mxu0 0.0
    %6082 = vmatpush2.msra.mxu0 0.0
    %6083 = vmatprep.mubr.f32.mxu0 0.0
    %6084 = vmatmul.mubr.f32.gmra.mxu0 %v167
    %v6085 = vpop.f32.mrf.mxu0
    %v6086 = vadd.f32 0.0, %v6085
    %v6087 = vpop.f32.mrf.mxu0
    %6088 = vmatprep.mubr.f32.mxu0 0.0
    %6089 = vmatmul.mubr.f32.gmra.mxu0 %v170
    %v6090 = vpop.f32.mrf.mxu0
    %v6091 = vadd.f32 0.0, %v6090
    %v6092 = vpop.f32.mrf.mxu0
    %6093 = vmatprep.mubr.f32.mxu0 0.0
    %6094 = vmatmul.mubr.f32.gmra.mxu0 %v173
    %v6095 = vpop.f32.mrf.mxu0
    %v6096 = vadd.f32 0.0, %v6095
    %v6097 = vpop.f32.mrf.mxu0
    %6098 = vmatprep.mubr.f32.mxu0 0.0
    %6099 = vmatmul.mubr.f32.gmra.mxu0 %v176
    %v6100 = vpop.f32.mrf.mxu0
    %v6101 = vadd.f32 0.0, %v6100
    %v6102 = vpop.f32.mrf.mxu0
    %6103 = vmatprep.mubr.f32.mxu0 0.0
    %6104 = vmatmul.mubr.f32.gmra.mxu0 %v179
    %v6105 = vpop.f32.mrf.mxu0
    %v6106 = vadd.f32 0.0, %v6105
    %v6107 = vpop.f32.mrf.mxu0
    %6108 = vmatprep.mubr.f32.mxu0 0.0
    %6109 = vmatmul.mubr.f32.gmra.mxu0 %v182
    %v6110 = vpop.f32.mrf.mxu0
    %v6111 = vadd.f32 0.0, %v6110
    %v6112 = vpop.f32.mrf.mxu0
    %6113 = vmatprep.mubr.f32.mxu0 0.0
    %6114 = vmatmul.mubr.f32.gmra.mxu0 %v185
    %v6115 = vpop.f32.mrf.mxu0
    %v6116 = vadd.f32 0.0, %v6115
    %v6117 = vpop.f32.mrf.mxu0
    %6118 = vmatprep.mubr.f32.mxu0 0.0
    %6119 = vmatmul.mubr.f32.gmra.mxu0 %v188
    %v6120 = vpop.f32.mrf.mxu0
    %v6121 = vadd.f32 0.0, %v6120
    %v6122 = vpop.f32.mrf.mxu0
    %6123 = vmatprep.mubr.f32.mxu0 0.0
    %6124 = vmatmul.mubr.f32.gmra.mxu0 %v191
    %v6125 = vpop.f32.mrf.mxu0
    %v6126 = vadd.f32 0.0, %v6125
    %v6127 = vpop.f32.mrf.mxu0
    %6128 = vmatprep.mubr.f32.mxu0 0.0
    %6129 = vmatmul.mubr.f32.gmra.mxu0 %v194
    %v6130 = vpop.f32.mrf.mxu0
    %v6131 = vadd.f32 0.0, %v6130
    %v6132 = vpop.f32.mrf.mxu0
    %6133 = vmatprep.mubr.f32.mxu0 0.0
    %6134 = vmatmul.mubr.f32.gmra.mxu0 %v197
    %v6135 = vpop.f32.mrf.mxu0
    %v6136 = vadd.f32 0.0, %v6135
    %v6137 = vpop.f32.mrf.mxu0
    %6138 = vmatprep.mubr.f32.mxu0 0.0
    %6139 = vmatmul.mubr.f32.gmra.mxu0 %v200
    %v6140 = vpop.f32.mrf.mxu0
    %v6141 = vadd.f32 0.0, %v6140
    %v6142 = vpop.f32.mrf.mxu0
    %6143 = vmatprep.mubr.f32.mxu0 0.0
    %6144 = vmatmul.mubr.f32.gmra.mxu0 %v203
    %v6145 = vpop.f32.mrf.mxu0
    %v6146 = vadd.f32 0.0, %v6145
    %v6147 = vpop.f32.mrf.mxu0
    %6148 = vmatprep.mubr.f32.mxu0 0.0
    %6149 = vmatmul.mubr.f32.gmra.mxu0 %v206
    %v6150 = vpop.f32.mrf.mxu0
    %v6151 = vadd.f32 0.0, %v6150
    %v6152 = vpop.f32.mrf.mxu0
    %6153 = vmatprep.mubr.f32.mxu0 0.0
    %6154 = vmatmul.mubr.f32.gmra.mxu0 %v209
    %v6155 = vpop.f32.mrf.mxu0
    %v6156 = vadd.f32 0.0, %v6155
    %v6157 = vpop.f32.mrf.mxu0
    %6158 = vmatprep.mubr.f32.mxu0 0.0
    %6159 = vmatmul.mubr.f32.gmra.mxu0 %v212
    %v6160 = vpop.f32.mrf.mxu0
    %v6161 = vadd.f32 0.0, %v6160
    %v6162 = vpop.f32.mrf.mxu0
    %6163 = vdwg.mxu0
    %v6165 = vsel %vm165, %v6086, 0
    %v6168 = vsel %vm165, %v6091, 0
    %v6171 = vsel %vm165, %v6096, 0
    %v6174 = vsel %vm165, %v6101, 0
    %v6177 = vsel %vm165, %v6106, 0
    %v6180 = vsel %vm165, %v6111, 0
    %v6183 = vsel %vm165, %v6116, 0
    %v6186 = vsel %vm165, %v6121, 0
    %v6189 = vsel %vm165, %v6126, 0
    %v6192 = vsel %vm165, %v6131, 0
    %v6195 = vsel %vm165, %v6136, 0
    %v6198 = vsel %vm165, %v6141, 0
    %v6201 = vsel %vm165, %v6146, 0
    %v6204 = vsel %vm165, %v6151, 0
    %v6207 = vsel %vm165, %v6156, 0
    %v6210 = vsel %vm165, %v6161, 0
    %6212 = vmatprep.subr.mxu0 0.0
    %6213 = vmatpush1.msra.mxu0 0.0
    %6214 = vmatprep.subr.mxu0 0.0
    %6215 = vmatpush1.msra.mxu0 0.0
    %6216 = vmatprep.subr.mxu0 0.0
    %6217 = vmatpush1.msra.mxu0 0.0
    %6218 = vmatprep.subr.mxu0 0.0
    %6219 = vmatpush1.msra.mxu0 0.0
    %6220 = vmatprep.subr.mxu0 0.0
    %6221 = vmatpush1.msra.mxu0 0.0
    %6222 = vmatprep.subr.mxu0 0.0
    %6223 = vmatpush1.msra.mxu0 0.0
    %6224 = vmatprep.subr.mxu0 0.0
    %6225 = vmatpush1.msra.mxu0 0.0
    %6226 = vmatprep.subr.mxu0 0.0
    %6227 = vmatpush1.msra.mxu0 0.0
    %6228 = vmatprep.subr.mxu0 0.0
    %6229 = vmatpush1.msra.mxu0 0.0
    %6230 = vmatprep.subr.mxu0 0.0
    %6231 = vmatpush1.msra.mxu0 0.0
    %6232 = vmatprep.subr.mxu0 0.0
    %6233 = vmatpush1.msra.mxu0 0.0
    %6234 = vmatprep.subr.mxu0 0.0
    %6235 = vmatpush1.msra.mxu0 0.0
    %6236 = vmatprep.subr.mxu0 0.0
    %6237 = vmatpush1.msra.mxu0 0.0
    %6238 = vmatprep.subr.mxu0 0.0
    %6239 = vmatpush1.msra.mxu0 0.0
    %6240 = vmatprep.subr.mxu0 0.0
    %6241 = vmatpush1.msra.mxu0 0.0
    %6242 = vmatprep.subr.mxu0 0.0
    %6243 = vmatpush1.msra.mxu0 %v102
    %6244 = vmatprep.subr.mxu0 0.0
    %6245 = vmatpush2.msra.mxu0 0.0
    %6246 = vmatprep.subr.mxu0 0.0
    %6247 = vmatpush2.msra.mxu0 0.0
    %6248 = vmatprep.subr.mxu0 0.0
    %6249 = vmatpush2.msra.mxu0 0.0
    %6250 = vmatprep.subr.mxu0 0.0
    %6251 = vmatpush2.msra.mxu0 0.0
    %6252 = vmatprep.subr.mxu0 0.0
    %6253 = vmatpush2.msra.mxu0 0.0
    %6254 = vmatprep.subr.mxu0 0.0
    %6255 = vmatpush2.msra.mxu0 0.0
    %6256 = vmatprep.subr.mxu0 0.0
    %6257 = vmatpush2.msra.mxu0 0.0
    %6258 = vmatprep.subr.mxu0 0.0
    %6259 = vmatpush2.msra.mxu0 0.0
    %6260 = vmatprep.subr.mxu0 0.0
    %6261 = vmatpush2.msra.mxu0 0.0
    %6262 = vmatprep.subr.mxu0 0.0
    %6263 = vmatpush2.msra.mxu0 0.0
    %6264 = vmatprep.subr.mxu0 0.0
    %6265 = vmatpush2.msra.mxu0 0.0
    %6266 = vmatprep.subr.mxu0 0.0
    %6267 = vmatpush2.msra.mxu0 0.0
    %6268 = vmatprep.subr.mxu0 0.0
    %6269 = vmatpush2.msra.mxu0 0.0
    %6270 = vmatprep.subr.mxu0 0.0
    %6271 = vmatpush2.msra.mxu0 0.0
    %6272 = vmatprep.subr.mxu0 0.0
    %6273 = vmatpush2.msra.mxu0 0.0
    %6274 = vmatprep.subr.mxu0 0.0
    %6275 = vmatpush2.msra.mxu0 0.0
    %6276 = vmatprep.mubr.f32.mxu0 0.0
    %6277 = vmatmul.mubr.f32.gmra.mxu0 %v6165
    %v6278 = vpop.f32.mrf.mxu0
    %v6279 = vadd.f32 0.0, %v6278
    %v6280 = vpop.f32.mrf.mxu0
    %6281 = vmatprep.mubr.f32.mxu0 0.0
    %6282 = vmatmul.mubr.f32.gmra.mxu0 %v6168
    %v6283 = vpop.f32.mrf.mxu0
    %v6284 = vadd.f32 0.0, %v6283
    %v6285 = vpop.f32.mrf.mxu0
    %6286 = vmatprep.mubr.f32.mxu0 0.0
    %6287 = vmatmul.mubr.f32.gmra.mxu0 %v6171
    %v6288 = vpop.f32.mrf.mxu0
    %v6289 = vadd.f32 0.0, %v6288
    %v6290 = vpop.f32.mrf.mxu0
    %6291 = vmatprep.mubr.f32.mxu0 0.0
    %6292 = vmatmul.mubr.f32.gmra.mxu0 %v6174
    %v6293 = vpop.f32.mrf.mxu0
    %v6294 = vadd.f32 0.0, %v6293
    %v6295 = vpop.f32.mrf.mxu0
    %6296 = vmatprep.mubr.f32.mxu0 0.0
    %6297 = vmatmul.mubr.f32.gmra.mxu0 %v6177
    %v6298 = vpop.f32.mrf.mxu0
    %v6299 = vadd.f32 0.0, %v6298
    %v6300 = vpop.f32.mrf.mxu0
    %6301 = vmatprep.mubr.f32.mxu0 0.0
    %6302 = vmatmul.mubr.f32.gmra.mxu0 %v6180
    %v6303 = vpop.f32.mrf.mxu0
    %v6304 = vadd.f32 0.0, %v6303
    %v6305 = vpop.f32.mrf.mxu0
    %6306 = vmatprep.mubr.f32.mxu0 0.0
    %6307 = vmatmul.mubr.f32.gmra.mxu0 %v6183
    %v6308 = vpop.f32.mrf.mxu0
    %v6309 = vadd.f32 0.0, %v6308
    %v6310 = vpop.f32.mrf.mxu0
    %6311 = vmatprep.mubr.f32.mxu0 0.0
    %6312 = vmatmul.mubr.f32.gmra.mxu0 %v6186
    %v6313 = vpop.f32.mrf.mxu0
    %v6314 = vadd.f32 0.0, %v6313
    %v6315 = vpop.f32.mrf.mxu0
    %6316 = vmatprep.mubr.f32.mxu0 0.0
    %6317 = vmatmul.mubr.f32.gmra.mxu0 %v6189
    %v6318 = vpop.f32.mrf.mxu0
    %v6319 = vadd.f32 0.0, %v6318
    %v6320 = vpop.f32.mrf.mxu0
    %6321 = vmatprep.mubr.f32.mxu0 0.0
    %6322 = vmatmul.mubr.f32.gmra.mxu0 %v6192
    %v6323 = vpop.f32.mrf.mxu0
    %v6324 = vadd.f32 0.0, %v6323
    %v6325 = vpop.f32.mrf.mxu0
    %6326 = vmatprep.mubr.f32.mxu0 0.0
    %6327 = vmatmul.mubr.f32.gmra.mxu0 %v6195
    %v6328 = vpop.f32.mrf.mxu0
    %v6329 = vadd.f32 0.0, %v6328
    %v6330 = vpop.f32.mrf.mxu0
    %6331 = vmatprep.mubr.f32.mxu0 0.0
    %6332 = vmatmul.mubr.f32.gmra.mxu0 %v6198
    %v6333 = vpop.f32.mrf.mxu0
    %v6334 = vadd.f32 0.0, %v6333
    %v6335 = vpop.f32.mrf.mxu0
    %6336 = vmatprep.mubr.f32.mxu0 0.0
    %6337 = vmatmul.mubr.f32.gmra.mxu0 %v6201
    %v6338 = vpop.f32.mrf.mxu0
    %v6339 = vadd.f32 0.0, %v6338
    %v6340 = vpop.f32.mrf.mxu0
    %6341 = vmatprep.mubr.f32.mxu0 0.0
    %6342 = vmatmul.mubr.f32.gmra.mxu0 %v6204
    %v6343 = vpop.f32.mrf.mxu0
    %v6344 = vadd.f32 0.0, %v6343
    %v6345 = vpop.f32.mrf.mxu0
    %6346 = vmatprep.mubr.f32.mxu0 0.0
    %6347 = vmatmul.mubr.f32.gmra.mxu0 %v6207
    %v6348 = vpop.f32.mrf.mxu0
    %v6349 = vadd.f32 0.0, %v6348
    %v6350 = vpop.f32.mrf.mxu0
    %6351 = vmatprep.mubr.f32.mxu0 0.0
    %6352 = vmatmul.mubr.f32.gmra.mxu0 %v6210
    %v6353 = vpop.f32.mrf.mxu0
    %v6354 = vadd.f32 0.0, %v6353
    %v6355 = vpop.f32.mrf.mxu0
    %6356 = vdwg.mxu0
    %v6357 = vsel %vm1328, %v6279, 0.0
    %v6358 = vsel %vm1329, %v6284, 0.0
    %v6359 = vsel %vm1330, %v6289, 0.0
    %v6360 = vsel %vm1331, %v6294, 0.0
    %v6361 = vsel %vm1332, %v6299, 0.0
    %v6362 = vsel %vm1333, %v6304, 0.0
    %v6363 = vsel %vm1334, %v6309, 0.0
    %v6364 = vsel %vm1335, %v6314, 0.0
    %v6365 = vsel %vm1336, %v6319, 0.0
    %v6366 = vsel %vm1337, %v6324, 0.0
    %v6367 = vsel %vm1338, %v6329, 0.0
    %v6368 = vsel %vm1339, %v6334, 0.0
    %v6369 = vsel %vm1340, %v6339, 0.0
    %v6370 = vsel %vm1341, %v6344, 0.0
    %v6371 = vsel %vm1342, %v6349, 0.0
    %v6372 = vsel %vm1343, %v6354, 0.0
    %v6373 = vadd.f32 %v6001, %v6357
    %v6374 = vadd.f32 %v6002, %v6358
    %v6375 = vadd.f32 %v6003, %v6359
    %v6376 = vadd.f32 %v6004, %v6360
    %v6377 = vadd.f32 %v6005, %v6361
    %v6378 = vadd.f32 %v6006, %v6362
    %v6379 = vadd.f32 %v6007, %v6363
    %v6380 = vadd.f32 %v6008, %v6364
    %v6381 = vadd.f32 %v6009, %v6365
    %v6382 = vadd.f32 %v6010, %v6366
    %v6383 = vadd.f32 %v6011, %v6367
    %v6384 = vadd.f32 %v6012, %v6368
    %v6385 = vadd.f32 %v6013, %v6369
    %v6386 = vadd.f32 %v6014, %v6370
    %v6387 = vadd.f32 %v6015, %v6371
    %v6388 = vadd.f32 %v6016, %v6372
    %s6389 = scalar_lea.vmem %s6, 48
    %v6390 = vld [vmem:[%s6389] sm:$0xff]
    %6391 = vmatprep.subr.mxu0 0.0
    %6392 = vmatpush1.msra.mxu0 0.0
    %6393 = vmatprep.subr.mxu0 0.0
    %6394 = vmatpush1.msra.mxu0 0.0
    %6395 = vmatprep.subr.mxu0 0.0
    %6396 = vmatpush1.msra.mxu0 0.0
    %6397 = vmatprep.subr.mxu0 0.0
    %6398 = vmatpush1.msra.mxu0 0.0
    %6399 = vmatprep.subr.mxu0 0.0
    %6400 = vmatpush1.msra.mxu0 0.0
    %6401 = vmatprep.subr.mxu0 0.0
    %6402 = vmatpush1.msra.mxu0 0.0
    %6403 = vmatprep.subr.mxu0 0.0
    %6404 = vmatpush1.msra.mxu0 0.0
    %6405 = vmatprep.subr.mxu0 0.0
    %6406 = vmatpush1.msra.mxu0 0.0
    %6407 = vmatprep.subr.mxu0 0.0
    %6408 = vmatpush1.msra.mxu0 0.0
    %6409 = vmatprep.subr.mxu0 0.0
    %6410 = vmatpush1.msra.mxu0 0.0
    %6411 = vmatprep.subr.mxu0 0.0
    %6412 = vmatpush1.msra.mxu0 0.0
    %6413 = vmatprep.subr.mxu0 0.0
    %6414 = vmatpush1.msra.mxu0 0.0
    %6415 = vmatprep.subr.mxu0 0.0
    %6416 = vmatpush1.msra.mxu0 0.0
    %6417 = vmatprep.subr.mxu0 0.0
    %6418 = vmatpush1.msra.mxu0 0.0
    %6419 = vmatprep.subr.mxu0 0.0
    %6420 = vmatpush1.msra.mxu0 0.0
    %6421 = vmatprep.subr.mxu0 0.0
    %6422 = vmatpush1.msra.mxu0 %v6390
    %6423 = vmatprep.subr.mxu0 0.0
    %6424 = vmatpush2.msra.mxu0 0.0
    %6425 = vmatprep.subr.mxu0 0.0
    %6426 = vmatpush2.msra.mxu0 0.0
    %6427 = vmatprep.subr.mxu0 0.0
    %6428 = vmatpush2.msra.mxu0 0.0
    %6429 = vmatprep.subr.mxu0 0.0
    %6430 = vmatpush2.msra.mxu0 0.0
    %6431 = vmatprep.subr.mxu0 0.0
    %6432 = vmatpush2.msra.mxu0 0.0
    %6433 = vmatprep.subr.mxu0 0.0
    %6434 = vmatpush2.msra.mxu0 0.0
    %6435 = vmatprep.subr.mxu0 0.0
    %6436 = vmatpush2.msra.mxu0 0.0
    %6437 = vmatprep.subr.mxu0 0.0
    %6438 = vmatpush2.msra.mxu0 0.0
    %6439 = vmatprep.subr.mxu0 0.0
    %6440 = vmatpush2.msra.mxu0 0.0
    %6441 = vmatprep.subr.mxu0 0.0
    %6442 = vmatpush2.msra.mxu0 0.0
    %6443 = vmatprep.subr.mxu0 0.0
    %6444 = vmatpush2.msra.mxu0 0.0
    %6445 = vmatprep.subr.mxu0 0.0
    %6446 = vmatpush2.msra.mxu0 0.0
    %6447 = vmatprep.subr.mxu0 0.0
    %6448 = vmatpush2.msra.mxu0 0.0
    %6449 = vmatprep.subr.mxu0 0.0
    %6450 = vmatpush2.msra.mxu0 0.0
    %6451 = vmatprep.subr.mxu0 0.0
    %6452 = vmatpush2.msra.mxu0 0.0
    %6453 = vmatprep.subr.mxu0 0.0
    %6454 = vmatpush2.msra.mxu0 0.0
    %6455 = vmatprep.mubr.f32.mxu0 0.0
    %6456 = vmatmul.mubr.f32.gmra.mxu0 %v167
    %v6457 = vpop.f32.mrf.mxu0
    %v6458 = vadd.f32 0.0, %v6457
    %v6459 = vpop.f32.mrf.mxu0
    %6460 = vmatprep.mubr.f32.mxu0 0.0
    %6461 = vmatmul.mubr.f32.gmra.mxu0 %v170
    %v6462 = vpop.f32.mrf.mxu0
    %v6463 = vadd.f32 0.0, %v6462
    %v6464 = vpop.f32.mrf.mxu0
    %6465 = vmatprep.mubr.f32.mxu0 0.0
    %6466 = vmatmul.mubr.f32.gmra.mxu0 %v173
    %v6467 = vpop.f32.mrf.mxu0
    %v6468 = vadd.f32 0.0, %v6467
    %v6469 = vpop.f32.mrf.mxu0
    %6470 = vmatprep.mubr.f32.mxu0 0.0
    %6471 = vmatmul.mubr.f32.gmra.mxu0 %v176
    %v6472 = vpop.f32.mrf.mxu0
    %v6473 = vadd.f32 0.0, %v6472
    %v6474 = vpop.f32.mrf.mxu0
    %6475 = vmatprep.mubr.f32.mxu0 0.0
    %6476 = vmatmul.mubr.f32.gmra.mxu0 %v179
    %v6477 = vpop.f32.mrf.mxu0
    %v6478 = vadd.f32 0.0, %v6477
    %v6479 = vpop.f32.mrf.mxu0
    %6480 = vmatprep.mubr.f32.mxu0 0.0
    %6481 = vmatmul.mubr.f32.gmra.mxu0 %v182
    %v6482 = vpop.f32.mrf.mxu0
    %v6483 = vadd.f32 0.0, %v6482
    %v6484 = vpop.f32.mrf.mxu0
    %6485 = vmatprep.mubr.f32.mxu0 0.0
    %6486 = vmatmul.mubr.f32.gmra.mxu0 %v185
    %v6487 = vpop.f32.mrf.mxu0
    %v6488 = vadd.f32 0.0, %v6487
    %v6489 = vpop.f32.mrf.mxu0
    %6490 = vmatprep.mubr.f32.mxu0 0.0
    %6491 = vmatmul.mubr.f32.gmra.mxu0 %v188
    %v6492 = vpop.f32.mrf.mxu0
    %v6493 = vadd.f32 0.0, %v6492
    %v6494 = vpop.f32.mrf.mxu0
    %6495 = vmatprep.mubr.f32.mxu0 0.0
    %6496 = vmatmul.mubr.f32.gmra.mxu0 %v191
    %v6497 = vpop.f32.mrf.mxu0
    %v6498 = vadd.f32 0.0, %v6497
    %v6499 = vpop.f32.mrf.mxu0
    %6500 = vmatprep.mubr.f32.mxu0 0.0
    %6501 = vmatmul.mubr.f32.gmra.mxu0 %v194
    %v6502 = vpop.f32.mrf.mxu0
    %v6503 = vadd.f32 0.0, %v6502
    %v6504 = vpop.f32.mrf.mxu0
    %6505 = vmatprep.mubr.f32.mxu0 0.0
    %6506 = vmatmul.mubr.f32.gmra.mxu0 %v197
    %v6507 = vpop.f32.mrf.mxu0
    %v6508 = vadd.f32 0.0, %v6507
    %v6509 = vpop.f32.mrf.mxu0
    %6510 = vmatprep.mubr.f32.mxu0 0.0
    %6511 = vmatmul.mubr.f32.gmra.mxu0 %v200
    %v6512 = vpop.f32.mrf.mxu0
    %v6513 = vadd.f32 0.0, %v6512
    %v6514 = vpop.f32.mrf.mxu0
    %6515 = vmatprep.mubr.f32.mxu0 0.0
    %6516 = vmatmul.mubr.f32.gmra.mxu0 %v203
    %v6517 = vpop.f32.mrf.mxu0
    %v6518 = vadd.f32 0.0, %v6517
    %v6519 = vpop.f32.mrf.mxu0
    %6520 = vmatprep.mubr.f32.mxu0 0.0
    %6521 = vmatmul.mubr.f32.gmra.mxu0 %v206
    %v6522 = vpop.f32.mrf.mxu0
    %v6523 = vadd.f32 0.0, %v6522
    %v6524 = vpop.f32.mrf.mxu0
    %6525 = vmatprep.mubr.f32.mxu0 0.0
    %6526 = vmatmul.mubr.f32.gmra.mxu0 %v209
    %v6527 = vpop.f32.mrf.mxu0
    %v6528 = vadd.f32 0.0, %v6527
    %v6529 = vpop.f32.mrf.mxu0
    %6530 = vmatprep.mubr.f32.mxu0 0.0
    %6531 = vmatmul.mubr.f32.gmra.mxu0 %v212
    %v6532 = vpop.f32.mrf.mxu0
    %v6533 = vadd.f32 0.0, %v6532
    %v6534 = vpop.f32.mrf.mxu0
    %6535 = vdwg.mxu0
    %v6537 = vsel %vm165, %v6458, 0
    %v6540 = vsel %vm165, %v6463, 0
    %v6543 = vsel %vm165, %v6468, 0
    %v6546 = vsel %vm165, %v6473, 0
    %v6549 = vsel %vm165, %v6478, 0
    %v6552 = vsel %vm165, %v6483, 0
    %v6555 = vsel %vm165, %v6488, 0
    %v6558 = vsel %vm165, %v6493, 0
    %v6561 = vsel %vm165, %v6498, 0
    %v6564 = vsel %vm165, %v6503, 0
    %v6567 = vsel %vm165, %v6508, 0
    %v6570 = vsel %vm165, %v6513, 0
    %v6573 = vsel %vm165, %v6518, 0
    %v6576 = vsel %vm165, %v6523, 0
    %v6579 = vsel %vm165, %v6528, 0
    %v6582 = vsel %vm165, %v6533, 0
    %6584 = vmatprep.subr.mxu0 0.0
    %6585 = vmatpush1.msra.mxu0 0.0
    %6586 = vmatprep.subr.mxu0 0.0
    %6587 = vmatpush1.msra.mxu0 0.0
    %6588 = vmatprep.subr.mxu0 0.0
    %6589 = vmatpush1.msra.mxu0 0.0
    %6590 = vmatprep.subr.mxu0 0.0
    %6591 = vmatpush1.msra.mxu0 0.0
    %6592 = vmatprep.subr.mxu0 0.0
    %6593 = vmatpush1.msra.mxu0 0.0
    %6594 = vmatprep.subr.mxu0 0.0
    %6595 = vmatpush1.msra.mxu0 0.0
    %6596 = vmatprep.subr.mxu0 0.0
    %6597 = vmatpush1.msra.mxu0 0.0
    %6598 = vmatprep.subr.mxu0 0.0
    %6599 = vmatpush1.msra.mxu0 0.0
    %6600 = vmatprep.subr.mxu0 0.0
    %6601 = vmatpush1.msra.mxu0 0.0
    %6602 = vmatprep.subr.mxu0 0.0
    %6603 = vmatpush1.msra.mxu0 0.0
    %6604 = vmatprep.subr.mxu0 0.0
    %6605 = vmatpush1.msra.mxu0 0.0
    %6606 = vmatprep.subr.mxu0 0.0
    %6607 = vmatpush1.msra.mxu0 0.0
    %6608 = vmatprep.subr.mxu0 0.0
    %6609 = vmatpush1.msra.mxu0 0.0
    %6610 = vmatprep.subr.mxu0 0.0
    %6611 = vmatpush1.msra.mxu0 0.0
    %6612 = vmatprep.subr.mxu0 0.0
    %6613 = vmatpush1.msra.mxu0 0.0
    %6614 = vmatprep.subr.mxu0 0.0
    %6615 = vmatpush1.msra.mxu0 %v102
    %6616 = vmatprep.subr.mxu0 0.0
    %6617 = vmatpush2.msra.mxu0 0.0
    %6618 = vmatprep.subr.mxu0 0.0
    %6619 = vmatpush2.msra.mxu0 0.0
    %6620 = vmatprep.subr.mxu0 0.0
    %6621 = vmatpush2.msra.mxu0 0.0
    %6622 = vmatprep.subr.mxu0 0.0
    %6623 = vmatpush2.msra.mxu0 0.0
    %6624 = vmatprep.subr.mxu0 0.0
    %6625 = vmatpush2.msra.mxu0 0.0
    %6626 = vmatprep.subr.mxu0 0.0
    %6627 = vmatpush2.msra.mxu0 0.0
    %6628 = vmatprep.subr.mxu0 0.0
    %6629 = vmatpush2.msra.mxu0 0.0
    %6630 = vmatprep.subr.mxu0 0.0
    %6631 = vmatpush2.msra.mxu0 0.0
    %6632 = vmatprep.subr.mxu0 0.0
    %6633 = vmatpush2.msra.mxu0 0.0
    %6634 = vmatprep.subr.mxu0 0.0
    %6635 = vmatpush2.msra.mxu0 0.0
    %6636 = vmatprep.subr.mxu0 0.0
    %6637 = vmatpush2.msra.mxu0 0.0
    %6638 = vmatprep.subr.mxu0 0.0
    %6639 = vmatpush2.msra.mxu0 0.0
    %6640 = vmatprep.subr.mxu0 0.0
    %6641 = vmatpush2.msra.mxu0 0.0
    %6642 = vmatprep.subr.mxu0 0.0
    %6643 = vmatpush2.msra.mxu0 0.0
    %6644 = vmatprep.subr.mxu0 0.0
    %6645 = vmatpush2.msra.mxu0 0.0
    %6646 = vmatprep.subr.mxu0 0.0
    %6647 = vmatpush2.msra.mxu0 0.0
    %6648 = vmatprep.mubr.f32.mxu0 0.0
    %6649 = vmatmul.mubr.f32.gmra.mxu0 %v6537
    %v6650 = vpop.f32.mrf.mxu0
    %v6651 = vadd.f32 0.0, %v6650
    %v6652 = vpop.f32.mrf.mxu0
    %6653 = vmatprep.mubr.f32.mxu0 0.0
    %6654 = vmatmul.mubr.f32.gmra.mxu0 %v6540
    %v6655 = vpop.f32.mrf.mxu0
    %v6656 = vadd.f32 0.0, %v6655
    %v6657 = vpop.f32.mrf.mxu0
    %6658 = vmatprep.mubr.f32.mxu0 0.0
    %6659 = vmatmul.mubr.f32.gmra.mxu0 %v6543
    %v6660 = vpop.f32.mrf.mxu0
    %v6661 = vadd.f32 0.0, %v6660
    %v6662 = vpop.f32.mrf.mxu0
    %6663 = vmatprep.mubr.f32.mxu0 0.0
    %6664 = vmatmul.mubr.f32.gmra.mxu0 %v6546
    %v6665 = vpop.f32.mrf.mxu0
    %v6666 = vadd.f32 0.0, %v6665
    %v6667 = vpop.f32.mrf.mxu0
    %6668 = vmatprep.mubr.f32.mxu0 0.0
    %6669 = vmatmul.mubr.f32.gmra.mxu0 %v6549
    %v6670 = vpop.f32.mrf.mxu0
    %v6671 = vadd.f32 0.0, %v6670
    %v6672 = vpop.f32.mrf.mxu0
    %6673 = vmatprep.mubr.f32.mxu0 0.0
    %6674 = vmatmul.mubr.f32.gmra.mxu0 %v6552
    %v6675 = vpop.f32.mrf.mxu0
    %v6676 = vadd.f32 0.0, %v6675
    %v6677 = vpop.f32.mrf.mxu0
    %6678 = vmatprep.mubr.f32.mxu0 0.0
    %6679 = vmatmul.mubr.f32.gmra.mxu0 %v6555
    %v6680 = vpop.f32.mrf.mxu0
    %v6681 = vadd.f32 0.0, %v6680
    %v6682 = vpop.f32.mrf.mxu0
    %6683 = vmatprep.mubr.f32.mxu0 0.0
    %6684 = vmatmul.mubr.f32.gmra.mxu0 %v6558
    %v6685 = vpop.f32.mrf.mxu0
    %v6686 = vadd.f32 0.0, %v6685
    %v6687 = vpop.f32.mrf.mxu0
    %6688 = vmatprep.mubr.f32.mxu0 0.0
    %6689 = vmatmul.mubr.f32.gmra.mxu0 %v6561
    %v6690 = vpop.f32.mrf.mxu0
    %v6691 = vadd.f32 0.0, %v6690
    %v6692 = vpop.f32.mrf.mxu0
    %6693 = vmatprep.mubr.f32.mxu0 0.0
    %6694 = vmatmul.mubr.f32.gmra.mxu0 %v6564
    %v6695 = vpop.f32.mrf.mxu0
    %v6696 = vadd.f32 0.0, %v6695
    %v6697 = vpop.f32.mrf.mxu0
    %6698 = vmatprep.mubr.f32.mxu0 0.0
    %6699 = vmatmul.mubr.f32.gmra.mxu0 %v6567
    %v6700 = vpop.f32.mrf.mxu0
    %v6701 = vadd.f32 0.0, %v6700
    %v6702 = vpop.f32.mrf.mxu0
    %6703 = vmatprep.mubr.f32.mxu0 0.0
    %6704 = vmatmul.mubr.f32.gmra.mxu0 %v6570
    %v6705 = vpop.f32.mrf.mxu0
    %v6706 = vadd.f32 0.0, %v6705
    %v6707 = vpop.f32.mrf.mxu0
    %6708 = vmatprep.mubr.f32.mxu0 0.0
    %6709 = vmatmul.mubr.f32.gmra.mxu0 %v6573
    %v6710 = vpop.f32.mrf.mxu0
    %v6711 = vadd.f32 0.0, %v6710
    %v6712 = vpop.f32.mrf.mxu0
    %6713 = vmatprep.mubr.f32.mxu0 0.0
    %6714 = vmatmul.mubr.f32.gmra.mxu0 %v6576
    %v6715 = vpop.f32.mrf.mxu0
    %v6716 = vadd.f32 0.0, %v6715
    %v6717 = vpop.f32.mrf.mxu0
    %6718 = vmatprep.mubr.f32.mxu0 0.0
    %6719 = vmatmul.mubr.f32.gmra.mxu0 %v6579
    %v6720 = vpop.f32.mrf.mxu0
    %v6721 = vadd.f32 0.0, %v6720
    %v6722 = vpop.f32.mrf.mxu0
    %6723 = vmatprep.mubr.f32.mxu0 0.0
    %6724 = vmatmul.mubr.f32.gmra.mxu0 %v6582
    %v6725 = vpop.f32.mrf.mxu0
    %v6726 = vadd.f32 0.0, %v6725
    %v6727 = vpop.f32.mrf.mxu0
    %6728 = vdwg.mxu0
    %v6729 = vsel %vm552, %v6651, 0.0
    %v6730 = vsel %vm553, %v6656, 0.0
    %v6731 = vsel %vm554, %v6661, 0.0
    %v6732 = vsel %vm555, %v6666, 0.0
    %v6733 = vsel %vm556, %v6671, 0.0
    %v6734 = vsel %vm557, %v6676, 0.0
    %v6735 = vsel %vm558, %v6681, 0.0
    %v6736 = vsel %vm559, %v6686, 0.0
    %v6737 = vsel %vm560, %v6691, 0.0
    %v6738 = vsel %vm561, %v6696, 0.0
    %v6739 = vsel %vm562, %v6701, 0.0
    %v6740 = vsel %vm563, %v6706, 0.0
    %v6741 = vsel %vm564, %v6711, 0.0
    %v6742 = vsel %vm565, %v6716, 0.0
    %v6743 = vsel %vm566, %v6721, 0.0
    %v6744 = vsel %vm567, %v6726, 0.0
    %v6745 = vadd.f32 %v6729, 0.0
    %v6746 = vadd.f32 %v6730, 0.0
    %v6747 = vadd.f32 %v6731, 0.0
    %v6748 = vadd.f32 %v6732, 0.0
    %v6749 = vadd.f32 %v6733, 0.0
    %v6750 = vadd.f32 %v6734, 0.0
    %v6751 = vadd.f32 %v6735, 0.0
    %v6752 = vadd.f32 %v6736, 0.0
    %v6753 = vadd.f32 %v6737, 0.0
    %v6754 = vadd.f32 %v6738, 0.0
    %v6755 = vadd.f32 %v6739, 0.0
    %v6756 = vadd.f32 %v6740, 0.0
    %v6757 = vadd.f32 %v6741, 0.0
    %v6758 = vadd.f32 %v6742, 0.0
    %v6759 = vadd.f32 %v6743, 0.0
    %v6760 = vadd.f32 %v6744, 0.0
    %s6761 = scalar_lea.vmem %s6, 56
    %v6762 = vld [vmem:[%s6761] sm:$0xff]
    %6763 = vmatprep.subr.mxu0 0.0
    %6764 = vmatpush1.msra.mxu0 0.0
    %6765 = vmatprep.subr.mxu0 0.0
    %6766 = vmatpush1.msra.mxu0 0.0
    %6767 = vmatprep.subr.mxu0 0.0
    %6768 = vmatpush1.msra.mxu0 0.0
    %6769 = vmatprep.subr.mxu0 0.0
    %6770 = vmatpush1.msra.mxu0 0.0
    %6771 = vmatprep.subr.mxu0 0.0
    %6772 = vmatpush1.msra.mxu0 0.0
    %6773 = vmatprep.subr.mxu0 0.0
    %6774 = vmatpush1.msra.mxu0 0.0
    %6775 = vmatprep.subr.mxu0 0.0
    %6776 = vmatpush1.msra.mxu0 0.0
    %6777 = vmatprep.subr.mxu0 0.0
    %6778 = vmatpush1.msra.mxu0 0.0
    %6779 = vmatprep.subr.mxu0 0.0
    %6780 = vmatpush1.msra.mxu0 0.0
    %6781 = vmatprep.subr.mxu0 0.0
    %6782 = vmatpush1.msra.mxu0 0.0
    %6783 = vmatprep.subr.mxu0 0.0
    %6784 = vmatpush1.msra.mxu0 0.0
    %6785 = vmatprep.subr.mxu0 0.0
    %6786 = vmatpush1.msra.mxu0 0.0
    %6787 = vmatprep.subr.mxu0 0.0
    %6788 = vmatpush1.msra.mxu0 0.0
    %6789 = vmatprep.subr.mxu0 0.0
    %6790 = vmatpush1.msra.mxu0 0.0
    %6791 = vmatprep.subr.mxu0 0.0
    %6792 = vmatpush1.msra.mxu0 0.0
    %6793 = vmatprep.subr.mxu0 0.0
    %6794 = vmatpush1.msra.mxu0 %v6762
    %6795 = vmatprep.subr.mxu0 0.0
    %6796 = vmatpush2.msra.mxu0 0.0
    %6797 = vmatprep.subr.mxu0 0.0
    %6798 = vmatpush2.msra.mxu0 0.0
    %6799 = vmatprep.subr.mxu0 0.0
    %6800 = vmatpush2.msra.mxu0 0.0
    %6801 = vmatprep.subr.mxu0 0.0
    %6802 = vmatpush2.msra.mxu0 0.0
    %6803 = vmatprep.subr.mxu0 0.0
    %6804 = vmatpush2.msra.mxu0 0.0
    %6805 = vmatprep.subr.mxu0 0.0
    %6806 = vmatpush2.msra.mxu0 0.0
    %6807 = vmatprep.subr.mxu0 0.0
    %6808 = vmatpush2.msra.mxu0 0.0
    %6809 = vmatprep.subr.mxu0 0.0
    %6810 = vmatpush2.msra.mxu0 0.0
    %6811 = vmatprep.subr.mxu0 0.0
    %6812 = vmatpush2.msra.mxu0 0.0
    %6813 = vmatprep.subr.mxu0 0.0
    %6814 = vmatpush2.msra.mxu0 0.0
    %6815 = vmatprep.subr.mxu0 0.0
    %6816 = vmatpush2.msra.mxu0 0.0
    %6817 = vmatprep.subr.mxu0 0.0
    %6818 = vmatpush2.msra.mxu0 0.0
    %6819 = vmatprep.subr.mxu0 0.0
    %6820 = vmatpush2.msra.mxu0 0.0
    %6821 = vmatprep.subr.mxu0 0.0
    %6822 = vmatpush2.msra.mxu0 0.0
    %6823 = vmatprep.subr.mxu0 0.0
    %6824 = vmatpush2.msra.mxu0 0.0
    %6825 = vmatprep.subr.mxu0 0.0
    %6826 = vmatpush2.msra.mxu0 0.0
    %6827 = vmatprep.mubr.f32.mxu0 0.0
    %6828 = vmatmul.mubr.f32.gmra.mxu0 %v167
    %v6829 = vpop.f32.mrf.mxu0
    %v6830 = vadd.f32 0.0, %v6829
    %v6831 = vpop.f32.mrf.mxu0
    %6832 = vmatprep.mubr.f32.mxu0 0.0
    %6833 = vmatmul.mubr.f32.gmra.mxu0 %v170
    %v6834 = vpop.f32.mrf.mxu0
    %v6835 = vadd.f32 0.0, %v6834
    %v6836 = vpop.f32.mrf.mxu0
    %6837 = vmatprep.mubr.f32.mxu0 0.0
    %6838 = vmatmul.mubr.f32.gmra.mxu0 %v173
    %v6839 = vpop.f32.mrf.mxu0
    %v6840 = vadd.f32 0.0, %v6839
    %v6841 = vpop.f32.mrf.mxu0
    %6842 = vmatprep.mubr.f32.mxu0 0.0
    %6843 = vmatmul.mubr.f32.gmra.mxu0 %v176
    %v6844 = vpop.f32.mrf.mxu0
    %v6845 = vadd.f32 0.0, %v6844
    %v6846 = vpop.f32.mrf.mxu0
    %6847 = vmatprep.mubr.f32.mxu0 0.0
    %6848 = vmatmul.mubr.f32.gmra.mxu0 %v179
    %v6849 = vpop.f32.mrf.mxu0
    %v6850 = vadd.f32 0.0, %v6849
    %v6851 = vpop.f32.mrf.mxu0
    %6852 = vmatprep.mubr.f32.mxu0 0.0
    %6853 = vmatmul.mubr.f32.gmra.mxu0 %v182
    %v6854 = vpop.f32.mrf.mxu0
    %v6855 = vadd.f32 0.0, %v6854
    %v6856 = vpop.f32.mrf.mxu0
    %6857 = vmatprep.mubr.f32.mxu0 0.0
    %6858 = vmatmul.mubr.f32.gmra.mxu0 %v185
    %v6859 = vpop.f32.mrf.mxu0
    %v6860 = vadd.f32 0.0, %v6859
    %v6861 = vpop.f32.mrf.mxu0
    %6862 = vmatprep.mubr.f32.mxu0 0.0
    %6863 = vmatmul.mubr.f32.gmra.mxu0 %v188
    %v6864 = vpop.f32.mrf.mxu0
    %v6865 = vadd.f32 0.0, %v6864
    %v6866 = vpop.f32.mrf.mxu0
    %6867 = vmatprep.mubr.f32.mxu0 0.0
    %6868 = vmatmul.mubr.f32.gmra.mxu0 %v191
    %v6869 = vpop.f32.mrf.mxu0
    %v6870 = vadd.f32 0.0, %v6869
    %v6871 = vpop.f32.mrf.mxu0
    %6872 = vmatprep.mubr.f32.mxu0 0.0
    %6873 = vmatmul.mubr.f32.gmra.mxu0 %v194
    %v6874 = vpop.f32.mrf.mxu0
    %v6875 = vadd.f32 0.0, %v6874
    %v6876 = vpop.f32.mrf.mxu0
    %6877 = vmatprep.mubr.f32.mxu0 0.0
    %6878 = vmatmul.mubr.f32.gmra.mxu0 %v197
    %v6879 = vpop.f32.mrf.mxu0
    %v6880 = vadd.f32 0.0, %v6879
    %v6881 = vpop.f32.mrf.mxu0
    %6882 = vmatprep.mubr.f32.mxu0 0.0
    %6883 = vmatmul.mubr.f32.gmra.mxu0 %v200
    %v6884 = vpop.f32.mrf.mxu0
    %v6885 = vadd.f32 0.0, %v6884
    %v6886 = vpop.f32.mrf.mxu0
    %6887 = vmatprep.mubr.f32.mxu0 0.0
    %6888 = vmatmul.mubr.f32.gmra.mxu0 %v203
    %v6889 = vpop.f32.mrf.mxu0
    %v6890 = vadd.f32 0.0, %v6889
    %v6891 = vpop.f32.mrf.mxu0
    %6892 = vmatprep.mubr.f32.mxu0 0.0
    %6893 = vmatmul.mubr.f32.gmra.mxu0 %v206
    %v6894 = vpop.f32.mrf.mxu0
    %v6895 = vadd.f32 0.0, %v6894
    %v6896 = vpop.f32.mrf.mxu0
    %6897 = vmatprep.mubr.f32.mxu0 0.0
    %6898 = vmatmul.mubr.f32.gmra.mxu0 %v209
    %v6899 = vpop.f32.mrf.mxu0
    %v6900 = vadd.f32 0.0, %v6899
    %v6901 = vpop.f32.mrf.mxu0
    %6902 = vmatprep.mubr.f32.mxu0 0.0
    %6903 = vmatmul.mubr.f32.gmra.mxu0 %v212
    %v6904 = vpop.f32.mrf.mxu0
    %v6905 = vadd.f32 0.0, %v6904
    %v6906 = vpop.f32.mrf.mxu0
    %6907 = vdwg.mxu0
    %v6909 = vsel %vm165, %v6830, 0
    %v6912 = vsel %vm165, %v6835, 0
    %v6915 = vsel %vm165, %v6840, 0
    %v6918 = vsel %vm165, %v6845, 0
    %v6921 = vsel %vm165, %v6850, 0
    %v6924 = vsel %vm165, %v6855, 0
    %v6927 = vsel %vm165, %v6860, 0
    %v6930 = vsel %vm165, %v6865, 0
    %v6933 = vsel %vm165, %v6870, 0
    %v6936 = vsel %vm165, %v6875, 0
    %v6939 = vsel %vm165, %v6880, 0
    %v6942 = vsel %vm165, %v6885, 0
    %v6945 = vsel %vm165, %v6890, 0
    %v6948 = vsel %vm165, %v6895, 0
    %v6951 = vsel %vm165, %v6900, 0
    %v6954 = vsel %vm165, %v6905, 0
    %6956 = vmatprep.subr.mxu0 0.0
    %6957 = vmatpush1.msra.mxu0 0.0
    %6958 = vmatprep.subr.mxu0 0.0
    %6959 = vmatpush1.msra.mxu0 0.0
    %6960 = vmatprep.subr.mxu0 0.0
    %6961 = vmatpush1.msra.mxu0 0.0
    %6962 = vmatprep.subr.mxu0 0.0
    %6963 = vmatpush1.msra.mxu0 0.0
    %6964 = vmatprep.subr.mxu0 0.0
    %6965 = vmatpush1.msra.mxu0 0.0
    %6966 = vmatprep.subr.mxu0 0.0
    %6967 = vmatpush1.msra.mxu0 0.0
    %6968 = vmatprep.subr.mxu0 0.0
    %6969 = vmatpush1.msra.mxu0 0.0
    %6970 = vmatprep.subr.mxu0 0.0
    %6971 = vmatpush1.msra.mxu0 0.0
    %6972 = vmatprep.subr.mxu0 0.0
    %6973 = vmatpush1.msra.mxu0 0.0
    %6974 = vmatprep.subr.mxu0 0.0
    %6975 = vmatpush1.msra.mxu0 0.0
    %6976 = vmatprep.subr.mxu0 0.0
    %6977 = vmatpush1.msra.mxu0 0.0
    %6978 = vmatprep.subr.mxu0 0.0
    %6979 = vmatpush1.msra.mxu0 0.0
    %6980 = vmatprep.subr.mxu0 0.0
    %6981 = vmatpush1.msra.mxu0 0.0
    %6982 = vmatprep.subr.mxu0 0.0
    %6983 = vmatpush1.msra.mxu0 0.0
    %6984 = vmatprep.subr.mxu0 0.0
    %6985 = vmatpush1.msra.mxu0 0.0
    %6986 = vmatprep.subr.mxu0 0.0
    %6987 = vmatpush1.msra.mxu0 %v102
    %6988 = vmatprep.subr.mxu0 0.0
    %6989 = vmatpush2.msra.mxu0 0.0
    %6990 = vmatprep.subr.mxu0 0.0
    %6991 = vmatpush2.msra.mxu0 0.0
    %6992 = vmatprep.subr.mxu0 0.0
    %6993 = vmatpush2.msra.mxu0 0.0
    %6994 = vmatprep.subr.mxu0 0.0
    %6995 = vmatpush2.msra.mxu0 0.0
    %6996 = vmatprep.subr.mxu0 0.0
    %6997 = vmatpush2.msra.mxu0 0.0
    %6998 = vmatprep.subr.mxu0 0.0
    %6999 = vmatpush2.msra.mxu0 0.0
    %7000 = vmatprep.subr.mxu0 0.0
    %7001 = vmatpush2.msra.mxu0 0.0
    %7002 = vmatprep.subr.mxu0 0.0
    %7003 = vmatpush2.msra.mxu0 0.0
    %7004 = vmatprep.subr.mxu0 0.0
    %7005 = vmatpush2.msra.mxu0 0.0
    %7006 = vmatprep.subr.mxu0 0.0
    %7007 = vmatpush2.msra.mxu0 0.0
    %7008 = vmatprep.subr.mxu0 0.0
    %7009 = vmatpush2.msra.mxu0 0.0
    %7010 = vmatprep.subr.mxu0 0.0
    %7011 = vmatpush2.msra.mxu0 0.0
    %7012 = vmatprep.subr.mxu0 0.0
    %7013 = vmatpush2.msra.mxu0 0.0
    %7014 = vmatprep.subr.mxu0 0.0
    %7015 = vmatpush2.msra.mxu0 0.0
    %7016 = vmatprep.subr.mxu0 0.0
    %7017 = vmatpush2.msra.mxu0 0.0
    %7018 = vmatprep.subr.mxu0 0.0
    %7019 = vmatpush2.msra.mxu0 0.0
    %7020 = vmatprep.mubr.f32.mxu0 0.0
    %7021 = vmatmul.mubr.f32.gmra.mxu0 %v6909
    %v7022 = vpop.f32.mrf.mxu0
    %v7023 = vadd.f32 0.0, %v7022
    %v7024 = vpop.f32.mrf.mxu0
    %7025 = vmatprep.mubr.f32.mxu0 0.0
    %7026 = vmatmul.mubr.f32.gmra.mxu0 %v6912
    %v7027 = vpop.f32.mrf.mxu0
    %v7028 = vadd.f32 0.0, %v7027
    %v7029 = vpop.f32.mrf.mxu0
    %7030 = vmatprep.mubr.f32.mxu0 0.0
    %7031 = vmatmul.mubr.f32.gmra.mxu0 %v6915
    %v7032 = vpop.f32.mrf.mxu0
    %v7033 = vadd.f32 0.0, %v7032
    %v7034 = vpop.f32.mrf.mxu0
    %7035 = vmatprep.mubr.f32.mxu0 0.0
    %7036 = vmatmul.mubr.f32.gmra.mxu0 %v6918
    %v7037 = vpop.f32.mrf.mxu0
    %v7038 = vadd.f32 0.0, %v7037
    %v7039 = vpop.f32.mrf.mxu0
    %7040 = vmatprep.mubr.f32.mxu0 0.0
    %7041 = vmatmul.mubr.f32.gmra.mxu0 %v6921
    %v7042 = vpop.f32.mrf.mxu0
    %v7043 = vadd.f32 0.0, %v7042
    %v7044 = vpop.f32.mrf.mxu0
    %7045 = vmatprep.mubr.f32.mxu0 0.0
    %7046 = vmatmul.mubr.f32.gmra.mxu0 %v6924
    %v7047 = vpop.f32.mrf.mxu0
    %v7048 = vadd.f32 0.0, %v7047
    %v7049 = vpop.f32.mrf.mxu0
    %7050 = vmatprep.mubr.f32.mxu0 0.0
    %7051 = vmatmul.mubr.f32.gmra.mxu0 %v6927
    %v7052 = vpop.f32.mrf.mxu0
    %v7053 = vadd.f32 0.0, %v7052
    %v7054 = vpop.f32.mrf.mxu0
    %7055 = vmatprep.mubr.f32.mxu0 0.0
    %7056 = vmatmul.mubr.f32.gmra.mxu0 %v6930
    %v7057 = vpop.f32.mrf.mxu0
    %v7058 = vadd.f32 0.0, %v7057
    %v7059 = vpop.f32.mrf.mxu0
    %7060 = vmatprep.mubr.f32.mxu0 0.0
    %7061 = vmatmul.mubr.f32.gmra.mxu0 %v6933
    %v7062 = vpop.f32.mrf.mxu0
    %v7063 = vadd.f32 0.0, %v7062
    %v7064 = vpop.f32.mrf.mxu0
    %7065 = vmatprep.mubr.f32.mxu0 0.0
    %7066 = vmatmul.mubr.f32.gmra.mxu0 %v6936
    %v7067 = vpop.f32.mrf.mxu0
    %v7068 = vadd.f32 0.0, %v7067
    %v7069 = vpop.f32.mrf.mxu0
    %7070 = vmatprep.mubr.f32.mxu0 0.0
    %7071 = vmatmul.mubr.f32.gmra.mxu0 %v6939
    %v7072 = vpop.f32.mrf.mxu0
    %v7073 = vadd.f32 0.0, %v7072
    %v7074 = vpop.f32.mrf.mxu0
    %7075 = vmatprep.mubr.f32.mxu0 0.0
    %7076 = vmatmul.mubr.f32.gmra.mxu0 %v6942
    %v7077 = vpop.f32.mrf.mxu0
    %v7078 = vadd.f32 0.0, %v7077
    %v7079 = vpop.f32.mrf.mxu0
    %7080 = vmatprep.mubr.f32.mxu0 0.0
    %7081 = vmatmul.mubr.f32.gmra.mxu0 %v6945
    %v7082 = vpop.f32.mrf.mxu0
    %v7083 = vadd.f32 0.0, %v7082
    %v7084 = vpop.f32.mrf.mxu0
    %7085 = vmatprep.mubr.f32.mxu0 0.0
    %7086 = vmatmul.mubr.f32.gmra.mxu0 %v6948
    %v7087 = vpop.f32.mrf.mxu0
    %v7088 = vadd.f32 0.0, %v7087
    %v7089 = vpop.f32.mrf.mxu0
    %7090 = vmatprep.mubr.f32.mxu0 0.0
    %7091 = vmatmul.mubr.f32.gmra.mxu0 %v6951
    %v7092 = vpop.f32.mrf.mxu0
    %v7093 = vadd.f32 0.0, %v7092
    %v7094 = vpop.f32.mrf.mxu0
    %7095 = vmatprep.mubr.f32.mxu0 0.0
    %7096 = vmatmul.mubr.f32.gmra.mxu0 %v6954
    %v7097 = vpop.f32.mrf.mxu0
    %v7098 = vadd.f32 0.0, %v7097
    %v7099 = vpop.f32.mrf.mxu0
    %7100 = vdwg.mxu0
    %v7101 = vsel %vm940, %v7023, 0.0
    %v7102 = vsel %vm941, %v7028, 0.0
    %v7103 = vsel %vm942, %v7033, 0.0
    %v7104 = vsel %vm943, %v7038, 0.0
    %v7105 = vsel %vm944, %v7043, 0.0
    %v7106 = vsel %vm945, %v7048, 0.0
    %v7107 = vsel %vm946, %v7053, 0.0
    %v7108 = vsel %vm947, %v7058, 0.0
    %v7109 = vsel %vm948, %v7063, 0.0
    %v7110 = vsel %vm949, %v7068, 0.0
    %v7111 = vsel %vm950, %v7073, 0.0
    %v7112 = vsel %vm951, %v7078, 0.0
    %v7113 = vsel %vm952, %v7083, 0.0
    %v7114 = vsel %vm953, %v7088, 0.0
    %v7115 = vsel %vm954, %v7093, 0.0
    %v7116 = vsel %vm955, %v7098, 0.0
    %v7117 = vadd.f32 %v6745, %v7101
    %v7118 = vadd.f32 %v6746, %v7102
    %v7119 = vadd.f32 %v6747, %v7103
    %v7120 = vadd.f32 %v6748, %v7104
    %v7121 = vadd.f32 %v6749, %v7105
    %v7122 = vadd.f32 %v6750, %v7106
    %v7123 = vadd.f32 %v6751, %v7107
    %v7124 = vadd.f32 %v6752, %v7108
    %v7125 = vadd.f32 %v6753, %v7109
    %v7126 = vadd.f32 %v6754, %v7110
    %v7127 = vadd.f32 %v6755, %v7111
    %v7128 = vadd.f32 %v6756, %v7112
    %v7129 = vadd.f32 %v6757, %v7113
    %v7130 = vadd.f32 %v6758, %v7114
    %v7131 = vadd.f32 %v6759, %v7115
    %v7132 = vadd.f32 %v6760, %v7116
    %s7133 = scalar_lea.vmem %s6, 64
    %v7134 = vld [vmem:[%s7133] sm:$0xff]
    %7135 = vmatprep.subr.mxu0 0.0
    %7136 = vmatpush1.msra.mxu0 0.0
    %7137 = vmatprep.subr.mxu0 0.0
    %7138 = vmatpush1.msra.mxu0 0.0
    %7139 = vmatprep.subr.mxu0 0.0
    %7140 = vmatpush1.msra.mxu0 0.0
    %7141 = vmatprep.subr.mxu0 0.0
    %7142 = vmatpush1.msra.mxu0 0.0
    %7143 = vmatprep.subr.mxu0 0.0
    %7144 = vmatpush1.msra.mxu0 0.0
    %7145 = vmatprep.subr.mxu0 0.0
    %7146 = vmatpush1.msra.mxu0 0.0
    %7147 = vmatprep.subr.mxu0 0.0
    %7148 = vmatpush1.msra.mxu0 0.0
    %7149 = vmatprep.subr.mxu0 0.0
    %7150 = vmatpush1.msra.mxu0 0.0
    %7151 = vmatprep.subr.mxu0 0.0
    %7152 = vmatpush1.msra.mxu0 0.0
    %7153 = vmatprep.subr.mxu0 0.0
    %7154 = vmatpush1.msra.mxu0 0.0
    %7155 = vmatprep.subr.mxu0 0.0
    %7156 = vmatpush1.msra.mxu0 0.0
    %7157 = vmatprep.subr.mxu0 0.0
    %7158 = vmatpush1.msra.mxu0 0.0
    %7159 = vmatprep.subr.mxu0 0.0
    %7160 = vmatpush1.msra.mxu0 0.0
    %7161 = vmatprep.subr.mxu0 0.0
    %7162 = vmatpush1.msra.mxu0 0.0
    %7163 = vmatprep.subr.mxu0 0.0
    %7164 = vmatpush1.msra.mxu0 0.0
    %7165 = vmatprep.subr.mxu0 0.0
    %7166 = vmatpush1.msra.mxu0 %v7134
    %7167 = vmatprep.subr.mxu0 0.0
    %7168 = vmatpush2.msra.mxu0 0.0
    %7169 = vmatprep.subr.mxu0 0.0
    %7170 = vmatpush2.msra.mxu0 0.0
    %7171 = vmatprep.subr.mxu0 0.0
    %7172 = vmatpush2.msra.mxu0 0.0
    %7173 = vmatprep.subr.mxu0 0.0
    %7174 = vmatpush2.msra.mxu0 0.0
    %7175 = vmatprep.subr.mxu0 0.0
    %7176 = vmatpush2.msra.mxu0 0.0
    %7177 = vmatprep.subr.mxu0 0.0
    %7178 = vmatpush2.msra.mxu0 0.0
    %7179 = vmatprep.subr.mxu0 0.0
    %7180 = vmatpush2.msra.mxu0 0.0
    %7181 = vmatprep.subr.mxu0 0.0
    %7182 = vmatpush2.msra.mxu0 0.0
    %7183 = vmatprep.subr.mxu0 0.0
    %7184 = vmatpush2.msra.mxu0 0.0
    %7185 = vmatprep.subr.mxu0 0.0
    %7186 = vmatpush2.msra.mxu0 0.0
    %7187 = vmatprep.subr.mxu0 0.0
    %7188 = vmatpush2.msra.mxu0 0.0
    %7189 = vmatprep.subr.mxu0 0.0
    %7190 = vmatpush2.msra.mxu0 0.0
    %7191 = vmatprep.subr.mxu0 0.0
    %7192 = vmatpush2.msra.mxu0 0.0
    %7193 = vmatprep.subr.mxu0 0.0
    %7194 = vmatpush2.msra.mxu0 0.0
    %7195 = vmatprep.subr.mxu0 0.0
    %7196 = vmatpush2.msra.mxu0 0.0
    %7197 = vmatprep.subr.mxu0 0.0
    %7198 = vmatpush2.msra.mxu0 0.0
    %7199 = vmatprep.mubr.f32.mxu0 0.0
    %7200 = vmatmul.mubr.f32.gmra.mxu0 %v167
    %v7201 = vpop.f32.mrf.mxu0
    %v7202 = vadd.f32 0.0, %v7201
    %v7203 = vpop.f32.mrf.mxu0
    %7204 = vmatprep.mubr.f32.mxu0 0.0
    %7205 = vmatmul.mubr.f32.gmra.mxu0 %v170
    %v7206 = vpop.f32.mrf.mxu0
    %v7207 = vadd.f32 0.0, %v7206
    %v7208 = vpop.f32.mrf.mxu0
    %7209 = vmatprep.mubr.f32.mxu0 0.0
    %7210 = vmatmul.mubr.f32.gmra.mxu0 %v173
    %v7211 = vpop.f32.mrf.mxu0
    %v7212 = vadd.f32 0.0, %v7211
    %v7213 = vpop.f32.mrf.mxu0
    %7214 = vmatprep.mubr.f32.mxu0 0.0
    %7215 = vmatmul.mubr.f32.gmra.mxu0 %v176
    %v7216 = vpop.f32.mrf.mxu0
    %v7217 = vadd.f32 0.0, %v7216
    %v7218 = vpop.f32.mrf.mxu0
    %7219 = vmatprep.mubr.f32.mxu0 0.0
    %7220 = vmatmul.mubr.f32.gmra.mxu0 %v179
    %v7221 = vpop.f32.mrf.mxu0
    %v7222 = vadd.f32 0.0, %v7221
    %v7223 = vpop.f32.mrf.mxu0
    %7224 = vmatprep.mubr.f32.mxu0 0.0
    %7225 = vmatmul.mubr.f32.gmra.mxu0 %v182
    %v7226 = vpop.f32.mrf.mxu0
    %v7227 = vadd.f32 0.0, %v7226
    %v7228 = vpop.f32.mrf.mxu0
    %7229 = vmatprep.mubr.f32.mxu0 0.0
    %7230 = vmatmul.mubr.f32.gmra.mxu0 %v185
    %v7231 = vpop.f32.mrf.mxu0
    %v7232 = vadd.f32 0.0, %v7231
    %v7233 = vpop.f32.mrf.mxu0
    %7234 = vmatprep.mubr.f32.mxu0 0.0
    %7235 = vmatmul.mubr.f32.gmra.mxu0 %v188
    %v7236 = vpop.f32.mrf.mxu0
    %v7237 = vadd.f32 0.0, %v7236
    %v7238 = vpop.f32.mrf.mxu0
    %7239 = vmatprep.mubr.f32.mxu0 0.0
    %7240 = vmatmul.mubr.f32.gmra.mxu0 %v191
    %v7241 = vpop.f32.mrf.mxu0
    %v7242 = vadd.f32 0.0, %v7241
    %v7243 = vpop.f32.mrf.mxu0
    %7244 = vmatprep.mubr.f32.mxu0 0.0
    %7245 = vmatmul.mubr.f32.gmra.mxu0 %v194
    %v7246 = vpop.f32.mrf.mxu0
    %v7247 = vadd.f32 0.0, %v7246
    %v7248 = vpop.f32.mrf.mxu0
    %7249 = vmatprep.mubr.f32.mxu0 0.0
    %7250 = vmatmul.mubr.f32.gmra.mxu0 %v197
    %v7251 = vpop.f32.mrf.mxu0
    %v7252 = vadd.f32 0.0, %v7251
    %v7253 = vpop.f32.mrf.mxu0
    %7254 = vmatprep.mubr.f32.mxu0 0.0
    %7255 = vmatmul.mubr.f32.gmra.mxu0 %v200
    %v7256 = vpop.f32.mrf.mxu0
    %v7257 = vadd.f32 0.0, %v7256
    %v7258 = vpop.f32.mrf.mxu0
    %7259 = vmatprep.mubr.f32.mxu0 0.0
    %7260 = vmatmul.mubr.f32.gmra.mxu0 %v203
    %v7261 = vpop.f32.mrf.mxu0
    %v7262 = vadd.f32 0.0, %v7261
    %v7263 = vpop.f32.mrf.mxu0
    %7264 = vmatprep.mubr.f32.mxu0 0.0
    %7265 = vmatmul.mubr.f32.gmra.mxu0 %v206
    %v7266 = vpop.f32.mrf.mxu0
    %v7267 = vadd.f32 0.0, %v7266
    %v7268 = vpop.f32.mrf.mxu0
    %7269 = vmatprep.mubr.f32.mxu0 0.0
    %7270 = vmatmul.mubr.f32.gmra.mxu0 %v209
    %v7271 = vpop.f32.mrf.mxu0
    %v7272 = vadd.f32 0.0, %v7271
    %v7273 = vpop.f32.mrf.mxu0
    %7274 = vmatprep.mubr.f32.mxu0 0.0
    %7275 = vmatmul.mubr.f32.gmra.mxu0 %v212
    %v7276 = vpop.f32.mrf.mxu0
    %v7277 = vadd.f32 0.0, %v7276
    %v7278 = vpop.f32.mrf.mxu0
    %7279 = vdwg.mxu0
    %v7281 = vsel %vm165, %v7202, 0
    %v7284 = vsel %vm165, %v7207, 0
    %v7287 = vsel %vm165, %v7212, 0
    %v7290 = vsel %vm165, %v7217, 0
    %v7293 = vsel %vm165, %v7222, 0
    %v7296 = vsel %vm165, %v7227, 0
    %v7299 = vsel %vm165, %v7232, 0
    %v7302 = vsel %vm165, %v7237, 0
    %v7305 = vsel %vm165, %v7242, 0
    %v7308 = vsel %vm165, %v7247, 0
    %v7311 = vsel %vm165, %v7252, 0
    %v7314 = vsel %vm165, %v7257, 0
    %v7317 = vsel %vm165, %v7262, 0
    %v7320 = vsel %vm165, %v7267, 0
    %v7323 = vsel %vm165, %v7272, 0
    %v7326 = vsel %vm165, %v7277, 0
    %7328 = vmatprep.subr.mxu0 0.0
    %7329 = vmatpush1.msra.mxu0 0.0
    %7330 = vmatprep.subr.mxu0 0.0
    %7331 = vmatpush1.msra.mxu0 0.0
    %7332 = vmatprep.subr.mxu0 0.0
    %7333 = vmatpush1.msra.mxu0 0.0
    %7334 = vmatprep.subr.mxu0 0.0
    %7335 = vmatpush1.msra.mxu0 0.0
    %7336 = vmatprep.subr.mxu0 0.0
    %7337 = vmatpush1.msra.mxu0 0.0
    %7338 = vmatprep.subr.mxu0 0.0
    %7339 = vmatpush1.msra.mxu0 0.0
    %7340 = vmatprep.subr.mxu0 0.0
    %7341 = vmatpush1.msra.mxu0 0.0
    %7342 = vmatprep.subr.mxu0 0.0
    %7343 = vmatpush1.msra.mxu0 0.0
    %7344 = vmatprep.subr.mxu0 0.0
    %7345 = vmatpush1.msra.mxu0 0.0
    %7346 = vmatprep.subr.mxu0 0.0
    %7347 = vmatpush1.msra.mxu0 0.0
    %7348 = vmatprep.subr.mxu0 0.0
    %7349 = vmatpush1.msra.mxu0 0.0
    %7350 = vmatprep.subr.mxu0 0.0
    %7351 = vmatpush1.msra.mxu0 0.0
    %7352 = vmatprep.subr.mxu0 0.0
    %7353 = vmatpush1.msra.mxu0 0.0
    %7354 = vmatprep.subr.mxu0 0.0
    %7355 = vmatpush1.msra.mxu0 0.0
    %7356 = vmatprep.subr.mxu0 0.0
    %7357 = vmatpush1.msra.mxu0 0.0
    %7358 = vmatprep.subr.mxu0 0.0
    %7359 = vmatpush1.msra.mxu0 %v102
    %7360 = vmatprep.subr.mxu0 0.0
    %7361 = vmatpush2.msra.mxu0 0.0
    %7362 = vmatprep.subr.mxu0 0.0
    %7363 = vmatpush2.msra.mxu0 0.0
    %7364 = vmatprep.subr.mxu0 0.0
    %7365 = vmatpush2.msra.mxu0 0.0
    %7366 = vmatprep.subr.mxu0 0.0
    %7367 = vmatpush2.msra.mxu0 0.0
    %7368 = vmatprep.subr.mxu0 0.0
    %7369 = vmatpush2.msra.mxu0 0.0
    %7370 = vmatprep.subr.mxu0 0.0
    %7371 = vmatpush2.msra.mxu0 0.0
    %7372 = vmatprep.subr.mxu0 0.0
    %7373 = vmatpush2.msra.mxu0 0.0
    %7374 = vmatprep.subr.mxu0 0.0
    %7375 = vmatpush2.msra.mxu0 0.0
    %7376 = vmatprep.subr.mxu0 0.0
    %7377 = vmatpush2.msra.mxu0 0.0
    %7378 = vmatprep.subr.mxu0 0.0
    %7379 = vmatpush2.msra.mxu0 0.0
    %7380 = vmatprep.subr.mxu0 0.0
    %7381 = vmatpush2.msra.mxu0 0.0
    %7382 = vmatprep.subr.mxu0 0.0
    %7383 = vmatpush2.msra.mxu0 0.0
    %7384 = vmatprep.subr.mxu0 0.0
    %7385 = vmatpush2.msra.mxu0 0.0
    %7386 = vmatprep.subr.mxu0 0.0
    %7387 = vmatpush2.msra.mxu0 0.0
    %7388 = vmatprep.subr.mxu0 0.0
    %7389 = vmatpush2.msra.mxu0 0.0
    %7390 = vmatprep.subr.mxu0 0.0
    %7391 = vmatpush2.msra.mxu0 0.0
    %7392 = vmatprep.mubr.f32.mxu0 0.0
    %7393 = vmatmul.mubr.f32.gmra.mxu0 %v7281
    %v7394 = vpop.f32.mrf.mxu0
    %v7395 = vadd.f32 0.0, %v7394
    %v7396 = vpop.f32.mrf.mxu0
    %7397 = vmatprep.mubr.f32.mxu0 0.0
    %7398 = vmatmul.mubr.f32.gmra.mxu0 %v7284
    %v7399 = vpop.f32.mrf.mxu0
    %v7400 = vadd.f32 0.0, %v7399
    %v7401 = vpop.f32.mrf.mxu0
    %7402 = vmatprep.mubr.f32.mxu0 0.0
    %7403 = vmatmul.mubr.f32.gmra.mxu0 %v7287
    %v7404 = vpop.f32.mrf.mxu0
    %v7405 = vadd.f32 0.0, %v7404
    %v7406 = vpop.f32.mrf.mxu0
    %7407 = vmatprep.mubr.f32.mxu0 0.0
    %7408 = vmatmul.mubr.f32.gmra.mxu0 %v7290
    %v7409 = vpop.f32.mrf.mxu0
    %v7410 = vadd.f32 0.0, %v7409
    %v7411 = vpop.f32.mrf.mxu0
    %7412 = vmatprep.mubr.f32.mxu0 0.0
    %7413 = vmatmul.mubr.f32.gmra.mxu0 %v7293
    %v7414 = vpop.f32.mrf.mxu0
    %v7415 = vadd.f32 0.0, %v7414
    %v7416 = vpop.f32.mrf.mxu0
    %7417 = vmatprep.mubr.f32.mxu0 0.0
    %7418 = vmatmul.mubr.f32.gmra.mxu0 %v7296
    %v7419 = vpop.f32.mrf.mxu0
    %v7420 = vadd.f32 0.0, %v7419
    %v7421 = vpop.f32.mrf.mxu0
    %7422 = vmatprep.mubr.f32.mxu0 0.0
    %7423 = vmatmul.mubr.f32.gmra.mxu0 %v7299
    %v7424 = vpop.f32.mrf.mxu0
    %v7425 = vadd.f32 0.0, %v7424
    %v7426 = vpop.f32.mrf.mxu0
    %7427 = vmatprep.mubr.f32.mxu0 0.0
    %7428 = vmatmul.mubr.f32.gmra.mxu0 %v7302
    %v7429 = vpop.f32.mrf.mxu0
    %v7430 = vadd.f32 0.0, %v7429
    %v7431 = vpop.f32.mrf.mxu0
    %7432 = vmatprep.mubr.f32.mxu0 0.0
    %7433 = vmatmul.mubr.f32.gmra.mxu0 %v7305
    %v7434 = vpop.f32.mrf.mxu0
    %v7435 = vadd.f32 0.0, %v7434
    %v7436 = vpop.f32.mrf.mxu0
    %7437 = vmatprep.mubr.f32.mxu0 0.0
    %7438 = vmatmul.mubr.f32.gmra.mxu0 %v7308
    %v7439 = vpop.f32.mrf.mxu0
    %v7440 = vadd.f32 0.0, %v7439
    %v7441 = vpop.f32.mrf.mxu0
    %7442 = vmatprep.mubr.f32.mxu0 0.0
    %7443 = vmatmul.mubr.f32.gmra.mxu0 %v7311
    %v7444 = vpop.f32.mrf.mxu0
    %v7445 = vadd.f32 0.0, %v7444
    %v7446 = vpop.f32.mrf.mxu0
    %7447 = vmatprep.mubr.f32.mxu0 0.0
    %7448 = vmatmul.mubr.f32.gmra.mxu0 %v7314
    %v7449 = vpop.f32.mrf.mxu0
    %v7450 = vadd.f32 0.0, %v7449
    %v7451 = vpop.f32.mrf.mxu0
    %7452 = vmatprep.mubr.f32.mxu0 0.0
    %7453 = vmatmul.mubr.f32.gmra.mxu0 %v7317
    %v7454 = vpop.f32.mrf.mxu0
    %v7455 = vadd.f32 0.0, %v7454
    %v7456 = vpop.f32.mrf.mxu0
    %7457 = vmatprep.mubr.f32.mxu0 0.0
    %7458 = vmatmul.mubr.f32.gmra.mxu0 %v7320
    %v7459 = vpop.f32.mrf.mxu0
    %v7460 = vadd.f32 0.0, %v7459
    %v7461 = vpop.f32.mrf.mxu0
    %7462 = vmatprep.mubr.f32.mxu0 0.0
    %7463 = vmatmul.mubr.f32.gmra.mxu0 %v7323
    %v7464 = vpop.f32.mrf.mxu0
    %v7465 = vadd.f32 0.0, %v7464
    %v7466 = vpop.f32.mrf.mxu0
    %7467 = vmatprep.mubr.f32.mxu0 0.0
    %7468 = vmatmul.mubr.f32.gmra.mxu0 %v7326
    %v7469 = vpop.f32.mrf.mxu0
    %v7470 = vadd.f32 0.0, %v7469
    %v7471 = vpop.f32.mrf.mxu0
    %7472 = vdwg.mxu0
    %v7473 = vsel %vm1328, %v7395, 0.0
    %v7474 = vsel %vm1329, %v7400, 0.0
    %v7475 = vsel %vm1330, %v7405, 0.0
    %v7476 = vsel %vm1331, %v7410, 0.0
    %v7477 = vsel %vm1332, %v7415, 0.0
    %v7478 = vsel %vm1333, %v7420, 0.0
    %v7479 = vsel %vm1334, %v7425, 0.0
    %v7480 = vsel %vm1335, %v7430, 0.0
    %v7481 = vsel %vm1336, %v7435, 0.0
    %v7482 = vsel %vm1337, %v7440, 0.0
    %v7483 = vsel %vm1338, %v7445, 0.0
    %v7484 = vsel %vm1339, %v7450, 0.0
    %v7485 = vsel %vm1340, %v7455, 0.0
    %v7486 = vsel %vm1341, %v7460, 0.0
    %v7487 = vsel %vm1342, %v7465, 0.0
    %v7488 = vsel %vm1343, %v7470, 0.0
    %v7489 = vadd.f32 %v7117, %v7473
    %v7490 = vadd.f32 %v7118, %v7474
    %v7491 = vadd.f32 %v7119, %v7475
    %v7492 = vadd.f32 %v7120, %v7476
    %v7493 = vadd.f32 %v7121, %v7477
    %v7494 = vadd.f32 %v7122, %v7478
    %v7495 = vadd.f32 %v7123, %v7479
    %v7496 = vadd.f32 %v7124, %v7480
    %v7497 = vadd.f32 %v7125, %v7481
    %v7498 = vadd.f32 %v7126, %v7482
    %v7499 = vadd.f32 %v7127, %v7483
    %v7500 = vadd.f32 %v7128, %v7484
    %v7501 = vadd.f32 %v7129, %v7485
    %v7502 = vadd.f32 %v7130, %v7486
    %v7503 = vadd.f32 %v7131, %v7487
    %v7504 = vadd.f32 %v7132, %v7488
    %v7505 = vrot.slane %v4154, 7
    %v7506 = vrot.slane %v4155, 7
    %v7507 = vrot.slane %v4156, 7
    %v7508 = vrot.slane %v4157, 7
    %v7509 = vsel %vm3612, %v7507, %v7508
    %v7510 = vsel %vm3612, %v7506, %v7507
    %v7511 = vsel %vm3612, %v7505, %v7506
    %v7512 = vsel %vm3612, %v7508, %v7505
    %v7513 = vmul.f32 %v7512, %v3620
    %v7514 = vmul.f32 %v7511, %v3625
    %v7515 = vmul.f32 %v7510, %v3630
    %v7516 = vmul.f32 %v7509, %v3635
    %v7517 = vrot.slane %v4154, 1
    %v7518 = vrot.slane %v4155, 1
    %v7519 = vrot.slane %v4156, 1
    %v7520 = vrot.slane %v4157, 1
    %v7521 = vsel %vm3645, %v7519, %v7520
    %v7522 = vsel %vm3645, %v7518, %v7519
    %v7523 = vsel %vm3645, %v7517, %v7518
    %v7524 = vsel %vm3645, %v7520, %v7517
    %v7525 = vmul.f32 %v7523, %v3653
    %v7526 = vmul.f32 %v7522, %v3658
    %v7527 = vmul.f32 %v7521, %v3663
    %v7528 = vmul.f32 %v7524, %v3668
    %7529 = vmatprep.subr.mxu0 0.0
    %7530 = vmatpush1.msra.mxu0 %v6388
    %7531 = vmatprep.subr.mxu0 0.0
    %7532 = vmatpush1.msra.mxu0 %v6387
    %7533 = vmatprep.subr.mxu0 0.0
    %7534 = vmatpush1.msra.mxu0 %v6386
    %7535 = vmatprep.subr.mxu0 0.0
    %7536 = vmatpush1.msra.mxu0 %v6385
    %7537 = vmatprep.subr.mxu0 0.0
    %7538 = vmatpush1.msra.mxu0 %v6384
    %7539 = vmatprep.subr.mxu0 0.0
    %7540 = vmatpush1.msra.mxu0 %v6383
    %7541 = vmatprep.subr.mxu0 0.0
    %7542 = vmatpush1.msra.mxu0 %v6382
    %7543 = vmatprep.subr.mxu0 0.0
    %7544 = vmatpush1.msra.mxu0 %v6381
    %7545 = vmatprep.subr.mxu0 0.0
    %7546 = vmatpush1.msra.mxu0 %v6380
    %7547 = vmatprep.subr.mxu0 0.0
    %7548 = vmatpush1.msra.mxu0 %v6379
    %7549 = vmatprep.subr.mxu0 0.0
    %7550 = vmatpush1.msra.mxu0 %v6378
    %7551 = vmatprep.subr.mxu0 0.0
    %7552 = vmatpush1.msra.mxu0 %v6377
    %7553 = vmatprep.subr.mxu0 0.0
    %7554 = vmatpush1.msra.mxu0 %v6376
    %7555 = vmatprep.subr.mxu0 0.0
    %7556 = vmatpush1.msra.mxu0 %v6375
    %7557 = vmatprep.subr.mxu0 0.0
    %7558 = vmatpush1.msra.mxu0 %v6374
    %7559 = vmatprep.subr.mxu0 0.0
    %7560 = vmatpush1.msra.mxu0 %v6373
    %7561 = vmatprep.subr.mxu0 0.0
    %7562 = vmatpush2.msra.mxu0 0.0
    %7563 = vmatprep.subr.mxu0 0.0
    %7564 = vmatpush2.msra.mxu0 0.0
    %7565 = vmatprep.subr.mxu0 0.0
    %7566 = vmatpush2.msra.mxu0 0.0
    %7567 = vmatprep.subr.mxu0 0.0
    %7568 = vmatpush2.msra.mxu0 0.0
    %7569 = vmatprep.subr.mxu0 0.0
    %7570 = vmatpush2.msra.mxu0 0.0
    %7571 = vmatprep.subr.mxu0 0.0
    %7572 = vmatpush2.msra.mxu0 0.0
    %7573 = vmatprep.subr.mxu0 0.0
    %7574 = vmatpush2.msra.mxu0 0.0
    %7575 = vmatprep.subr.mxu0 0.0
    %7576 = vmatpush2.msra.mxu0 0.0
    %7577 = vmatprep.subr.mxu0 0.0
    %7578 = vmatpush2.msra.mxu0 0.0
    %7579 = vmatprep.subr.mxu0 0.0
    %7580 = vmatpush2.msra.mxu0 0.0
    %7581 = vmatprep.subr.mxu0 0.0
    %7582 = vmatpush2.msra.mxu0 0.0
    %7583 = vmatprep.subr.mxu0 0.0
    %7584 = vmatpush2.msra.mxu0 0.0
    %7585 = vmatprep.subr.mxu0 0.0
    %7586 = vmatpush2.msra.mxu0 0.0
    %7587 = vmatprep.subr.mxu0 0.0
    %7588 = vmatpush2.msra.mxu0 0.0
    %7589 = vmatprep.subr.mxu0 0.0
    %7590 = vmatpush2.msra.mxu0 0.0
    %7591 = vmatprep.subr.mxu0 0.0
    %7592 = vmatpush2.msra.mxu0 0.0
    %7593 = vmatprep.mubr.f32.mxu0 0.0
    %7594 = vmatmul.mubr.f32.gmra.mxu0 %v4154
    %v7595 = vpop.f32.mrf.mxu0
    %v7596 = vadd.f32 0.0, %v7595
    %v7597 = vpop.f32.mrf.mxu0
    %7598 = vmatprep.mubr.f32.mxu0 0.0
    %7599 = vmatmul.mubr.f32.gmra.mxu0 %v4155
    %v7600 = vpop.f32.mrf.mxu0
    %v7601 = vadd.f32 0.0, %v7600
    %v7602 = vpop.f32.mrf.mxu0
    %7603 = vmatprep.mubr.f32.mxu0 0.0
    %7604 = vmatmul.mubr.f32.gmra.mxu0 %v4156
    %v7605 = vpop.f32.mrf.mxu0
    %v7606 = vadd.f32 0.0, %v7605
    %v7607 = vpop.f32.mrf.mxu0
    %7608 = vmatprep.mubr.f32.mxu0 0.0
    %7609 = vmatmul.mubr.f32.gmra.mxu0 %v4157
    %v7610 = vpop.f32.mrf.mxu0
    %v7611 = vadd.f32 0.0, %v7610
    %v7612 = vpop.f32.mrf.mxu0
    %7613 = vdwg.mxu0
    %7614 = vmatprep.subr.mxu0 0.0
    %7615 = vmatpush1.msra.mxu0 %v5272
    %7616 = vmatprep.subr.mxu0 0.0
    %7617 = vmatpush1.msra.mxu0 %v5271
    %7618 = vmatprep.subr.mxu0 0.0
    %7619 = vmatpush1.msra.mxu0 %v5270
    %7620 = vmatprep.subr.mxu0 0.0
    %7621 = vmatpush1.msra.mxu0 %v5269
    %7622 = vmatprep.subr.mxu0 0.0
    %7623 = vmatpush1.msra.mxu0 %v5268
    %7624 = vmatprep.subr.mxu0 0.0
    %7625 = vmatpush1.msra.mxu0 %v5267
    %7626 = vmatprep.subr.mxu0 0.0
    %7627 = vmatpush1.msra.mxu0 %v5266
    %7628 = vmatprep.subr.mxu0 0.0
    %7629 = vmatpush1.msra.mxu0 %v5265
    %7630 = vmatprep.subr.mxu0 0.0
    %7631 = vmatpush1.msra.mxu0 %v5264
    %7632 = vmatprep.subr.mxu0 0.0
    %7633 = vmatpush1.msra.mxu0 %v5263
    %7634 = vmatprep.subr.mxu0 0.0
    %7635 = vmatpush1.msra.mxu0 %v5262
    %7636 = vmatprep.subr.mxu0 0.0
    %7637 = vmatpush1.msra.mxu0 %v5261
    %7638 = vmatprep.subr.mxu0 0.0
    %7639 = vmatpush1.msra.mxu0 %v5260
    %7640 = vmatprep.subr.mxu0 0.0
    %7641 = vmatpush1.msra.mxu0 %v5259
    %7642 = vmatprep.subr.mxu0 0.0
    %7643 = vmatpush1.msra.mxu0 %v5258
    %7644 = vmatprep.subr.mxu0 0.0
    %7645 = vmatpush1.msra.mxu0 %v5257
    %7646 = vmatprep.subr.mxu0 0.0
    %7647 = vmatpush2.msra.mxu0 0.0
    %7648 = vmatprep.subr.mxu0 0.0
    %7649 = vmatpush2.msra.mxu0 0.0
    %7650 = vmatprep.subr.mxu0 0.0
    %7651 = vmatpush2.msra.mxu0 0.0
    %7652 = vmatprep.subr.mxu0 0.0
    %7653 = vmatpush2.msra.mxu0 0.0
    %7654 = vmatprep.subr.mxu0 0.0
    %7655 = vmatpush2.msra.mxu0 0.0
    %7656 = vmatprep.subr.mxu0 0.0
    %7657 = vmatpush2.msra.mxu0 0.0
    %7658 = vmatprep.subr.mxu0 0.0
    %7659 = vmatpush2.msra.mxu0 0.0
    %7660 = vmatprep.subr.mxu0 0.0
    %7661 = vmatpush2.msra.mxu0 0.0
    %7662 = vmatprep.subr.mxu0 0.0
    %7663 = vmatpush2.msra.mxu0 0.0
    %7664 = vmatprep.subr.mxu0 0.0
    %7665 = vmatpush2.msra.mxu0 0.0
    %7666 = vmatprep.subr.mxu0 0.0
    %7667 = vmatpush2.msra.mxu0 0.0
    %7668 = vmatprep.subr.mxu0 0.0
    %7669 = vmatpush2.msra.mxu0 0.0
    %7670 = vmatprep.subr.mxu0 0.0
    %7671 = vmatpush2.msra.mxu0 0.0
    %7672 = vmatprep.subr.mxu0 0.0
    %7673 = vmatpush2.msra.mxu0 0.0
    %7674 = vmatprep.subr.mxu0 0.0
    %7675 = vmatpush2.msra.mxu0 0.0
    %7676 = vmatprep.subr.mxu0 0.0
    %7677 = vmatpush2.msra.mxu0 0.0
    %7678 = vmatprep.mubr.f32.mxu0 0.0
    %7679 = vmatmul.mubr.f32.gmra.mxu0 %v7513
    %v7680 = vpop.f32.mrf.mxu0
    %v7681 = vadd.f32 %v7596, %v7680
    %v7682 = vpop.f32.mrf.mxu0
    %7683 = vmatprep.mubr.f32.mxu0 0.0
    %7684 = vmatmul.mubr.f32.gmra.mxu0 %v7514
    %v7685 = vpop.f32.mrf.mxu0
    %v7686 = vadd.f32 %v7601, %v7685
    %v7687 = vpop.f32.mrf.mxu0
    %7688 = vmatprep.mubr.f32.mxu0 0.0
    %7689 = vmatmul.mubr.f32.gmra.mxu0 %v7515
    %v7690 = vpop.f32.mrf.mxu0
    %v7691 = vadd.f32 %v7606, %v7690
    %v7692 = vpop.f32.mrf.mxu0
    %7693 = vmatprep.mubr.f32.mxu0 0.0
    %7694 = vmatmul.mubr.f32.gmra.mxu0 %v7516
    %v7695 = vpop.f32.mrf.mxu0
    %v7696 = vadd.f32 %v7611, %v7695
    %v7697 = vpop.f32.mrf.mxu0
    %7698 = vdwg.mxu0
    %7699 = vmatprep.subr.mxu0 0.0
    %7700 = vmatpush1.msra.mxu0 %v7504
    %7701 = vmatprep.subr.mxu0 0.0
    %7702 = vmatpush1.msra.mxu0 %v7503
    %7703 = vmatprep.subr.mxu0 0.0
    %7704 = vmatpush1.msra.mxu0 %v7502
    %7705 = vmatprep.subr.mxu0 0.0
    %7706 = vmatpush1.msra.mxu0 %v7501
    %7707 = vmatprep.subr.mxu0 0.0
    %7708 = vmatpush1.msra.mxu0 %v7500
    %7709 = vmatprep.subr.mxu0 0.0
    %7710 = vmatpush1.msra.mxu0 %v7499
    %7711 = vmatprep.subr.mxu0 0.0
    %7712 = vmatpush1.msra.mxu0 %v7498
    %7713 = vmatprep.subr.mxu0 0.0
    %7714 = vmatpush1.msra.mxu0 %v7497
    %7715 = vmatprep.subr.mxu0 0.0
    %7716 = vmatpush1.msra.mxu0 %v7496
    %7717 = vmatprep.subr.mxu0 0.0
    %7718 = vmatpush1.msra.mxu0 %v7495
    %7719 = vmatprep.subr.mxu0 0.0
    %7720 = vmatpush1.msra.mxu0 %v7494
    %7721 = vmatprep.subr.mxu0 0.0
    %7722 = vmatpush1.msra.mxu0 %v7493
    %7723 = vmatprep.subr.mxu0 0.0
    %7724 = vmatpush1.msra.mxu0 %v7492
    %7725 = vmatprep.subr.mxu0 0.0
    %7726 = vmatpush1.msra.mxu0 %v7491
    %7727 = vmatprep.subr.mxu0 0.0
    %7728 = vmatpush1.msra.mxu0 %v7490
    %7729 = vmatprep.subr.mxu0 0.0
    %7730 = vmatpush1.msra.mxu0 %v7489
    %7731 = vmatprep.subr.mxu0 0.0
    %7732 = vmatpush2.msra.mxu0 0.0
    %7733 = vmatprep.subr.mxu0 0.0
    %7734 = vmatpush2.msra.mxu0 0.0
    %7735 = vmatprep.subr.mxu0 0.0
    %7736 = vmatpush2.msra.mxu0 0.0
    %7737 = vmatprep.subr.mxu0 0.0
    %7738 = vmatpush2.msra.mxu0 0.0
    %7739 = vmatprep.subr.mxu0 0.0
    %7740 = vmatpush2.msra.mxu0 0.0
    %7741 = vmatprep.subr.mxu0 0.0
    %7742 = vmatpush2.msra.mxu0 0.0
    %7743 = vmatprep.subr.mxu0 0.0
    %7744 = vmatpush2.msra.mxu0 0.0
    %7745 = vmatprep.subr.mxu0 0.0
    %7746 = vmatpush2.msra.mxu0 0.0
    %7747 = vmatprep.subr.mxu0 0.0
    %7748 = vmatpush2.msra.mxu0 0.0
    %7749 = vmatprep.subr.mxu0 0.0
    %7750 = vmatpush2.msra.mxu0 0.0
    %7751 = vmatprep.subr.mxu0 0.0
    %7752 = vmatpush2.msra.mxu0 0.0
    %7753 = vmatprep.subr.mxu0 0.0
    %7754 = vmatpush2.msra.mxu0 0.0
    %7755 = vmatprep.subr.mxu0 0.0
    %7756 = vmatpush2.msra.mxu0 0.0
    %7757 = vmatprep.subr.mxu0 0.0
    %7758 = vmatpush2.msra.mxu0 0.0
    %7759 = vmatprep.subr.mxu0 0.0
    %7760 = vmatpush2.msra.mxu0 0.0
    %7761 = vmatprep.subr.mxu0 0.0
    %7762 = vmatpush2.msra.mxu0 0.0
    %7763 = vmatprep.mubr.f32.mxu0 0.0
    %7764 = vmatmul.mubr.f32.gmra.mxu0 %v7525
    %v7765 = vpop.f32.mrf.mxu0
    %v7766 = vadd.f32 0.0, %v7765
    %v7767 = vpop.f32.mrf.mxu0
    %7768 = vmatprep.mubr.f32.mxu0 0.0
    %7769 = vmatmul.mubr.f32.gmra.mxu0 %v7526
    %v7770 = vpop.f32.mrf.mxu0
    %v7771 = vadd.f32 0.0, %v7770
    %v7772 = vpop.f32.mrf.mxu0
    %7773 = vmatprep.mubr.f32.mxu0 0.0
    %7774 = vmatmul.mubr.f32.gmra.mxu0 %v7527
    %v7775 = vpop.f32.mrf.mxu0
    %v7776 = vadd.f32 0.0, %v7775
    %v7777 = vpop.f32.mrf.mxu0
    %7778 = vmatprep.mubr.f32.mxu0 0.0
    %7779 = vmatmul.mubr.f32.gmra.mxu0 %v7528
    %v7780 = vpop.f32.mrf.mxu0
    %v7781 = vadd.f32 0.0, %v7780
    %v7782 = vpop.f32.mrf.mxu0
    %7783 = vdwg.mxu0
    %v7784 = vadd.f32 %v7681, %v7766
    %v7785 = vadd.f32 %v7686, %v7771
    %v7786 = vadd.f32 %v7691, %v7776
    %v7787 = vadd.f32 %v7696, %v7781
    %v7788 = vadd.f32 %v7784, %v7785
    %v7789 = vadd.f32 %v7788, %v7786
    %v7790 = vadd.f32 %v7789, %v7787
    %v7791 = vrot.slane %v7790, 4
    %v7792 = vadd.f32 %v7790, %v7791
    %v7793 = vrot.slane %v7792, 2
    %v7794 = vadd.f32 %v7792, %v7793
    %v7795 = vrot.slane %v7794, 1
    %v7796 = vadd.f32 %v7794, %v7795
    %v7797 = vmul.f32 %v7784, %v7784
    %v7798 = vmul.f32 %v7785, %v7785
    %v7799 = vmul.f32 %v7786, %v7786
    %v7800 = vmul.f32 %v7787, %v7787
    %v7801 = vadd.f32 %v7797, %v7798
    %v7802 = vadd.f32 %v7801, %v7799
    %v7803 = vadd.f32 %v7802, %v7800
    %v7804 = vrot.slane %v7803, 4
    %v7805 = vadd.f32 %v7803, %v7804
    %v7806 = vrot.slane %v7805, 2
    %v7807 = vadd.f32 %v7805, %v7806
    %v7808 = vrot.slane %v7807, 1
    %v7809 = vadd.f32 %v7807, %v7808
    %v7810 = vsel %vm3955, %v7796, %v7809
    %7811 = vmatprep.subr.mxu0 0.0
    %7812 = vmatpush1.msra.mxu0 %v99
    %7813 = vmatprep.subr.mxu0 0.0
    %7814 = vmatpush1.msra.mxu0 %v98
    %7815 = vmatprep.subr.mxu0 0.0
    %7816 = vmatpush1.msra.mxu0 %v97
    %7817 = vmatprep.subr.mxu0 0.0
    %7818 = vmatpush1.msra.mxu0 %v96
    %7819 = vmatprep.subr.mxu0 0.0
    %7820 = vmatpush1.msra.mxu0 %v95
    %7821 = vmatprep.subr.mxu0 0.0
    %7822 = vmatpush1.msra.mxu0 %v94
    %7823 = vmatprep.subr.mxu0 0.0
    %7824 = vmatpush1.msra.mxu0 %v93
    %7825 = vmatprep.subr.mxu0 0.0
    %7826 = vmatpush1.msra.mxu0 %v92
    %7827 = vmatprep.subr.mxu0 0.0
    %7828 = vmatpush1.msra.mxu0 %v91
    %7829 = vmatprep.subr.mxu0 0.0
    %7830 = vmatpush1.msra.mxu0 %v90
    %7831 = vmatprep.subr.mxu0 0.0
    %7832 = vmatpush1.msra.mxu0 %v89
    %7833 = vmatprep.subr.mxu0 0.0
    %7834 = vmatpush1.msra.mxu0 %v88
    %7835 = vmatprep.subr.mxu0 0.0
    %7836 = vmatpush1.msra.mxu0 %v87
    %7837 = vmatprep.subr.mxu0 0.0
    %7838 = vmatpush1.msra.mxu0 %v86
    %7839 = vmatprep.subr.mxu0 0.0
    %7840 = vmatpush1.msra.mxu0 %v85
    %7841 = vmatprep.subr.mxu0 0.0
    %7842 = vmatpush1.msra.mxu0 %v84
    %7843 = vmatprep.subr.mxu0 0.0
    %7844 = vmatpush2.msra.mxu0 0.0
    %7845 = vmatprep.subr.mxu0 0.0
    %7846 = vmatpush2.msra.mxu0 0.0
    %7847 = vmatprep.subr.mxu0 0.0
    %7848 = vmatpush2.msra.mxu0 0.0
    %7849 = vmatprep.subr.mxu0 0.0
    %7850 = vmatpush2.msra.mxu0 0.0
    %7851 = vmatprep.subr.mxu0 0.0
    %7852 = vmatpush2.msra.mxu0 0.0
    %7853 = vmatprep.subr.mxu0 0.0
    %7854 = vmatpush2.msra.mxu0 0.0
    %7855 = vmatprep.subr.mxu0 0.0
    %7856 = vmatpush2.msra.mxu0 0.0
    %7857 = vmatprep.subr.mxu0 0.0
    %7858 = vmatpush2.msra.mxu0 0.0
    %7859 = vmatprep.subr.mxu0 0.0
    %7860 = vmatpush2.msra.mxu0 0.0
    %7861 = vmatprep.subr.mxu0 0.0
    %7862 = vmatpush2.msra.mxu0 0.0
    %7863 = vmatprep.subr.mxu0 0.0
    %7864 = vmatpush2.msra.mxu0 0.0
    %7865 = vmatprep.subr.mxu0 0.0
    %7866 = vmatpush2.msra.mxu0 0.0
    %7867 = vmatprep.subr.mxu0 0.0
    %7868 = vmatpush2.msra.mxu0 0.0
    %7869 = vmatprep.subr.mxu0 0.0
    %7870 = vmatpush2.msra.mxu0 0.0
    %7871 = vmatprep.subr.mxu0 0.0
    %7872 = vmatpush2.msra.mxu0 0.0
    %7873 = vmatprep.subr.mxu0 0.0
    %7874 = vmatpush2.msra.mxu0 0.0
    %7875 = vmatprep.mubr.f32.mxu0 0.0
    %7876 = vmatmul.mubr.f32.gmra.mxu0 %v7810
    %v7877 = vpop.f32.mrf.mxu0
    %v7878 = vadd.f32 0.0, %v7877
    %v7879 = vpop.f32.mrf.mxu0
    %7880 = vdwg.mxu0
    %v7881 = vmul.f32 %v7878, 0.001953125
    %v7882 = vmul.f32 %v7881, %v7881
    %v7884 = vrot.slane %v7882, 7
    %v7886 = vsub.f32 %v7881, %v7884
    %v7887 = vmax.f32 %v7886, 0.0
    %v7888 = vld [vmem:[%s7] sm:$0x1]
    %v7889 = vadd.f32 %v7887, 1e-05
    %v7890 = vrsqrt.pop %v7889
    %v7893 = vunpack.c.l.s4 1966171168
    %v7894 = vunpack.c.0.s8 %v7893
    %v7895 = vlaneseq
    %v7896 = vshrl.u32 %v7895, 7
    %v7897 = vsub.s32 %v7894, %v7896
    %v7898 = vrot.slane %v7890, %v7897
    %v7899 = vcombine.high %v7898, %v7898
    %v7901 = vunpack.c.l.s4 1966171168
    %v7902 = vunpack.c.0.s8 %v7901
    %v7903 = vlaneseq
    %v7904 = vshrl.u32 %v7903, 7
    %v7905 = vsub.s32 %v7902, %v7904
    %v7906 = vrot.slane %v7899, %v7905
    %v7908 = vmul.f32 %v7888, %v7906
    %v7909 = vld [vmem:[%s8] sm:$0x1]
    %v7910 = vmul.f32 %v7881, %v7908
    %v7911 = vsub.f32 %v7909, %v7910
    %v7913 = vlaneseq
    %v7914 = vshrl.u32 %v7913, 7
    %v7915 = vsub.s32 0, %v7914
    %v7916 = vrot.slane %v7911, %v7915
    %v7918 = vsel %vm3955, %v7908, %v7916
    %v7920 = vsel %vm165, %v7918, 0
    %7922 = vmatprep.subr.mxu0 0.0
    %7923 = vmatpush1.msra.mxu0 0.0
    %7924 = vmatprep.subr.mxu0 0.0
    %7925 = vmatpush1.msra.mxu0 0.0
    %7926 = vmatprep.subr.mxu0 0.0
    %7927 = vmatpush1.msra.mxu0 0.0
    %7928 = vmatprep.subr.mxu0 0.0
    %7929 = vmatpush1.msra.mxu0 0.0
    %7930 = vmatprep.subr.mxu0 0.0
    %7931 = vmatpush1.msra.mxu0 0.0
    %7932 = vmatprep.subr.mxu0 0.0
    %7933 = vmatpush1.msra.mxu0 0.0
    %7934 = vmatprep.subr.mxu0 0.0
    %7935 = vmatpush1.msra.mxu0 0.0
    %7936 = vmatprep.subr.mxu0 0.0
    %7937 = vmatpush1.msra.mxu0 0.0
    %7938 = vmatprep.subr.mxu0 0.0
    %7939 = vmatpush1.msra.mxu0 0.0
    %7940 = vmatprep.subr.mxu0 0.0
    %7941 = vmatpush1.msra.mxu0 0.0
    %7942 = vmatprep.subr.mxu0 0.0
    %7943 = vmatpush1.msra.mxu0 0.0
    %7944 = vmatprep.subr.mxu0 0.0
    %7945 = vmatpush1.msra.mxu0 0.0
    %7946 = vmatprep.subr.mxu0 0.0
    %7947 = vmatpush1.msra.mxu0 0.0
    %7948 = vmatprep.subr.mxu0 0.0
    %7949 = vmatpush1.msra.mxu0 0.0
    %7950 = vmatprep.subr.mxu0 0.0
    %7951 = vmatpush1.msra.mxu0 0.0
    %7952 = vmatprep.subr.mxu0 0.0
    %7953 = vmatpush1.msra.mxu0 %v102
    %7954 = vmatprep.subr.mxu0 0.0
    %7955 = vmatpush2.msra.mxu0 0.0
    %7956 = vmatprep.subr.mxu0 0.0
    %7957 = vmatpush2.msra.mxu0 0.0
    %7958 = vmatprep.subr.mxu0 0.0
    %7959 = vmatpush2.msra.mxu0 0.0
    %7960 = vmatprep.subr.mxu0 0.0
    %7961 = vmatpush2.msra.mxu0 0.0
    %7962 = vmatprep.subr.mxu0 0.0
    %7963 = vmatpush2.msra.mxu0 0.0
    %7964 = vmatprep.subr.mxu0 0.0
    %7965 = vmatpush2.msra.mxu0 0.0
    %7966 = vmatprep.subr.mxu0 0.0
    %7967 = vmatpush2.msra.mxu0 0.0
    %7968 = vmatprep.subr.mxu0 0.0
    %7969 = vmatpush2.msra.mxu0 0.0
    %7970 = vmatprep.subr.mxu0 0.0
    %7971 = vmatpush2.msra.mxu0 0.0
    %7972 = vmatprep.subr.mxu0 0.0
    %7973 = vmatpush2.msra.mxu0 0.0
    %7974 = vmatprep.subr.mxu0 0.0
    %7975 = vmatpush2.msra.mxu0 0.0
    %7976 = vmatprep.subr.mxu0 0.0
    %7977 = vmatpush2.msra.mxu0 0.0
    %7978 = vmatprep.subr.mxu0 0.0
    %7979 = vmatpush2.msra.mxu0 0.0
    %7980 = vmatprep.subr.mxu0 0.0
    %7981 = vmatpush2.msra.mxu0 0.0
    %7982 = vmatprep.subr.mxu0 0.0
    %7983 = vmatpush2.msra.mxu0 0.0
    %7984 = vmatprep.subr.mxu0 0.0
    %7985 = vmatpush2.msra.mxu0 0.0
    %7986 = vmatprep.mubr.f32.mxu0 0.0
    %7987 = vmatmul.mubr.f32.gmra.mxu0 %v7920
    %v7988 = vpop.f32.mrf.mxu0
    %v7989 = vadd.f32 0.0, %v7988
    %v7990 = vpop.f32.mrf.mxu0
    %7991 = vdwg.mxu0
    %v7992 = vlaneseq
    %v7993 = vshrl.u32 %v7992, 7
    %v7994 = vsub.s32 0, %v7993
    %v7995 = vrot.slane %v7989, %v7994
    %v7996 = vmul.f32 %v7784, %v7995
    %v7997 = vmul.f32 %v7785, %v7995
    %v7998 = vmul.f32 %v7786, %v7995
    %v7999 = vmul.f32 %v7787, %v7995
    %v8000 = vlaneseq
    %v8001 = vshrl.u32 %v8000, 7
    %v8002 = vsub.s32 1, %v8001
    %v8003 = vrot.slane %v7989, %v8002
    %v8004 = vadd.f32 %v7996, %v8003
    %v8005 = vadd.f32 %v7997, %v8003
    %v8006 = vadd.f32 %v7998, %v8003
    %v8007 = vadd.f32 %v7999, %v8003
    %v8008 = vadd.f32 %v8004, %v111
    %v8009 = vadd.f32 %v8005, %v112
    %v8010 = vadd.f32 %v8006, %v113
    %v8011 = vadd.f32 %v8007, %v114
    %v8012 = vmax.f32 %v8008, 0.0
    %v8013 = vmax.f32 %v8009, 0.0
    %v8014 = vmax.f32 %v8010, 0.0
    %v8015 = vmax.f32 %v8011, 0.0
    %8016 = vst [vmem:[#allocation2] sm:$0xff] %v8012
    %8017 = vst [vmem:[#allocation2 + $0x8] sm:$0xff] %v8013
    %8018 = vst [vmem:[#allocation2 + $0x10] sm:$0xff] %v8014
    %8019 = vst [vmem:[#allocation2 + $0x18] sm:$0xff] %v8015
    // Predicated region
    $region38: #{tpu_custom_call.1} parent=1 // pred_check
      _
    $region39: #{tpu_custom_call.1} parent=1 // pred_check_branch
      %8021 = sbr.rel (0) target = $region41
    $region40: #{tpu_custom_call.1} parent=1 // pred_region
      %s8023 = ssub.s32 512, 512
      %8024 = vsyncadd [#allocation3], %s8023
      %s8025 = sshll.u32 [#allocation2], 4
      %s8026 = int_to_ptr.vmem [resolvable:$true] %s8025
      %8031 = dma.vmem_to_hbm [thread:$0]  %s8026, 512, %s9, [#allocation3], 128, 128, 8
    $region41: #{tpu_custom_call.1} parent=1 // pred_fallthru
      _
    // Predicated region
    $region42: #{tpu_custom_call.1} parent=1 // pred_check
      _
    $region43: #{tpu_custom_call.1} parent=1 // pred_check_branch
      %8033 = sbr.rel (0) target = $region45
    $region44: #{tpu_custom_call.1} parent=1 // pred_region
      %8034 = dma.done [#allocation3], 512
    $region45: #{tpu_custom_call.1} parent=1 // pred_fallthru
      _
    %8035 = vsyncpa [#allocation3], 1

</llo_original>
